<compile_context>
chip_gen: v5e
topology: v5e:2x2
jax: 0.10.0
libtpu: 0.0.40
codegen_flags: <defaults>
</compile_context>

<pallas_src>
import functools

import jax
import jax.numpy as jnp
from jax import lax
from jax.experimental import pallas as pl
from jax.experimental.pallas import tpu as pltpu


# ----------------------------------------------------------------------------
# Pallas kernel: one grid step == one batch element, channel-major (c, n) tiles.
# ----------------------------------------------------------------------------
def _agent_attn_kernel(x_ref, wq_ref, wk_ref, wv_ref, wp_ref, bias_ref,
                       dwcw_ref, pool_ref, mask_ref, pb1_ref, ab1_ref,
                       out_ref, *, num_heads, head_dim, scale, w):
    f32 = jnp.float32
    bf16 = jnp.bfloat16
    c = num_heads * head_dim

    x = x_ref[0]                                  # (c, n) f32 == shortcut
    n = x.shape[1]
    xb = x.astype(bf16)

    bq = bias_ref[:, 0:1]                         # (c, 1) channel biases
    bk = bias_ref[:, 1:2]
    bv = bias_ref[:, 2:3]
    bdwc = bias_ref[:, 3:4]
    bp = bias_ref[:, 4:5]

    # ---- qkv projections (channel-major): q = Wq^T @ x  -> (c, n) ------------
    q = jnp.dot(wq_ref[...], xb, preferred_element_type=f32) + bq
    k = jnp.dot(wk_ref[...], xb, preferred_element_type=f32) + bk
    v = jnp.dot(wv_ref[...], xb, preferred_element_type=f32) + bv
    qb, kb, vb = q.astype(bf16), k.astype(bf16), v.astype(bf16)

    # ---- agent tokens (A, c) = pool @ q^T, softmax scale folded in once ------
    agent_t = lax.dot_general(pool_ref[...], qb, (((1,), (1,)), ((), ())),
                              preferred_element_type=f32)               # (A, c)
    a_t = (agent_t * scale).astype(bf16)

    # ---- depthwise 3x3 conv (padding=1, groups=c) on v: lane rolls + masks ---
    # out[ch, p] = sum_{di,dj} w[ch, t] * v[ch, p + di*w + dj]  (zero pad);
    # roll wrap-around / row-crossing of the +-1 column taps is killed by the
    # precomputed lane-dense (9, 1, n) validity masks.
    dwc = jnp.zeros((c, n), f32)
    t = 0
    for di in (-1, 0, 1):
        for dj in (-1, 0, 1):
            tap_w = dwcw_ref[:, t:t + 1]                                 # (c, 1)
            s = di * w + dj
            if s == 0:
                dwc = dwc + v * tap_w
            else:
                shifted = pltpu.roll(v, shift=(-s) % n, axis=1)          # out[p]=v[p+s]
                dwc = dwc + (shifted * mask_ref[t]) * tap_w
            t += 1
    dwc = dwc + bdwc

    # ---- two-stage agent attention, per head (all score tensors lane-dense) --
    head_outs = []
    for hd_i in range(num_heads):
        sl = slice(hd_i * head_dim, (hd_i + 1) * head_dim)
        qh, kh, vh = qb[sl, :], kb[sl, :], vb[sl, :]                     # (d, n)
        ah = a_t[:, sl]                                                  # (A, d)

        # stage 1: agent_attn = softmax((scale*A) @ K^T + pb1)           (A, n)
        s1 = jnp.dot(ah, kh, preferred_element_type=f32) + pb1_ref[hd_i]
        s1 = s1 - jnp.max(s1, axis=-1, keepdims=True)
        e1 = jnp.exp(s1)
        p1 = (e1 / jnp.sum(e1, axis=-1, keepdims=True)).astype(bf16)

        # agent_v^T = V @ agent_attn^T                                    (d, A)
        agent_v = lax.dot_general(vh, p1, (((1,), (1,)), ((), ())),
                                  preferred_element_type=f32)

        # stage 2 (transposed): q_attn^T = softmax_A((scale*A) @ Q^T + ab1)  (A, n)
        s2 = jnp.dot(ah, qh, preferred_element_type=f32) + ab1_ref[hd_i]
        s2 = s2 - jnp.max(s2, axis=0, keepdims=True)
        e2 = jnp.exp(s2)
        p2 = (e2 / jnp.sum(e2, axis=0, keepdims=True)).astype(bf16)

        # head_out^T = agent_v^T @ q_attn^T                               (d, n)
        head_outs.append(jnp.dot(agent_v.astype(bf16), p2,
                                 preferred_element_type=f32))

    attn = jnp.concatenate(head_outs, axis=0)                            # (c, n)

    # ---- ONE fused output projection over (attention + dwc) ------------------
    acc = (attn + dwc).astype(bf16)
    y = jnp.dot(wp_ref[...], acc, preferred_element_type=f32) + bp       # (c, n)

    # ---- sigmoid gate with the shortcut ---------------------------------------
    out_ref[0] = x * jax.nn.sigmoid(y)


# ----------------------------------------------------------------------------
# Host-side constant builders (cached): bilinear resize (PyTorch align_corners=
# False), adaptive-pool matrix, depthwise-conv tap-validity masks.
# ----------------------------------------------------------------------------
@functools.lru_cache(maxsize=None)
def _resize_coeffs(in_size, out_size):
    s = (jnp.arange(out_size, dtype=jnp.float32) + 0.5) * (in_size / out_size) - 0.5
    s = jnp.maximum(s, 0.0)
    i0 = jnp.clip(jnp.floor(s).astype(jnp.int32), 0, in_size - 1)
    i1 = jnp.clip(i0 + 1, 0, in_size - 1)
    return i0, i1, s - i0.astype(jnp.float32)


def bilinear_resize(img, oh, ow):
    """F.interpolate(img, size=(oh, ow), mode='bilinear') on (..., H, W)."""
    H, W = img.shape[-2], img.shape[-1]
    r0, r1, fr = _resize_coeffs(H, oh)
    c0, c1, fc = _resize_coeffs(W, ow)
    g = lambda ri, ci: img[..., ri[:, None], ci[None, :]]
    wr, wc = fr[:, None], fc[None, :]
    return (g(r0, c0) * (1 - wr) * (1 - wc) + g(r0, c1) * (1 - wr) * wc +
            g(r1, c0) * wr * (1 - wc) + g(r1, c1) * wr * wc)


@functools.lru_cache(maxsize=None)
def adaptive_pool_matrix(h, w, ph, pw):
    """(ph*pw, h*w) matrix M s.t. M @ flat(x) == AdaptiveAvgPool2d((ph, pw))."""
    mat = [[0.0] * (h * w) for _ in range(ph * pw)]
    for ai in range(ph):
        hs, he = (ai * h) // ph, ((ai + 1) * h + ph - 1) // ph
        for aj in range(pw):
            ws, we = (aj * w) // pw, ((aj + 1) * w + pw - 1) // pw
            inv = 1.0 / ((he - hs) * (we - ws))
            for r in range(hs, he):
                for cc in range(ws, we):
                    mat[ai * pw + aj][r * w + cc] = inv
    return jnp.array(mat, jnp.float32)


@functools.lru_cache(maxsize=None)
def conv_tap_masks(h, w):
    """Lane-dense (9, 1, h*w) 0/1 masks: tap (di, dj) valid at pixel p iff its
    source pixel (row+di, col+dj) lies inside the image (zero padding)."""
    n = h * w
    r = jnp.arange(n, dtype=jnp.int32) // w
    col = jnp.arange(n, dtype=jnp.int32) % w
    masks = []
    for di in (-1, 0, 1):
        for dj in (-1, 0, 1):
            valid = ((r + di >= 0) & (r + di < h) &
                     (col + dj >= 0) & (col + dj < w))
            masks.append(valid.astype(jnp.float32))
    return jnp.stack(masks).reshape(9, 1, n)


def _pick_vmem_limit(resident_bytes):
    """Residency-derived VMEM budget, capped per chip generation."""
    cap = 128 * 1024 * 1024
    try:
        cap = int(getattr(pltpu.get_tpu_info(), "vmem_capacity_bytes", cap)) or cap
    except Exception:
        pass
    ceiling = max((3 * cap) // 4, 32 * 1024 * 1024)   # ~48 MiB v7x, ~96 MiB v5e/v6e
    want = max(32 * 1024 * 1024, 2 * int(resident_bytes))
    return int(min(want, ceiling))


# ----------------------------------------------------------------------------
# Wrapper: NCHW in / NCHW out.  No data transposes — only reshapes.
# ----------------------------------------------------------------------------
def agent_attention(x_nchw, params, num_heads, agent_num):
    b, c, h, w = x_nchw.shape
    n = h * w
    head_dim = c // num_heads
    scale = head_dim ** -0.5
    pool_size = int(agent_num ** 0.5)
    bf16 = jnp.bfloat16

    x_cn = x_nchw.reshape(b, c, n)                                     # channel-major

    # qkv weights split + transposed (q = Wq^T @ x); wproj transposed; all bf16.
    wqkv = params["wqkv"]
    wq_t = wqkv[:, 0 * c:1 * c].T.astype(bf16)
    wk_t = wqkv[:, 1 * c:2 * c].T.astype(bf16)
    wv_t = wqkv[:, 2 * c:3 * c].T.astype(bf16)
    wp_t = params["wproj"].T.astype(bf16)

    # Column-bundled channel biases: [bq | bk | bv | b_dwc | b_proj]  (c, 5) f32.
    bqkv = params["bqkv"][0]
    bias_bundle = jnp.stack([bqkv[0 * c:1 * c], bqkv[1 * c:2 * c], bqkv[2 * c:3 * c],
                             params["dwcb"][0], params["bproj"][0]], axis=1)

    dwcw_cm = params["dwcw"].T.astype(jnp.float32)                     # (c, 9)
    pool_m = adaptive_pool_matrix(h, w, pool_size, pool_size).astype(bf16)   # (A, n)
    masks = conv_tap_masks(h, w)                                       # (9, 1, n) f32
    pb1 = bilinear_resize(params["an_bias"], h, w).reshape(
        num_heads, agent_num, n).astype(bf16)                          # (nh, A, n)
    # ab1 kept un-permuted ((nh, A, n)) — stage 2 is computed transposed in-kernel.
    ab1 = bilinear_resize(params["na_bias"], h, w).reshape(
        num_heads, agent_num, n).astype(bf16)

    const_operands = (wq_t, wk_t, wv_t, wp_t, bias_bundle, dwcw_cm,
                      pool_m, masks, pb1, ab1)

    kernel = functools.partial(_agent_attn_kernel, num_heads=num_heads,
                               head_dim=head_dim, scale=scale, w=w)

    # VMEM budget: constants + double-buffered x/out tiles + in-kernel intermediates.
    const_bytes = sum(int(a.nbytes) for a in const_operands)
    tile_bytes = c * n * 4
    resident = 2 * const_bytes + 4 * tile_bytes + 12 * tile_bytes
    vmem_limit = _pick_vmem_limit(resident)

    flops = int(b * (8 * n * c * c + 10 * agent_num * n * c + 30 * n * c))
    transcendentals = int(b * (2 * num_heads * agent_num * n + n * c))
    bytes_accessed = int(2 * x_cn.nbytes + const_bytes)
    cost = pl.CostEstimate(flops=flops, transcendentals=transcendentals,
                           bytes_accessed=bytes_accessed)

    def run(single_buffer_consts):
        def const_spec(a):
            zeros = (0,) * a.ndim
            kwargs = {}
            if single_buffer_consts:
                # Constant index map -> double buffering is pure VMEM waste.
                kwargs["pipeline_mode"] = pl.Buffered(1)
            return pl.BlockSpec(a.shape, lambda i: zeros, **kwargs)

        call = pl.pallas_call(
            kernel,
            out_shape=jax.ShapeDtypeStruct((b, c, n), jnp.float32),
            grid=(b,),
            in_specs=[pl.BlockSpec((1, c, n), lambda i: (i, 0, 0))] +
                     [const_spec(a) for a in const_operands],
            out_specs=pl.BlockSpec((1, c, n), lambda i: (i, 0, 0)),
            compiler_params=pltpu.CompilerParams(
                dimension_semantics=("parallel",),
                vmem_limit_bytes=vmem_limit),
            cost_estimate=cost,
        )
        return jax.block_until_ready(call(x_cn, *const_operands))

    try:
        out = run(True)
    except Exception:
        # This JAX build rejects pipeline_mode / Buffered(1): fall back to the
        # default double-buffered constant operands (correctness unchanged).
        out = run(False)

    return out.reshape(b, c, h, w)


# ----------------------------------------------------------------------------
# Pure-JAX f32 reference (mirrors the PyTorch forward) for a correctness check.
# ----------------------------------------------------------------------------
def reference(x_nchw, params, num_heads, agent_num):
    b, c, h, w = x_nchw.shape
    n = h * w
    hd = c // num_heads
    scale = hd ** -0.5
    ps = int(agent_num ** 0.5)

    x = jnp.transpose(x_nchw, (0, 2, 3, 1)).reshape(b, n, c)
    qkv = x @ params["wqkv"] + params["bqkv"]
    q, k, v = qkv[..., :c], qkv[..., c:2 * c], qkv[..., 2 * c:]
    pool = adaptive_pool_matrix(h, w, ps, ps)
    agent = jnp.einsum("an,bnc->bac", pool, q)

    qh = q.reshape(b, n, num_heads, hd).transpose(0, 2, 1, 3)
    kh = k.reshape(b, n, num_heads, hd).transpose(0, 2, 1, 3)
    vh = v.reshape(b, n, num_heads, hd).transpose(0, 2, 1, 3)
    ah = agent.reshape(b, agent_num, num_heads, hd).transpose(0, 2, 1, 3)

    pb1 = bilinear_resize(params["an_bias"], h, w).reshape(num_heads, agent_num, n)
    ab1 = jnp.transpose(
        bilinear_resize(params["na_bias"], h, w).reshape(num_heads, agent_num, n),
        (0, 2, 1))

    p1 = jax.nn.softmax(scale * jnp.einsum("bhad,bhnd->bhan", ah, kh) + pb1[None], -1)
    agent_v = jnp.einsum("bhan,bhnd->bhad", p1, vh)
    p2 = jax.nn.softmax(scale * jnp.einsum("bhnd,bhad->bhna", qh, ah) + ab1[None], -1)
    xa = jnp.einsum("bhna,bhad->bhnd", p2, agent_v).transpose(0, 2, 1, 3).reshape(b, n, c)

    v2 = v.reshape(b, h, w, c)
    vp = jnp.pad(v2, ((0, 0), (1, 1), (1, 1), (0, 0)))
    dwcw = params["dwcw"].reshape(3, 3, c)
    dwc = sum(vp[:, di:di + h, dj:dj + w, :] * dwcw[di, dj]
              for di in range(3) for dj in range(3)) + params["dwcb"]

    y = (xa + dwc.reshape(b, n, c)) @ params["wproj"] + params["bproj"]
    return jnp.transpose((x * jax.nn.sigmoid(y)).reshape(b, h, w, c), (0, 3, 1, 2))


# ----------------------------------------------------------------------------
if __name__ == "__main__":
    dim, num_heads, agent_num = 32, 4, 16          # head_dim = 8, pool 4x4
    b, h, w = 2, 16, 16                            # n = 256 (lane-dense)

    key = jax.random.PRNGKey(0)
    ks = jax.random.split(key, 9)
    params = {
        "wqkv": jax.random.normal(ks[0], (dim, 3 * dim), jnp.float32) * 0.05,
        "bqkv": jax.random.normal(ks[1], (1, 3 * dim), jnp.float32) * 0.02,
        "wproj": jax.random.normal(ks[2], (dim, dim), jnp.float32) * 0.05,
        "bproj": jax.random.normal(ks[3], (1, dim), jnp.float32) * 0.02,
        "dwcw": jax.random.normal(ks[4], (9, dim), jnp.float32) * 0.1,     # (3*3, c)
        "dwcb": jax.random.normal(ks[5], (1, dim), jnp.float32) * 0.02,
        "an_bias": jax.random.normal(ks[6], (num_heads, agent_num, 7, 7),
                                     jnp.float32) * 0.02,
        "na_bias": jax.random.normal(ks[7], (num_heads, agent_num, 7, 7),
                                     jnp.float32) * 0.02,
    }
    x = jax.random.normal(ks[8], (b, dim, h, w), jnp.float32)              # NCHW

    y = agent_attention(x, params, num_heads, agent_num)
    y = jax.block_until_ready(y)

    y_ref = reference(x, params, num_heads, agent_num)
    max_err = float(jnp.max(jnp.abs(y - y_ref)))
    # bf16 matmul operands (f32 accumulation) -> looser tolerance than pure f32.
    assert jnp.allclose(y, y_ref, atol=1e-2, rtol=1e-2), f"max_err={max_err}"

    print("KERNEL_OK")
</pallas_src>

<mosaic_0001>
module attributes {stable_mosaic.version = 11 : i64} {
  func.func @_agent_attn_kernel(%arg0: i32, %arg1: memref<1x32x256xf32, #tpu.memory_space<vmem>>, %arg2: memref<32x32xbf16, #tpu.memory_space<vmem>>, %arg3: memref<32x32xbf16, #tpu.memory_space<vmem>>, %arg4: memref<32x32xbf16, #tpu.memory_space<vmem>>, %arg5: memref<32x32xbf16, #tpu.memory_space<vmem>>, %arg6: memref<32x5xf32, #tpu.memory_space<vmem>>, %arg7: memref<32x9xf32, #tpu.memory_space<vmem>>, %arg8: memref<16x256xbf16, #tpu.memory_space<vmem>>, %arg9: memref<9x1x256xf32, #tpu.memory_space<vmem>>, %arg10: memref<4x16x256xbf16, #tpu.memory_space<vmem>>, %arg11: memref<4x16x256xbf16, #tpu.memory_space<vmem>>, %arg12: memref<1x32x256xf32, #tpu.memory_space<vmem>>) attributes {dimension_semantics = [#tpu.dimension_semantics<parallel>], iteration_bounds = array<i64: 2>, scalar_prefetch = 0 : i64, scratch_operands = 0 : i64, tpu.core_type = #tpu.core_type<tc>, window_params = [{transform_indices = @transform_0, window_bounds = array<i64: 1, 32, 256>}, {pipeline_mode = #tpu.pipeline_mode<synchronous>, transform_indices = @transform_1, window_bounds = array<i64: 32, 32>}, {pipeline_mode = #tpu.pipeline_mode<synchronous>, transform_indices = @transform_2, window_bounds = array<i64: 32, 32>}, {pipeline_mode = #tpu.pipeline_mode<synchronous>, transform_indices = @transform_3, window_bounds = array<i64: 32, 32>}, {pipeline_mode = #tpu.pipeline_mode<synchronous>, transform_indices = @transform_4, window_bounds = array<i64: 32, 32>}, {pipeline_mode = #tpu.pipeline_mode<synchronous>, transform_indices = @transform_5, window_bounds = array<i64: 32, 5>}, {pipeline_mode = #tpu.pipeline_mode<synchronous>, transform_indices = @transform_6, window_bounds = array<i64: 32, 9>}, {pipeline_mode = #tpu.pipeline_mode<synchronous>, transform_indices = @transform_7, window_bounds = array<i64: 16, 256>}, {pipeline_mode = #tpu.pipeline_mode<synchronous>, transform_indices = @transform_8, window_bounds = array<i64: 9, 1, 256>}, {pipeline_mode = #tpu.pipeline_mode<synchronous>, transform_indices = @transform_9, window_bounds = array<i64: 4, 16, 256>}, {pipeline_mode = #tpu.pipeline_mode<synchronous>, transform_indices = @transform_10, window_bounds = array<i64: 4, 16, 256>}, {transform_indices = @transform_11, window_bounds = array<i64: 1, 32, 256>}]} {
    %c0 = arith.constant 0 : index
    %c0_0 = arith.constant 0 : index
    %c0_1 = arith.constant 0 : index
    %0 = vector.load %arg1[%c0, %c0_0, %c0_1] : memref<1x32x256xf32, #tpu.memory_space<vmem>>, vector<1x32x256xf32>
    %1 = vector.shape_cast %0 : vector<1x32x256xf32> to vector<32x256xf32>
    %2 = arith.truncf %1 : vector<32x256xf32> to vector<32x256xbf16>
    %c0_2 = arith.constant 0 : index
    %c0_3 = arith.constant 0 : index
    %3 = vector.load %arg6[%c0_2, %c0_3] : memref<32x5xf32, #tpu.memory_space<vmem>>, vector<32x1xf32>
    %c0_4 = arith.constant 0 : index
    %c1 = arith.constant 1 : index
    %4 = vector.load %arg6[%c0_4, %c1] : memref<32x5xf32, #tpu.memory_space<vmem>>, vector<32x1xf32>
    %c0_5 = arith.constant 0 : index
    %c2 = arith.constant 2 : index
    %5 = vector.load %arg6[%c0_5, %c2] : memref<32x5xf32, #tpu.memory_space<vmem>>, vector<32x1xf32>
    %c0_6 = arith.constant 0 : index
    %c3 = arith.constant 3 : index
    %6 = vector.load %arg6[%c0_6, %c3] : memref<32x5xf32, #tpu.memory_space<vmem>>, vector<32x1xf32>
    %c0_7 = arith.constant 0 : index
    %c4 = arith.constant 4 : index
    %7 = vector.load %arg6[%c0_7, %c4] : memref<32x5xf32, #tpu.memory_space<vmem>>, vector<32x1xf32>
    %c0_8 = arith.constant 0 : index
    %c0_9 = arith.constant 0 : index
    %8 = vector.load %arg2[%c0_8, %c0_9] : memref<32x32xbf16, #tpu.memory_space<vmem>>, vector<32x32xbf16>
    %cst = arith.constant dense<0.000000e+00> : vector<32x256xf32>
    %9 = tpu.matmul %8, %2, %cst {dimension_numbers = #tpu.dot_dimension_numbers<[1], [0], [0], [1], [0, 0, 1, 1], [], []>} : vector<32x32xbf16>, vector<32x256xbf16>, vector<32x256xf32> -> vector<32x256xf32>
    %10 = vector.broadcast %3 : vector<32x1xf32> to vector<32x256xf32>
    %11 = arith.addf %9, %10 : vector<32x256xf32>
    %c0_10 = arith.constant 0 : index
    %c0_11 = arith.constant 0 : index
    %12 = vector.load %arg3[%c0_10, %c0_11] : memref<32x32xbf16, #tpu.memory_space<vmem>>, vector<32x32xbf16>
    %cst_12 = arith.constant dense<0.000000e+00> : vector<32x256xf32>
    %13 = tpu.matmul %12, %2, %cst_12 {dimension_numbers = #tpu.dot_dimension_numbers<[1], [0], [0], [1], [0, 0, 1, 1], [], []>} : vector<32x32xbf16>, vector<32x256xbf16>, vector<32x256xf32> -> vector<32x256xf32>
    %14 = vector.broadcast %4 : vector<32x1xf32> to vector<32x256xf32>
    %15 = arith.addf %13, %14 : vector<32x256xf32>
    %c0_13 = arith.constant 0 : index
    %c0_14 = arith.constant 0 : index
    %16 = vector.load %arg4[%c0_13, %c0_14] : memref<32x32xbf16, #tpu.memory_space<vmem>>, vector<32x32xbf16>
    %cst_15 = arith.constant dense<0.000000e+00> : vector<32x256xf32>
    %17 = tpu.matmul %16, %2, %cst_15 {dimension_numbers = #tpu.dot_dimension_numbers<[1], [0], [0], [1], [0, 0, 1, 1], [], []>} : vector<32x32xbf16>, vector<32x256xbf16>, vector<32x256xf32> -> vector<32x256xf32>
    %18 = vector.broadcast %5 : vector<32x1xf32> to vector<32x256xf32>
    %19 = arith.addf %17, %18 : vector<32x256xf32>
    %20 = arith.truncf %11 : vector<32x256xf32> to vector<32x256xbf16>
    %21 = arith.truncf %15 : vector<32x256xf32> to vector<32x256xbf16>
    %22 = arith.truncf %19 : vector<32x256xf32> to vector<32x256xbf16>
    %c0_16 = arith.constant 0 : index
    %c0_17 = arith.constant 0 : index
    %23 = vector.load %arg8[%c0_16, %c0_17] : memref<16x256xbf16, #tpu.memory_space<vmem>>, vector<16x256xbf16>
    %cst_18 = arith.constant dense<0.000000e+00> : vector<16x32xf32>
    %24 = tpu.matmul %23, %20, %cst_18 {dimension_numbers = #tpu.dot_dimension_numbers<[1], [1], [0], [0], [0, 0, 1, 0], [], []>} : vector<16x256xbf16>, vector<32x256xbf16>, vector<16x32xf32> -> vector<16x32xf32>
    %cst_19 = arith.constant 0.353553385 : f32
    %25 = vector.broadcast %cst_19 : f32 to vector<16x32xf32>
    %26 = arith.mulf %24, %25 : vector<16x32xf32>
    %27 = arith.truncf %26 : vector<16x32xf32> to vector<16x32xbf16>
    %cst_20 = arith.constant 0.000000e+00 : f32
    %28 = vector.broadcast %cst_20 : f32 to vector<32x256xf32>
    %c0_21 = arith.constant 0 : index
    %c0_22 = arith.constant 0 : index
    %29 = vector.load %arg7[%c0_21, %c0_22] : memref<32x9xf32, #tpu.memory_space<vmem>>, vector<32x1xf32>
    %c17_i32 = arith.constant 17 : i32
    %30 = tpu.dynamic_rotate %19 by %c17_i32 dim 1 : vector<32x256xf32>, i32 -> vector<32x256xf32>
    %c0_23 = arith.constant 0 : index
    %c0_24 = arith.constant 0 : index
    %c0_25 = arith.constant 0 : index
    %31 = vector.load %arg9[%c0_23, %c0_24, %c0_25] : memref<9x1x256xf32, #tpu.memory_space<vmem>>, vector<1x1x256xf32>
    %32 = vector.shape_cast %31 : vector<1x1x256xf32> to vector<1x256xf32>
    %33 = vector.broadcast %32 : vector<1x256xf32> to vector<32x256xf32>
    %34 = arith.mulf %30, %33 : vector<32x256xf32>
    %35 = vector.broadcast %29 : vector<32x1xf32> to vector<32x256xf32>
    %36 = arith.mulf %34, %35 : vector<32x256xf32>
    %37 = arith.addf %28, %36 : vector<32x256xf32>
    %c0_26 = arith.constant 0 : index
    %c1_27 = arith.constant 1 : index
    %38 = vector.load %arg7[%c0_26, %c1_27] : memref<32x9xf32, #tpu.memory_space<vmem>>, vector<32x1xf32>
    %c16_i32 = arith.constant 16 : i32
    %39 = tpu.dynamic_rotate %19 by %c16_i32 dim 1 : vector<32x256xf32>, i32 -> vector<32x256xf32>
    %c1_28 = arith.constant 1 : index
    %c0_29 = arith.constant 0 : index
    %c0_30 = arith.constant 0 : index
    %40 = vector.load %arg9[%c1_28, %c0_29, %c0_30] : memref<9x1x256xf32, #tpu.memory_space<vmem>>, vector<1x1x256xf32>
    %41 = vector.shape_cast %40 : vector<1x1x256xf32> to vector<1x256xf32>
    %42 = vector.broadcast %41 : vector<1x256xf32> to vector<32x256xf32>
    %43 = arith.mulf %39, %42 : vector<32x256xf32>
    %44 = vector.broadcast %38 : vector<32x1xf32> to vector<32x256xf32>
    %45 = arith.mulf %43, %44 : vector<32x256xf32>
    %46 = arith.addf %37, %45 : vector<32x256xf32>
    %c0_31 = arith.constant 0 : index
    %c2_32 = arith.constant 2 : index
    %47 = vector.load %arg7[%c0_31, %c2_32] : memref<32x9xf32, #tpu.memory_space<vmem>>, vector<32x1xf32>
    %c15_i32 = arith.constant 15 : i32
    %48 = tpu.dynamic_rotate %19 by %c15_i32 dim 1 : vector<32x256xf32>, i32 -> vector<32x256xf32>
    %c2_33 = arith.constant 2 : index
    %c0_34 = arith.constant 0 : index
    %c0_35 = arith.constant 0 : index
    %49 = vector.load %arg9[%c2_33, %c0_34, %c0_35] : memref<9x1x256xf32, #tpu.memory_space<vmem>>, vector<1x1x256xf32>
    %50 = vector.shape_cast %49 : vector<1x1x256xf32> to vector<1x256xf32>
    %51 = vector.broadcast %50 : vector<1x256xf32> to vector<32x256xf32>
    %52 = arith.mulf %48, %51 : vector<32x256xf32>
    %53 = vector.broadcast %47 : vector<32x1xf32> to vector<32x256xf32>
    %54 = arith.mulf %52, %53 : vector<32x256xf32>
    %55 = arith.addf %46, %54 : vector<32x256xf32>
    %c0_36 = arith.constant 0 : index
    %c3_37 = arith.constant 3 : index
    %56 = vector.load %arg7[%c0_36, %c3_37] : memref<32x9xf32, #tpu.memory_space<vmem>>, vector<32x1xf32>
    %c1_i32 = arith.constant 1 : i32
    %57 = tpu.dynamic_rotate %19 by %c1_i32 dim 1 : vector<32x256xf32>, i32 -> vector<32x256xf32>
    %c3_38 = arith.constant 3 : index
    %c0_39 = arith.constant 0 : index
    %c0_40 = arith.constant 0 : index
    %58 = vector.load %arg9[%c3_38, %c0_39, %c0_40] : memref<9x1x256xf32, #tpu.memory_space<vmem>>, vector<1x1x256xf32>
    %59 = vector.shape_cast %58 : vector<1x1x256xf32> to vector<1x256xf32>
    %60 = vector.broadcast %59 : vector<1x256xf32> to vector<32x256xf32>
    %61 = arith.mulf %57, %60 : vector<32x256xf32>
    %62 = vector.broadcast %56 : vector<32x1xf32> to vector<32x256xf32>
    %63 = arith.mulf %61, %62 : vector<32x256xf32>
    %64 = arith.addf %55, %63 : vector<32x256xf32>
    %c0_41 = arith.constant 0 : index
    %c4_42 = arith.constant 4 : index
    %65 = vector.load %arg7[%c0_41, %c4_42] : memref<32x9xf32, #tpu.memory_space<vmem>>, vector<32x1xf32>
    %66 = vector.broadcast %65 : vector<32x1xf32> to vector<32x256xf32>
    %67 = arith.mulf %19, %66 : vector<32x256xf32>
    %68 = arith.addf %64, %67 : vector<32x256xf32>
    %c0_43 = arith.constant 0 : index
    %c5 = arith.constant 5 : index
    %69 = vector.load %arg7[%c0_43, %c5] : memref<32x9xf32, #tpu.memory_space<vmem>>, vector<32x1xf32>
    %c255_i32 = arith.constant 255 : i32
    %70 = tpu.dynamic_rotate %19 by %c255_i32 dim 1 : vector<32x256xf32>, i32 -> vector<32x256xf32>
    %c5_44 = arith.constant 5 : index
    %c0_45 = arith.constant 0 : index
    %c0_46 = arith.constant 0 : index
    %71 = vector.load %arg9[%c5_44, %c0_45, %c0_46] : memref<9x1x256xf32, #tpu.memory_space<vmem>>, vector<1x1x256xf32>
    %72 = vector.shape_cast %71 : vector<1x1x256xf32> to vector<1x256xf32>
    %73 = vector.broadcast %72 : vector<1x256xf32> to vector<32x256xf32>
    %74 = arith.mulf %70, %73 : vector<32x256xf32>
    %75 = vector.broadcast %69 : vector<32x1xf32> to vector<32x256xf32>
    %76 = arith.mulf %74, %75 : vector<32x256xf32>
    %77 = arith.addf %68, %76 : vector<32x256xf32>
    %c0_47 = arith.constant 0 : index
    %c6 = arith.constant 6 : index
    %78 = vector.load %arg7[%c0_47, %c6] : memref<32x9xf32, #tpu.memory_space<vmem>>, vector<32x1xf32>
    %c241_i32 = arith.constant 241 : i32
    %79 = tpu.dynamic_rotate %19 by %c241_i32 dim 1 : vector<32x256xf32>, i32 -> vector<32x256xf32>
    %c6_48 = arith.constant 6 : index
    %c0_49 = arith.constant 0 : index
    %c0_50 = arith.constant 0 : index
    %80 = vector.load %arg9[%c6_48, %c0_49, %c0_50] : memref<9x1x256xf32, #tpu.memory_space<vmem>>, vector<1x1x256xf32>
    %81 = vector.shape_cast %80 : vector<1x1x256xf32> to vector<1x256xf32>
    %82 = vector.broadcast %81 : vector<1x256xf32> to vector<32x256xf32>
    %83 = arith.mulf %79, %82 : vector<32x256xf32>
    %84 = vector.broadcast %78 : vector<32x1xf32> to vector<32x256xf32>
    %85 = arith.mulf %83, %84 : vector<32x256xf32>
    %86 = arith.addf %77, %85 : vector<32x256xf32>
    %c0_51 = arith.constant 0 : index
    %c7 = arith.constant 7 : index
    %87 = vector.load %arg7[%c0_51, %c7] : memref<32x9xf32, #tpu.memory_space<vmem>>, vector<32x1xf32>
    %c240_i32 = arith.constant 240 : i32
    %88 = tpu.dynamic_rotate %19 by %c240_i32 dim 1 : vector<32x256xf32>, i32 -> vector<32x256xf32>
    %c7_52 = arith.constant 7 : index
    %c0_53 = arith.constant 0 : index
    %c0_54 = arith.constant 0 : index
    %89 = vector.load %arg9[%c7_52, %c0_53, %c0_54] : memref<9x1x256xf32, #tpu.memory_space<vmem>>, vector<1x1x256xf32>
    %90 = vector.shape_cast %89 : vector<1x1x256xf32> to vector<1x256xf32>
    %91 = vector.broadcast %90 : vector<1x256xf32> to vector<32x256xf32>
    %92 = arith.mulf %88, %91 : vector<32x256xf32>
    %93 = vector.broadcast %87 : vector<32x1xf32> to vector<32x256xf32>
    %94 = arith.mulf %92, %93 : vector<32x256xf32>
    %95 = arith.addf %86, %94 : vector<32x256xf32>
    %c0_55 = arith.constant 0 : index
    %c8 = arith.constant 8 : index
    %96 = vector.load %arg7[%c0_55, %c8] : memref<32x9xf32, #tpu.memory_space<vmem>>, vector<32x1xf32>
    %c239_i32 = arith.constant 239 : i32
    %97 = tpu.dynamic_rotate %19 by %c239_i32 dim 1 : vector<32x256xf32>, i32 -> vector<32x256xf32>
    %c8_56 = arith.constant 8 : index
    %c0_57 = arith.constant 0 : index
    %c0_58 = arith.constant 0 : index
    %98 = vector.load %arg9[%c8_56, %c0_57, %c0_58] : memref<9x1x256xf32, #tpu.memory_space<vmem>>, vector<1x1x256xf32>
    %99 = vector.shape_cast %98 : vector<1x1x256xf32> to vector<1x256xf32>
    %100 = vector.broadcast %99 : vector<1x256xf32> to vector<32x256xf32>
    %101 = arith.mulf %97, %100 : vector<32x256xf32>
    %102 = vector.broadcast %96 : vector<32x1xf32> to vector<32x256xf32>
    %103 = arith.mulf %101, %102 : vector<32x256xf32>
    %104 = arith.addf %95, %103 : vector<32x256xf32>
    %105 = vector.broadcast %6 : vector<32x1xf32> to vector<32x256xf32>
    %106 = arith.addf %104, %105 : vector<32x256xf32>
    %107 = vector.extract_strided_slice %20 {offsets = [0, 0], sizes = [8, 256], strides = [1, 1]} : vector<32x256xbf16> to vector<8x256xbf16>
    %108 = vector.extract_strided_slice %21 {offsets = [0, 0], sizes = [8, 256], strides = [1, 1]} : vector<32x256xbf16> to vector<8x256xbf16>
    %109 = vector.extract_strided_slice %22 {offsets = [0, 0], sizes = [8, 256], strides = [1, 1]} : vector<32x256xbf16> to vector<8x256xbf16>
    %110 = vector.extract_strided_slice %27 {offsets = [0, 0], sizes = [16, 8], strides = [1, 1]} : vector<16x32xbf16> to vector<16x8xbf16>
    %cst_59 = arith.constant dense<0.000000e+00> : vector<16x256xf32>
    %111 = tpu.matmul %110, %108, %cst_59 {dimension_numbers = #tpu.dot_dimension_numbers<[1], [0], [0], [1], [0, 0, 1, 1], [], []>} : vector<16x8xbf16>, vector<8x256xbf16>, vector<16x256xf32> -> vector<16x256xf32>
    %c0_60 = arith.constant 0 : index
    %c0_61 = arith.constant 0 : index
    %c0_62 = arith.constant 0 : index
    %112 = vector.load %arg10[%c0_60, %c0_61, %c0_62] : memref<4x16x256xbf16, #tpu.memory_space<vmem>>, vector<1x16x256xbf16>
    %113 = vector.shape_cast %112 : vector<1x16x256xbf16> to vector<16x256xbf16>
    %114 = arith.extf %113 : vector<16x256xbf16> to vector<16x256xf32>
    %115 = arith.addf %111, %114 : vector<16x256xf32>
    %cst_63 = arith.constant dense<0xFF800000> : vector<16xf32>
    %116 = vector.multi_reduction <maximumf>, %115, %cst_63 [1] : vector<16x256xf32> to vector<16xf32>
    %117 = vector.shape_cast %116 : vector<16xf32> to vector<16x1xf32>
    %118 = vector.broadcast %117 : vector<16x1xf32> to vector<16x256xf32>
    %119 = arith.subf %115, %118 : vector<16x256xf32>
    %120 = math.exp %119 : vector<16x256xf32>
    %cst_64 = arith.constant dense<0.000000e+00> : vector<16xf32>
    %121 = vector.multi_reduction <add>, %120, %cst_64 [1] : vector<16x256xf32> to vector<16xf32>
    %122 = vector.shape_cast %121 : vector<16xf32> to vector<16x1xf32>
    %123 = vector.broadcast %122 : vector<16x1xf32> to vector<16x256xf32>
    %124 = arith.divf %120, %123 : vector<16x256xf32>
    %125 = arith.truncf %124 : vector<16x256xf32> to vector<16x256xbf16>
    %cst_65 = arith.constant dense<0.000000e+00> : vector<8x16xf32>
    %126 = tpu.matmul %109, %125, %cst_65 {dimension_numbers = #tpu.dot_dimension_numbers<[1], [1], [0], [0], [0, 0, 1, 0], [], []>} : vector<8x256xbf16>, vector<16x256xbf16>, vector<8x16xf32> -> vector<8x16xf32>
    %cst_66 = arith.constant dense<0.000000e+00> : vector<16x256xf32>
    %127 = tpu.matmul %110, %107, %cst_66 {dimension_numbers = #tpu.dot_dimension_numbers<[1], [0], [0], [1], [0, 0, 1, 1], [], []>} : vector<16x8xbf16>, vector<8x256xbf16>, vector<16x256xf32> -> vector<16x256xf32>
    %c0_67 = arith.constant 0 : index
    %c0_68 = arith.constant 0 : index
    %c0_69 = arith.constant 0 : index
    %128 = vector.load %arg11[%c0_67, %c0_68, %c0_69] : memref<4x16x256xbf16, #tpu.memory_space<vmem>>, vector<1x16x256xbf16>
    %129 = vector.shape_cast %128 : vector<1x16x256xbf16> to vector<16x256xbf16>
    %130 = arith.extf %129 : vector<16x256xbf16> to vector<16x256xf32>
    %131 = arith.addf %127, %130 : vector<16x256xf32>
    %cst_70 = arith.constant dense<0xFF800000> : vector<256xf32>
    %132 = vector.multi_reduction <maximumf>, %131, %cst_70 [0] : vector<16x256xf32> to vector<256xf32>
    %133 = vector.shape_cast %132 : vector<256xf32> to vector<1x256xf32>
    %134 = vector.broadcast %133 : vector<1x256xf32> to vector<16x256xf32>
    %135 = arith.subf %131, %134 : vector<16x256xf32>
    %136 = math.exp %135 : vector<16x256xf32>
    %cst_71 = arith.constant dense<0.000000e+00> : vector<256xf32>
    %137 = vector.multi_reduction <add>, %136, %cst_71 [0] : vector<16x256xf32> to vector<256xf32>
    %138 = vector.shape_cast %137 : vector<256xf32> to vector<1x256xf32>
    %139 = vector.broadcast %138 : vector<1x256xf32> to vector<16x256xf32>
    %140 = arith.divf %136, %139 : vector<16x256xf32>
    %141 = arith.truncf %140 : vector<16x256xf32> to vector<16x256xbf16>
    %142 = arith.truncf %126 : vector<8x16xf32> to vector<8x16xbf16>
    %cst_72 = arith.constant dense<0.000000e+00> : vector<8x256xf32>
    %143 = tpu.matmul %142, %141, %cst_72 {dimension_numbers = #tpu.dot_dimension_numbers<[1], [0], [0], [1], [0, 0, 1, 1], [], []>} : vector<8x16xbf16>, vector<16x256xbf16>, vector<8x256xf32> -> vector<8x256xf32>
    %144 = vector.extract_strided_slice %20 {offsets = [8, 0], sizes = [8, 256], strides = [1, 1]} : vector<32x256xbf16> to vector<8x256xbf16>
    %145 = vector.extract_strided_slice %21 {offsets = [8, 0], sizes = [8, 256], strides = [1, 1]} : vector<32x256xbf16> to vector<8x256xbf16>
    %146 = vector.extract_strided_slice %22 {offsets = [8, 0], sizes = [8, 256], strides = [1, 1]} : vector<32x256xbf16> to vector<8x256xbf16>
    %147 = vector.extract_strided_slice %27 {offsets = [0, 8], sizes = [16, 8], strides = [1, 1]} : vector<16x32xbf16> to vector<16x8xbf16>
    %cst_73 = arith.constant dense<0.000000e+00> : vector<16x256xf32>
    %148 = tpu.matmul %147, %145, %cst_73 {dimension_numbers = #tpu.dot_dimension_numbers<[1], [0], [0], [1], [0, 0, 1, 1], [], []>} : vector<16x8xbf16>, vector<8x256xbf16>, vector<16x256xf32> -> vector<16x256xf32>
    %c1_74 = arith.constant 1 : index
    %c0_75 = arith.constant 0 : index
    %c0_76 = arith.constant 0 : index
    %149 = vector.load %arg10[%c1_74, %c0_75, %c0_76] : memref<4x16x256xbf16, #tpu.memory_space<vmem>>, vector<1x16x256xbf16>
    %150 = vector.shape_cast %149 : vector<1x16x256xbf16> to vector<16x256xbf16>
    %151 = arith.extf %150 : vector<16x256xbf16> to vector<16x256xf32>
    %152 = arith.addf %148, %151 : vector<16x256xf32>
    %cst_77 = arith.constant dense<0xFF800000> : vector<16xf32>
    %153 = vector.multi_reduction <maximumf>, %152, %cst_77 [1] : vector<16x256xf32> to vector<16xf32>
    %154 = vector.shape_cast %153 : vector<16xf32> to vector<16x1xf32>
    %155 = vector.broadcast %154 : vector<16x1xf32> to vector<16x256xf32>
    %156 = arith.subf %152, %155 : vector<16x256xf32>
    %157 = math.exp %156 : vector<16x256xf32>
    %cst_78 = arith.constant dense<0.000000e+00> : vector<16xf32>
    %158 = vector.multi_reduction <add>, %157, %cst_78 [1] : vector<16x256xf32> to vector<16xf32>
    %159 = vector.shape_cast %158 : vector<16xf32> to vector<16x1xf32>
    %160 = vector.broadcast %159 : vector<16x1xf32> to vector<16x256xf32>
    %161 = arith.divf %157, %160 : vector<16x256xf32>
    %162 = arith.truncf %161 : vector<16x256xf32> to vector<16x256xbf16>
    %cst_79 = arith.constant dense<0.000000e+00> : vector<8x16xf32>
    %163 = tpu.matmul %146, %162, %cst_79 {dimension_numbers = #tpu.dot_dimension_numbers<[1], [1], [0], [0], [0, 0, 1, 0], [], []>} : vector<8x256xbf16>, vector<16x256xbf16>, vector<8x16xf32> -> vector<8x16xf32>
    %cst_80 = arith.constant dense<0.000000e+00> : vector<16x256xf32>
    %164 = tpu.matmul %147, %144, %cst_80 {dimension_numbers = #tpu.dot_dimension_numbers<[1], [0], [0], [1], [0, 0, 1, 1], [], []>} : vector<16x8xbf16>, vector<8x256xbf16>, vector<16x256xf32> -> vector<16x256xf32>
    %c1_81 = arith.constant 1 : index
    %c0_82 = arith.constant 0 : index
    %c0_83 = arith.constant 0 : index
    %165 = vector.load %arg11[%c1_81, %c0_82, %c0_83] : memref<4x16x256xbf16, #tpu.memory_space<vmem>>, vector<1x16x256xbf16>
    %166 = vector.shape_cast %165 : vector<1x16x256xbf16> to vector<16x256xbf16>
    %167 = arith.extf %166 : vector<16x256xbf16> to vector<16x256xf32>
    %168 = arith.addf %164, %167 : vector<16x256xf32>
    %cst_84 = arith.constant dense<0xFF800000> : vector<256xf32>
    %169 = vector.multi_reduction <maximumf>, %168, %cst_84 [0] : vector<16x256xf32> to vector<256xf32>
    %170 = vector.shape_cast %169 : vector<256xf32> to vector<1x256xf32>
    %171 = vector.broadcast %170 : vector<1x256xf32> to vector<16x256xf32>
    %172 = arith.subf %168, %171 : vector<16x256xf32>
    %173 = math.exp %172 : vector<16x256xf32>
    %cst_85 = arith.constant dense<0.000000e+00> : vector<256xf32>
    %174 = vector.multi_reduction <add>, %173, %cst_85 [0] : vector<16x256xf32> to vector<256xf32>
    %175 = vector.shape_cast %174 : vector<256xf32> to vector<1x256xf32>
    %176 = vector.broadcast %175 : vector<1x256xf32> to vector<16x256xf32>
    %177 = arith.divf %173, %176 : vector<16x256xf32>
    %178 = arith.truncf %177 : vector<16x256xf32> to vector<16x256xbf16>
    %179 = arith.truncf %163 : vector<8x16xf32> to vector<8x16xbf16>
    %cst_86 = arith.constant dense<0.000000e+00> : vector<8x256xf32>
    %180 = tpu.matmul %179, %178, %cst_86 {dimension_numbers = #tpu.dot_dimension_numbers<[1], [0], [0], [1], [0, 0, 1, 1], [], []>} : vector<8x16xbf16>, vector<16x256xbf16>, vector<8x256xf32> -> vector<8x256xf32>
    %181 = vector.extract_strided_slice %20 {offsets = [16, 0], sizes = [8, 256], strides = [1, 1]} : vector<32x256xbf16> to vector<8x256xbf16>
    %182 = vector.extract_strided_slice %21 {offsets = [16, 0], sizes = [8, 256], strides = [1, 1]} : vector<32x256xbf16> to vector<8x256xbf16>
    %183 = vector.extract_strided_slice %22 {offsets = [16, 0], sizes = [8, 256], strides = [1, 1]} : vector<32x256xbf16> to vector<8x256xbf16>
    %184 = vector.extract_strided_slice %27 {offsets = [0, 16], sizes = [16, 8], strides = [1, 1]} : vector<16x32xbf16> to vector<16x8xbf16>
    %cst_87 = arith.constant dense<0.000000e+00> : vector<16x256xf32>
    %185 = tpu.matmul %184, %182, %cst_87 {dimension_numbers = #tpu.dot_dimension_numbers<[1], [0], [0], [1], [0, 0, 1, 1], [], []>} : vector<16x8xbf16>, vector<8x256xbf16>, vector<16x256xf32> -> vector<16x256xf32>
    %c2_88 = arith.constant 2 : index
    %c0_89 = arith.constant 0 : index
    %c0_90 = arith.constant 0 : index
    %186 = vector.load %arg10[%c2_88, %c0_89, %c0_90] : memref<4x16x256xbf16, #tpu.memory_space<vmem>>, vector<1x16x256xbf16>
    %187 = vector.shape_cast %186 : vector<1x16x256xbf16> to vector<16x256xbf16>
    %188 = arith.extf %187 : vector<16x256xbf16> to vector<16x256xf32>
    %189 = arith.addf %185, %188 : vector<16x256xf32>
    %cst_91 = arith.constant dense<0xFF800000> : vector<16xf32>
    %190 = vector.multi_reduction <maximumf>, %189, %cst_91 [1] : vector<16x256xf32> to vector<16xf32>
    %191 = vector.shape_cast %190 : vector<16xf32> to vector<16x1xf32>
    %192 = vector.broadcast %191 : vector<16x1xf32> to vector<16x256xf32>
    %193 = arith.subf %189, %192 : vector<16x256xf32>
    %194 = math.exp %193 : vector<16x256xf32>
    %cst_92 = arith.constant dense<0.000000e+00> : vector<16xf32>
    %195 = vector.multi_reduction <add>, %194, %cst_92 [1] : vector<16x256xf32> to vector<16xf32>
    %196 = vector.shape_cast %195 : vector<16xf32> to vector<16x1xf32>
    %197 = vector.broadcast %196 : vector<16x1xf32> to vector<16x256xf32>
    %198 = arith.divf %194, %197 : vector<16x256xf32>
    %199 = arith.truncf %198 : vector<16x256xf32> to vector<16x256xbf16>
    %cst_93 = arith.constant dense<0.000000e+00> : vector<8x16xf32>
    %200 = tpu.matmul %183, %199, %cst_93 {dimension_numbers = #tpu.dot_dimension_numbers<[1], [1], [0], [0], [0, 0, 1, 0], [], []>} : vector<8x256xbf16>, vector<16x256xbf16>, vector<8x16xf32> -> vector<8x16xf32>
    %cst_94 = arith.constant dense<0.000000e+00> : vector<16x256xf32>
    %201 = tpu.matmul %184, %181, %cst_94 {dimension_numbers = #tpu.dot_dimension_numbers<[1], [0], [0], [1], [0, 0, 1, 1], [], []>} : vector<16x8xbf16>, vector<8x256xbf16>, vector<16x256xf32> -> vector<16x256xf32>
    %c2_95 = arith.constant 2 : index
    %c0_96 = arith.constant 0 : index
    %c0_97 = arith.constant 0 : index
    %202 = vector.load %arg11[%c2_95, %c0_96, %c0_97] : memref<4x16x256xbf16, #tpu.memory_space<vmem>>, vector<1x16x256xbf16>
    %203 = vector.shape_cast %202 : vector<1x16x256xbf16> to vector<16x256xbf16>
    %204 = arith.extf %203 : vector<16x256xbf16> to vector<16x256xf32>
    %205 = arith.addf %201, %204 : vector<16x256xf32>
    %cst_98 = arith.constant dense<0xFF800000> : vector<256xf32>
    %206 = vector.multi_reduction <maximumf>, %205, %cst_98 [0] : vector<16x256xf32> to vector<256xf32>
    %207 = vector.shape_cast %206 : vector<256xf32> to vector<1x256xf32>
    %208 = vector.broadcast %207 : vector<1x256xf32> to vector<16x256xf32>
    %209 = arith.subf %205, %208 : vector<16x256xf32>
    %210 = math.exp %209 : vector<16x256xf32>
    %cst_99 = arith.constant dense<0.000000e+00> : vector<256xf32>
    %211 = vector.multi_reduction <add>, %210, %cst_99 [0] : vector<16x256xf32> to vector<256xf32>
    %212 = vector.shape_cast %211 : vector<256xf32> to vector<1x256xf32>
    %213 = vector.broadcast %212 : vector<1x256xf32> to vector<16x256xf32>
    %214 = arith.divf %210, %213 : vector<16x256xf32>
    %215 = arith.truncf %214 : vector<16x256xf32> to vector<16x256xbf16>
    %216 = arith.truncf %200 : vector<8x16xf32> to vector<8x16xbf16>
    %cst_100 = arith.constant dense<0.000000e+00> : vector<8x256xf32>
    %217 = tpu.matmul %216, %215, %cst_100 {dimension_numbers = #tpu.dot_dimension_numbers<[1], [0], [0], [1], [0, 0, 1, 1], [], []>} : vector<8x16xbf16>, vector<16x256xbf16>, vector<8x256xf32> -> vector<8x256xf32>
    %218 = vector.extract_strided_slice %20 {offsets = [24, 0], sizes = [8, 256], strides = [1, 1]} : vector<32x256xbf16> to vector<8x256xbf16>
    %219 = vector.extract_strided_slice %21 {offsets = [24, 0], sizes = [8, 256], strides = [1, 1]} : vector<32x256xbf16> to vector<8x256xbf16>
    %220 = vector.extract_strided_slice %22 {offsets = [24, 0], sizes = [8, 256], strides = [1, 1]} : vector<32x256xbf16> to vector<8x256xbf16>
    %221 = vector.extract_strided_slice %27 {offsets = [0, 24], sizes = [16, 8], strides = [1, 1]} : vector<16x32xbf16> to vector<16x8xbf16>
    %cst_101 = arith.constant dense<0.000000e+00> : vector<16x256xf32>
    %222 = tpu.matmul %221, %219, %cst_101 {dimension_numbers = #tpu.dot_dimension_numbers<[1], [0], [0], [1], [0, 0, 1, 1], [], []>} : vector<16x8xbf16>, vector<8x256xbf16>, vector<16x256xf32> -> vector<16x256xf32>
    %c3_102 = arith.constant 3 : index
    %c0_103 = arith.constant 0 : index
    %c0_104 = arith.constant 0 : index
    %223 = vector.load %arg10[%c3_102, %c0_103, %c0_104] : memref<4x16x256xbf16, #tpu.memory_space<vmem>>, vector<1x16x256xbf16>
    %224 = vector.shape_cast %223 : vector<1x16x256xbf16> to vector<16x256xbf16>
    %225 = arith.extf %224 : vector<16x256xbf16> to vector<16x256xf32>
    %226 = arith.addf %222, %225 : vector<16x256xf32>
    %cst_105 = arith.constant dense<0xFF800000> : vector<16xf32>
    %227 = vector.multi_reduction <maximumf>, %226, %cst_105 [1] : vector<16x256xf32> to vector<16xf32>
    %228 = vector.shape_cast %227 : vector<16xf32> to vector<16x1xf32>
    %229 = vector.broadcast %228 : vector<16x1xf32> to vector<16x256xf32>
    %230 = arith.subf %226, %229 : vector<16x256xf32>
    %231 = math.exp %230 : vector<16x256xf32>
    %cst_106 = arith.constant dense<0.000000e+00> : vector<16xf32>
    %232 = vector.multi_reduction <add>, %231, %cst_106 [1] : vector<16x256xf32> to vector<16xf32>
    %233 = vector.shape_cast %232 : vector<16xf32> to vector<16x1xf32>
    %234 = vector.broadcast %233 : vector<16x1xf32> to vector<16x256xf32>
    %235 = arith.divf %231, %234 : vector<16x256xf32>
    %236 = arith.truncf %235 : vector<16x256xf32> to vector<16x256xbf16>
    %cst_107 = arith.constant dense<0.000000e+00> : vector<8x16xf32>
    %237 = tpu.matmul %220, %236, %cst_107 {dimension_numbers = #tpu.dot_dimension_numbers<[1], [1], [0], [0], [0, 0, 1, 0], [], []>} : vector<8x256xbf16>, vector<16x256xbf16>, vector<8x16xf32> -> vector<8x16xf32>
    %cst_108 = arith.constant dense<0.000000e+00> : vector<16x256xf32>
    %238 = tpu.matmul %221, %218, %cst_108 {dimension_numbers = #tpu.dot_dimension_numbers<[1], [0], [0], [1], [0, 0, 1, 1], [], []>} : vector<16x8xbf16>, vector<8x256xbf16>, vector<16x256xf32> -> vector<16x256xf32>
    %c3_109 = arith.constant 3 : index
    %c0_110 = arith.constant 0 : index
    %c0_111 = arith.constant 0 : index
    %239 = vector.load %arg11[%c3_109, %c0_110, %c0_111] : memref<4x16x256xbf16, #tpu.memory_space<vmem>>, vector<1x16x256xbf16>
    %240 = vector.shape_cast %239 : vector<1x16x256xbf16> to vector<16x256xbf16>
    %241 = arith.extf %240 : vector<16x256xbf16> to vector<16x256xf32>
    %242 = arith.addf %238, %241 : vector<16x256xf32>
    %cst_112 = arith.constant dense<0xFF800000> : vector<256xf32>
    %243 = vector.multi_reduction <maximumf>, %242, %cst_112 [0] : vector<16x256xf32> to vector<256xf32>
    %244 = vector.shape_cast %243 : vector<256xf32> to vector<1x256xf32>
    %245 = vector.broadcast %244 : vector<1x256xf32> to vector<16x256xf32>
    %246 = arith.subf %242, %245 : vector<16x256xf32>
    %247 = math.exp %246 : vector<16x256xf32>
    %cst_113 = arith.constant dense<0.000000e+00> : vector<256xf32>
    %248 = vector.multi_reduction <add>, %247, %cst_113 [0] : vector<16x256xf32> to vector<256xf32>
    %249 = vector.shape_cast %248 : vector<256xf32> to vector<1x256xf32>
    %250 = vector.broadcast %249 : vector<1x256xf32> to vector<16x256xf32>
    %251 = arith.divf %247, %250 : vector<16x256xf32>
    %252 = arith.truncf %251 : vector<16x256xf32> to vector<16x256xbf16>
    %253 = arith.truncf %237 : vector<8x16xf32> to vector<8x16xbf16>
    %cst_114 = arith.constant dense<0.000000e+00> : vector<8x256xf32>
    %254 = tpu.matmul %253, %252, %cst_114 {dimension_numbers = #tpu.dot_dimension_numbers<[1], [0], [0], [1], [0, 0, 1, 1], [], []>} : vector<8x16xbf16>, vector<16x256xbf16>, vector<8x256xf32> -> vector<8x256xf32>
    %255 = tpu.concatenate %143, %180, %217, %254 in 0 : vector<8x256xf32>, vector<8x256xf32>, vector<8x256xf32>, vector<8x256xf32> -> vector<32x256xf32>
    %256 = arith.addf %255, %106 : vector<32x256xf32>
    %257 = arith.truncf %256 : vector<32x256xf32> to vector<32x256xbf16>
    %c0_115 = arith.constant 0 : index
    %c0_116 = arith.constant 0 : index
    %258 = vector.load %arg5[%c0_115, %c0_116] : memref<32x32xbf16, #tpu.memory_space<vmem>>, vector<32x32xbf16>
    %cst_117 = arith.constant dense<0.000000e+00> : vector<32x256xf32>
    %259 = tpu.matmul %258, %257, %cst_117 {dimension_numbers = #tpu.dot_dimension_numbers<[1], [0], [0], [1], [0, 0, 1, 1], [], []>} : vector<32x32xbf16>, vector<32x256xbf16>, vector<32x256xf32> -> vector<32x256xf32>
    %260 = vector.broadcast %7 : vector<32x1xf32> to vector<32x256xf32>
    %261 = arith.addf %259, %260 : vector<32x256xf32>
    %262 = arith.negf %261 : vector<32x256xf32>
    %263 = math.exp %262 : vector<32x256xf32>
    %cst_118 = arith.constant 1.000000e+00 : f32
    %264 = vector.broadcast %cst_118 : f32 to vector<32x256xf32>
    %265 = arith.addf %264, %263 : vector<32x256xf32>
    %266 = arith.divf %264, %265 : vector<32x256xf32>
    %267 = arith.mulf %1, %266 : vector<32x256xf32>
    %c0_119 = arith.constant 0 : index
    %c0_120 = arith.constant 0 : index
    %c0_121 = arith.constant 0 : index
    %268 = vector.load %arg12[%c0_119, %c0_120, %c0_121] : memref<1x32x256xf32, #tpu.memory_space<vmem>>, vector<1x32x256xf32>
    %269 = vector.shape_cast %268 : vector<1x32x256xf32> to vector<32x256xf32>
    %270 = vector.shape_cast %267 : vector<32x256xf32> to vector<1x32x256xf32>
    tpu.vector_store %arg12[%c0_119, %c0_120, %c0_121], %270 {strides = array<i32>} : memref<1x32x256xf32, #tpu.memory_space<vmem>>, vector<1x32x256xf32>,
    return
  }
  func.func @transform_0(%arg0: i32) -> (i32, i32, i32) {
    %c0_i32 = arith.constant 0 : i32
    %c0_i32_0 = arith.constant 0 : i32
    %c0_i32_1 = arith.constant 0 : i32
    return %arg0, %c0_i32, %c0_i32_0 : i32, i32, i32
  }
  func.func @transform_1(%arg0: i32) -> (i32, i32) {
    %c0_i32 = arith.constant 0 : i32
    %c0_i32_0 = arith.constant 0 : i32
    %c0_i32_1 = arith.constant 0 : i32
    return %c0_i32, %c0_i32_0 : i32, i32
  }
  func.func @transform_2(%arg0: i32) -> (i32, i32) {
    %c0_i32 = arith.constant 0 : i32
    %c0_i32_0 = arith.constant 0 : i32
    %c0_i32_1 = arith.constant 0 : i32
    return %c0_i32, %c0_i32_0 : i32, i32
  }
  func.func @transform_3(%arg0: i32) -> (i32, i32) {
    %c0_i32 = arith.constant 0 : i32
    %c0_i32_0 = arith.constant 0 : i32
    %c0_i32_1 = arith.constant 0 : i32
    return %c0_i32, %c0_i32_0 : i32, i32
  }
  func.func @transform_4(%arg0: i32) -> (i32, i32) {
    %c0_i32 = arith.constant 0 : i32
    %c0_i32_0 = arith.constant 0 : i32
    %c0_i32_1 = arith.constant 0 : i32
    return %c0_i32, %c0_i32_0 : i32, i32
  }
  func.func @transform_5(%arg0: i32) -> (i32, i32) {
    %c0_i32 = arith.constant 0 : i32
    %c0_i32_0 = arith.constant 0 : i32
    %c0_i32_1 = arith.constant 0 : i32
    return %c0_i32, %c0_i32_0 : i32, i32
  }
  func.func @transform_6(%arg0: i32) -> (i32, i32) {
    %c0_i32 = arith.constant 0 : i32
    %c0_i32_0 = arith.constant 0 : i32
    %c0_i32_1 = arith.constant 0 : i32
    return %c0_i32, %c0_i32_0 : i32, i32
  }
  func.func @transform_7(%arg0: i32) -> (i32, i32) {
    %c0_i32 = arith.constant 0 : i32
    %c0_i32_0 = arith.constant 0 : i32
    %c0_i32_1 = arith.constant 0 : i32
    return %c0_i32, %c0_i32_0 : i32, i32
  }
  func.func @transform_8(%arg0: i32) -> (i32, i32, i32) {
    %c0_i32 = arith.constant 0 : i32
    %c0_i32_0 = arith.constant 0 : i32
    %c0_i32_1 = arith.constant 0 : i32
    %c0_i32_2 = arith.constant 0 : i32
    return %c0_i32, %c0_i32_0, %c0_i32_1 : i32, i32, i32
  }
  func.func @transform_9(%arg0: i32) -> (i32, i32, i32) {
    %c0_i32 = arith.constant 0 : i32
    %c0_i32_0 = arith.constant 0 : i32
    %c0_i32_1 = arith.constant 0 : i32
    %c0_i32_2 = arith.constant 0 : i32
    return %c0_i32, %c0_i32_0, %c0_i32_1 : i32, i32, i32
  }
  func.func @transform_10(%arg0: i32) -> (i32, i32, i32) {
    %c0_i32 = arith.constant 0 : i32
    %c0_i32_0 = arith.constant 0 : i32
    %c0_i32_1 = arith.constant 0 : i32
    %c0_i32_2 = arith.constant 0 : i32
    return %c0_i32, %c0_i32_0, %c0_i32_1 : i32, i32, i32
  }
  func.func @transform_11(%arg0: i32) -> (i32, i32, i32) {
    %c0_i32 = arith.constant 0 : i32
    %c0_i32_0 = arith.constant 0 : i32
    %c0_i32_1 = arith.constant 0 : i32
    return %arg0, %c0_i32, %c0_i32_0 : i32, i32, i32
  }
}

module attributes {stable_mosaic.version = 11 : i64} {
  func.func @_agent_attn_kernel(%arg0: i32, %arg1: memref<1x32x256xf32, #tpu.memory_space<vmem>>, %arg2: memref<32x32xbf16, #tpu.memory_space<vmem>>, %arg3: memref<32x32xbf16, #tpu.memory_space<vmem>>, %arg4: memref<32x32xbf16, #tpu.memory_space<vmem>>, %arg5: memref<32x32xbf16, #tpu.memory_space<vmem>>, %arg6: memref<32x5xf32, #tpu.memory_space<vmem>>, %arg7: memref<32x9xf32, #tpu.memory_space<vmem>>, %arg8: memref<16x256xbf16, #tpu.memory_space<vmem>>, %arg9: memref<9x1x256xf32, #tpu.memory_space<vmem>>, %arg10: memref<4x16x256xbf16, #tpu.memory_space<vmem>>, %arg11: memref<4x16x256xbf16, #tpu.memory_space<vmem>>, %arg12: memref<1x32x256xf32, #tpu.memory_space<vmem>>) attributes {dimension_semantics = [#tpu.dimension_semantics<parallel>], iteration_bounds = array<i64: 2>, scalar_prefetch = 0 : i64, scratch_operands = 0 : i64, tpu.core_type = #tpu.core_type<tc>, window_params = [{transform_indices = @transform_0, window_bounds = array<i64: 1, 32, 256>}, {pipeline_mode = #tpu.pipeline_mode<synchronous>, transform_indices = @transform_1, window_bounds = array<i64: 32, 32>}, {pipeline_mode = #tpu.pipeline_mode<synchronous>, transform_indices = @transform_2, window_bounds = array<i64: 32, 32>}, {pipeline_mode = #tpu.pipeline_mode<synchronous>, transform_indices = @transform_3, window_bounds = array<i64: 32, 32>}, {pipeline_mode = #tpu.pipeline_mode<synchronous>, transform_indices = @transform_4, window_bounds = array<i64: 32, 32>}, {pipeline_mode = #tpu.pipeline_mode<synchronous>, transform_indices = @transform_5, window_bounds = array<i64: 32, 5>}, {pipeline_mode = #tpu.pipeline_mode<synchronous>, transform_indices = @transform_6, window_bounds = array<i64: 32, 9>}, {pipeline_mode = #tpu.pipeline_mode<synchronous>, transform_indices = @transform_7, window_bounds = array<i64: 16, 256>}, {pipeline_mode = #tpu.pipeline_mode<synchronous>, transform_indices = @transform_8, window_bounds = array<i64: 9, 1, 256>}, {pipeline_mode = #tpu.pipeline_mode<synchronous>, transform_indices = @transform_9, window_bounds = array<i64: 4, 16, 256>}, {pipeline_mode = #tpu.pipeline_mode<synchronous>, transform_indices = @transform_10, window_bounds = array<i64: 4, 16, 256>}, {transform_indices = @transform_11, window_bounds = array<i64: 1, 32, 256>}]} {
    %c0 = arith.constant 0 : index
    %c0_0 = arith.constant 0 : index
    %c0_1 = arith.constant 0 : index
    %0 = vector.load %arg1[%c0, %c0_0, %c0_1] : memref<1x32x256xf32, #tpu.memory_space<vmem>>, vector<1x32x256xf32>
    %1 = vector.shape_cast %0 : vector<1x32x256xf32> to vector<32x256xf32>
    %2 = arith.truncf %1 : vector<32x256xf32> to vector<32x256xbf16>
    %c0_2 = arith.constant 0 : index
    %c0_3 = arith.constant 0 : index
    %3 = vector.load %arg6[%c0_2, %c0_3] : memref<32x5xf32, #tpu.memory_space<vmem>>, vector<32x1xf32>
    %c0_4 = arith.constant 0 : index
    %c1 = arith.constant 1 : index
    %4 = vector.load %arg6[%c0_4, %c1] : memref<32x5xf32, #tpu.memory_space<vmem>>, vector<32x1xf32>
    %c0_5 = arith.constant 0 : index
    %c2 = arith.constant 2 : index
    %5 = vector.load %arg6[%c0_5, %c2] : memref<32x5xf32, #tpu.memory_space<vmem>>, vector<32x1xf32>
    %c0_6 = arith.constant 0 : index
    %c3 = arith.constant 3 : index
    %6 = vector.load %arg6[%c0_6, %c3] : memref<32x5xf32, #tpu.memory_space<vmem>>, vector<32x1xf32>
    %c0_7 = arith.constant 0 : index
    %c4 = arith.constant 4 : index
    %7 = vector.load %arg6[%c0_7, %c4] : memref<32x5xf32, #tpu.memory_space<vmem>>, vector<32x1xf32>
    %c0_8 = arith.constant 0 : index
    %c0_9 = arith.constant 0 : index
    %8 = vector.load %arg2[%c0_8, %c0_9] : memref<32x32xbf16, #tpu.memory_space<vmem>>, vector<32x32xbf16>
    %cst = arith.constant dense<0.000000e+00> : vector<32x256xf32>
    %9 = tpu.matmul %8, %2, %cst {dimension_numbers = #tpu.dot_dimension_numbers<[1], [0], [0], [1], [0, 0, 1, 1], [], []>} : vector<32x32xbf16>, vector<32x256xbf16>, vector<32x256xf32> -> vector<32x256xf32>
    %10 = vector.broadcast %3 : vector<32x1xf32> to vector<32x256xf32>
    %11 = arith.addf %9, %10 : vector<32x256xf32>
    %c0_10 = arith.constant 0 : index
    %c0_11 = arith.constant 0 : index
    %12 = vector.load %arg3[%c0_10, %c0_11] : memref<32x32xbf16, #tpu.memory_space<vmem>>, vector<32x32xbf16>
    %cst_12 = arith.constant dense<0.000000e+00> : vector<32x256xf32>
    %13 = tpu.matmul %12, %2, %cst_12 {dimension_numbers = #tpu.dot_dimension_numbers<[1], [0], [0], [1], [0, 0, 1, 1], [], []>} : vector<32x32xbf16>, vector<32x256xbf16>, vector<32x256xf32> -> vector<32x256xf32>
    %14 = vector.broadcast %4 : vector<32x1xf32> to vector<32x256xf32>
    %15 = arith.addf %13, %14 : vector<32x256xf32>
    %c0_13 = arith.constant 0 : index
    %c0_14 = arith.constant 0 : index
    %16 = vector.load %arg4[%c0_13, %c0_14] : memref<32x32xbf16, #tpu.memory_space<vmem>>, vector<32x32xbf16>
    %cst_15 = arith.constant dense<0.000000e+00> : vector<32x256xf32>
    %17 = tpu.matmul %16, %2, %cst_15 {dimension_numbers = #tpu.dot_dimension_numbers<[1], [0], [0], [1], [0, 0, 1, 1], [], []>} : vector<32x32xbf16>, vector<32x256xbf16>, vector<32x256xf32> -> vector<32x256xf32>
    %18 = vector.broadcast %5 : vector<32x1xf32> to vector<32x256xf32>
    %19 = arith.addf %17, %18 : vector<32x256xf32>
    %20 = arith.truncf %11 : vector<32x256xf32> to vector<32x256xbf16>
    %21 = arith.truncf %15 : vector<32x256xf32> to vector<32x256xbf16>
    %22 = arith.truncf %19 : vector<32x256xf32> to vector<32x256xbf16>
    %c0_16 = arith.constant 0 : index
    %c0_17 = arith.constant 0 : index
    %23 = vector.load %arg8[%c0_16, %c0_17] : memref<16x256xbf16, #tpu.memory_space<vmem>>, vector<16x256xbf16>
    %cst_18 = arith.constant dense<0.000000e+00> : vector<16x32xf32>
    %24 = tpu.matmul %23, %20, %cst_18 {dimension_numbers = #tpu.dot_dimension_numbers<[1], [1], [0], [0], [0, 0, 1, 0], [], []>} : vector<16x256xbf16>, vector<32x256xbf16>, vector<16x32xf32> -> vector<16x32xf32>
    %cst_19 = arith.constant 0.353553385 : f32
    %25 = vector.broadcast %cst_19 : f32 to vector<16x32xf32>
    %26 = arith.mulf %24, %25 : vector<16x32xf32>
    %27 = arith.truncf %26 : vector<16x32xf32> to vector<16x32xbf16>
    %cst_20 = arith.constant 0.000000e+00 : f32
    %28 = vector.broadcast %cst_20 : f32 to vector<32x256xf32>
    %c0_21 = arith.constant 0 : index
    %c0_22 = arith.constant 0 : index
    %29 = vector.load %arg7[%c0_21, %c0_22] : memref<32x9xf32, #tpu.memory_space<vmem>>, vector<32x1xf32>
    %c17_i32 = arith.constant 17 : i32
    %30 = tpu.dynamic_rotate %19 by %c17_i32 dim 1 : vector<32x256xf32>, i32 -> vector<32x256xf32>
    %c0_23 = arith.constant 0 : index
    %c0_24 = arith.constant 0 : index
    %c0_25 = arith.constant 0 : index
    %31 = vector.load %arg9[%c0_23, %c0_24, %c0_25] : memref<9x1x256xf32, #tpu.memory_space<vmem>>, vector<1x1x256xf32>
    %32 = vector.shape_cast %31 : vector<1x1x256xf32> to vector<1x256xf32>
    %33 = vector.broadcast %32 : vector<1x256xf32> to vector<32x256xf32>
    %34 = arith.mulf %30, %33 : vector<32x256xf32>
    %35 = vector.broadcast %29 : vector<32x1xf32> to vector<32x256xf32>
    %36 = arith.mulf %34, %35 : vector<32x256xf32>
    %37 = arith.addf %28, %36 : vector<32x256xf32>
    %c0_26 = arith.constant 0 : index
    %c1_27 = arith.constant 1 : index
    %38 = vector.load %arg7[%c0_26, %c1_27] : memref<32x9xf32, #tpu.memory_space<vmem>>, vector<32x1xf32>
    %c16_i32 = arith.constant 16 : i32
    %39 = tpu.dynamic_rotate %19 by %c16_i32 dim 1 : vector<32x256xf32>, i32 -> vector<32x256xf32>
    %c1_28 = arith.constant 1 : index
    %c0_29 = arith.constant 0 : index
    %c0_30 = arith.constant 0 : index
    %40 = vector.load %arg9[%c1_28, %c0_29, %c0_30] : memref<9x1x256xf32, #tpu.memory_space<vmem>>, vector<1x1x256xf32>
    %41 = vector.shape_cast %40 : vector<1x1x256xf32> to vector<1x256xf32>
    %42 = vector.broadcast %41 : vector<1x256xf32> to vector<32x256xf32>
    %43 = arith.mulf %39, %42 : vector<32x256xf32>
    %44 = vector.broadcast %38 : vector<32x1xf32> to vector<32x256xf32>
    %45 = arith.mulf %43, %44 : vector<32x256xf32>
    %46 = arith.addf %37, %45 : vector<32x256xf32>
    %c0_31 = arith.constant 0 : index
    %c2_32 = arith.constant 2 : index
    %47 = vector.load %arg7[%c0_31, %c2_32] : memref<32x9xf32, #tpu.memory_space<vmem>>, vector<32x1xf32>
    %c15_i32 = arith.constant 15 : i32
    %48 = tpu.dynamic_rotate %19 by %c15_i32 dim 1 : vector<32x256xf32>, i32 -> vector<32x256xf32>
    %c2_33 = arith.constant 2 : index
    %c0_34 = arith.constant 0 : index
    %c0_35 = arith.constant 0 : index
    %49 = vector.load %arg9[%c2_33, %c0_34, %c0_35] : memref<9x1x256xf32, #tpu.memory_space<vmem>>, vector<1x1x256xf32>
    %50 = vector.shape_cast %49 : vector<1x1x256xf32> to vector<1x256xf32>
    %51 = vector.broadcast %50 : vector<1x256xf32> to vector<32x256xf32>
    %52 = arith.mulf %48, %51 : vector<32x256xf32>
    %53 = vector.broadcast %47 : vector<32x1xf32> to vector<32x256xf32>
    %54 = arith.mulf %52, %53 : vector<32x256xf32>
    %55 = arith.addf %46, %54 : vector<32x256xf32>
    %c0_36 = arith.constant 0 : index
    %c3_37 = arith.constant 3 : index
    %56 = vector.load %arg7[%c0_36, %c3_37] : memref<32x9xf32, #tpu.memory_space<vmem>>, vector<32x1xf32>
    %c1_i32 = arith.constant 1 : i32
    %57 = tpu.dynamic_rotate %19 by %c1_i32 dim 1 : vector<32x256xf32>, i32 -> vector<32x256xf32>
    %c3_38 = arith.constant 3 : index
    %c0_39 = arith.constant 0 : index
    %c0_40 = arith.constant 0 : index
    %58 = vector.load %arg9[%c3_38, %c0_39, %c0_40] : memref<9x1x256xf32, #tpu.memory_space<vmem>>, vector<1x1x256xf32>
    %59 = vector.shape_cast %58 : vector<1x1x256xf32> to vector<1x256xf32>
    %60 = vector.broadcast %59 : vector<1x256xf32> to vector<32x256xf32>
    %61 = arith.mulf %57, %60 : vector<32x256xf32>
    %62 = vector.broadcast %56 : vector<32x1xf32> to vector<32x256xf32>
    %63 = arith.mulf %61, %62 : vector<32x256xf32>
    %64 = arith.addf %55, %63 : vector<32x256xf32>
    %c0_41 = arith.constant 0 : index
    %c4_42 = arith.constant 4 : index
    %65 = vector.load %arg7[%c0_41, %c4_42] : memref<32x9xf32, #tpu.memory_space<vmem>>, vector<32x1xf32>
    %66 = vector.broadcast %65 : vector<32x1xf32> to vector<32x256xf32>
    %67 = arith.mulf %19, %66 : vector<32x256xf32>
    %68 = arith.addf %64, %67 : vector<32x256xf32>
    %c0_43 = arith.constant 0 : index
    %c5 = arith.constant 5 : index
    %69 = vector.load %arg7[%c0_43, %c5] : memref<32x9xf32, #tpu.memory_space<vmem>>, vector<32x1xf32>
    %c255_i32 = arith.constant 255 : i32
    %70 = tpu.dynamic_rotate %19 by %c255_i32 dim 1 : vector<32x256xf32>, i32 -> vector<32x256xf32>
    %c5_44 = arith.constant 5 : index
    %c0_45 = arith.constant 0 : index
    %c0_46 = arith.constant 0 : index
    %71 = vector.load %arg9[%c5_44, %c0_45, %c0_46] : memref<9x1x256xf32, #tpu.memory_space<vmem>>, vector<1x1x256xf32>
    %72 = vector.shape_cast %71 : vector<1x1x256xf32> to vector<1x256xf32>
    %73 = vector.broadcast %72 : vector<1x256xf32> to vector<32x256xf32>
    %74 = arith.mulf %70, %73 : vector<32x256xf32>
    %75 = vector.broadcast %69 : vector<32x1xf32> to vector<32x256xf32>
    %76 = arith.mulf %74, %75 : vector<32x256xf32>
    %77 = arith.addf %68, %76 : vector<32x256xf32>
    %c0_47 = arith.constant 0 : index
    %c6 = arith.constant 6 : index
    %78 = vector.load %arg7[%c0_47, %c6] : memref<32x9xf32, #tpu.memory_space<vmem>>, vector<32x1xf32>
    %c241_i32 = arith.constant 241 : i32
    %79 = tpu.dynamic_rotate %19 by %c241_i32 dim 1 : vector<32x256xf32>, i32 -> vector<32x256xf32>
    %c6_48 = arith.constant 6 : index
    %c0_49 = arith.constant 0 : index
    %c0_50 = arith.constant 0 : index
    %80 = vector.load %arg9[%c6_48, %c0_49, %c0_50] : memref<9x1x256xf32, #tpu.memory_space<vmem>>, vector<1x1x256xf32>
    %81 = vector.shape_cast %80 : vector<1x1x256xf32> to vector<1x256xf32>
    %82 = vector.broadcast %81 : vector<1x256xf32> to vector<32x256xf32>
    %83 = arith.mulf %79, %82 : vector<32x256xf32>
    %84 = vector.broadcast %78 : vector<32x1xf32> to vector<32x256xf32>
    %85 = arith.mulf %83, %84 : vector<32x256xf32>
    %86 = arith.addf %77, %85 : vector<32x256xf32>
    %c0_51 = arith.constant 0 : index
    %c7 = arith.constant 7 : index
    %87 = vector.load %arg7[%c0_51, %c7] : memref<32x9xf32, #tpu.memory_space<vmem>>, vector<32x1xf32>
    %c240_i32 = arith.constant 240 : i32
    %88 = tpu.dynamic_rotate %19 by %c240_i32 dim 1 : vector<32x256xf32>, i32 -> vector<32x256xf32>
    %c7_52 = arith.constant 7 : index
    %c0_53 = arith.constant 0 : index
    %c0_54 = arith.constant 0 : index
    %89 = vector.load %arg9[%c7_52, %c0_53, %c0_54] : memref<9x1x256xf32, #tpu.memory_space<vmem>>, vector<1x1x256xf32>
    %90 = vector.shape_cast %89 : vector<1x1x256xf32> to vector<1x256xf32>
    %91 = vector.broadcast %90 : vector<1x256xf32> to vector<32x256xf32>
    %92 = arith.mulf %88, %91 : vector<32x256xf32>
    %93 = vector.broadcast %87 : vector<32x1xf32> to vector<32x256xf32>
    %94 = arith.mulf %92, %93 : vector<32x256xf32>
    %95 = arith.addf %86, %94 : vector<32x256xf32>
    %c0_55 = arith.constant 0 : index
    %c8 = arith.constant 8 : index
    %96 = vector.load %arg7[%c0_55, %c8] : memref<32x9xf32, #tpu.memory_space<vmem>>, vector<32x1xf32>
    %c239_i32 = arith.constant 239 : i32
    %97 = tpu.dynamic_rotate %19 by %c239_i32 dim 1 : vector<32x256xf32>, i32 -> vector<32x256xf32>
    %c8_56 = arith.constant 8 : index
    %c0_57 = arith.constant 0 : index
    %c0_58 = arith.constant 0 : index
    %98 = vector.load %arg9[%c8_56, %c0_57, %c0_58] : memref<9x1x256xf32, #tpu.memory_space<vmem>>, vector<1x1x256xf32>
    %99 = vector.shape_cast %98 : vector<1x1x256xf32> to vector<1x256xf32>
    %100 = vector.broadcast %99 : vector<1x256xf32> to vector<32x256xf32>
    %101 = arith.mulf %97, %100 : vector<32x256xf32>
    %102 = vector.broadcast %96 : vector<32x1xf32> to vector<32x256xf32>
    %103 = arith.mulf %101, %102 : vector<32x256xf32>
    %104 = arith.addf %95, %103 : vector<32x256xf32>
    %105 = vector.broadcast %6 : vector<32x1xf32> to vector<32x256xf32>
    %106 = arith.addf %104, %105 : vector<32x256xf32>
    %107 = vector.extract_strided_slice %20 {offsets = [0, 0], sizes = [8, 256], strides = [1, 1]} : vector<32x256xbf16> to vector<8x256xbf16>
    %108 = vector.extract_strided_slice %21 {offsets = [0, 0], sizes = [8, 256], strides = [1, 1]} : vector<32x256xbf16> to vector<8x256xbf16>
    %109 = vector.extract_strided_slice %22 {offsets = [0, 0], sizes = [8, 256], strides = [1, 1]} : vector<32x256xbf16> to vector<8x256xbf16>
    %110 = vector.extract_strided_slice %27 {offsets = [0, 0], sizes = [16, 8], strides = [1, 1]} : vector<16x32xbf16> to vector<16x8xbf16>
    %cst_59 = arith.constant dense<0.000000e+00> : vector<16x256xf32>
    %111 = tpu.matmul %110, %108, %cst_59 {dimension_numbers = #tpu.dot_dimension_numbers<[1], [0], [0], [1], [0, 0, 1, 1], [], []>} : vector<16x8xbf16>, vector<8x256xbf16>, vector<16x256xf32> -> vector<16x256xf32>
    %c0_60 = arith.constant 0 : index
    %c0_61 = arith.constant 0 : index
    %c0_62 = arith.constant 0 : index
    %112 = vector.load %arg10[%c0_60, %c0_61, %c0_62] : memref<4x16x256xbf16, #tpu.memory_space<vmem>>, vector<1x16x256xbf16>
    %113 = vector.shape_cast %112 : vector<1x16x256xbf16> to vector<16x256xbf16>
    %114 = arith.extf %113 : vector<16x256xbf16> to vector<16x256xf32>
    %115 = arith.addf %111, %114 : vector<16x256xf32>
    %cst_63 = arith.constant dense<0xFF800000> : vector<16xf32>
    %116 = vector.multi_reduction <maximumf>, %115, %cst_63 [1] : vector<16x256xf32> to vector<16xf32>
    %117 = vector.shape_cast %116 : vector<16xf32> to vector<16x1xf32>
    %118 = vector.broadcast %117 : vector<16x1xf32> to vector<16x256xf32>
    %119 = arith.subf %115, %118 : vector<16x256xf32>
    %120 = math.exp %119 : vector<16x256xf32>
    %cst_64 = arith.constant dense<0.000000e+00> : vector<16xf32>
    %121 = vector.multi_reduction <add>, %120, %cst_64 [1] : vector<16x256xf32> to vector<16xf32>
    %122 = vector.shape_cast %121 : vector<16xf32> to vector<16x1xf32>
    %123 = vector.broadcast %122 : vector<16x1xf32> to vector<16x256xf32>
    %124 = arith.divf %120, %123 : vector<16x256xf32>
    %125 = arith.truncf %124 : vector<16x256xf32> to vector<16x256xbf16>
    %cst_65 = arith.constant dense<0.000000e+00> : vector<8x16xf32>
    %126 = tpu.matmul %109, %125, %cst_65 {dimension_numbers = #tpu.dot_dimension_numbers<[1], [1], [0], [0], [0, 0, 1, 0], [], []>} : vector<8x256xbf16>, vector<16x256xbf16>, vector<8x16xf32> -> vector<8x16xf32>
    %cst_66 = arith.constant dense<0.000000e+00> : vector<16x256xf32>
    %127 = tpu.matmul %110, %107, %cst_66 {dimension_numbers = #tpu.dot_dimension_numbers<[1], [0], [0], [1], [0, 0, 1, 1], [], []>} : vector<16x8xbf16>, vector<8x256xbf16>, vector<16x256xf32> -> vector<16x256xf32>
    %c0_67 = arith.constant 0 : index
    %c0_68 = arith.constant 0 : index
    %c0_69 = arith.constant 0 : index
    %128 = vector.load %arg11[%c0_67, %c0_68, %c0_69] : memref<4x16x256xbf16, #tpu.memory_space<vmem>>, vector<1x16x256xbf16>
    %129 = vector.shape_cast %128 : vector<1x16x256xbf16> to vector<16x256xbf16>
    %130 = arith.extf %129 : vector<16x256xbf16> to vector<16x256xf32>
    %131 = arith.addf %127, %130 : vector<16x256xf32>
    %cst_70 = arith.constant dense<0xFF800000> : vector<256xf32>
    %132 = vector.multi_reduction <maximumf>, %131, %cst_70 [0] : vector<16x256xf32> to vector<256xf32>
    %133 = vector.shape_cast %132 : vector<256xf32> to vector<1x256xf32>
    %134 = vector.broadcast %133 : vector<1x256xf32> to vector<16x256xf32>
    %135 = arith.subf %131, %134 : vector<16x256xf32>
    %136 = math.exp %135 : vector<16x256xf32>
    %cst_71 = arith.constant dense<0.000000e+00> : vector<256xf32>
    %137 = vector.multi_reduction <add>, %136, %cst_71 [0] : vector<16x256xf32> to vector<256xf32>
    %138 = vector.shape_cast %137 : vector<256xf32> to vector<1x256xf32>
    %139 = vector.broadcast %138 : vector<1x256xf32> to vector<16x256xf32>
    %140 = arith.divf %136, %139 : vector<16x256xf32>
    %141 = arith.truncf %140 : vector<16x256xf32> to vector<16x256xbf16>
    %142 = arith.truncf %126 : vector<8x16xf32> to vector<8x16xbf16>
    %cst_72 = arith.constant dense<0.000000e+00> : vector<8x256xf32>
    %143 = tpu.matmul %142, %141, %cst_72 {dimension_numbers = #tpu.dot_dimension_numbers<[1], [0], [0], [1], [0, 0, 1, 1], [], []>} : vector<8x16xbf16>, vector<16x256xbf16>, vector<8x256xf32> -> vector<8x256xf32>
    %144 = vector.extract_strided_slice %20 {offsets = [8, 0], sizes = [8, 256], strides = [1, 1]} : vector<32x256xbf16> to vector<8x256xbf16>
    %145 = vector.extract_strided_slice %21 {offsets = [8, 0], sizes = [8, 256], strides = [1, 1]} : vector<32x256xbf16> to vector<8x256xbf16>
    %146 = vector.extract_strided_slice %22 {offsets = [8, 0], sizes = [8, 256], strides = [1, 1]} : vector<32x256xbf16> to vector<8x256xbf16>
    %147 = vector.extract_strided_slice %27 {offsets = [0, 8], sizes = [16, 8], strides = [1, 1]} : vector<16x32xbf16> to vector<16x8xbf16>
    %cst_73 = arith.constant dense<0.000000e+00> : vector<16x256xf32>
    %148 = tpu.matmul %147, %145, %cst_73 {dimension_numbers = #tpu.dot_dimension_numbers<[1], [0], [0], [1], [0, 0, 1, 1], [], []>} : vector<16x8xbf16>, vector<8x256xbf16>, vector<16x256xf32> -> vector<16x256xf32>
    %c1_74 = arith.constant 1 : index
    %c0_75 = arith.constant 0 : index
    %c0_76 = arith.constant 0 : index
    %149 = vector.load %arg10[%c1_74, %c0_75, %c0_76] : memref<4x16x256xbf16, #tpu.memory_space<vmem>>, vector<1x16x256xbf16>
    %150 = vector.shape_cast %149 : vector<1x16x256xbf16> to vector<16x256xbf16>
    %151 = arith.extf %150 : vector<16x256xbf16> to vector<16x256xf32>
    %152 = arith.addf %148, %151 : vector<16x256xf32>
    %cst_77 = arith.constant dense<0xFF800000> : vector<16xf32>
    %153 = vector.multi_reduction <maximumf>, %152, %cst_77 [1] : vector<16x256xf32> to vector<16xf32>
    %154 = vector.shape_cast %153 : vector<16xf32> to vector<16x1xf32>
    %155 = vector.broadcast %154 : vector<16x1xf32> to vector<16x256xf32>
    %156 = arith.subf %152, %155 : vector<16x256xf32>
    %157 = math.exp %156 : vector<16x256xf32>
    %cst_78 = arith.constant dense<0.000000e+00> : vector<16xf32>
    %158 = vector.multi_reduction <add>, %157, %cst_78 [1] : vector<16x256xf32> to vector<16xf32>
    %159 = vector.shape_cast %158 : vector<16xf32> to vector<16x1xf32>
    %160 = vector.broadcast %159 : vector<16x1xf32> to vector<16x256xf32>
    %161 = arith.divf %157, %160 : vector<16x256xf32>
    %162 = arith.truncf %161 : vector<16x256xf32> to vector<16x256xbf16>
    %cst_79 = arith.constant dense<0.000000e+00> : vector<8x16xf32>
    %163 = tpu.matmul %146, %162, %cst_79 {dimension_numbers = #tpu.dot_dimension_numbers<[1], [1], [0], [0], [0, 0, 1, 0], [], []>} : vector<8x256xbf16>, vector<16x256xbf16>, vector<8x16xf32> -> vector<8x16xf32>
    %cst_80 = arith.constant dense<0.000000e+00> : vector<16x256xf32>
    %164 = tpu.matmul %147, %144, %cst_80 {dimension_numbers = #tpu.dot_dimension_numbers<[1], [0], [0], [1], [0, 0, 1, 1], [], []>} : vector<16x8xbf16>, vector<8x256xbf16>, vector<16x256xf32> -> vector<16x256xf32>
    %c1_81 = arith.constant 1 : index
    %c0_82 = arith.constant 0 : index
    %c0_83 = arith.constant 0 : index
    %165 = vector.load %arg11[%c1_81, %c0_82, %c0_83] : memref<4x16x256xbf16, #tpu.memory_space<vmem>>, vector<1x16x256xbf16>
    %166 = vector.shape_cast %165 : vector<1x16x256xbf16> to vector<16x256xbf16>
    %167 = arith.extf %166 : vector<16x256xbf16> to vector<16x256xf32>
    %168 = arith.addf %164, %167 : vector<16x256xf32>
    %cst_84 = arith.constant dense<0xFF800000> : vector<256xf32>
    %169 = vector.multi_reduction <maximumf>, %168, %cst_84 [0] : vector<16x256xf32> to vector<256xf32>
    %170 = vector.shape_cast %169 : vector<256xf32> to vector<1x256xf32>
    %171 = vector.broadcast %170 : vector<1x256xf32> to vector<16x256xf32>
    %172 = arith.subf %168, %171 : vector<16x256xf32>
    %173 = math.exp %172 : vector<16x256xf32>
    %cst_85 = arith.constant dense<0.000000e+00> : vector<256xf32>
    %174 = vector.multi_reduction <add>, %173, %cst_85 [0] : vector<16x256xf32> to vector<256xf32>
    %175 = vector.shape_cast %174 : vector<256xf32> to vector<1x256xf32>
    %176 = vector.broadcast %175 : vector<1x256xf32> to vector<16x256xf32>
    %177 = arith.divf %173, %176 : vector<16x256xf32>
    %178 = arith.truncf %177 : vector<16x256xf32> to vector<16x256xbf16>
    %179 = arith.truncf %163 : vector<8x16xf32> to vector<8x16xbf16>
    %cst_86 = arith.constant dense<0.000000e+00> : vector<8x256xf32>
    %180 = tpu.matmul %179, %178, %cst_86 {dimension_numbers = #tpu.dot_dimension_numbers<[1], [0], [0], [1], [0, 0, 1, 1], [], []>} : vector<8x16xbf16>, vector<16x256xbf16>, vector<8x256xf32> -> vector<8x256xf32>
    %181 = vector.extract_strided_slice %20 {offsets = [16, 0], sizes = [8, 256], strides = [1, 1]} : vector<32x256xbf16> to vector<8x256xbf16>
    %182 = vector.extract_strided_slice %21 {offsets = [16, 0], sizes = [8, 256], strides = [1, 1]} : vector<32x256xbf16> to vector<8x256xbf16>
    %183 = vector.extract_strided_slice %22 {offsets = [16, 0], sizes = [8, 256], strides = [1, 1]} : vector<32x256xbf16> to vector<8x256xbf16>
    %184 = vector.extract_strided_slice %27 {offsets = [0, 16], sizes = [16, 8], strides = [1, 1]} : vector<16x32xbf16> to vector<16x8xbf16>
    %cst_87 = arith.constant dense<0.000000e+00> : vector<16x256xf32>
    %185 = tpu.matmul %184, %182, %cst_87 {dimension_numbers = #tpu.dot_dimension_numbers<[1], [0], [0], [1], [0, 0, 1, 1], [], []>} : vector<16x8xbf16>, vector<8x256xbf16>, vector<16x256xf32> -> vector<16x256xf32>
    %c2_88 = arith.constant 2 : index
    %c0_89 = arith.constant 0 : index
    %c0_90 = arith.constant 0 : index
    %186 = vector.load %arg10[%c2_88, %c0_89, %c0_90] : memref<4x16x256xbf16, #tpu.memory_space<vmem>>, vector<1x16x256xbf16>
    %187 = vector.shape_cast %186 : vector<1x16x256xbf16> to vector<16x256xbf16>
    %188 = arith.extf %187 : vector<16x256xbf16> to vector<16x256xf32>
    %189 = arith.addf %185, %188 : vector<16x256xf32>
    %cst_91 = arith.constant dense<0xFF800000> : vector<16xf32>
    %190 = vector.multi_reduction <maximumf>, %189, %cst_91 [1] : vector<16x256xf32> to vector<16xf32>
    %191 = vector.shape_cast %190 : vector<16xf32> to vector<16x1xf32>
    %192 = vector.broadcast %191 : vector<16x1xf32> to vector<16x256xf32>
    %193 = arith.subf %189, %192 : vector<16x256xf32>
    %194 = math.exp %193 : vector<16x256xf32>
    %cst_92 = arith.constant dense<0.000000e+00> : vector<16xf32>
    %195 = vector.multi_reduction <add>, %194, %cst_92 [1] : vector<16x256xf32> to vector<16xf32>
    %196 = vector.shape_cast %195 : vector<16xf32> to vector<16x1xf32>
    %197 = vector.broadcast %196 : vector<16x1xf32> to vector<16x256xf32>
    %198 = arith.divf %194, %197 : vector<16x256xf32>
    %199 = arith.truncf %198 : vector<16x256xf32> to vector<16x256xbf16>
    %cst_93 = arith.constant dense<0.000000e+00> : vector<8x16xf32>
    %200 = tpu.matmul %183, %199, %cst_93 {dimension_numbers = #tpu.dot_dimension_numbers<[1], [1], [0], [0], [0, 0, 1, 0], [], []>} : vector<8x256xbf16>, vector<16x256xbf16>, vector<8x16xf32> -> vector<8x16xf32>
    %cst_94 = arith.constant dense<0.000000e+00> : vector<16x256xf32>
    %201 = tpu.matmul %184, %181, %cst_94 {dimension_numbers = #tpu.dot_dimension_numbers<[1], [0], [0], [1], [0, 0, 1, 1], [], []>} : vector<16x8xbf16>, vector<8x256xbf16>, vector<16x256xf32> -> vector<16x256xf32>
    %c2_95 = arith.constant 2 : index
    %c0_96 = arith.constant 0 : index
    %c0_97 = arith.constant 0 : index
    %202 = vector.load %arg11[%c2_95, %c0_96, %c0_97] : memref<4x16x256xbf16, #tpu.memory_space<vmem>>, vector<1x16x256xbf16>
    %203 = vector.shape_cast %202 : vector<1x16x256xbf16> to vector<16x256xbf16>
    %204 = arith.extf %203 : vector<16x256xbf16> to vector<16x256xf32>
    %205 = arith.addf %201, %204 : vector<16x256xf32>
    %cst_98 = arith.constant dense<0xFF800000> : vector<256xf32>
    %206 = vector.multi_reduction <maximumf>, %205, %cst_98 [0] : vector<16x256xf32> to vector<256xf32>
    %207 = vector.shape_cast %206 : vector<256xf32> to vector<1x256xf32>
    %208 = vector.broadcast %207 : vector<1x256xf32> to vector<16x256xf32>
    %209 = arith.subf %205, %208 : vector<16x256xf32>
    %210 = math.exp %209 : vector<16x256xf32>
    %cst_99 = arith.constant dense<0.000000e+00> : vector<256xf32>
    %211 = vector.multi_reduction <add>, %210, %cst_99 [0] : vector<16x256xf32> to vector<256xf32>
    %212 = vector.shape_cast %211 : vector<256xf32> to vector<1x256xf32>
    %213 = vector.broadcast %212 : vector<1x256xf32> to vector<16x256xf32>
    %214 = arith.divf %210, %213 : vector<16x256xf32>
    %215 = arith.truncf %214 : vector<16x256xf32> to vector<16x256xbf16>
    %216 = arith.truncf %200 : vector<8x16xf32> to vector<8x16xbf16>
    %cst_100 = arith.constant dense<0.000000e+00> : vector<8x256xf32>
    %217 = tpu.matmul %216, %215, %cst_100 {dimension_numbers = #tpu.dot_dimension_numbers<[1], [0], [0], [1], [0, 0, 1, 1], [], []>} : vector<8x16xbf16>, vector<16x256xbf16>, vector<8x256xf32> -> vector<8x256xf32>
    %218 = vector.extract_strided_slice %20 {offsets = [24, 0], sizes = [8, 256], strides = [1, 1]} : vector<32x256xbf16> to vector<8x256xbf16>
    %219 = vector.extract_strided_slice %21 {offsets = [24, 0], sizes = [8, 256], strides = [1, 1]} : vector<32x256xbf16> to vector<8x256xbf16>
    %220 = vector.extract_strided_slice %22 {offsets = [24, 0], sizes = [8, 256], strides = [1, 1]} : vector<32x256xbf16> to vector<8x256xbf16>
    %221 = vector.extract_strided_slice %27 {offsets = [0, 24], sizes = [16, 8], strides = [1, 1]} : vector<16x32xbf16> to vector<16x8xbf16>
    %cst_101 = arith.constant dense<0.000000e+00> : vector<16x256xf32>
    %222 = tpu.matmul %221, %219, %cst_101 {dimension_numbers = #tpu.dot_dimension_numbers<[1], [0], [0], [1], [0, 0, 1, 1], [], []>} : vector<16x8xbf16>, vector<8x256xbf16>, vector<16x256xf32> -> vector<16x256xf32>
    %c3_102 = arith.constant 3 : index
    %c0_103 = arith.constant 0 : index
    %c0_104 = arith.constant 0 : index
    %223 = vector.load %arg10[%c3_102, %c0_103, %c0_104] : memref<4x16x256xbf16, #tpu.memory_space<vmem>>, vector<1x16x256xbf16>
    %224 = vector.shape_cast %223 : vector<1x16x256xbf16> to vector<16x256xbf16>
    %225 = arith.extf %224 : vector<16x256xbf16> to vector<16x256xf32>
    %226 = arith.addf %222, %225 : vector<16x256xf32>
    %cst_105 = arith.constant dense<0xFF800000> : vector<16xf32>
    %227 = vector.multi_reduction <maximumf>, %226, %cst_105 [1] : vector<16x256xf32> to vector<16xf32>
    %228 = vector.shape_cast %227 : vector<16xf32> to vector<16x1xf32>
    %229 = vector.broadcast %228 : vector<16x1xf32> to vector<16x256xf32>
    %230 = arith.subf %226, %229 : vector<16x256xf32>
    %231 = math.exp %230 : vector<16x256xf32>
    %cst_106 = arith.constant dense<0.000000e+00> : vector<16xf32>
    %232 = vector.multi_reduction <add>, %231, %cst_106 [1] : vector<16x256xf32> to vector<16xf32>
    %233 = vector.shape_cast %232 : vector<16xf32> to vector<16x1xf32>
    %234 = vector.broadcast %233 : vector<16x1xf32> to vector<16x256xf32>
    %235 = arith.divf %231, %234 : vector<16x256xf32>
    %236 = arith.truncf %235 : vector<16x256xf32> to vector<16x256xbf16>
    %cst_107 = arith.constant dense<0.000000e+00> : vector<8x16xf32>
    %237 = tpu.matmul %220, %236, %cst_107 {dimension_numbers = #tpu.dot_dimension_numbers<[1], [1], [0], [0], [0, 0, 1, 0], [], []>} : vector<8x256xbf16>, vector<16x256xbf16>, vector<8x16xf32> -> vector<8x16xf32>
    %cst_108 = arith.constant dense<0.000000e+00> : vector<16x256xf32>
    %238 = tpu.matmul %221, %218, %cst_108 {dimension_numbers = #tpu.dot_dimension_numbers<[1], [0], [0], [1], [0, 0, 1, 1], [], []>} : vector<16x8xbf16>, vector<8x256xbf16>, vector<16x256xf32> -> vector<16x256xf32>
    %c3_109 = arith.constant 3 : index
    %c0_110 = arith.constant 0 : index
    %c0_111 = arith.constant 0 : index
    %239 = vector.load %arg11[%c3_109, %c0_110, %c0_111] : memref<4x16x256xbf16, #tpu.memory_space<vmem>>, vector<1x16x256xbf16>
    %240 = vector.shape_cast %239 : vector<1x16x256xbf16> to vector<16x256xbf16>
    %241 = arith.extf %240 : vector<16x256xbf16> to vector<16x256xf32>
    %242 = arith.addf %238, %241 : vector<16x256xf32>
    %cst_112 = arith.constant dense<0xFF800000> : vector<256xf32>
    %243 = vector.multi_reduction <maximumf>, %242, %cst_112 [0] : vector<16x256xf32> to vector<256xf32>
    %244 = vector.shape_cast %243 : vector<256xf32> to vector<1x256xf32>
    %245 = vector.broadcast %244 : vector<1x256xf32> to vector<16x256xf32>
    %246 = arith.subf %242, %245 : vector<16x256xf32>
    %247 = math.exp %246 : vector<16x256xf32>
    %cst_113 = arith.constant dense<0.000000e+00> : vector<256xf32>
    %248 = vector.multi_reduction <add>, %247, %cst_113 [0] : vector<16x256xf32> to vector<256xf32>
    %249 = vector.shape_cast %248 : vector<256xf32> to vector<1x256xf32>
    %250 = vector.broadcast %249 : vector<1x256xf32> to vector<16x256xf32>
    %251 = arith.divf %247, %250 : vector<16x256xf32>
    %252 = arith.truncf %251 : vector<16x256xf32> to vector<16x256xbf16>
    %253 = arith.truncf %237 : vector<8x16xf32> to vector<8x16xbf16>
    %cst_114 = arith.constant dense<0.000000e+00> : vector<8x256xf32>
    %254 = tpu.matmul %253, %252, %cst_114 {dimension_numbers = #tpu.dot_dimension_numbers<[1], [0], [0], [1], [0, 0, 1, 1], [], []>} : vector<8x16xbf16>, vector<16x256xbf16>, vector<8x256xf32> -> vector<8x256xf32>
    %255 = tpu.concatenate %143, %180, %217, %254 in 0 : vector<8x256xf32>, vector<8x256xf32>, vector<8x256xf32>, vector<8x256xf32> -> vector<32x256xf32>
    %256 = arith.addf %255, %106 : vector<32x256xf32>
    %257 = arith.truncf %256 : vector<32x256xf32> to vector<32x256xbf16>
    %c0_115 = arith.constant 0 : index
    %c0_116 = arith.constant 0 : index
    %258 = vector.load %arg5[%c0_115, %c0_116] : memref<32x32xbf16, #tpu.memory_space<vmem>>, vector<32x32xbf16>
    %cst_117 = arith.constant dense<0.000000e+00> : vector<32x256xf32>
    %259 = tpu.matmul %258, %257, %cst_117 {dimension_numbers = #tpu.dot_dimension_numbers<[1], [0], [0], [1], [0, 0, 1, 1], [], []>} : vector<32x32xbf16>, vector<32x256xbf16>, vector<32x256xf32> -> vector<32x256xf32>
    %260 = vector.broadcast %7 : vector<32x1xf32> to vector<32x256xf32>
    %261 = arith.addf %259, %260 : vector<32x256xf32>
    %262 = arith.negf %261 : vector<32x256xf32>
    %263 = math.exp %262 : vector<32x256xf32>
    %cst_118 = arith.constant 1.000000e+00 : f32
    %264 = vector.broadcast %cst_118 : f32 to vector<32x256xf32>
    %265 = arith.addf %264, %263 : vector<32x256xf32>
    %266 = arith.divf %264, %265 : vector<32x256xf32>
    %267 = arith.mulf %1, %266 : vector<32x256xf32>
    %c0_119 = arith.constant 0 : index
    %c0_120 = arith.constant 0 : index
    %c0_121 = arith.constant 0 : index
    %268 = vector.load %arg12[%c0_119, %c0_120, %c0_121] : memref<1x32x256xf32, #tpu.memory_space<vmem>>, vector<1x32x256xf32>
    %269 = vector.shape_cast %268 : vector<1x32x256xf32> to vector<32x256xf32>
    %270 = vector.shape_cast %267 : vector<32x256xf32> to vector<1x32x256xf32>
    tpu.vector_store %arg12[%c0_119, %c0_120, %c0_121], %270 {strides = array<i32>} : memref<1x32x256xf32, #tpu.memory_space<vmem>>, vector<1x32x256xf32>,
    return
  }
  func.func @transform_0(%arg0: i32) -> (i32, i32, i32) {
    %c0_i32 = arith.constant 0 : i32
    %c0_i32_0 = arith.constant 0 : i32
    %c0_i32_1 = arith.constant 0 : i32
    return %arg0, %c0_i32, %c0_i32_0 : i32, i32, i32
  }
  func.func @transform_1(%arg0: i32) -> (i32, i32) {
    %c0_i32 = arith.constant 0 : i32
    %c0_i32_0 = arith.constant 0 : i32
    %c0_i32_1 = arith.constant 0 : i32
    return %c0_i32, %c0_i32_0 : i32, i32
  }
  func.func @transform_2(%arg0: i32) -> (i32, i32) {
    %c0_i32 = arith.constant 0 : i32
    %c0_i32_0 = arith.constant 0 : i32
    %c0_i32_1 = arith.constant 0 : i32
    return %c0_i32, %c0_i32_0 : i32, i32
  }
  func.func @transform_3(%arg0: i32) -> (i32, i32) {
    %c0_i32 = arith.constant 0 : i32
    %c0_i32_0 = arith.constant 0 : i32
    %c0_i32_1 = arith.constant 0 : i32
    return %c0_i32, %c0_i32_0 : i32, i32
  }
  func.func @transform_4(%arg0: i32) -> (i32, i32) {
    %c0_i32 = arith.constant 0 : i32
    %c0_i32_0 = arith.constant 0 : i32
    %c0_i32_1 = arith.constant 0 : i32
    return %c0_i32, %c0_i32_0 : i32, i32
  }
  func.func @transform_5(%arg0: i32) -> (i32, i32) {
    %c0_i32 = arith.constant 0 : i32
    %c0_i32_0 = arith.constant 0 : i32
    %c0_i32_1 = arith.constant 0 : i32
    return %c0_i32, %c0_i32_0 : i32, i32
  }
  func.func @transform_6(%arg0: i32) -> (i32, i32) {
    %c0_i32 = arith.constant 0 : i32
    %c0_i32_0 = arith.constant 0 : i32
    %c0_i32_1 = arith.constant 0 : i32
    return %c0_i32, %c0_i32_0 : i32, i32
  }
  func.func @transform_7(%arg0: i32) -> (i32, i32) {
    %c0_i32 = arith.constant 0 : i32
    %c0_i32_0 = arith.constant 0 : i32
    %c0_i32_1 = arith.constant 0 : i32
    return %c0_i32, %c0_i32_0 : i32, i32
  }
  func.func @transform_8(%arg0: i32) -> (i32, i32, i32) {
    %c0_i32 = arith.constant 0 : i32
    %c0_i32_0 = arith.constant 0 : i32
    %c0_i32_1 = arith.constant 0 : i32
    %c0_i32_2 = arith.constant 0 : i32
    return %c0_i32, %c0_i32_0, %c0_i32_1 : i32, i32, i32
  }
  func.func @transform_9(%arg0: i32) -> (i32, i32, i32) {
    %c0_i32 = arith.constant 0 : i32
    %c0_i32_0 = arith.constant 0 : i32
    %c0_i32_1 = arith.constant 0 : i32
    %c0_i32_2 = arith.constant 0 : i32
    return %c0_i32, %c0_i32_0, %c0_i32_1 : i32, i32, i32
  }
  func.func @transform_10(%arg0: i32) -> (i32, i32, i32) {
    %c0_i32 = arith.constant 0 : i32
    %c0_i32_0 = arith.constant 0 : i32
    %c0_i32_1 = arith.constant 0 : i32
    %c0_i32_2 = arith.constant 0 : i32
    return %c0_i32, %c0_i32_0, %c0_i32_1 : i32, i32, i32
  }
  func.func @transform_11(%arg0: i32) -> (i32, i32, i32) {
    %c0_i32 = arith.constant 0 : i32
    %c0_i32_0 = arith.constant 0 : i32
    %c0_i32_1 = arith.constant 0 : i32
    return %arg0, %c0_i32, %c0_i32_0 : i32, i32, i32
  }
}

</mosaic_0001>

<llo_original>
// kernel: tpu_custom_call.1
$region0: #{tpu_custom_call.1}
  #allocation0 [shape = 'u32[]', space=smem, size = 0x4, offset = 0x4, fixed_abs, tag = 'smem constant byte address 0x4 - core index']
  #allocation1 [shape = 'u32[72,128]{1,0:T(1,128)}', space=vmem, size = 0x9000, scoped, tag = 'internal scratch']
  %s0 = inlined_call_operand.hbm [shape: f32[2,32,256], index: 0, kind: input, shape index: {}]
  %s1 = inlined_call_operand.hbm [shape: bf16[32,32], index: 1, kind: input, shape index: {}]
  %s2 = inlined_call_operand.hbm [shape: bf16[32,32], index: 2, kind: input, shape index: {}]
  %s3 = inlined_call_operand.hbm [shape: bf16[32,32], index: 3, kind: input, shape index: {}]
  %s4 = inlined_call_operand.hbm [shape: bf16[32,32], index: 4, kind: input, shape index: {}]
  %s5 = inlined_call_operand.vmem [shape: f32[32,5], index: 5, kind: input, shape index: {}]
  %s6 = inlined_call_operand.vmem [shape: f32[32,9], index: 6, kind: input, shape index: {}]
  %s7 = inlined_call_operand.hbm [shape: bf16[16,256], index: 7, kind: input, shape index: {}]
  %s8 = inlined_call_operand.vmem [shape: f32[9,1,256], index: 8, kind: input, shape index: {}]
  %s9 = inlined_call_operand.vmem [shape: bf16[4,16,256], index: 9, kind: input, shape index: {}]
  %s10 = inlined_call_operand.hbm [shape: bf16[4,16,256], index: 10, kind: input, shape index: {}]
  %s11 = inlined_call_operand.hbm [shape: f32[2,32,256], index: 11, kind: output, shape index: {}]
  %s12 = sld [smem:[#allocation0]]
  $region105: #{tpu_custom_call.1} parent=0
    _
  %s14 = ssub.s32 1, %s12
  %s15 = scalar_select 0, %s14, %s12
  $region1: #{tpu_custom_call.1} parent=0
    #allocation2 [shape = 'u8[65536]{0}', space=vmem, size = 0x10000, scoped, tag = 'input window, operand 0']
    #allocation3 [shape = 's32[2]{0}', space=sflag, size = 0x8, scoped, tag = 'scoped memory for tpu_custom_call.1']
    #allocation4 [shape = 's32[2]{0}', space=sflag, size = 0x8, scoped, tag = 'scoped memory for tpu_custom_call.1']
    #allocation5 [shape = 'u8[8192]{0}', space=vmem, size = 0x2000, scoped, tag = 'input window, operand 1, single buffered']
    #allocation6 [shape = 's32[1]{0}', space=sflag, size = 0x4, scoped, tag = 'scoped memory for tpu_custom_call.1']
    #allocation7 [shape = 'u8[8192]{0}', space=vmem, size = 0x2000, scoped, tag = 'input window, operand 2, single buffered']
    #allocation8 [shape = 'u8[8192]{0}', space=vmem, size = 0x2000, scoped, tag = 'input window, operand 3, single buffered']
    #allocation9 [shape = 's32[1]{0}', space=sflag, size = 0x4, scoped, tag = 'scoped memory for tpu_custom_call.1']
    #allocation10 [shape = 'u8[8192]{0}', space=vmem, size = 0x2000, scoped, tag = 'input window, operand 4, single buffered']
    #allocation11 [shape = 'u8[8192]{0}', space=vmem, size = 0x2000, scoped, tag = 'input window, operand 7, single buffered']
    #allocation12 [shape = 's32[1]{0}', space=sflag, size = 0x4, scoped, tag = 'scoped memory for tpu_custom_call.1']
    #allocation13 [shape = 'u8[32768]{0}', space=vmem, size = 0x8000, scoped, tag = 'input window, operand 10, single buffered']
    #allocation14 [shape = 'u8[65536]{0}', space=vmem, size = 0x10000, scoped, tag = 'output window, operand 0']
    %16 = vsyncpa [#allocation3], 0
    %s17 = scalar_lea.sflag [#allocation3], 1
    %18 = vsyncpa %s17, 0
    %19 = vsyncpa [#allocation6], 0
    %20 = vsyncpa [#allocation9], 0
    %21 = vsyncpa [#allocation12], 0
    %22 = vsyncpa [#allocation4], 0
    %s23 = scalar_lea.sflag [#allocation4], 1
    %24 = vsyncpa %s23, 0
    loop: start=0, step=1, limit=4
    $region2: #{tpu_custom_call.1} parent=1 // loop_pre_header
      _
    $region3: #{tpu_custom_call.1} parent=1 // loop_header
      %s26 = sphi 0, %s30
      %p27 = scmp.ge.s32.totalorder %s26, 4
      %s36 = sphi 0, %s38
      %s39 = sphi 0, %s36
      %s40 = sphi 0, %s39
      %s56 = sphi 0, %s40
      %s60 = sphi 0, %s60
      %s62 = sphi 0, %s60
      %s63 = sphi 0, %s62
      %s77 = sphi 0, %s63
      %s81 = sphi 0, %s81
      %s83 = sphi 0, %s81
      %s84 = sphi 0, %s83
      %s98 = sphi 0, %s84
      %s102 = sphi 0, %s102
      %s104 = sphi 0, %s102
      %s105 = sphi 0, %s104
      %s119 = sphi 0, %s105
      %s123 = sphi 0, %s123
      %s125 = sphi 0, %s123
      %s126 = sphi 0, %s125
      %s140 = sphi 0, %s126
      %s144 = sphi 0, %s144
      %s146 = sphi 0, %s144
      %s147 = sphi 0, %s146
      %s161 = sphi 0, %s147
      %s165 = sphi 0, %s165
      %s167 = sphi 0, %s165
      %s168 = sphi 0, %s167
      %s182 = sphi 0, %s168
      %s186 = sphi 0, %s186
      %s188 = sphi 0, %s186
      %s189 = sphi 0, %s188
      %s203 = sphi 0, %s189
      %s207 = sphi 0, %s207
      %s209 = sphi 0, %s207
      %s210 = sphi 0, %s209
      %s224 = sphi 0, %s210
      %s228 = sphi 0, %s228
      %s230 = sphi 0, %s228
      %s231 = sphi 0, %s230
      %s245 = sphi 0, %s231
      %s249 = sphi 0, %s249
      %s251 = sphi 0, %s249
      %s252 = sphi 0, %s251
      %s266 = sphi 0, %s252
      %s272 = sphi 0, %s274
      %s275 = sphi 0, %s272
      %s276 = sphi 0, %s275
      %s292 = sphi 0, %s276
    $region4: #{tpu_custom_call.1} parent=1 // loop_header_branch
      %29 = sbr.rel (%p27) target = $region8
    $region5: #{tpu_custom_call.1} parent=1 // loop_body
      %s31 = ssub.s32 %s26, 1
      %s32 = ssub.s32 %s26, 2
      %s33 = sadd.s32 %s26, 1
      %s34 = ssub.s32 %s26, %s33
      %p35 = scmp.eq.s32.totalorder %s34, 0
      %s37 = sadd.s32 %s36, 1
      %s38 = scalar_select %p35, %s36, %s37
      %p41 = pneg %p35
      %p42 = scmp.eq.s32.totalorder %s26, 1
      %p43 = por %p41, %p42
      %p44 = scmp.ne.s32.totalorder %s36, %s39
      %p45 = scmp.eq.s32.totalorder %s26, 0
      %p46 = por %p44, %p45
      %p47 = scmp.ne.s32.totalorder %s36, %s39
      %p48 = scmp.eq.s32.totalorder %s31, 1
      %p49 = por %p47, %p48
      %p50 = scmp.ne.s32.totalorder %s39, %s40
      %p51 = scmp.eq.s32.totalorder %s31, 0
      %p52 = por %p50, %p51
      %p53 = scmp.ne.s32.totalorder %s39, %s40
      %p54 = scmp.eq.s32.totalorder %s32, 1
      %p55 = por %p53, %p54
      %p57 = scmp.ne.s32.totalorder %s40, %s56
      %p58 = scmp.eq.s32.totalorder %s32, 0
      %p59 = por %p57, %p58
      %s61 = sadd.s32 %s60, 1
      %p64 = scmp.eq.s32.totalorder %s26, 1
      %p65 = scmp.ne.s32.totalorder %s60, %s62
      %p66 = scmp.eq.s32.totalorder %s26, 0
      %p67 = por %p65, %p66
      %p68 = scmp.ne.s32.totalorder %s60, %s62
      %p69 = scmp.eq.s32.totalorder %s31, 1
      %p70 = por %p68, %p69
      %p71 = scmp.ne.s32.totalorder %s62, %s63
      %p72 = scmp.eq.s32.totalorder %s31, 0
      %p73 = por %p71, %p72
      %p74 = scmp.ne.s32.totalorder %s62, %s63
      %p75 = scmp.eq.s32.totalorder %s32, 1
      %p76 = por %p74, %p75
      %p78 = scmp.ne.s32.totalorder %s63, %s77
      %p79 = scmp.eq.s32.totalorder %s32, 0
      %p80 = por %p78, %p79
      %s82 = sadd.s32 %s81, 1
      %p85 = scmp.eq.s32.totalorder %s26, 1
      %p86 = scmp.ne.s32.totalorder %s81, %s83
      %p87 = scmp.eq.s32.totalorder %s26, 0
      %p88 = por %p86, %p87
      %p89 = scmp.ne.s32.totalorder %s81, %s83
      %p90 = scmp.eq.s32.totalorder %s31, 1
      %p91 = por %p89, %p90
      %p92 = scmp.ne.s32.totalorder %s83, %s84
      %p93 = scmp.eq.s32.totalorder %s31, 0
      %p94 = por %p92, %p93
      %p95 = scmp.ne.s32.totalorder %s83, %s84
      %p96 = scmp.eq.s32.totalorder %s32, 1
      %p97 = por %p95, %p96
      %p99 = scmp.ne.s32.totalorder %s84, %s98
      %p100 = scmp.eq.s32.totalorder %s32, 0
      %p101 = por %p99, %p100
      %s103 = sadd.s32 %s102, 1
      %p106 = scmp.eq.s32.totalorder %s26, 1
      %p107 = scmp.ne.s32.totalorder %s102, %s104
      %p108 = scmp.eq.s32.totalorder %s26, 0
      %p109 = por %p107, %p108
      %p110 = scmp.ne.s32.totalorder %s102, %s104
      %p111 = scmp.eq.s32.totalorder %s31, 1
      %p112 = por %p110, %p111
      %p113 = scmp.ne.s32.totalorder %s104, %s105
      %p114 = scmp.eq.s32.totalorder %s31, 0
      %p115 = por %p113, %p114
      %p116 = scmp.ne.s32.totalorder %s104, %s105
      %p117 = scmp.eq.s32.totalorder %s32, 1
      %p118 = por %p116, %p117
      %p120 = scmp.ne.s32.totalorder %s105, %s119
      %p121 = scmp.eq.s32.totalorder %s32, 0
      %p122 = por %p120, %p121
      %s124 = sadd.s32 %s123, 1
      %p127 = scmp.eq.s32.totalorder %s26, 1
      %p128 = scmp.ne.s32.totalorder %s123, %s125
      %p129 = scmp.eq.s32.totalorder %s26, 0
      %p130 = por %p128, %p129
      %p131 = scmp.ne.s32.totalorder %s123, %s125
      %p132 = scmp.eq.s32.totalorder %s31, 1
      %p133 = por %p131, %p132
      %p134 = scmp.ne.s32.totalorder %s125, %s126
      %p135 = scmp.eq.s32.totalorder %s31, 0
      %p136 = por %p134, %p135
      %p137 = scmp.ne.s32.totalorder %s125, %s126
      %p138 = scmp.eq.s32.totalorder %s32, 1
      %p139 = por %p137, %p138
      %p141 = scmp.ne.s32.totalorder %s126, %s140
      %p142 = scmp.eq.s32.totalorder %s32, 0
      %p143 = por %p141, %p142
      %s145 = sadd.s32 %s144, 1
      %p148 = scmp.eq.s32.totalorder %s26, 1
      %p149 = scmp.ne.s32.totalorder %s144, %s146
      %p150 = scmp.eq.s32.totalorder %s26, 0
      %p151 = por %p149, %p150
      %p152 = scmp.ne.s32.totalorder %s144, %s146
      %p153 = scmp.eq.s32.totalorder %s31, 1
      %p154 = por %p152, %p153
      %p155 = scmp.ne.s32.totalorder %s146, %s147
      %p156 = scmp.eq.s32.totalorder %s31, 0
      %p157 = por %p155, %p156
      %p158 = scmp.ne.s32.totalorder %s146, %s147
      %p159 = scmp.eq.s32.totalorder %s32, 1
      %p160 = por %p158, %p159
      %p162 = scmp.ne.s32.totalorder %s147, %s161
      %p163 = scmp.eq.s32.totalorder %s32, 0
      %p164 = por %p162, %p163
      %s166 = sadd.s32 %s165, 1
      %p169 = scmp.eq.s32.totalorder %s26, 1
      %p170 = scmp.ne.s32.totalorder %s165, %s167
      %p171 = scmp.eq.s32.totalorder %s26, 0
      %p172 = por %p170, %p171
      %p173 = scmp.ne.s32.totalorder %s165, %s167
      %p174 = scmp.eq.s32.totalorder %s31, 1
      %p175 = por %p173, %p174
      %p176 = scmp.ne.s32.totalorder %s167, %s168
      %p177 = scmp.eq.s32.totalorder %s31, 0
      %p178 = por %p176, %p177
      %p179 = scmp.ne.s32.totalorder %s167, %s168
      %p180 = scmp.eq.s32.totalorder %s32, 1
      %p181 = por %p179, %p180
      %p183 = scmp.ne.s32.totalorder %s168, %s182
      %p184 = scmp.eq.s32.totalorder %s32, 0
      %p185 = por %p183, %p184
      %s187 = sadd.s32 %s186, 1
      %p190 = scmp.eq.s32.totalorder %s26, 1
      %p191 = scmp.ne.s32.totalorder %s186, %s188
      %p192 = scmp.eq.s32.totalorder %s26, 0
      %p193 = por %p191, %p192
      %p194 = scmp.ne.s32.totalorder %s186, %s188
      %p195 = scmp.eq.s32.totalorder %s31, 1
      %p196 = por %p194, %p195
      %p197 = scmp.ne.s32.totalorder %s188, %s189
      %p198 = scmp.eq.s32.totalorder %s31, 0
      %p199 = por %p197, %p198
      %p200 = scmp.ne.s32.totalorder %s188, %s189
      %p201 = scmp.eq.s32.totalorder %s32, 1
      %p202 = por %p200, %p201
      %p204 = scmp.ne.s32.totalorder %s189, %s203
      %p205 = scmp.eq.s32.totalorder %s32, 0
      %p206 = por %p204, %p205
      %s208 = sadd.s32 %s207, 1
      %p211 = scmp.eq.s32.totalorder %s26, 1
      %p212 = scmp.ne.s32.totalorder %s207, %s209
      %p213 = scmp.eq.s32.totalorder %s26, 0
      %p214 = por %p212, %p213
      %p215 = scmp.ne.s32.totalorder %s207, %s209
      %p216 = scmp.eq.s32.totalorder %s31, 1
      %p217 = por %p215, %p216
      %p218 = scmp.ne.s32.totalorder %s209, %s210
      %p219 = scmp.eq.s32.totalorder %s31, 0
      %p220 = por %p218, %p219
      %p221 = scmp.ne.s32.totalorder %s209, %s210
      %p222 = scmp.eq.s32.totalorder %s32, 1
      %p223 = por %p221, %p222
      %p225 = scmp.ne.s32.totalorder %s210, %s224
      %p226 = scmp.eq.s32.totalorder %s32, 0
      %p227 = por %p225, %p226
      %s229 = sadd.s32 %s228, 1
      %p232 = scmp.eq.s32.totalorder %s26, 1
      %p233 = scmp.ne.s32.totalorder %s228, %s230
      %p234 = scmp.eq.s32.totalorder %s26, 0
      %p235 = por %p233, %p234
      %p236 = scmp.ne.s32.totalorder %s228, %s230
      %p237 = scmp.eq.s32.totalorder %s31, 1
      %p238 = por %p236, %p237
      %p239 = scmp.ne.s32.totalorder %s230, %s231
      %p240 = scmp.eq.s32.totalorder %s31, 0
      %p241 = por %p239, %p240
      %p242 = scmp.ne.s32.totalorder %s230, %s231
      %p243 = scmp.eq.s32.totalorder %s32, 1
      %p244 = por %p242, %p243
      %p246 = scmp.ne.s32.totalorder %s231, %s245
      %p247 = scmp.eq.s32.totalorder %s32, 0
      %p248 = por %p246, %p247
      %s250 = sadd.s32 %s249, 1
      %p253 = scmp.eq.s32.totalorder %s26, 1
      %p254 = scmp.ne.s32.totalorder %s249, %s251
      %p255 = scmp.eq.s32.totalorder %s26, 0
      %p256 = por %p254, %p255
      %p257 = scmp.ne.s32.totalorder %s249, %s251
      %p258 = scmp.eq.s32.totalorder %s31, 1
      %p259 = por %p257, %p258
      %p260 = scmp.ne.s32.totalorder %s251, %s252
      %p261 = scmp.eq.s32.totalorder %s31, 0
      %p262 = por %p260, %p261
      %p263 = scmp.ne.s32.totalorder %s251, %s252
      %p264 = scmp.eq.s32.totalorder %s32, 1
      %p265 = por %p263, %p264
      %p267 = scmp.ne.s32.totalorder %s252, %s266
      %p268 = scmp.eq.s32.totalorder %s32, 0
      %p269 = por %p267, %p268
      %s270 = ssub.s32 %s26, %s33
      %p271 = scmp.eq.s32.totalorder %s270, 0
      %s273 = sadd.s32 %s272, 1
      %s274 = scalar_select %p271, %s272, %s273
      %p277 = pneg %p271
      %p278 = scmp.eq.s32.totalorder %s26, 1
      %p279 = por %p277, %p278
      %p280 = scmp.ne.s32.totalorder %s272, %s275
      %p281 = scmp.eq.s32.totalorder %s26, 0
      %p282 = por %p280, %p281
      %p283 = scmp.ne.s32.totalorder %s272, %s275
      %p284 = scmp.eq.s32.totalorder %s31, 1
      %p285 = por %p283, %p284
      %p286 = scmp.ne.s32.totalorder %s275, %s276
      %p287 = scmp.eq.s32.totalorder %s31, 0
      %p288 = por %p286, %p287
      %p289 = scmp.ne.s32.totalorder %s275, %s276
      %p290 = scmp.eq.s32.totalorder %s32, 1
      %p291 = por %p289, %p290
      %p293 = scmp.ne.s32.totalorder %s276, %s292
      %p294 = scmp.eq.s32.totalorder %s32, 0
      %p295 = por %p293, %p294
      %p296 = scmp.le.s32.totalorder 1, %s26
      %p297 = scmp.lt.s32.totalorder %s26, 3
      %p298 = pnand %p296, %p297
      %p299 = pneg %p298
      // Predicated region
      $region9: #{tpu_custom_call.1} parent=5 // pred_check
        _
      $region10: #{tpu_custom_call.1} parent=5 // pred_check_branch
        %301 = sbr.rel (%p298) target = $region12
      $region11: #{tpu_custom_call.1} parent=5 // pred_region
        %s302 = ssub.s32 %s26, 1
        // Predicated region
        $region13: #{tpu_custom_call.1} parent=11 // pred_check
          %p303 = pneg %p73
        $region14: #{tpu_custom_call.1} parent=11 // pred_check_branch
          %305 = sbr.rel (%p303) target = $region16
        $region15: #{tpu_custom_call.1} parent=11 // pred_region
          %307 = vsyncadd [#allocation6], 0
          %s308 = sshll.u32 %s1, 4
          %s309 = int_to_ptr.hbm [resolvable:$true] %s308
          %s310 = sshll.u32 [#allocation5], 4
          %s311 = int_to_ptr.vmem [resolvable:$true] %s310
          %316 = dma.hbm_to_vmem [thread:$0]  %s309, 256, %s311, [#allocation6], 64, 64, 4
        $region16: #{tpu_custom_call.1} parent=11 // pred_fallthru
          _
        // Predicated region
        $region17: #{tpu_custom_call.1} parent=11 // pred_check
          %p317 = pneg %p94
        $region18: #{tpu_custom_call.1} parent=11 // pred_check_branch
          %319 = sbr.rel (%p317) target = $region20
        $region19: #{tpu_custom_call.1} parent=11 // pred_region
          %321 = vsyncadd [#allocation6], 0
          %s322 = sshll.u32 %s2, 4
          %s323 = int_to_ptr.hbm [resolvable:$true] %s322
          %s324 = sshll.u32 [#allocation7], 4
          %s325 = int_to_ptr.vmem [resolvable:$true] %s324
          %330 = dma.hbm_to_vmem [thread:$0]  %s323, 256, %s325, [#allocation6], 64, 64, 4
        $region20: #{tpu_custom_call.1} parent=11 // pred_fallthru
          _
        // Predicated region
        $region21: #{tpu_custom_call.1} parent=11 // pred_check
          %p331 = pneg %p115
        $region22: #{tpu_custom_call.1} parent=11 // pred_check_branch
          %333 = sbr.rel (%p331) target = $region24
        $region23: #{tpu_custom_call.1} parent=11 // pred_region
          %335 = vsyncadd [#allocation9], 0
          %s336 = sshll.u32 %s3, 4
          %s337 = int_to_ptr.hbm [resolvable:$true] %s336
          %s338 = sshll.u32 [#allocation8], 4
          %s339 = int_to_ptr.vmem [resolvable:$true] %s338
          %344 = dma.hbm_to_vmem [thread:$0]  %s337, 256, %s339, [#allocation9], 64, 64, 4
        $region24: #{tpu_custom_call.1} parent=11 // pred_fallthru
          _
        // Predicated region
        $region25: #{tpu_custom_call.1} parent=11 // pred_check
          %p345 = pneg %p136
        $region26: #{tpu_custom_call.1} parent=11 // pred_check_branch
          %347 = sbr.rel (%p345) target = $region28
        $region27: #{tpu_custom_call.1} parent=11 // pred_region
          %349 = vsyncadd [#allocation9], 0
          %s350 = sshll.u32 %s4, 4
          %s351 = int_to_ptr.hbm [resolvable:$true] %s350
          %s352 = sshll.u32 [#allocation10], 4
          %s353 = int_to_ptr.vmem [resolvable:$true] %s352
          %358 = dma.hbm_to_vmem [thread:$0]  %s351, 256, %s353, [#allocation9], 64, 64, 4
        $region28: #{tpu_custom_call.1} parent=11 // pred_fallthru
          _
        // Predicated region
        $region29: #{tpu_custom_call.1} parent=11 // pred_check
          %p359 = pneg %p157
        $region30: #{tpu_custom_call.1} parent=11 // pred_check_branch
          %361 = sbr.rel (%p359) target = $region32
        $region31: #{tpu_custom_call.1} parent=11 // pred_region
          _
        $region32: #{tpu_custom_call.1} parent=11 // pred_fallthru
          _
        // Predicated region
        $region33: #{tpu_custom_call.1} parent=11 // pred_check
          %p362 = pneg %p178
        $region34: #{tpu_custom_call.1} parent=11 // pred_check_branch
          %364 = sbr.rel (%p362) target = $region36
        $region35: #{tpu_custom_call.1} parent=11 // pred_region
          _
        $region36: #{tpu_custom_call.1} parent=11 // pred_fallthru
          _
        // Predicated region
        $region37: #{tpu_custom_call.1} parent=11 // pred_check
          %p365 = pneg %p199
        $region38: #{tpu_custom_call.1} parent=11 // pred_check_branch
          %367 = sbr.rel (%p365) target = $region40
        $region39: #{tpu_custom_call.1} parent=11 // pred_region
          %369 = vsyncadd [#allocation12], 0
          %s370 = sshll.u32 %s7, 4
          %s371 = int_to_ptr.hbm [resolvable:$true] %s370
          %s372 = sshll.u32 [#allocation11], 4
          %s373 = int_to_ptr.vmem [resolvable:$true] %s372
          %378 = dma.hbm_to_vmem [thread:$0]  %s371, 256, %s373, [#allocation12], 128, 128, 8
        $region40: #{tpu_custom_call.1} parent=11 // pred_fallthru
          _
        // Predicated region
        $region41: #{tpu_custom_call.1} parent=11 // pred_check
          %p379 = pneg %p220
        $region42: #{tpu_custom_call.1} parent=11 // pred_check_branch
          %381 = sbr.rel (%p379) target = $region44
        $region43: #{tpu_custom_call.1} parent=11 // pred_region
          _
        $region44: #{tpu_custom_call.1} parent=11 // pred_fallthru
          _
        // Predicated region
        $region45: #{tpu_custom_call.1} parent=11 // pred_check
          %p382 = pneg %p241
        $region46: #{tpu_custom_call.1} parent=11 // pred_check_branch
          %384 = sbr.rel (%p382) target = $region48
        $region47: #{tpu_custom_call.1} parent=11 // pred_region
          _
        $region48: #{tpu_custom_call.1} parent=11 // pred_fallthru
          _
        // Predicated region
        $region49: #{tpu_custom_call.1} parent=11 // pred_check
          %p385 = pneg %p262
        $region50: #{tpu_custom_call.1} parent=11 // pred_check_branch
          %387 = sbr.rel (%p385) target = $region52
        $region51: #{tpu_custom_call.1} parent=11 // pred_region
          %389 = vsyncadd [#allocation12], 0
          %s390 = sshll.u32 %s10, 4
          %s391 = int_to_ptr.hbm [resolvable:$true] %s390
          %s392 = sshll.u32 [#allocation13], 4
          %s393 = int_to_ptr.vmem [resolvable:$true] %s392
          %398 = dma.hbm_to_vmem [thread:$0]  %s391, 1024, %s393, [#allocation12], 128, 128, 8
        $region52: #{tpu_custom_call.1} parent=11 // pred_fallthru
          _
      $region12: #{tpu_custom_call.1} parent=5 // pred_fallthru
        _
      %p399 = scmp.lt.s32.totalorder %s26, 2
      // Predicated region
      $region53: #{tpu_custom_call.1} parent=5 // pred_check
        %p400 = pneg %p399
      $region54: #{tpu_custom_call.1} parent=5 // pred_check_branch
        %402 = sbr.rel (%p400) target = $region56
      $region55: #{tpu_custom_call.1} parent=5 // pred_region
        // Predicated region
        $region57: #{tpu_custom_call.1} parent=55 // pred_check
          %p403 = pneg %p46
        $region58: #{tpu_custom_call.1} parent=55 // pred_check_branch
          %405 = sbr.rel (%p403) target = $region60
        $region59: #{tpu_custom_call.1} parent=55 // pred_region
          %s406 = sand.u32 %s36, 1
          %s407 = scalar_lea.sflag [#allocation3], %s406
          %s408 = sand.u32 %s36, 1
          %s409 = smul.addr %s408, 64
          %s410 = scalar_lea.vmem [#allocation2], %s409
          %412 = vsyncadd %s407, 0
          %s413 = smul.addr %s26, 8
          %s414 = smul.addr %s413, 8
          %s415 = scalar_lea.hbm %s0, %s414
          %s416 = sshll.u32 %s415, 4
          %s417 = int_to_ptr.hbm [resolvable:$true] %s416
          %s418 = sshll.u32 %s410, 4
          %s419 = int_to_ptr.vmem [resolvable:$true] %s418
          %424 = dma.hbm_to_vmem [thread:$0]  %s417, 1024, %s419, %s407, 256, 256, 16
        $region60: #{tpu_custom_call.1} parent=55 // pred_fallthru
          _
      $region56: #{tpu_custom_call.1} parent=5 // pred_fallthru
        _
      %p425 = scmp.le.s32.totalorder 1, %s26
      %p426 = scmp.lt.s32.totalorder %s26, 3
      %p427 = pnand %p425, %p426
      %p428 = pneg %p427
      // Predicated region
      $region61: #{tpu_custom_call.1} parent=5 // pred_check
        _
      $region62: #{tpu_custom_call.1} parent=5 // pred_check_branch
        %430 = sbr.rel (%p427) target = $region64
      $region63: #{tpu_custom_call.1} parent=5 // pred_region
        %s431 = ssub.s32 %s26, 1
        %s432 = sand.u32 %s39, 1
        %s433 = scalar_lea.sflag [#allocation3], %s432
        %s434 = sand.u32 %s39, 1
        %s435 = smul.addr %s434, 64
        %s436 = scalar_lea.vmem [#allocation2], %s435
        // Predicated region
        $region65: #{tpu_custom_call.1} parent=63 // pred_check
          %p437 = pneg %p52
        $region66: #{tpu_custom_call.1} parent=63 // pred_check_branch
          %439 = sbr.rel (%p437) target = $region68
        $region67: #{tpu_custom_call.1} parent=63 // pred_region
          %441 = dma.done %s433, 1024
        $region68: #{tpu_custom_call.1} parent=63 // pred_fallthru
          _
        // Predicated region
        $region69: #{tpu_custom_call.1} parent=63 // pred_check
          %p442 = pneg %p73
        $region70: #{tpu_custom_call.1} parent=63 // pred_check_branch
          %444 = sbr.rel (%p442) target = $region72
        $region71: #{tpu_custom_call.1} parent=63 // pred_region
          %446 = dma.done [#allocation6], 256
        $region72: #{tpu_custom_call.1} parent=63 // pred_fallthru
          _
        // Predicated region
        $region73: #{tpu_custom_call.1} parent=63 // pred_check
          %p447 = pneg %p94
        $region74: #{tpu_custom_call.1} parent=63 // pred_check_branch
          %449 = sbr.rel (%p447) target = $region76
        $region75: #{tpu_custom_call.1} parent=63 // pred_region
          %451 = dma.done [#allocation6], 256
        $region76: #{tpu_custom_call.1} parent=63 // pred_fallthru
          _
        // Predicated region
        $region77: #{tpu_custom_call.1} parent=63 // pred_check
          %p452 = pneg %p115
        $region78: #{tpu_custom_call.1} parent=63 // pred_check_branch
          %454 = sbr.rel (%p452) target = $region80
        $region79: #{tpu_custom_call.1} parent=63 // pred_region
          %456 = dma.done [#allocation9], 256
        $region80: #{tpu_custom_call.1} parent=63 // pred_fallthru
          _
        // Predicated region
        $region81: #{tpu_custom_call.1} parent=63 // pred_check
          %p457 = pneg %p136
        $region82: #{tpu_custom_call.1} parent=63 // pred_check_branch
          %459 = sbr.rel (%p457) target = $region84
        $region83: #{tpu_custom_call.1} parent=63 // pred_region
          %461 = dma.done [#allocation9], 256
        $region84: #{tpu_custom_call.1} parent=63 // pred_fallthru
          _
        // Predicated region
        $region85: #{tpu_custom_call.1} parent=63 // pred_check
          %p462 = pneg %p199
        $region86: #{tpu_custom_call.1} parent=63 // pred_check_branch
          %464 = sbr.rel (%p462) target = $region88
        $region87: #{tpu_custom_call.1} parent=63 // pred_region
          %466 = dma.done [#allocation12], 256
        $region88: #{tpu_custom_call.1} parent=63 // pred_fallthru
          _
        // Predicated region
        $region89: #{tpu_custom_call.1} parent=63 // pred_check
          %p467 = pneg %p262
        $region90: #{tpu_custom_call.1} parent=63 // pred_check_branch
          %469 = sbr.rel (%p467) target = $region92
        $region91: #{tpu_custom_call.1} parent=63 // pred_region
          %471 = dma.done [#allocation12], 1024
        $region92: #{tpu_custom_call.1} parent=63 // pred_fallthru
          _
        %s472 = sand.u32 %s39, 1
        %s473 = scalar_lea.sflag [#allocation3], %s472
        %s474 = sand.u32 %s39, 1
        %s475 = smul.addr %s474, 64
        %s476 = scalar_lea.vmem [#allocation2], %s475
        %p477 = pneg %p52
        %p478 = pneg %p49
        %p479 = pneg %p73
        %p480 = pneg %p70
        %p481 = pneg %p94
        %p482 = pneg %p91
        %p483 = pneg %p115
        %p484 = pneg %p112
        %p485 = pneg %p136
        %p486 = pneg %p133
        %p487 = pneg %p157
        %p488 = pneg %p154
        %p489 = pneg %p178
        %p490 = pneg %p175
        %p491 = pneg %p199
        %p492 = pneg %p196
        %p493 = pneg %p220
        %p494 = pneg %p217
        %p495 = pneg %p241
        %p496 = pneg %p238
        %p497 = pneg %p262
        %p498 = pneg %p259
        %p499 = pneg %p288
        %p500 = pneg %p285
        %s501 = sand.u32 %s275, 1
        %s502 = scalar_lea.sflag [#allocation4], %s501
        %s503 = sand.u32 %s275, 1
        %s504 = smul.addr %s503, 64
        %s505 = scalar_lea.vmem [#allocation14], %s504
        %v507 = vld [vmem:[%s436] sm:$0xff]
        %v508 = vld [vmem:[%s436 + $0x8] sm:$0xff]
        %v509 = vld [vmem:[%s436 + $0x10] sm:$0xff]
        %v510 = vld [vmem:[%s436 + $0x18] sm:$0xff]
        %v511 = vld [vmem:[%s436 + $0x20] sm:$0xff]
        %v512 = vld [vmem:[%s436 + $0x28] sm:$0xff]
        %v513 = vld [vmem:[%s436 + $0x30] sm:$0xff]
        %v514 = vld [vmem:[%s436 + $0x38] sm:$0xff]
        %v515 = vpack.c.bf16 %v509, %v507
        %v516 = vpack.c.bf16 %v510, %v508
        %v517 = vpack.c.bf16 %v513, %v511
        %v518 = vpack.c.bf16 %v514, %v512
        %v519 = vld [vmem:[%s5] sm:$0xff]
        %v520 = vld [vmem:[%s5 + $0x8] sm:$0xff]
        %v521 = vld [vmem:[%s5 + $0x10] sm:$0xff]
        %v522 = vld [vmem:[%s5 + $0x18] sm:$0xff]
        %v523 = vld [vmem:[#allocation5] sm:$0xf]
        %v524 = vld [vmem:[#allocation5 + $0x4] sm:$0xf]
        %v525 = vld [vmem:[#allocation5 + $0x8] sm:$0xf]
        %v526 = vld [vmem:[#allocation5 + $0xc] sm:$0xf]
        %528 = vset.pattern.permute.xlu0 0
        %529 = vperm.xlu0 %528, %v519
        %v530 = vpop.permute.xlu0 %529
        %533 = vset.pattern.permute.xlu0 0
        %534 = vperm.xlu0 %533, %v520
        %v535 = vpop.permute.xlu0 %534
        %538 = vset.pattern.permute.xlu0 0
        %539 = vperm.xlu0 %538, %v521
        %v540 = vpop.permute.xlu0 %539
        %543 = vset.pattern.permute.xlu0 0
        %544 = vperm.xlu0 %543, %v522
        %v545 = vpop.permute.xlu0 %544
        %v551 = vunpack.c.l.b16 %v523
        %v552 = vunpack.c.l.b16 %v524
        %v553 = vunpack.c.l.b16 %v525
        %v554 = vunpack.c.l.b16 %v526
        %v555 = vpack.c.b16 %v552, %v551
        %v556 = vpack.c.b16 %v554, %v553
        %vm557 = vcmask 261120
        %v559 = vsel %vm557, %v555, 0
        %v562 = vsel %vm557, %v556, 0
        %564 = vmatpush.bf16.msra.mxu0 0
        %565 = vmatpush.bf16.msra.mxu0 0
        %566 = vmatpush.bf16.msra.mxu0 0
        %567 = vmatpush.bf16.msra.mxu0 0
        %568 = vmatpush.bf16.msra.mxu0 0
        %569 = vmatpush.bf16.msra.mxu0 0
        %570 = vmatpush.bf16.msra.mxu0 %v517
        %571 = vmatpush.bf16.msra.mxu0 %v515
        %572 = vmatmul.bf16.gmra.mxu0 %v559
        %v573 = vpop.f32.mrf.mxu0
        %v574 = vadd.f32 %v530, %v573
        %v575 = vpop.f32.mrf.mxu0
        %v576 = vadd.f32 %v535, %v575
        %577 = vmatmul.bf16.gmra.mxu0 %v562
        %v578 = vpop.f32.mrf.mxu0
        %v579 = vadd.f32 %v540, %v578
        %v580 = vpop.f32.mrf.mxu0
        %v581 = vadd.f32 %v545, %v580
        %582 = vdwg.mxu0
        %583 = vmatpush.bf16.msra.mxu0 0
        %584 = vmatpush.bf16.msra.mxu0 0
        %585 = vmatpush.bf16.msra.mxu0 0
        %586 = vmatpush.bf16.msra.mxu0 0
        %587 = vmatpush.bf16.msra.mxu0 0
        %588 = vmatpush.bf16.msra.mxu0 0
        %589 = vmatpush.bf16.msra.mxu0 %v518
        %590 = vmatpush.bf16.msra.mxu0 %v516
        %591 = vmatmul.bf16.gmra.mxu0 %v559
        %v592 = vpop.f32.mrf.mxu0
        %v593 = vadd.f32 %v530, %v592
        %v594 = vpop.f32.mrf.mxu0
        %v595 = vadd.f32 %v535, %v594
        %596 = vmatmul.bf16.gmra.mxu0 %v562
        %v597 = vpop.f32.mrf.mxu0
        %v598 = vadd.f32 %v540, %v597
        %v599 = vpop.f32.mrf.mxu0
        %v600 = vadd.f32 %v545, %v599
        %601 = vdwg.mxu0
        %v602 = vld [vmem:[#allocation7] sm:$0xf]
        %v603 = vld [vmem:[#allocation7 + $0x4] sm:$0xf]
        %v604 = vld [vmem:[#allocation7 + $0x8] sm:$0xf]
        %v605 = vld [vmem:[#allocation7 + $0xc] sm:$0xf]
        %606 = vset.pattern.permute.xlu0 1
        %607 = vperm.xlu0 %606, %v519
        %v608 = vpop.permute.xlu0 %607
        %610 = vset.pattern.permute.xlu0 1
        %611 = vperm.xlu0 %610, %v520
        %v612 = vpop.permute.xlu0 %611
        %614 = vset.pattern.permute.xlu0 1
        %615 = vperm.xlu0 %614, %v521
        %v616 = vpop.permute.xlu0 %615
        %618 = vset.pattern.permute.xlu0 1
        %619 = vperm.xlu0 %618, %v522
        %v620 = vpop.permute.xlu0 %619
        %v626 = vunpack.c.l.b16 %v602
        %v627 = vunpack.c.l.b16 %v603
        %v628 = vunpack.c.l.b16 %v604
        %v629 = vunpack.c.l.b16 %v605
        %v630 = vpack.c.b16 %v627, %v626
        %v631 = vpack.c.b16 %v629, %v628
        %v633 = vsel %vm557, %v630, 0
        %v636 = vsel %vm557, %v631, 0
        %638 = vmatpush.bf16.msra.mxu0 0
        %639 = vmatpush.bf16.msra.mxu0 0
        %640 = vmatpush.bf16.msra.mxu0 0
        %641 = vmatpush.bf16.msra.mxu0 0
        %642 = vmatpush.bf16.msra.mxu0 0
        %643 = vmatpush.bf16.msra.mxu0 0
        %644 = vmatpush.bf16.msra.mxu0 %v517
        %645 = vmatpush.bf16.msra.mxu0 %v515
        %646 = vmatmul.bf16.gmra.mxu0 %v633
        %v647 = vpop.f32.mrf.mxu0
        %v648 = vadd.f32 %v608, %v647
        %v649 = vpop.f32.mrf.mxu0
        %v650 = vadd.f32 %v612, %v649
        %651 = vmatmul.bf16.gmra.mxu0 %v636
        %v652 = vpop.f32.mrf.mxu0
        %v653 = vadd.f32 %v616, %v652
        %v654 = vpop.f32.mrf.mxu0
        %v655 = vadd.f32 %v620, %v654
        %656 = vdwg.mxu0
        %657 = vmatpush.bf16.msra.mxu0 0
        %658 = vmatpush.bf16.msra.mxu0 0
        %659 = vmatpush.bf16.msra.mxu0 0
        %660 = vmatpush.bf16.msra.mxu0 0
        %661 = vmatpush.bf16.msra.mxu0 0
        %662 = vmatpush.bf16.msra.mxu0 0
        %663 = vmatpush.bf16.msra.mxu0 %v518
        %664 = vmatpush.bf16.msra.mxu0 %v516
        %665 = vmatmul.bf16.gmra.mxu0 %v633
        %v666 = vpop.f32.mrf.mxu0
        %v667 = vadd.f32 %v608, %v666
        %v668 = vpop.f32.mrf.mxu0
        %v669 = vadd.f32 %v612, %v668
        %670 = vmatmul.bf16.gmra.mxu0 %v636
        %v671 = vpop.f32.mrf.mxu0
        %v672 = vadd.f32 %v616, %v671
        %v673 = vpop.f32.mrf.mxu0
        %v674 = vadd.f32 %v620, %v673
        %675 = vdwg.mxu0
        %v676 = vld [vmem:[#allocation8] sm:$0xf]
        %v677 = vld [vmem:[#allocation8 + $0x4] sm:$0xf]
        %v678 = vld [vmem:[#allocation8 + $0x8] sm:$0xf]
        %v679 = vld [vmem:[#allocation8 + $0xc] sm:$0xf]
        %680 = vset.pattern.permute.xlu0 2
        %681 = vperm.xlu0 %680, %v519
        %v682 = vpop.permute.xlu0 %681
        %684 = vset.pattern.permute.xlu0 2
        %685 = vperm.xlu0 %684, %v520
        %v686 = vpop.permute.xlu0 %685
        %688 = vset.pattern.permute.xlu0 2
        %689 = vperm.xlu0 %688, %v521
        %v690 = vpop.permute.xlu0 %689
        %692 = vset.pattern.permute.xlu0 2
        %693 = vperm.xlu0 %692, %v522
        %v694 = vpop.permute.xlu0 %693
        %v700 = vunpack.c.l.b16 %v676
        %v701 = vunpack.c.l.b16 %v677
        %v702 = vunpack.c.l.b16 %v678
        %v703 = vunpack.c.l.b16 %v679
        %v704 = vpack.c.b16 %v701, %v700
        %v705 = vpack.c.b16 %v703, %v702
        %v707 = vsel %vm557, %v704, 0
        %v710 = vsel %vm557, %v705, 0
        %712 = vmatpush.bf16.msra.mxu0 0
        %713 = vmatpush.bf16.msra.mxu0 0
        %714 = vmatpush.bf16.msra.mxu0 0
        %715 = vmatpush.bf16.msra.mxu0 0
        %716 = vmatpush.bf16.msra.mxu0 0
        %717 = vmatpush.bf16.msra.mxu0 0
        %718 = vmatpush.bf16.msra.mxu0 %v517
        %719 = vmatpush.bf16.msra.mxu0 %v515
        %720 = vmatmul.bf16.gmra.mxu0 %v707
        %v721 = vpop.f32.mrf.mxu0
        %v722 = vadd.f32 %v682, %v721
        %v723 = vpop.f32.mrf.mxu0
        %v724 = vadd.f32 %v686, %v723
        %725 = vmatmul.bf16.gmra.mxu0 %v710
        %v726 = vpop.f32.mrf.mxu0
        %v727 = vadd.f32 %v690, %v726
        %v728 = vpop.f32.mrf.mxu0
        %v729 = vadd.f32 %v694, %v728
        %730 = vdwg.mxu0
        %731 = vmatpush.bf16.msra.mxu0 0
        %732 = vmatpush.bf16.msra.mxu0 0
        %733 = vmatpush.bf16.msra.mxu0 0
        %734 = vmatpush.bf16.msra.mxu0 0
        %735 = vmatpush.bf16.msra.mxu0 0
        %736 = vmatpush.bf16.msra.mxu0 0
        %737 = vmatpush.bf16.msra.mxu0 %v518
        %738 = vmatpush.bf16.msra.mxu0 %v516
        %739 = vmatmul.bf16.gmra.mxu0 %v707
        %v740 = vpop.f32.mrf.mxu0
        %v741 = vadd.f32 %v682, %v740
        %v742 = vpop.f32.mrf.mxu0
        %v743 = vadd.f32 %v686, %v742
        %744 = vmatmul.bf16.gmra.mxu0 %v710
        %v745 = vpop.f32.mrf.mxu0
        %v746 = vadd.f32 %v690, %v745
        %v747 = vpop.f32.mrf.mxu0
        %v748 = vadd.f32 %v694, %v747
        %749 = vdwg.mxu0
        %v750 = vpack.c.bf16 %v593, %v574
        %v751 = vpack.c.bf16 %v595, %v576
        %v752 = vpack.c.bf16 %v598, %v579
        %v753 = vpack.c.bf16 %v600, %v581
        %v754 = vpack.c.bf16 %v667, %v648
        %v755 = vpack.c.bf16 %v669, %v650
        %v756 = vpack.c.bf16 %v672, %v653
        %v757 = vpack.c.bf16 %v674, %v655
        %v758 = vpack.c.bf16 %v741, %v722
        %v759 = vpack.c.bf16 %v743, %v724
        %v760 = vpack.c.bf16 %v746, %v727
        %v761 = vpack.c.bf16 %v748, %v729
        %v762 = vld [vmem:[#allocation11] sm:$0xff]
        %v763 = vld [vmem:[#allocation11 + $0x8] sm:$0xff]
        %v766 = vunpack.c.l.b16 %v762
        %v767 = vunpack.c.h.b16 %v762
        %v768 = vunpack.c.l.b16 %v763
        %v769 = vunpack.c.h.b16 %v763
        %v770 = vpack.c.b16 %v768, %v766
        %v771 = vpack.c.b16 %v769, %v767
        %v778 = vunpack.c.l.b16 %v750
        %v779 = vunpack.c.h.b16 %v750
        %v780 = vunpack.c.l.b16 %v751
        %v781 = vunpack.c.h.b16 %v751
        %v782 = vunpack.c.l.b16 %v752
        %v783 = vunpack.c.h.b16 %v752
        %v784 = vunpack.c.l.b16 %v753
        %v785 = vunpack.c.h.b16 %v753
        %v786 = vpack.c.b16 %v780, %v778
        %v787 = vpack.c.b16 %v781, %v779
        %v788 = vpack.c.b16 %v784, %v782
        %v789 = vpack.c.b16 %v785, %v783
        %794 = vmatpush.bf16.xpose.msra.mxu0 0
        %795 = vmatpush.bf16.xpose.msra.mxu0 0
        %796 = vmatpush.bf16.xpose.msra.mxu0 0
        %797 = vmatpush.bf16.xpose.msra.mxu0 0
        %798 = vmatpush.bf16.xpose.msra.mxu0 0
        %799 = vmatpush.bf16.xpose.msra.mxu0 0
        %800 = vmatpush.bf16.xpose.msra.mxu0 %v788
        %801 = vmatpush.bf16.xpose.msra.mxu0 %v786
        %802 = vmatmul.bf16.gmra.mxu0 %v770
        %v803 = vpop.f32.mrf.mxu0
        %v804 = vadd.f32 0.0, %v803
        %v805 = vpop.f32.mrf.mxu0
        %v806 = vadd.f32 0.0, %v805
        %807 = vdwg.mxu0
        %808 = vmatpush.bf16.xpose.msra.mxu0 0
        %809 = vmatpush.bf16.xpose.msra.mxu0 0
        %810 = vmatpush.bf16.xpose.msra.mxu0 0
        %811 = vmatpush.bf16.xpose.msra.mxu0 0
        %812 = vmatpush.bf16.xpose.msra.mxu0 0
        %813 = vmatpush.bf16.xpose.msra.mxu0 0
        %814 = vmatpush.bf16.xpose.msra.mxu0 %v789
        %815 = vmatpush.bf16.xpose.msra.mxu0 %v787
        %816 = vmatmul.bf16.gmra.mxu0 %v771
        %v817 = vpop.f32.mrf.mxu0
        %v818 = vadd.f32 %v804, %v817
        %v819 = vpop.f32.mrf.mxu0
        %v820 = vadd.f32 %v806, %v819
        %821 = vdwg.mxu0
        %v822 = vmul.f32 %v818, 0.35355338
        %v823 = vmul.f32 %v820, 0.35355338
        %v824 = vpack.c.bf16 %v822, %v822
        %v825 = vpack.c.bf16 %v823, %v823
        %v826 = vld [vmem:[%s6] sm:$0xff]
        %v827 = vld [vmem:[%s6 + $0x8] sm:$0xff]
        %v828 = vld [vmem:[%s6 + $0x10] sm:$0xff]
        %v829 = vld [vmem:[%s6 + $0x18] sm:$0xff]
        %830 = vrot.lane.b32.xlu0 %v722, 17
        %v831 = vpop.permute.xlu0 %830
        %832 = vrot.lane.b32.xlu0 %v724, 17
        %v833 = vpop.permute.xlu0 %832
        %834 = vrot.lane.b32.xlu0 %v727, 17
        %v835 = vpop.permute.xlu0 %834
        %836 = vrot.lane.b32.xlu0 %v729, 17
        %v837 = vpop.permute.xlu0 %836
        %838 = vrot.lane.b32.xlu0 %v741, 17
        %v839 = vpop.permute.xlu0 %838
        %840 = vrot.lane.b32.xlu0 %v743, 17
        %v841 = vpop.permute.xlu0 %840
        %842 = vrot.lane.b32.xlu0 %v746, 17
        %v843 = vpop.permute.xlu0 %842
        %844 = vrot.lane.b32.xlu0 %v748, 17
        %v845 = vpop.permute.xlu0 %844
        %v846 = vlaneseq
        %v847 = vand.u32 %v846, 127
        %vm848 = vcmp.lt.s32.totalorder %v847, 17
        %v849 = vsel %vm848, %v831, %v839
        %v850 = vsel %vm848, %v833, %v841
        %v851 = vsel %vm848, %v835, %v843
        %v852 = vsel %vm848, %v837, %v845
        %v853 = vsel %vm848, %v839, %v831
        %v854 = vsel %vm848, %v841, %v833
        %v855 = vsel %vm848, %v843, %v835
        %v856 = vsel %vm848, %v845, %v837
        %v857 = vld [vmem:[%s8] sm:$0x3]
        %v859 = vperm.slane %v857, 0
        %v860 = vperm.slane %v857, 1
        %v863 = vmul.f32 %v853, %v859
        %v864 = vmul.f32 %v849, %v860
        %v865 = vmul.f32 %v854, %v859
        %v866 = vmul.f32 %v850, %v860
        %v867 = vmul.f32 %v855, %v859
        %v868 = vmul.f32 %v851, %v860
        %v869 = vmul.f32 %v856, %v859
        %v870 = vmul.f32 %v852, %v860
        %872 = vset.pattern.permute.xlu0 0
        %873 = vperm.xlu0 %872, %v826
        %v874 = vpop.permute.xlu0 %873
        %877 = vset.pattern.permute.xlu0 0
        %878 = vperm.xlu0 %877, %v827
        %v879 = vpop.permute.xlu0 %878
        %882 = vset.pattern.permute.xlu0 0
        %883 = vperm.xlu0 %882, %v828
        %v884 = vpop.permute.xlu0 %883
        %887 = vset.pattern.permute.xlu0 0
        %888 = vperm.xlu0 %887, %v829
        %v889 = vpop.permute.xlu0 %888
        %v891 = vmul.f32 %v863, %v874
        %v892 = vmul.f32 %v864, %v874
        %v893 = vmul.f32 %v865, %v879
        %v894 = vmul.f32 %v866, %v879
        %v895 = vmul.f32 %v867, %v884
        %v896 = vmul.f32 %v868, %v884
        %v897 = vmul.f32 %v869, %v889
        %v898 = vmul.f32 %v870, %v889
        %v899 = vadd.f32 %v891, 0.0
        %v900 = vadd.f32 %v892, 0.0
        %v901 = vadd.f32 %v893, 0.0
        %v902 = vadd.f32 %v894, 0.0
        %v903 = vadd.f32 %v895, 0.0
        %v904 = vadd.f32 %v896, 0.0
        %v905 = vadd.f32 %v897, 0.0
        %v906 = vadd.f32 %v898, 0.0
        %907 = vrot.lane.b32.xlu0 %v722, 16
        %v908 = vpop.permute.xlu0 %907
        %909 = vrot.lane.b32.xlu0 %v724, 16
        %v910 = vpop.permute.xlu0 %909
        %911 = vrot.lane.b32.xlu0 %v727, 16
        %v912 = vpop.permute.xlu0 %911
        %913 = vrot.lane.b32.xlu0 %v729, 16
        %v914 = vpop.permute.xlu0 %913
        %915 = vrot.lane.b32.xlu0 %v741, 16
        %v916 = vpop.permute.xlu0 %915
        %917 = vrot.lane.b32.xlu0 %v743, 16
        %v918 = vpop.permute.xlu0 %917
        %919 = vrot.lane.b32.xlu0 %v746, 16
        %v920 = vpop.permute.xlu0 %919
        %921 = vrot.lane.b32.xlu0 %v748, 16
        %v922 = vpop.permute.xlu0 %921
        %vm923 = vcmp.lt.s32.totalorder %v847, 16
        %v924 = vsel %vm923, %v908, %v916
        %v925 = vsel %vm923, %v910, %v918
        %v926 = vsel %vm923, %v912, %v920
        %v927 = vsel %vm923, %v914, %v922
        %v928 = vsel %vm923, %v916, %v908
        %v929 = vsel %vm923, %v918, %v910
        %v930 = vsel %vm923, %v920, %v912
        %v931 = vsel %vm923, %v922, %v914
        %s932 = scalar_lea.vmem %s8, 2
        %v933 = vld [vmem:[%s932] sm:$0x3]
        %v935 = vperm.slane %v933, 0
        %v936 = vperm.slane %v933, 1
        %v939 = vmul.f32 %v928, %v935
        %v940 = vmul.f32 %v924, %v936
        %v941 = vmul.f32 %v929, %v935
        %v942 = vmul.f32 %v925, %v936
        %v943 = vmul.f32 %v930, %v935
        %v944 = vmul.f32 %v926, %v936
        %v945 = vmul.f32 %v931, %v935
        %v946 = vmul.f32 %v927, %v936
        %947 = vset.pattern.permute.xlu0 1
        %948 = vperm.xlu0 %947, %v826
        %v949 = vpop.permute.xlu0 %948
        %951 = vset.pattern.permute.xlu0 1
        %952 = vperm.xlu0 %951, %v827
        %v953 = vpop.permute.xlu0 %952
        %955 = vset.pattern.permute.xlu0 1
        %956 = vperm.xlu0 %955, %v828
        %v957 = vpop.permute.xlu0 %956
        %959 = vset.pattern.permute.xlu0 1
        %960 = vperm.xlu0 %959, %v829
        %v961 = vpop.permute.xlu0 %960
        %v963 = vmul.f32 %v939, %v949
        %v964 = vmul.f32 %v940, %v949
        %v965 = vmul.f32 %v941, %v953
        %v966 = vmul.f32 %v942, %v953
        %v967 = vmul.f32 %v943, %v957
        %v968 = vmul.f32 %v944, %v957
        %v969 = vmul.f32 %v945, %v961
        %v970 = vmul.f32 %v946, %v961
        %v971 = vadd.f32 %v899, %v963
        %v972 = vadd.f32 %v900, %v964
        %v973 = vadd.f32 %v901, %v965
        %v974 = vadd.f32 %v902, %v966
        %v975 = vadd.f32 %v903, %v967
        %v976 = vadd.f32 %v904, %v968
        %v977 = vadd.f32 %v905, %v969
        %v978 = vadd.f32 %v906, %v970
        %979 = vrot.lane.b32.xlu0 %v722, 15
        %v980 = vpop.permute.xlu0 %979
        %981 = vrot.lane.b32.xlu0 %v724, 15
        %v982 = vpop.permute.xlu0 %981
        %983 = vrot.lane.b32.xlu0 %v727, 15
        %v984 = vpop.permute.xlu0 %983
        %985 = vrot.lane.b32.xlu0 %v729, 15
        %v986 = vpop.permute.xlu0 %985
        %987 = vrot.lane.b32.xlu0 %v741, 15
        %v988 = vpop.permute.xlu0 %987
        %989 = vrot.lane.b32.xlu0 %v743, 15
        %v990 = vpop.permute.xlu0 %989
        %991 = vrot.lane.b32.xlu0 %v746, 15
        %v992 = vpop.permute.xlu0 %991
        %993 = vrot.lane.b32.xlu0 %v748, 15
        %v994 = vpop.permute.xlu0 %993
        %vm995 = vcmp.lt.s32.totalorder %v847, 15
        %v996 = vsel %vm995, %v980, %v988
        %v997 = vsel %vm995, %v982, %v990
        %v998 = vsel %vm995, %v984, %v992
        %v999 = vsel %vm995, %v986, %v994
        %v1000 = vsel %vm995, %v988, %v980
        %v1001 = vsel %vm995, %v990, %v982
        %v1002 = vsel %vm995, %v992, %v984
        %v1003 = vsel %vm995, %v994, %v986
        %s1004 = scalar_lea.vmem %s8, 4
        %v1005 = vld [vmem:[%s1004] sm:$0x3]
        %v1007 = vperm.slane %v1005, 0
        %v1008 = vperm.slane %v1005, 1
        %v1011 = vmul.f32 %v1000, %v1007
        %v1012 = vmul.f32 %v996, %v1008
        %v1013 = vmul.f32 %v1001, %v1007
        %v1014 = vmul.f32 %v997, %v1008
        %v1015 = vmul.f32 %v1002, %v1007
        %v1016 = vmul.f32 %v998, %v1008
        %v1017 = vmul.f32 %v1003, %v1007
        %v1018 = vmul.f32 %v999, %v1008
        %1019 = vset.pattern.permute.xlu0 2
        %1020 = vperm.xlu0 %1019, %v826
        %v1021 = vpop.permute.xlu0 %1020
        %1023 = vset.pattern.permute.xlu0 2
        %1024 = vperm.xlu0 %1023, %v827
        %v1025 = vpop.permute.xlu0 %1024
        %1027 = vset.pattern.permute.xlu0 2
        %1028 = vperm.xlu0 %1027, %v828
        %v1029 = vpop.permute.xlu0 %1028
        %1031 = vset.pattern.permute.xlu0 2
        %1032 = vperm.xlu0 %1031, %v829
        %v1033 = vpop.permute.xlu0 %1032
        %v1035 = vmul.f32 %v1011, %v1021
        %v1036 = vmul.f32 %v1012, %v1021
        %v1037 = vmul.f32 %v1013, %v1025
        %v1038 = vmul.f32 %v1014, %v1025
        %v1039 = vmul.f32 %v1015, %v1029
        %v1040 = vmul.f32 %v1016, %v1029
        %v1041 = vmul.f32 %v1017, %v1033
        %v1042 = vmul.f32 %v1018, %v1033
        %v1043 = vadd.f32 %v971, %v1035
        %v1044 = vadd.f32 %v972, %v1036
        %v1045 = vadd.f32 %v973, %v1037
        %v1046 = vadd.f32 %v974, %v1038
        %v1047 = vadd.f32 %v975, %v1039
        %v1048 = vadd.f32 %v976, %v1040
        %v1049 = vadd.f32 %v977, %v1041
        %v1050 = vadd.f32 %v978, %v1042
        %1051 = vrot.lane.b32.xlu0 %v722, 1
        %v1052 = vpop.permute.xlu0 %1051
        %1053 = vrot.lane.b32.xlu0 %v724, 1
        %v1054 = vpop.permute.xlu0 %1053
        %1055 = vrot.lane.b32.xlu0 %v727, 1
        %v1056 = vpop.permute.xlu0 %1055
        %1057 = vrot.lane.b32.xlu0 %v729, 1
        %v1058 = vpop.permute.xlu0 %1057
        %1059 = vrot.lane.b32.xlu0 %v741, 1
        %v1060 = vpop.permute.xlu0 %1059
        %1061 = vrot.lane.b32.xlu0 %v743, 1
        %v1062 = vpop.permute.xlu0 %1061
        %1063 = vrot.lane.b32.xlu0 %v746, 1
        %v1064 = vpop.permute.xlu0 %1063
        %1065 = vrot.lane.b32.xlu0 %v748, 1
        %v1066 = vpop.permute.xlu0 %1065
        %vm1067 = vcmp.lt.s32.totalorder %v847, 1
        %v1068 = vsel %vm1067, %v1052, %v1060
        %v1069 = vsel %vm1067, %v1054, %v1062
        %v1070 = vsel %vm1067, %v1056, %v1064
        %v1071 = vsel %vm1067, %v1058, %v1066
        %v1072 = vsel %vm1067, %v1060, %v1052
        %v1073 = vsel %vm1067, %v1062, %v1054
        %v1074 = vsel %vm1067, %v1064, %v1056
        %v1075 = vsel %vm1067, %v1066, %v1058
        %s1076 = scalar_lea.vmem %s8, 6
        %v1077 = vld [vmem:[%s1076] sm:$0x3]
        %v1079 = vperm.slane %v1077, 0
        %v1080 = vperm.slane %v1077, 1
        %v1083 = vmul.f32 %v1072, %v1079
        %v1084 = vmul.f32 %v1068, %v1080
        %v1085 = vmul.f32 %v1073, %v1079
        %v1086 = vmul.f32 %v1069, %v1080
        %v1087 = vmul.f32 %v1074, %v1079
        %v1088 = vmul.f32 %v1070, %v1080
        %v1089 = vmul.f32 %v1075, %v1079
        %v1090 = vmul.f32 %v1071, %v1080
        %1091 = vset.pattern.permute.xlu0 3
        %1092 = vperm.xlu0 %1091, %v826
        %v1093 = vpop.permute.xlu0 %1092
        %1095 = vset.pattern.permute.xlu0 3
        %1096 = vperm.xlu0 %1095, %v827
        %v1097 = vpop.permute.xlu0 %1096
        %1099 = vset.pattern.permute.xlu0 3
        %1100 = vperm.xlu0 %1099, %v828
        %v1101 = vpop.permute.xlu0 %1100
        %1103 = vset.pattern.permute.xlu0 3
        %1104 = vperm.xlu0 %1103, %v829
        %v1105 = vpop.permute.xlu0 %1104
        %v1107 = vmul.f32 %v1083, %v1093
        %v1108 = vmul.f32 %v1084, %v1093
        %v1109 = vmul.f32 %v1085, %v1097
        %v1110 = vmul.f32 %v1086, %v1097
        %v1111 = vmul.f32 %v1087, %v1101
        %v1112 = vmul.f32 %v1088, %v1101
        %v1113 = vmul.f32 %v1089, %v1105
        %v1114 = vmul.f32 %v1090, %v1105
        %v1115 = vadd.f32 %v1043, %v1107
        %v1116 = vadd.f32 %v1044, %v1108
        %v1117 = vadd.f32 %v1045, %v1109
        %v1118 = vadd.f32 %v1046, %v1110
        %v1119 = vadd.f32 %v1047, %v1111
        %v1120 = vadd.f32 %v1048, %v1112
        %v1121 = vadd.f32 %v1049, %v1113
        %v1122 = vadd.f32 %v1050, %v1114
        %1123 = vset.pattern.permute.xlu0 4
        %1124 = vperm.xlu0 %1123, %v826
        %v1125 = vpop.permute.xlu0 %1124
        %1127 = vset.pattern.permute.xlu0 4
        %1128 = vperm.xlu0 %1127, %v827
        %v1129 = vpop.permute.xlu0 %1128
        %1131 = vset.pattern.permute.xlu0 4
        %1132 = vperm.xlu0 %1131, %v828
        %v1133 = vpop.permute.xlu0 %1132
        %1135 = vset.pattern.permute.xlu0 4
        %1136 = vperm.xlu0 %1135, %v829
        %v1137 = vpop.permute.xlu0 %1136
        %v1139 = vmul.f32 %v722, %v1125
        %v1140 = vmul.f32 %v741, %v1125
        %v1141 = vmul.f32 %v724, %v1129
        %v1142 = vmul.f32 %v743, %v1129
        %v1143 = vmul.f32 %v727, %v1133
        %v1144 = vmul.f32 %v746, %v1133
        %v1145 = vmul.f32 %v729, %v1137
        %v1146 = vmul.f32 %v748, %v1137
        %v1147 = vadd.f32 %v1115, %v1139
        %v1148 = vadd.f32 %v1116, %v1140
        %v1149 = vadd.f32 %v1117, %v1141
        %v1150 = vadd.f32 %v1118, %v1142
        %v1151 = vadd.f32 %v1119, %v1143
        %v1152 = vadd.f32 %v1120, %v1144
        %v1153 = vadd.f32 %v1121, %v1145
        %v1154 = vadd.f32 %v1122, %v1146
        %1155 = vrot.lane.b32.xlu0 %v722, 127
        %v1156 = vpop.permute.xlu0 %1155
        %1157 = vrot.lane.b32.xlu0 %v724, 127
        %v1158 = vpop.permute.xlu0 %1157
        %1159 = vrot.lane.b32.xlu0 %v727, 127
        %v1160 = vpop.permute.xlu0 %1159
        %1161 = vrot.lane.b32.xlu0 %v729, 127
        %v1162 = vpop.permute.xlu0 %1161
        %1163 = vrot.lane.b32.xlu0 %v741, 127
        %v1164 = vpop.permute.xlu0 %1163
        %1165 = vrot.lane.b32.xlu0 %v743, 127
        %v1166 = vpop.permute.xlu0 %1165
        %1167 = vrot.lane.b32.xlu0 %v746, 127
        %v1168 = vpop.permute.xlu0 %1167
        %1169 = vrot.lane.b32.xlu0 %v748, 127
        %v1170 = vpop.permute.xlu0 %1169
        %vm1171 = vcmp.lt.s32.totalorder %v847, 127
        %v1172 = vsel %vm1171, %v1156, %v1164
        %v1173 = vsel %vm1171, %v1158, %v1166
        %v1174 = vsel %vm1171, %v1160, %v1168
        %v1175 = vsel %vm1171, %v1162, %v1170
        %v1176 = vsel %vm1171, %v1164, %v1156
        %v1177 = vsel %vm1171, %v1166, %v1158
        %v1178 = vsel %vm1171, %v1168, %v1160
        %v1179 = vsel %vm1171, %v1170, %v1162
        %s1180 = scalar_lea.vmem %s8, 10
        %v1181 = vld [vmem:[%s1180] sm:$0x3]
        %v1183 = vperm.slane %v1181, 0
        %v1184 = vperm.slane %v1181, 1
        %v1187 = vmul.f32 %v1172, %v1183
        %v1188 = vmul.f32 %v1176, %v1184
        %v1189 = vmul.f32 %v1173, %v1183
        %v1190 = vmul.f32 %v1177, %v1184
        %v1191 = vmul.f32 %v1174, %v1183
        %v1192 = vmul.f32 %v1178, %v1184
        %v1193 = vmul.f32 %v1175, %v1183
        %v1194 = vmul.f32 %v1179, %v1184
        %1195 = vset.pattern.permute.xlu0 5
        %1196 = vperm.xlu0 %1195, %v826
        %v1197 = vpop.permute.xlu0 %1196
        %1199 = vset.pattern.permute.xlu0 5
        %1200 = vperm.xlu0 %1199, %v827
        %v1201 = vpop.permute.xlu0 %1200
        %1203 = vset.pattern.permute.xlu0 5
        %1204 = vperm.xlu0 %1203, %v828
        %v1205 = vpop.permute.xlu0 %1204
        %1207 = vset.pattern.permute.xlu0 5
        %1208 = vperm.xlu0 %1207, %v829
        %v1209 = vpop.permute.xlu0 %1208
        %v1211 = vmul.f32 %v1187, %v1197
        %v1212 = vmul.f32 %v1188, %v1197
        %v1213 = vmul.f32 %v1189, %v1201
        %v1214 = vmul.f32 %v1190, %v1201
        %v1215 = vmul.f32 %v1191, %v1205
        %v1216 = vmul.f32 %v1192, %v1205
        %v1217 = vmul.f32 %v1193, %v1209
        %v1218 = vmul.f32 %v1194, %v1209
        %v1219 = vadd.f32 %v1147, %v1211
        %v1220 = vadd.f32 %v1148, %v1212
        %v1221 = vadd.f32 %v1149, %v1213
        %v1222 = vadd.f32 %v1150, %v1214
        %v1223 = vadd.f32 %v1151, %v1215
        %v1224 = vadd.f32 %v1152, %v1216
        %v1225 = vadd.f32 %v1153, %v1217
        %v1226 = vadd.f32 %v1154, %v1218
        %1227 = vrot.lane.b32.xlu0 %v722, 113
        %v1228 = vpop.permute.xlu0 %1227
        %1229 = vrot.lane.b32.xlu0 %v724, 113
        %v1230 = vpop.permute.xlu0 %1229
        %1231 = vrot.lane.b32.xlu0 %v727, 113
        %v1232 = vpop.permute.xlu0 %1231
        %1233 = vrot.lane.b32.xlu0 %v729, 113
        %v1234 = vpop.permute.xlu0 %1233
        %1235 = vrot.lane.b32.xlu0 %v741, 113
        %v1236 = vpop.permute.xlu0 %1235
        %1237 = vrot.lane.b32.xlu0 %v743, 113
        %v1238 = vpop.permute.xlu0 %1237
        %1239 = vrot.lane.b32.xlu0 %v746, 113
        %v1240 = vpop.permute.xlu0 %1239
        %1241 = vrot.lane.b32.xlu0 %v748, 113
        %v1242 = vpop.permute.xlu0 %1241
        %vm1243 = vcmp.lt.s32.totalorder %v847, 113
        %v1244 = vsel %vm1243, %v1228, %v1236
        %v1245 = vsel %vm1243, %v1230, %v1238
        %v1246 = vsel %vm1243, %v1232, %v1240
        %v1247 = vsel %vm1243, %v1234, %v1242
        %v1248 = vsel %vm1243, %v1236, %v1228
        %v1249 = vsel %vm1243, %v1238, %v1230
        %v1250 = vsel %vm1243, %v1240, %v1232
        %v1251 = vsel %vm1243, %v1242, %v1234
        %s1252 = scalar_lea.vmem %s8, 12
        %v1253 = vld [vmem:[%s1252] sm:$0x3]
        %v1255 = vperm.slane %v1253, 0
        %v1256 = vperm.slane %v1253, 1
        %v1259 = vmul.f32 %v1244, %v1255
        %v1260 = vmul.f32 %v1248, %v1256
        %v1261 = vmul.f32 %v1245, %v1255
        %v1262 = vmul.f32 %v1249, %v1256
        %v1263 = vmul.f32 %v1246, %v1255
        %v1264 = vmul.f32 %v1250, %v1256
        %v1265 = vmul.f32 %v1247, %v1255
        %v1266 = vmul.f32 %v1251, %v1256
        %1267 = vset.pattern.permute.xlu0 6
        %1268 = vperm.xlu0 %1267, %v826
        %v1269 = vpop.permute.xlu0 %1268
        %1271 = vset.pattern.permute.xlu0 6
        %1272 = vperm.xlu0 %1271, %v827
        %v1273 = vpop.permute.xlu0 %1272
        %1275 = vset.pattern.permute.xlu0 6
        %1276 = vperm.xlu0 %1275, %v828
        %v1277 = vpop.permute.xlu0 %1276
        %1279 = vset.pattern.permute.xlu0 6
        %1280 = vperm.xlu0 %1279, %v829
        %v1281 = vpop.permute.xlu0 %1280
        %v1283 = vmul.f32 %v1259, %v1269
        %v1284 = vmul.f32 %v1260, %v1269
        %v1285 = vmul.f32 %v1261, %v1273
        %v1286 = vmul.f32 %v1262, %v1273
        %v1287 = vmul.f32 %v1263, %v1277
        %v1288 = vmul.f32 %v1264, %v1277
        %v1289 = vmul.f32 %v1265, %v1281
        %v1290 = vmul.f32 %v1266, %v1281
        %v1291 = vadd.f32 %v1219, %v1283
        %v1292 = vadd.f32 %v1220, %v1284
        %v1293 = vadd.f32 %v1221, %v1285
        %v1294 = vadd.f32 %v1222, %v1286
        %v1295 = vadd.f32 %v1223, %v1287
        %v1296 = vadd.f32 %v1224, %v1288
        %v1297 = vadd.f32 %v1225, %v1289
        %v1298 = vadd.f32 %v1226, %v1290
        %1299 = vrot.lane.b32.xlu0 %v722, 112
        %v1300 = vpop.permute.xlu0 %1299
        %1301 = vrot.lane.b32.xlu0 %v724, 112
        %v1302 = vpop.permute.xlu0 %1301
        %1303 = vrot.lane.b32.xlu0 %v727, 112
        %v1304 = vpop.permute.xlu0 %1303
        %1305 = vrot.lane.b32.xlu0 %v729, 112
        %v1306 = vpop.permute.xlu0 %1305
        %1307 = vrot.lane.b32.xlu0 %v741, 112
        %v1308 = vpop.permute.xlu0 %1307
        %1309 = vrot.lane.b32.xlu0 %v743, 112
        %v1310 = vpop.permute.xlu0 %1309
        %1311 = vrot.lane.b32.xlu0 %v746, 112
        %v1312 = vpop.permute.xlu0 %1311
        %1313 = vrot.lane.b32.xlu0 %v748, 112
        %v1314 = vpop.permute.xlu0 %1313
        %vm1315 = vcmp.lt.s32.totalorder %v847, 112
        %v1316 = vsel %vm1315, %v1300, %v1308
        %v1317 = vsel %vm1315, %v1302, %v1310
        %v1318 = vsel %vm1315, %v1304, %v1312
        %v1319 = vsel %vm1315, %v1306, %v1314
        %v1320 = vsel %vm1315, %v1308, %v1300
        %v1321 = vsel %vm1315, %v1310, %v1302
        %v1322 = vsel %vm1315, %v1312, %v1304
        %v1323 = vsel %vm1315, %v1314, %v1306
        %s1324 = scalar_lea.vmem %s8, 14
        %v1325 = vld [vmem:[%s1324] sm:$0x3]
        %v1327 = vperm.slane %v1325, 0
        %v1328 = vperm.slane %v1325, 1
        %v1331 = vmul.f32 %v1316, %v1327
        %v1332 = vmul.f32 %v1320, %v1328
        %v1333 = vmul.f32 %v1317, %v1327
        %v1334 = vmul.f32 %v1321, %v1328
        %v1335 = vmul.f32 %v1318, %v1327
        %v1336 = vmul.f32 %v1322, %v1328
        %v1337 = vmul.f32 %v1319, %v1327
        %v1338 = vmul.f32 %v1323, %v1328
        %1339 = vset.pattern.permute.xlu0 7
        %1340 = vperm.xlu0 %1339, %v826
        %v1341 = vpop.permute.xlu0 %1340
        %1343 = vset.pattern.permute.xlu0 7
        %1344 = vperm.xlu0 %1343, %v827
        %v1345 = vpop.permute.xlu0 %1344
        %1347 = vset.pattern.permute.xlu0 7
        %1348 = vperm.xlu0 %1347, %v828
        %v1349 = vpop.permute.xlu0 %1348
        %1351 = vset.pattern.permute.xlu0 7
        %1352 = vperm.xlu0 %1351, %v829
        %v1353 = vpop.permute.xlu0 %1352
        %v1355 = vmul.f32 %v1331, %v1341
        %v1356 = vmul.f32 %v1332, %v1341
        %v1357 = vmul.f32 %v1333, %v1345
        %v1358 = vmul.f32 %v1334, %v1345
        %v1359 = vmul.f32 %v1335, %v1349
        %v1360 = vmul.f32 %v1336, %v1349
        %v1361 = vmul.f32 %v1337, %v1353
        %v1362 = vmul.f32 %v1338, %v1353
        %v1363 = vadd.f32 %v1291, %v1355
        %v1364 = vadd.f32 %v1292, %v1356
        %v1365 = vadd.f32 %v1293, %v1357
        %v1366 = vadd.f32 %v1294, %v1358
        %v1367 = vadd.f32 %v1295, %v1359
        %v1368 = vadd.f32 %v1296, %v1360
        %v1369 = vadd.f32 %v1297, %v1361
        %v1370 = vadd.f32 %v1298, %v1362
        %1371 = vrot.lane.b32.xlu0 %v722, 111
        %v1372 = vpop.permute.xlu0 %1371
        %1373 = vrot.lane.b32.xlu0 %v724, 111
        %v1374 = vpop.permute.xlu0 %1373
        %1375 = vrot.lane.b32.xlu0 %v727, 111
        %v1376 = vpop.permute.xlu0 %1375
        %1377 = vrot.lane.b32.xlu0 %v729, 111
        %v1378 = vpop.permute.xlu0 %1377
        %1379 = vrot.lane.b32.xlu0 %v741, 111
        %v1380 = vpop.permute.xlu0 %1379
        %1381 = vrot.lane.b32.xlu0 %v743, 111
        %v1382 = vpop.permute.xlu0 %1381
        %1383 = vrot.lane.b32.xlu0 %v746, 111
        %v1384 = vpop.permute.xlu0 %1383
        %1385 = vrot.lane.b32.xlu0 %v748, 111
        %v1386 = vpop.permute.xlu0 %1385
        %vm1387 = vcmp.lt.s32.totalorder %v847, 111
        %v1388 = vsel %vm1387, %v1372, %v1380
        %v1389 = vsel %vm1387, %v1374, %v1382
        %v1390 = vsel %vm1387, %v1376, %v1384
        %v1391 = vsel %vm1387, %v1378, %v1386
        %v1392 = vsel %vm1387, %v1380, %v1372
        %v1393 = vsel %vm1387, %v1382, %v1374
        %v1394 = vsel %vm1387, %v1384, %v1376
        %v1395 = vsel %vm1387, %v1386, %v1378
        %s1396 = scalar_lea.vmem %s8, 16
        %v1397 = vld [vmem:[%s1396] sm:$0x3]
        %v1399 = vperm.slane %v1397, 0
        %v1400 = vperm.slane %v1397, 1
        %v1403 = vmul.f32 %v1388, %v1399
        %v1404 = vmul.f32 %v1392, %v1400
        %v1405 = vmul.f32 %v1389, %v1399
        %v1406 = vmul.f32 %v1393, %v1400
        %v1407 = vmul.f32 %v1390, %v1399
        %v1408 = vmul.f32 %v1394, %v1400
        %v1409 = vmul.f32 %v1391, %v1399
        %v1410 = vmul.f32 %v1395, %v1400
        %1411 = vset.pattern.permute.xlu0 8
        %1412 = vperm.xlu0 %1411, %v826
        %v1413 = vpop.permute.xlu0 %1412
        %1415 = vset.pattern.permute.xlu0 8
        %1416 = vperm.xlu0 %1415, %v827
        %v1417 = vpop.permute.xlu0 %1416
        %1419 = vset.pattern.permute.xlu0 8
        %1420 = vperm.xlu0 %1419, %v828
        %v1421 = vpop.permute.xlu0 %1420
        %1423 = vset.pattern.permute.xlu0 8
        %1424 = vperm.xlu0 %1423, %v829
        %v1425 = vpop.permute.xlu0 %1424
        %v1427 = vmul.f32 %v1403, %v1413
        %v1428 = vmul.f32 %v1404, %v1413
        %v1429 = vmul.f32 %v1405, %v1417
        %v1430 = vmul.f32 %v1406, %v1417
        %v1431 = vmul.f32 %v1407, %v1421
        %v1432 = vmul.f32 %v1408, %v1421
        %v1433 = vmul.f32 %v1409, %v1425
        %v1434 = vmul.f32 %v1410, %v1425
        %v1435 = vadd.f32 %v1363, %v1427
        %v1436 = vadd.f32 %v1364, %v1428
        %v1437 = vadd.f32 %v1365, %v1429
        %v1438 = vadd.f32 %v1366, %v1430
        %v1439 = vadd.f32 %v1367, %v1431
        %v1440 = vadd.f32 %v1368, %v1432
        %v1441 = vadd.f32 %v1369, %v1433
        %v1442 = vadd.f32 %v1370, %v1434
        %1443 = vset.pattern.permute.xlu0 3
        %1444 = vperm.xlu0 %1443, %v519
        %v1445 = vpop.permute.xlu0 %1444
        %1447 = vset.pattern.permute.xlu0 3
        %1448 = vperm.xlu0 %1447, %v520
        %v1449 = vpop.permute.xlu0 %1448
        %1451 = vset.pattern.permute.xlu0 3
        %1452 = vperm.xlu0 %1451, %v521
        %v1453 = vpop.permute.xlu0 %1452
        %1455 = vset.pattern.permute.xlu0 3
        %1456 = vperm.xlu0 %1455, %v522
        %v1457 = vpop.permute.xlu0 %1456
        %v1459 = vadd.f32 %v1435, %v1445
        %v1460 = vadd.f32 %v1436, %v1445
        %v1461 = vadd.f32 %v1437, %v1449
        %v1462 = vadd.f32 %v1438, %v1449
        %v1463 = vadd.f32 %v1439, %v1453
        %v1464 = vadd.f32 %v1440, %v1453
        %v1465 = vadd.f32 %v1441, %v1457
        %v1466 = vadd.f32 %v1442, %v1457
        %v1467 = vld [vmem:[%s9] sm:$0xff]
        %v1468 = vld [vmem:[%s9 + $0x8] sm:$0xff]
        %v1469 = vunpack.c.l.bf16 %v1467
        %v1470 = vunpack.c.h.bf16 %v1467
        %v1471 = vunpack.c.l.bf16 %v1468
        %v1472 = vunpack.c.h.bf16 %v1468
        %v1475 = vunpack.c.l.b16 %v824
        %v1476 = vunpack.c.l.b16 %v825
        %v1477 = vpack.c.b16 %v1476, %v1475
        %v1479 = vunpack.c.l.b16 %v754
        %v1480 = vunpack.c.h.b16 %v754
        %v1481 = vpack.c.b16 %v1479, %v1479
        %v1482 = vpack.c.b16 %v1480, %v1480
        %vm1483 = vcmask 64512
        %v1485 = vsel %vm1483, %v1477, 0
        %vm1487 = vcmask 1043456
        %v1489 = vsel %vm1487, %v1481, 0
        %v1492 = vsel %vm1487, %v1482, 0
        %1494 = vmatpush.bf16.msra.mxu0 0
        %1495 = vmatpush.bf16.msra.mxu0 0
        %1496 = vmatpush.bf16.msra.mxu0 0
        %1497 = vmatpush.bf16.msra.mxu0 0
        %1498 = vmatpush.bf16.msra.mxu0 0
        %1499 = vmatpush.bf16.msra.mxu0 0
        %1500 = vmatpush.bf16.msra.mxu0 0
        %1501 = vmatpush.bf16.msra.mxu0 %v1489
        %1502 = vmatmul.bf16.gmra.mxu0 %v1485
        %v1503 = vpop.f32.mrf.mxu0
        %v1504 = vadd.f32 %v1469, %v1503
        %v1505 = vpop.f32.mrf.mxu0
        %v1506 = vadd.f32 %v1471, %v1505
        %1507 = vdwg.mxu0
        %1508 = vmatpush.bf16.msra.mxu0 0
        %1509 = vmatpush.bf16.msra.mxu0 0
        %1510 = vmatpush.bf16.msra.mxu0 0
        %1511 = vmatpush.bf16.msra.mxu0 0
        %1512 = vmatpush.bf16.msra.mxu0 0
        %1513 = vmatpush.bf16.msra.mxu0 0
        %1514 = vmatpush.bf16.msra.mxu0 0
        %1515 = vmatpush.bf16.msra.mxu0 %v1492
        %1516 = vmatmul.bf16.gmra.mxu0 %v1485
        %v1517 = vpop.f32.mrf.mxu0
        %v1518 = vadd.f32 %v1470, %v1517
        %v1519 = vpop.f32.mrf.mxu0
        %v1520 = vadd.f32 %v1472, %v1519
        %1521 = vdwg.mxu0
        %v1522 = vmax.f32 %v1504, %v1518
        %1523 = vmax.xlane.f32.xlu0 %v1522
        %v1524 = vpop.xlane.xlu0 %1523
        %v1525 = vmax.f32 %v1506, %v1520
        %1526 = vmax.xlane.f32.xlu0 %v1525
        %v1527 = vpop.xlane.xlu0 %1526
        %v1528 = vsub.f32 %v1504, %v1524
        %v1529 = vsub.f32 %v1518, %v1524
        %v1530 = vsub.f32 %v1506, %v1527
        %v1531 = vsub.f32 %v1520, %v1527
        %v1532 = vmul.f32 %v1528, 1.442695
        %v1533 = vpow.pop %v1532
        %v1534 = vmul.f32 %v1529, 1.442695
        %v1535 = vpow.pop %v1534
        %v1536 = vmul.f32 %v1530, 1.442695
        %v1537 = vpow.pop %v1536
        %v1538 = vmul.f32 %v1531, 1.442695
        %v1539 = vpow.pop %v1538
        %v1540 = vadd.f32 %v1533, %v1535
        %1541 = vadd.xlane.f32.xlu0 %v1540
        %v1542 = vpop.xlane.xlu0 %1541
        %v1543 = vadd.f32 %v1537, %v1539
        %1544 = vadd.xlane.f32.xlu0 %v1543
        %v1545 = vpop.xlane.xlu0 %1544
        %v1546 = vrcp.pop %v1542
        %v1547 = vmul.f32 %v1542, %v1546
        %v1548 = vsub.f32 1.0, %v1547
        %v1549 = vmul.f32 %v1546, %v1548
        %v1550 = vadd.f32 %v1546, %v1549
        %vm1551 = vweird.f32 %v1542
        %vm1552 = vweird.f32 %v1546
        %vm1553 = vmor %vm1551, %vm1552
        %v1554 = vsel %vm1553, %v1546, %v1550
        %v1555 = vand.u32 2147483647, %v1542
        %vm1556 = vcmp.eq.f32.partialorder %v1555, 8.507059e+37
        %v1557 = vand.u32 %v1542, 2147483648
        %v1558 = vor.u32 1.1754944e-38, %v1557
        %v1559 = vsel %vm1556, %v1558, %v1554
        %v1560 = vmul.f32 %v1533, %v1559
        %v1561 = vmul.f32 %v1535, %v1559
        %v1562 = vrcp.pop %v1545
        %v1563 = vmul.f32 %v1545, %v1562
        %v1564 = vsub.f32 1.0, %v1563
        %v1565 = vmul.f32 %v1562, %v1564
        %v1566 = vadd.f32 %v1562, %v1565
        %vm1567 = vweird.f32 %v1545
        %vm1568 = vweird.f32 %v1562
        %vm1569 = vmor %vm1567, %vm1568
        %v1570 = vsel %vm1569, %v1562, %v1566
        %v1571 = vand.u32 2147483647, %v1545
        %vm1572 = vcmp.eq.f32.partialorder %v1571, 8.507059e+37
        %v1573 = vand.u32 %v1545, 2147483648
        %v1574 = vor.u32 1.1754944e-38, %v1573
        %v1575 = vsel %vm1572, %v1574, %v1570
        %v1576 = vmul.f32 %v1537, %v1575
        %v1577 = vmul.f32 %v1539, %v1575
        %v1578 = vpack.c.bf16 %v1576, %v1560
        %v1579 = vpack.c.bf16 %v1577, %v1561
        %v1581 = vunpack.c.l.b16 %v758
        %v1582 = vunpack.c.h.b16 %v758
        %v1583 = vpack.c.b16 %v1581, %v1581
        %v1584 = vpack.c.b16 %v1582, %v1582
        %1587 = vmatpush.bf16.xpose.msra.mxu0 0
        %1588 = vmatpush.bf16.xpose.msra.mxu0 0
        %1589 = vmatpush.bf16.xpose.msra.mxu0 0
        %1590 = vmatpush.bf16.xpose.msra.mxu0 0
        %1591 = vmatpush.bf16.xpose.msra.mxu0 0
        %1592 = vmatpush.bf16.xpose.msra.mxu0 0
        %1593 = vmatpush.bf16.xpose.msra.mxu0 0
        %1594 = vmatpush.bf16.xpose.msra.mxu0 %v1578
        %1595 = vmatmul.bf16.gmra.mxu0 %v1583
        %v1596 = vpop.f32.mrf.mxu0
        %v1597 = vadd.f32 0.0, %v1596
        %v1598 = vpop.f32.mrf.mxu0
        %1599 = vdwg.mxu0
        %1600 = vmatpush.bf16.xpose.msra.mxu0 0
        %1601 = vmatpush.bf16.xpose.msra.mxu0 0
        %1602 = vmatpush.bf16.xpose.msra.mxu0 0
        %1603 = vmatpush.bf16.xpose.msra.mxu0 0
        %1604 = vmatpush.bf16.xpose.msra.mxu0 0
        %1605 = vmatpush.bf16.xpose.msra.mxu0 0
        %1606 = vmatpush.bf16.xpose.msra.mxu0 0
        %1607 = vmatpush.bf16.xpose.msra.mxu0 %v1579
        %1608 = vmatmul.bf16.gmra.mxu0 %v1584
        %v1609 = vpop.f32.mrf.mxu0
        %v1610 = vadd.f32 %v1597, %v1609
        %v1611 = vpop.f32.mrf.mxu0
        %1612 = vdwg.mxu0
        %v1613 = vld [vmem:[#allocation13] sm:$0xff]
        %v1614 = vld [vmem:[#allocation13 + $0x8] sm:$0xff]
        %v1615 = vunpack.c.l.bf16 %v1613
        %v1616 = vunpack.c.h.bf16 %v1613
        %v1617 = vunpack.c.l.bf16 %v1614
        %v1618 = vunpack.c.h.bf16 %v1614
        %v1619 = vpack.c.b16 %v778, %v778
        %v1620 = vpack.c.b16 %v779, %v779
        %v1622 = vsel %vm1487, %v1619, 0
        %v1625 = vsel %vm1487, %v1620, 0
        %1627 = vmatpush.bf16.msra.mxu0 0
        %1628 = vmatpush.bf16.msra.mxu0 0
        %1629 = vmatpush.bf16.msra.mxu0 0
        %1630 = vmatpush.bf16.msra.mxu0 0
        %1631 = vmatpush.bf16.msra.mxu0 0
        %1632 = vmatpush.bf16.msra.mxu0 0
        %1633 = vmatpush.bf16.msra.mxu0 0
        %1634 = vmatpush.bf16.msra.mxu0 %v1622
        %1635 = vmatmul.bf16.gmra.mxu0 %v1485
        %v1636 = vpop.f32.mrf.mxu0
        %v1637 = vadd.f32 %v1615, %v1636
        %v1638 = vpop.f32.mrf.mxu0
        %v1639 = vadd.f32 %v1617, %v1638
        %1640 = vdwg.mxu0
        %1641 = vmatpush.bf16.msra.mxu0 0
        %1642 = vmatpush.bf16.msra.mxu0 0
        %1643 = vmatpush.bf16.msra.mxu0 0
        %1644 = vmatpush.bf16.msra.mxu0 0
        %1645 = vmatpush.bf16.msra.mxu0 0
        %1646 = vmatpush.bf16.msra.mxu0 0
        %1647 = vmatpush.bf16.msra.mxu0 0
        %1648 = vmatpush.bf16.msra.mxu0 %v1625
        %1649 = vmatmul.bf16.gmra.mxu0 %v1485
        %v1650 = vpop.f32.mrf.mxu0
        %v1651 = vadd.f32 %v1616, %v1650
        %v1652 = vpop.f32.mrf.mxu0
        %v1653 = vadd.f32 %v1618, %v1652
        %1654 = vdwg.mxu0
        %v1655 = vmax.f32 %v1637, %v1639
        %v1656 = vrot.slane %v1655, 4
        %v1657 = vmax.f32 %v1655, %v1656
        %v1658 = vrot.slane %v1657, 2
        %v1659 = vmax.f32 %v1657, %v1658
        %v1660 = vrot.slane %v1659, 1
        %v1661 = vmax.f32 %v1659, %v1660
        %v1662 = vmax.f32 %v1651, %v1653
        %v1663 = vrot.slane %v1662, 4
        %v1664 = vmax.f32 %v1662, %v1663
        %v1665 = vrot.slane %v1664, 2
        %v1666 = vmax.f32 %v1664, %v1665
        %v1667 = vrot.slane %v1666, 1
        %v1668 = vmax.f32 %v1666, %v1667
        %v1669 = vsub.f32 %v1637, %v1661
        %v1670 = vsub.f32 %v1651, %v1668
        %v1671 = vsub.f32 %v1639, %v1661
        %v1672 = vsub.f32 %v1653, %v1668
        %v1673 = vmul.f32 %v1669, 1.442695
        %v1674 = vpow.pop %v1673
        %v1675 = vmul.f32 %v1670, 1.442695
        %v1676 = vpow.pop %v1675
        %v1677 = vmul.f32 %v1671, 1.442695
        %v1678 = vpow.pop %v1677
        %v1679 = vmul.f32 %v1672, 1.442695
        %v1680 = vpow.pop %v1679
        %v1681 = vadd.f32 %v1674, %v1678
        %v1682 = vrot.slane %v1681, 4
        %v1683 = vadd.f32 %v1681, %v1682
        %v1684 = vrot.slane %v1683, 2
        %v1685 = vadd.f32 %v1683, %v1684
        %v1686 = vrot.slane %v1685, 1
        %v1687 = vadd.f32 %v1685, %v1686
        %v1688 = vadd.f32 %v1676, %v1680
        %v1689 = vrot.slane %v1688, 4
        %v1690 = vadd.f32 %v1688, %v1689
        %v1691 = vrot.slane %v1690, 2
        %v1692 = vadd.f32 %v1690, %v1691
        %v1693 = vrot.slane %v1692, 1
        %v1694 = vadd.f32 %v1692, %v1693
        %v1695 = vrcp.pop %v1687
        %v1696 = vmul.f32 %v1687, %v1695
        %v1697 = vsub.f32 1.0, %v1696
        %v1698 = vmul.f32 %v1695, %v1697
        %v1699 = vadd.f32 %v1695, %v1698
        %vm1700 = vweird.f32 %v1687
        %vm1701 = vweird.f32 %v1695
        %vm1702 = vmor %vm1700, %vm1701
        %v1703 = vsel %vm1702, %v1695, %v1699
        %v1704 = vand.u32 2147483647, %v1687
        %vm1705 = vcmp.eq.f32.partialorder %v1704, 8.507059e+37
        %v1706 = vand.u32 %v1687, 2147483648
        %v1707 = vor.u32 1.1754944e-38, %v1706
        %v1708 = vsel %vm1705, %v1707, %v1703
        %v1709 = vmul.f32 %v1674, %v1708
        %v1710 = vrcp.pop %v1694
        %v1711 = vmul.f32 %v1694, %v1710
        %v1712 = vsub.f32 1.0, %v1711
        %v1713 = vmul.f32 %v1710, %v1712
        %v1714 = vadd.f32 %v1710, %v1713
        %vm1715 = vweird.f32 %v1694
        %vm1716 = vweird.f32 %v1710
        %vm1717 = vmor %vm1715, %vm1716
        %v1718 = vsel %vm1717, %v1710, %v1714
        %v1719 = vand.u32 2147483647, %v1694
        %vm1720 = vcmp.eq.f32.partialorder %v1719, 8.507059e+37
        %v1721 = vand.u32 %v1694, 2147483648
        %v1722 = vor.u32 1.1754944e-38, %v1721
        %v1723 = vsel %vm1720, %v1722, %v1718
        %v1724 = vmul.f32 %v1676, %v1723
        %v1725 = vmul.f32 %v1678, %v1708
        %v1726 = vmul.f32 %v1680, %v1723
        %v1727 = vpack.c.bf16 %v1725, %v1709
        %v1728 = vpack.c.bf16 %v1726, %v1724
        %v1729 = vpack.c.bf16 %v1610, %v1610
        %vm1730 = vcmask 130048
        %v1732 = vsel %vm1730, %v1729, 0
        %1734 = vmatpush.bf16.msra.mxu0 0
        %1735 = vmatpush.bf16.msra.mxu0 0
        %1736 = vmatpush.bf16.msra.mxu0 0
        %1737 = vmatpush.bf16.msra.mxu0 0
        %1738 = vmatpush.bf16.msra.mxu0 0
        %1739 = vmatpush.bf16.msra.mxu0 0
        %1740 = vmatpush.bf16.msra.mxu0 0
        %1741 = vmatpush.bf16.msra.mxu0 %v1727
        %1742 = vmatmul.bf16.gmra.mxu0 %v1732
        %v1743 = vpop.f32.mrf.mxu0
        %v1744 = vadd.f32 0.0, %v1743
        %v1745 = vpop.f32.mrf.mxu0
        %1746 = vdwg.mxu0
        %1747 = vmatpush.bf16.msra.mxu0 0
        %1748 = vmatpush.bf16.msra.mxu0 0
        %1749 = vmatpush.bf16.msra.mxu0 0
        %1750 = vmatpush.bf16.msra.mxu0 0
        %1751 = vmatpush.bf16.msra.mxu0 0
        %1752 = vmatpush.bf16.msra.mxu0 0
        %1753 = vmatpush.bf16.msra.mxu0 0
        %1754 = vmatpush.bf16.msra.mxu0 %v1728
        %1755 = vmatmul.bf16.gmra.mxu0 %v1732
        %v1756 = vpop.f32.mrf.mxu0
        %v1757 = vadd.f32 0.0, %v1756
        %v1758 = vpop.f32.mrf.mxu0
        %1759 = vdwg.mxu0
        %s1760 = scalar_lea.vmem %s9, 16
        %v1761 = vld [vmem:[%s1760] sm:$0xff]
        %v1762 = vld [vmem:[%s1760 + $0x8] sm:$0xff]
        %v1763 = vunpack.c.l.bf16 %v1761
        %v1764 = vunpack.c.h.bf16 %v1761
        %v1765 = vunpack.c.l.bf16 %v1762
        %v1766 = vunpack.c.h.bf16 %v1762
        %1767 = vrot.lane.b32.xlu0 %v1477, 120
        %v1768 = vpop.permute.xlu0 %1767
        %v1770 = vunpack.c.l.b16 %v755
        %v1771 = vunpack.c.h.b16 %v755
        %v1772 = vpack.c.b16 %v1770, %v1770
        %v1773 = vpack.c.b16 %v1771, %v1771
        %v1775 = vsel %vm1483, %v1768, 0
        %v1778 = vsel %vm1487, %v1772, 0
        %v1781 = vsel %vm1487, %v1773, 0
        %1783 = vmatpush.bf16.msra.mxu0 0
        %1784 = vmatpush.bf16.msra.mxu0 0
        %1785 = vmatpush.bf16.msra.mxu0 0
        %1786 = vmatpush.bf16.msra.mxu0 0
        %1787 = vmatpush.bf16.msra.mxu0 0
        %1788 = vmatpush.bf16.msra.mxu0 0
        %1789 = vmatpush.bf16.msra.mxu0 0
        %1790 = vmatpush.bf16.msra.mxu0 %v1778
        %1791 = vmatmul.bf16.gmra.mxu0 %v1775
        %v1792 = vpop.f32.mrf.mxu0
        %v1793 = vadd.f32 %v1763, %v1792
        %v1794 = vpop.f32.mrf.mxu0
        %v1795 = vadd.f32 %v1765, %v1794
        %1796 = vdwg.mxu0
        %1797 = vmatpush.bf16.msra.mxu0 0
        %1798 = vmatpush.bf16.msra.mxu0 0
        %1799 = vmatpush.bf16.msra.mxu0 0
        %1800 = vmatpush.bf16.msra.mxu0 0
        %1801 = vmatpush.bf16.msra.mxu0 0
        %1802 = vmatpush.bf16.msra.mxu0 0
        %1803 = vmatpush.bf16.msra.mxu0 0
        %1804 = vmatpush.bf16.msra.mxu0 %v1781
        %1805 = vmatmul.bf16.gmra.mxu0 %v1775
        %v1806 = vpop.f32.mrf.mxu0
        %v1807 = vadd.f32 %v1764, %v1806
        %v1808 = vpop.f32.mrf.mxu0
        %v1809 = vadd.f32 %v1766, %v1808
        %1810 = vdwg.mxu0
        %v1811 = vmax.f32 %v1793, %v1807
        %1812 = vmax.xlane.f32.xlu0 %v1811
        %v1813 = vpop.xlane.xlu0 %1812
        %v1814 = vmax.f32 %v1795, %v1809
        %1815 = vmax.xlane.f32.xlu0 %v1814
        %v1816 = vpop.xlane.xlu0 %1815
        %v1817 = vsub.f32 %v1793, %v1813
        %v1818 = vsub.f32 %v1807, %v1813
        %v1819 = vsub.f32 %v1795, %v1816
        %v1820 = vsub.f32 %v1809, %v1816
        %v1821 = vmul.f32 %v1817, 1.442695
        %v1822 = vpow.pop %v1821
        %v1823 = vmul.f32 %v1818, 1.442695
        %v1824 = vpow.pop %v1823
        %v1825 = vmul.f32 %v1819, 1.442695
        %v1826 = vpow.pop %v1825
        %v1827 = vmul.f32 %v1820, 1.442695
        %v1828 = vpow.pop %v1827
        %v1829 = vadd.f32 %v1822, %v1824
        %1830 = vadd.xlane.f32.xlu0 %v1829
        %v1831 = vpop.xlane.xlu0 %1830
        %v1832 = vadd.f32 %v1826, %v1828
        %1833 = vadd.xlane.f32.xlu0 %v1832
        %v1834 = vpop.xlane.xlu0 %1833
        %v1835 = vrcp.pop %v1831
        %v1836 = vmul.f32 %v1831, %v1835
        %v1837 = vsub.f32 1.0, %v1836
        %v1838 = vmul.f32 %v1835, %v1837
        %v1839 = vadd.f32 %v1835, %v1838
        %vm1840 = vweird.f32 %v1831
        %vm1841 = vweird.f32 %v1835
        %vm1842 = vmor %vm1840, %vm1841
        %v1843 = vsel %vm1842, %v1835, %v1839
        %v1844 = vand.u32 2147483647, %v1831
        %vm1845 = vcmp.eq.f32.partialorder %v1844, 8.507059e+37
        %v1846 = vand.u32 %v1831, 2147483648
        %v1847 = vor.u32 1.1754944e-38, %v1846
        %v1848 = vsel %vm1845, %v1847, %v1843
        %v1849 = vmul.f32 %v1822, %v1848
        %v1850 = vmul.f32 %v1824, %v1848
        %v1851 = vrcp.pop %v1834
        %v1852 = vmul.f32 %v1834, %v1851
        %v1853 = vsub.f32 1.0, %v1852
        %v1854 = vmul.f32 %v1851, %v1853
        %v1855 = vadd.f32 %v1851, %v1854
        %vm1856 = vweird.f32 %v1834
        %vm1857 = vweird.f32 %v1851
        %vm1858 = vmor %vm1856, %vm1857
        %v1859 = vsel %vm1858, %v1851, %v1855
        %v1860 = vand.u32 2147483647, %v1834
        %vm1861 = vcmp.eq.f32.partialorder %v1860, 8.507059e+37
        %v1862 = vand.u32 %v1834, 2147483648
        %v1863 = vor.u32 1.1754944e-38, %v1862
        %v1864 = vsel %vm1861, %v1863, %v1859
        %v1865 = vmul.f32 %v1826, %v1864
        %v1866 = vmul.f32 %v1828, %v1864
        %v1867 = vpack.c.bf16 %v1865, %v1849
        %v1868 = vpack.c.bf16 %v1866, %v1850
        %v1870 = vunpack.c.l.b16 %v759
        %v1871 = vunpack.c.h.b16 %v759
        %v1872 = vpack.c.b16 %v1870, %v1870
        %v1873 = vpack.c.b16 %v1871, %v1871
        %1876 = vmatpush.bf16.xpose.msra.mxu0 0
        %1877 = vmatpush.bf16.xpose.msra.mxu0 0
        %1878 = vmatpush.bf16.xpose.msra.mxu0 0
        %1879 = vmatpush.bf16.xpose.msra.mxu0 0
        %1880 = vmatpush.bf16.xpose.msra.mxu0 0
        %1881 = vmatpush.bf16.xpose.msra.mxu0 0
        %1882 = vmatpush.bf16.xpose.msra.mxu0 0
        %1883 = vmatpush.bf16.xpose.msra.mxu0 %v1867
        %1884 = vmatmul.bf16.gmra.mxu0 %v1872
        %v1885 = vpop.f32.mrf.mxu0
        %v1886 = vadd.f32 0.0, %v1885
        %v1887 = vpop.f32.mrf.mxu0
        %1888 = vdwg.mxu0
        %1889 = vmatpush.bf16.xpose.msra.mxu0 0
        %1890 = vmatpush.bf16.xpose.msra.mxu0 0
        %1891 = vmatpush.bf16.xpose.msra.mxu0 0
        %1892 = vmatpush.bf16.xpose.msra.mxu0 0
        %1893 = vmatpush.bf16.xpose.msra.mxu0 0
        %1894 = vmatpush.bf16.xpose.msra.mxu0 0
        %1895 = vmatpush.bf16.xpose.msra.mxu0 0
        %1896 = vmatpush.bf16.xpose.msra.mxu0 %v1868
        %1897 = vmatmul.bf16.gmra.mxu0 %v1873
        %v1898 = vpop.f32.mrf.mxu0
        %v1899 = vadd.f32 %v1886, %v1898
        %v1900 = vpop.f32.mrf.mxu0
        %1901 = vdwg.mxu0
        %s1902 = scalar_lea.vmem [#allocation13], 16
        %v1903 = vld [vmem:[%s1902] sm:$0xff]
        %v1904 = vld [vmem:[%s1902 + $0x8] sm:$0xff]
        %v1905 = vunpack.c.l.bf16 %v1903
        %v1906 = vunpack.c.h.bf16 %v1903
        %v1907 = vunpack.c.l.bf16 %v1904
        %v1908 = vunpack.c.h.bf16 %v1904
        %v1909 = vpack.c.b16 %v780, %v780
        %v1910 = vpack.c.b16 %v781, %v781
        %v1912 = vsel %vm1487, %v1909, 0
        %v1915 = vsel %vm1487, %v1910, 0
        %1917 = vmatpush.bf16.msra.mxu0 0
        %1918 = vmatpush.bf16.msra.mxu0 0
        %1919 = vmatpush.bf16.msra.mxu0 0
        %1920 = vmatpush.bf16.msra.mxu0 0
        %1921 = vmatpush.bf16.msra.mxu0 0
        %1922 = vmatpush.bf16.msra.mxu0 0
        %1923 = vmatpush.bf16.msra.mxu0 0
        %1924 = vmatpush.bf16.msra.mxu0 %v1912
        %1925 = vmatmul.bf16.gmra.mxu0 %v1775
        %v1926 = vpop.f32.mrf.mxu0
        %v1927 = vadd.f32 %v1905, %v1926
        %v1928 = vpop.f32.mrf.mxu0
        %v1929 = vadd.f32 %v1907, %v1928
        %1930 = vdwg.mxu0
        %1931 = vmatpush.bf16.msra.mxu0 0
        %1932 = vmatpush.bf16.msra.mxu0 0
        %1933 = vmatpush.bf16.msra.mxu0 0
        %1934 = vmatpush.bf16.msra.mxu0 0
        %1935 = vmatpush.bf16.msra.mxu0 0
        %1936 = vmatpush.bf16.msra.mxu0 0
        %1937 = vmatpush.bf16.msra.mxu0 0
        %1938 = vmatpush.bf16.msra.mxu0 %v1915
        %1939 = vmatmul.bf16.gmra.mxu0 %v1775
        %v1940 = vpop.f32.mrf.mxu0
        %v1941 = vadd.f32 %v1906, %v1940
        %v1942 = vpop.f32.mrf.mxu0
        %v1943 = vadd.f32 %v1908, %v1942
        %1944 = vdwg.mxu0
        %v1945 = vmax.f32 %v1927, %v1929
        %v1946 = vrot.slane %v1945, 4
        %v1947 = vmax.f32 %v1945, %v1946
        %v1948 = vrot.slane %v1947, 2
        %v1949 = vmax.f32 %v1947, %v1948
        %v1950 = vrot.slane %v1949, 1
        %v1951 = vmax.f32 %v1949, %v1950
        %v1952 = vmax.f32 %v1941, %v1943
        %v1953 = vrot.slane %v1952, 4
        %v1954 = vmax.f32 %v1952, %v1953
        %v1955 = vrot.slane %v1954, 2
        %v1956 = vmax.f32 %v1954, %v1955
        %v1957 = vrot.slane %v1956, 1
        %v1958 = vmax.f32 %v1956, %v1957
        %v1959 = vsub.f32 %v1927, %v1951
        %v1960 = vsub.f32 %v1941, %v1958
        %v1961 = vsub.f32 %v1929, %v1951
        %v1962 = vsub.f32 %v1943, %v1958
        %v1963 = vmul.f32 %v1959, 1.442695
        %v1964 = vpow.pop %v1963
        %v1965 = vmul.f32 %v1960, 1.442695
        %v1966 = vpow.pop %v1965
        %v1967 = vmul.f32 %v1961, 1.442695
        %v1968 = vpow.pop %v1967
        %v1969 = vmul.f32 %v1962, 1.442695
        %v1970 = vpow.pop %v1969
        %v1971 = vadd.f32 %v1964, %v1968
        %v1972 = vrot.slane %v1971, 4
        %v1973 = vadd.f32 %v1971, %v1972
        %v1974 = vrot.slane %v1973, 2
        %v1975 = vadd.f32 %v1973, %v1974
        %v1976 = vrot.slane %v1975, 1
        %v1977 = vadd.f32 %v1975, %v1976
        %v1978 = vadd.f32 %v1966, %v1970
        %v1979 = vrot.slane %v1978, 4
        %v1980 = vadd.f32 %v1978, %v1979
        %v1981 = vrot.slane %v1980, 2
        %v1982 = vadd.f32 %v1980, %v1981
        %v1983 = vrot.slane %v1982, 1
        %v1984 = vadd.f32 %v1982, %v1983
        %v1985 = vrcp.pop %v1977
        %v1986 = vmul.f32 %v1977, %v1985
        %v1987 = vsub.f32 1.0, %v1986
        %v1988 = vmul.f32 %v1985, %v1987
        %v1989 = vadd.f32 %v1985, %v1988
        %vm1990 = vweird.f32 %v1977
        %vm1991 = vweird.f32 %v1985
        %vm1992 = vmor %vm1990, %vm1991
        %v1993 = vsel %vm1992, %v1985, %v1989
        %v1994 = vand.u32 2147483647, %v1977
        %vm1995 = vcmp.eq.f32.partialorder %v1994, 8.507059e+37
        %v1996 = vand.u32 %v1977, 2147483648
        %v1997 = vor.u32 1.1754944e-38, %v1996
        %v1998 = vsel %vm1995, %v1997, %v1993
        %v1999 = vmul.f32 %v1964, %v1998
        %v2000 = vrcp.pop %v1984
        %v2001 = vmul.f32 %v1984, %v2000
        %v2002 = vsub.f32 1.0, %v2001
        %v2003 = vmul.f32 %v2000, %v2002
        %v2004 = vadd.f32 %v2000, %v2003
        %vm2005 = vweird.f32 %v1984
        %vm2006 = vweird.f32 %v2000
        %vm2007 = vmor %vm2005, %vm2006
        %v2008 = vsel %vm2007, %v2000, %v2004
        %v2009 = vand.u32 2147483647, %v1984
        %vm2010 = vcmp.eq.f32.partialorder %v2009, 8.507059e+37
        %v2011 = vand.u32 %v1984, 2147483648
        %v2012 = vor.u32 1.1754944e-38, %v2011
        %v2013 = vsel %vm2010, %v2012, %v2008
        %v2014 = vmul.f32 %v1966, %v2013
        %v2015 = vmul.f32 %v1968, %v1998
        %v2016 = vmul.f32 %v1970, %v2013
        %v2017 = vpack.c.bf16 %v2015, %v1999
        %v2018 = vpack.c.bf16 %v2016, %v2014
        %v2019 = vpack.c.bf16 %v1899, %v1899
        %v2021 = vsel %vm1730, %v2019, 0
        %2023 = vmatpush.bf16.msra.mxu0 0
        %2024 = vmatpush.bf16.msra.mxu0 0
        %2025 = vmatpush.bf16.msra.mxu0 0
        %2026 = vmatpush.bf16.msra.mxu0 0
        %2027 = vmatpush.bf16.msra.mxu0 0
        %2028 = vmatpush.bf16.msra.mxu0 0
        %2029 = vmatpush.bf16.msra.mxu0 0
        %2030 = vmatpush.bf16.msra.mxu0 %v2017
        %2031 = vmatmul.bf16.gmra.mxu0 %v2021
        %v2032 = vpop.f32.mrf.mxu0
        %v2033 = vadd.f32 0.0, %v2032
        %v2034 = vpop.f32.mrf.mxu0
        %2035 = vdwg.mxu0
        %2036 = vmatpush.bf16.msra.mxu0 0
        %2037 = vmatpush.bf16.msra.mxu0 0
        %2038 = vmatpush.bf16.msra.mxu0 0
        %2039 = vmatpush.bf16.msra.mxu0 0
        %2040 = vmatpush.bf16.msra.mxu0 0
        %2041 = vmatpush.bf16.msra.mxu0 0
        %2042 = vmatpush.bf16.msra.mxu0 0
        %2043 = vmatpush.bf16.msra.mxu0 %v2018
        %2044 = vmatmul.bf16.gmra.mxu0 %v2021
        %v2045 = vpop.f32.mrf.mxu0
        %v2046 = vadd.f32 0.0, %v2045
        %v2047 = vpop.f32.mrf.mxu0
        %2048 = vdwg.mxu0
        %s2049 = scalar_lea.vmem %s9, 32
        %v2050 = vld [vmem:[%s2049] sm:$0xff]
        %v2051 = vld [vmem:[%s2049 + $0x8] sm:$0xff]
        %v2052 = vunpack.c.l.bf16 %v2050
        %v2053 = vunpack.c.h.bf16 %v2050
        %v2054 = vunpack.c.l.bf16 %v2051
        %v2055 = vunpack.c.h.bf16 %v2051
        %2056 = vrot.lane.b32.xlu0 %v1477, 112
        %v2057 = vpop.permute.xlu0 %2056
        %v2059 = vunpack.c.l.b16 %v756
        %v2060 = vunpack.c.h.b16 %v756
        %v2061 = vpack.c.b16 %v2059, %v2059
        %v2062 = vpack.c.b16 %v2060, %v2060
        %v2064 = vsel %vm1483, %v2057, 0
        %v2067 = vsel %vm1487, %v2061, 0
        %v2070 = vsel %vm1487, %v2062, 0
        %2072 = vmatpush.bf16.msra.mxu0 0
        %2073 = vmatpush.bf16.msra.mxu0 0
        %2074 = vmatpush.bf16.msra.mxu0 0
        %2075 = vmatpush.bf16.msra.mxu0 0
        %2076 = vmatpush.bf16.msra.mxu0 0
        %2077 = vmatpush.bf16.msra.mxu0 0
        %2078 = vmatpush.bf16.msra.mxu0 0
        %2079 = vmatpush.bf16.msra.mxu0 %v2067
        %2080 = vmatmul.bf16.gmra.mxu0 %v2064
        %v2081 = vpop.f32.mrf.mxu0
        %v2082 = vadd.f32 %v2052, %v2081
        %v2083 = vpop.f32.mrf.mxu0
        %v2084 = vadd.f32 %v2054, %v2083
        %2085 = vdwg.mxu0
        %2086 = vmatpush.bf16.msra.mxu0 0
        %2087 = vmatpush.bf16.msra.mxu0 0
        %2088 = vmatpush.bf16.msra.mxu0 0
        %2089 = vmatpush.bf16.msra.mxu0 0
        %2090 = vmatpush.bf16.msra.mxu0 0
        %2091 = vmatpush.bf16.msra.mxu0 0
        %2092 = vmatpush.bf16.msra.mxu0 0
        %2093 = vmatpush.bf16.msra.mxu0 %v2070
        %2094 = vmatmul.bf16.gmra.mxu0 %v2064
        %v2095 = vpop.f32.mrf.mxu0
        %v2096 = vadd.f32 %v2053, %v2095
        %v2097 = vpop.f32.mrf.mxu0
        %v2098 = vadd.f32 %v2055, %v2097
        %2099 = vdwg.mxu0
        %v2100 = vmax.f32 %v2082, %v2096
        %2101 = vmax.xlane.f32.xlu0 %v2100
        %v2102 = vpop.xlane.xlu0 %2101
        %v2103 = vmax.f32 %v2084, %v2098
        %2104 = vmax.xlane.f32.xlu0 %v2103
        %v2105 = vpop.xlane.xlu0 %2104
        %v2106 = vsub.f32 %v2082, %v2102
        %v2107 = vsub.f32 %v2096, %v2102
        %v2108 = vsub.f32 %v2084, %v2105
        %v2109 = vsub.f32 %v2098, %v2105
        %v2110 = vmul.f32 %v2106, 1.442695
        %v2111 = vpow.pop %v2110
        %v2112 = vmul.f32 %v2107, 1.442695
        %v2113 = vpow.pop %v2112
        %v2114 = vmul.f32 %v2108, 1.442695
        %v2115 = vpow.pop %v2114
        %v2116 = vmul.f32 %v2109, 1.442695
        %v2117 = vpow.pop %v2116
        %v2118 = vadd.f32 %v2111, %v2113
        %2119 = vadd.xlane.f32.xlu0 %v2118
        %v2120 = vpop.xlane.xlu0 %2119
        %v2121 = vadd.f32 %v2115, %v2117
        %2122 = vadd.xlane.f32.xlu0 %v2121
        %v2123 = vpop.xlane.xlu0 %2122
        %v2124 = vrcp.pop %v2120
        %v2125 = vmul.f32 %v2120, %v2124
        %v2126 = vsub.f32 1.0, %v2125
        %v2127 = vmul.f32 %v2124, %v2126
        %v2128 = vadd.f32 %v2124, %v2127
        %vm2129 = vweird.f32 %v2120
        %vm2130 = vweird.f32 %v2124
        %vm2131 = vmor %vm2129, %vm2130
        %v2132 = vsel %vm2131, %v2124, %v2128
        %v2133 = vand.u32 2147483647, %v2120
        %vm2134 = vcmp.eq.f32.partialorder %v2133, 8.507059e+37
        %v2135 = vand.u32 %v2120, 2147483648
        %v2136 = vor.u32 1.1754944e-38, %v2135
        %v2137 = vsel %vm2134, %v2136, %v2132
        %v2138 = vmul.f32 %v2111, %v2137
        %v2139 = vmul.f32 %v2113, %v2137
        %v2140 = vrcp.pop %v2123
        %v2141 = vmul.f32 %v2123, %v2140
        %v2142 = vsub.f32 1.0, %v2141
        %v2143 = vmul.f32 %v2140, %v2142
        %v2144 = vadd.f32 %v2140, %v2143
        %vm2145 = vweird.f32 %v2123
        %vm2146 = vweird.f32 %v2140
        %vm2147 = vmor %vm2145, %vm2146
        %v2148 = vsel %vm2147, %v2140, %v2144
        %v2149 = vand.u32 2147483647, %v2123
        %vm2150 = vcmp.eq.f32.partialorder %v2149, 8.507059e+37
        %v2151 = vand.u32 %v2123, 2147483648
        %v2152 = vor.u32 1.1754944e-38, %v2151
        %v2153 = vsel %vm2150, %v2152, %v2148
        %v2154 = vmul.f32 %v2115, %v2153
        %v2155 = vmul.f32 %v2117, %v2153
        %v2156 = vpack.c.bf16 %v2154, %v2138
        %v2157 = vpack.c.bf16 %v2155, %v2139
        %v2159 = vunpack.c.l.b16 %v760
        %v2160 = vunpack.c.h.b16 %v760
        %v2161 = vpack.c.b16 %v2159, %v2159
        %v2162 = vpack.c.b16 %v2160, %v2160
        %2165 = vmatpush.bf16.xpose.msra.mxu0 0
        %2166 = vmatpush.bf16.xpose.msra.mxu0 0
        %2167 = vmatpush.bf16.xpose.msra.mxu0 0
        %2168 = vmatpush.bf16.xpose.msra.mxu0 0
        %2169 = vmatpush.bf16.xpose.msra.mxu0 0
        %2170 = vmatpush.bf16.xpose.msra.mxu0 0
        %2171 = vmatpush.bf16.xpose.msra.mxu0 0
        %2172 = vmatpush.bf16.xpose.msra.mxu0 %v2156
        %2173 = vmatmul.bf16.gmra.mxu0 %v2161
        %v2174 = vpop.f32.mrf.mxu0
        %v2175 = vadd.f32 0.0, %v2174
        %v2176 = vpop.f32.mrf.mxu0
        %2177 = vdwg.mxu0
        %2178 = vmatpush.bf16.xpose.msra.mxu0 0
        %2179 = vmatpush.bf16.xpose.msra.mxu0 0
        %2180 = vmatpush.bf16.xpose.msra.mxu0 0
        %2181 = vmatpush.bf16.xpose.msra.mxu0 0
        %2182 = vmatpush.bf16.xpose.msra.mxu0 0
        %2183 = vmatpush.bf16.xpose.msra.mxu0 0
        %2184 = vmatpush.bf16.xpose.msra.mxu0 0
        %2185 = vmatpush.bf16.xpose.msra.mxu0 %v2157
        %2186 = vmatmul.bf16.gmra.mxu0 %v2162
        %v2187 = vpop.f32.mrf.mxu0
        %v2188 = vadd.f32 %v2175, %v2187
        %v2189 = vpop.f32.mrf.mxu0
        %2190 = vdwg.mxu0
        %s2191 = scalar_lea.vmem [#allocation13], 32
        %v2192 = vld [vmem:[%s2191] sm:$0xff]
        %v2193 = vld [vmem:[%s2191 + $0x8] sm:$0xff]
        %v2194 = vunpack.c.l.bf16 %v2192
        %v2195 = vunpack.c.h.bf16 %v2192
        %v2196 = vunpack.c.l.bf16 %v2193
        %v2197 = vunpack.c.h.bf16 %v2193
        %v2198 = vpack.c.b16 %v782, %v782
        %v2199 = vpack.c.b16 %v783, %v783
        %v2201 = vsel %vm1487, %v2198, 0
        %v2204 = vsel %vm1487, %v2199, 0
        %2206 = vmatpush.bf16.msra.mxu0 0
        %2207 = vmatpush.bf16.msra.mxu0 0
        %2208 = vmatpush.bf16.msra.mxu0 0
        %2209 = vmatpush.bf16.msra.mxu0 0
        %2210 = vmatpush.bf16.msra.mxu0 0
        %2211 = vmatpush.bf16.msra.mxu0 0
        %2212 = vmatpush.bf16.msra.mxu0 0
        %2213 = vmatpush.bf16.msra.mxu0 %v2201
        %2214 = vmatmul.bf16.gmra.mxu0 %v2064
        %v2215 = vpop.f32.mrf.mxu0
        %v2216 = vadd.f32 %v2194, %v2215
        %v2217 = vpop.f32.mrf.mxu0
        %v2218 = vadd.f32 %v2196, %v2217
        %2219 = vdwg.mxu0
        %2220 = vmatpush.bf16.msra.mxu0 0
        %2221 = vmatpush.bf16.msra.mxu0 0
        %2222 = vmatpush.bf16.msra.mxu0 0
        %2223 = vmatpush.bf16.msra.mxu0 0
        %2224 = vmatpush.bf16.msra.mxu0 0
        %2225 = vmatpush.bf16.msra.mxu0 0
        %2226 = vmatpush.bf16.msra.mxu0 0
        %2227 = vmatpush.bf16.msra.mxu0 %v2204
        %2228 = vmatmul.bf16.gmra.mxu0 %v2064
        %v2229 = vpop.f32.mrf.mxu0
        %v2230 = vadd.f32 %v2195, %v2229
        %v2231 = vpop.f32.mrf.mxu0
        %v2232 = vadd.f32 %v2197, %v2231
        %2233 = vdwg.mxu0
        %v2234 = vmax.f32 %v2216, %v2218
        %v2235 = vrot.slane %v2234, 4
        %v2236 = vmax.f32 %v2234, %v2235
        %v2237 = vrot.slane %v2236, 2
        %v2238 = vmax.f32 %v2236, %v2237
        %v2239 = vrot.slane %v2238, 1
        %v2240 = vmax.f32 %v2238, %v2239
        %v2241 = vmax.f32 %v2230, %v2232
        %v2242 = vrot.slane %v2241, 4
        %v2243 = vmax.f32 %v2241, %v2242
        %v2244 = vrot.slane %v2243, 2
        %v2245 = vmax.f32 %v2243, %v2244
        %v2246 = vrot.slane %v2245, 1
        %v2247 = vmax.f32 %v2245, %v2246
        %v2248 = vsub.f32 %v2216, %v2240
        %v2249 = vsub.f32 %v2230, %v2247
        %v2250 = vsub.f32 %v2218, %v2240
        %v2251 = vsub.f32 %v2232, %v2247
        %v2252 = vmul.f32 %v2248, 1.442695
        %v2253 = vpow.pop %v2252
        %v2254 = vmul.f32 %v2249, 1.442695
        %v2255 = vpow.pop %v2254
        %v2256 = vmul.f32 %v2250, 1.442695
        %v2257 = vpow.pop %v2256
        %v2258 = vmul.f32 %v2251, 1.442695
        %v2259 = vpow.pop %v2258
        %v2260 = vadd.f32 %v2253, %v2257
        %v2261 = vrot.slane %v2260, 4
        %v2262 = vadd.f32 %v2260, %v2261
        %v2263 = vrot.slane %v2262, 2
        %v2264 = vadd.f32 %v2262, %v2263
        %v2265 = vrot.slane %v2264, 1
        %v2266 = vadd.f32 %v2264, %v2265
        %v2267 = vadd.f32 %v2255, %v2259
        %v2268 = vrot.slane %v2267, 4
        %v2269 = vadd.f32 %v2267, %v2268
        %v2270 = vrot.slane %v2269, 2
        %v2271 = vadd.f32 %v2269, %v2270
        %v2272 = vrot.slane %v2271, 1
        %v2273 = vadd.f32 %v2271, %v2272
        %v2274 = vrcp.pop %v2266
        %v2275 = vmul.f32 %v2266, %v2274
        %v2276 = vsub.f32 1.0, %v2275
        %v2277 = vmul.f32 %v2274, %v2276
        %v2278 = vadd.f32 %v2274, %v2277
        %vm2279 = vweird.f32 %v2266
        %vm2280 = vweird.f32 %v2274
        %vm2281 = vmor %vm2279, %vm2280
        %v2282 = vsel %vm2281, %v2274, %v2278
        %v2283 = vand.u32 2147483647, %v2266
        %vm2284 = vcmp.eq.f32.partialorder %v2283, 8.507059e+37
        %v2285 = vand.u32 %v2266, 2147483648
        %v2286 = vor.u32 1.1754944e-38, %v2285
        %v2287 = vsel %vm2284, %v2286, %v2282
        %v2288 = vmul.f32 %v2253, %v2287
        %v2289 = vrcp.pop %v2273
        %v2290 = vmul.f32 %v2273, %v2289
        %v2291 = vsub.f32 1.0, %v2290
        %v2292 = vmul.f32 %v2289, %v2291
        %v2293 = vadd.f32 %v2289, %v2292
        %vm2294 = vweird.f32 %v2273
        %vm2295 = vweird.f32 %v2289
        %vm2296 = vmor %vm2294, %vm2295
        %v2297 = vsel %vm2296, %v2289, %v2293
        %v2298 = vand.u32 2147483647, %v2273
        %vm2299 = vcmp.eq.f32.partialorder %v2298, 8.507059e+37
        %v2300 = vand.u32 %v2273, 2147483648
        %v2301 = vor.u32 1.1754944e-38, %v2300
        %v2302 = vsel %vm2299, %v2301, %v2297
        %v2303 = vmul.f32 %v2255, %v2302
        %v2304 = vmul.f32 %v2257, %v2287
        %v2305 = vmul.f32 %v2259, %v2302
        %v2306 = vpack.c.bf16 %v2304, %v2288
        %v2307 = vpack.c.bf16 %v2305, %v2303
        %v2308 = vpack.c.bf16 %v2188, %v2188
        %v2310 = vsel %vm1730, %v2308, 0
        %2312 = vmatpush.bf16.msra.mxu0 0
        %2313 = vmatpush.bf16.msra.mxu0 0
        %2314 = vmatpush.bf16.msra.mxu0 0
        %2315 = vmatpush.bf16.msra.mxu0 0
        %2316 = vmatpush.bf16.msra.mxu0 0
        %2317 = vmatpush.bf16.msra.mxu0 0
        %2318 = vmatpush.bf16.msra.mxu0 0
        %2319 = vmatpush.bf16.msra.mxu0 %v2306
        %2320 = vmatmul.bf16.gmra.mxu0 %v2310
        %v2321 = vpop.f32.mrf.mxu0
        %v2322 = vadd.f32 0.0, %v2321
        %v2323 = vpop.f32.mrf.mxu0
        %2324 = vdwg.mxu0
        %2325 = vmatpush.bf16.msra.mxu0 0
        %2326 = vmatpush.bf16.msra.mxu0 0
        %2327 = vmatpush.bf16.msra.mxu0 0
        %2328 = vmatpush.bf16.msra.mxu0 0
        %2329 = vmatpush.bf16.msra.mxu0 0
        %2330 = vmatpush.bf16.msra.mxu0 0
        %2331 = vmatpush.bf16.msra.mxu0 0
        %2332 = vmatpush.bf16.msra.mxu0 %v2307
        %2333 = vmatmul.bf16.gmra.mxu0 %v2310
        %v2334 = vpop.f32.mrf.mxu0
        %v2335 = vadd.f32 0.0, %v2334
        %v2336 = vpop.f32.mrf.mxu0
        %2337 = vdwg.mxu0
        %s2338 = scalar_lea.vmem %s9, 48
        %v2339 = vld [vmem:[%s2338] sm:$0xff]
        %v2340 = vld [vmem:[%s2338 + $0x8] sm:$0xff]
        %v2341 = vunpack.c.l.bf16 %v2339
        %v2342 = vunpack.c.h.bf16 %v2339
        %v2343 = vunpack.c.l.bf16 %v2340
        %v2344 = vunpack.c.h.bf16 %v2340
        %2345 = vrot.lane.b32.xlu0 %v1477, 104
        %v2346 = vpop.permute.xlu0 %2345
        %v2348 = vunpack.c.l.b16 %v757
        %v2349 = vunpack.c.h.b16 %v757
        %v2350 = vpack.c.b16 %v2348, %v2348
        %v2351 = vpack.c.b16 %v2349, %v2349
        %v2353 = vsel %vm1483, %v2346, 0
        %v2356 = vsel %vm1487, %v2350, 0
        %v2359 = vsel %vm1487, %v2351, 0
        %2361 = vmatpush.bf16.msra.mxu0 0
        %2362 = vmatpush.bf16.msra.mxu0 0
        %2363 = vmatpush.bf16.msra.mxu0 0
        %2364 = vmatpush.bf16.msra.mxu0 0
        %2365 = vmatpush.bf16.msra.mxu0 0
        %2366 = vmatpush.bf16.msra.mxu0 0
        %2367 = vmatpush.bf16.msra.mxu0 0
        %2368 = vmatpush.bf16.msra.mxu0 %v2356
        %2369 = vmatmul.bf16.gmra.mxu0 %v2353
        %v2370 = vpop.f32.mrf.mxu0
        %v2371 = vadd.f32 %v2341, %v2370
        %v2372 = vpop.f32.mrf.mxu0
        %v2373 = vadd.f32 %v2343, %v2372
        %2374 = vdwg.mxu0
        %2375 = vmatpush.bf16.msra.mxu0 0
        %2376 = vmatpush.bf16.msra.mxu0 0
        %2377 = vmatpush.bf16.msra.mxu0 0
        %2378 = vmatpush.bf16.msra.mxu0 0
        %2379 = vmatpush.bf16.msra.mxu0 0
        %2380 = vmatpush.bf16.msra.mxu0 0
        %2381 = vmatpush.bf16.msra.mxu0 0
        %2382 = vmatpush.bf16.msra.mxu0 %v2359
        %2383 = vmatmul.bf16.gmra.mxu0 %v2353
        %v2384 = vpop.f32.mrf.mxu0
        %v2385 = vadd.f32 %v2342, %v2384
        %v2386 = vpop.f32.mrf.mxu0
        %v2387 = vadd.f32 %v2344, %v2386
        %2388 = vdwg.mxu0
        %v2389 = vmax.f32 %v2371, %v2385
        %2390 = vmax.xlane.f32.xlu0 %v2389
        %v2391 = vpop.xlane.xlu0 %2390
        %v2392 = vmax.f32 %v2373, %v2387
        %2393 = vmax.xlane.f32.xlu0 %v2392
        %v2394 = vpop.xlane.xlu0 %2393
        %v2395 = vsub.f32 %v2371, %v2391
        %v2396 = vsub.f32 %v2385, %v2391
        %v2397 = vsub.f32 %v2373, %v2394
        %v2398 = vsub.f32 %v2387, %v2394
        %v2399 = vmul.f32 %v2395, 1.442695
        %v2400 = vpow.pop %v2399
        %v2401 = vmul.f32 %v2396, 1.442695
        %v2402 = vpow.pop %v2401
        %v2403 = vmul.f32 %v2397, 1.442695
        %v2404 = vpow.pop %v2403
        %v2405 = vmul.f32 %v2398, 1.442695
        %v2406 = vpow.pop %v2405
        %v2407 = vadd.f32 %v2400, %v2402
        %2408 = vadd.xlane.f32.xlu0 %v2407
        %v2409 = vpop.xlane.xlu0 %2408
        %v2410 = vadd.f32 %v2404, %v2406
        %2411 = vadd.xlane.f32.xlu0 %v2410
        %v2412 = vpop.xlane.xlu0 %2411
        %v2413 = vrcp.pop %v2409
        %v2414 = vmul.f32 %v2409, %v2413
        %v2415 = vsub.f32 1.0, %v2414
        %v2416 = vmul.f32 %v2413, %v2415
        %v2417 = vadd.f32 %v2413, %v2416
        %vm2418 = vweird.f32 %v2409
        %vm2419 = vweird.f32 %v2413
        %vm2420 = vmor %vm2418, %vm2419
        %v2421 = vsel %vm2420, %v2413, %v2417
        %v2422 = vand.u32 2147483647, %v2409
        %vm2423 = vcmp.eq.f32.partialorder %v2422, 8.507059e+37
        %v2424 = vand.u32 %v2409, 2147483648
        %v2425 = vor.u32 1.1754944e-38, %v2424
        %v2426 = vsel %vm2423, %v2425, %v2421
        %v2427 = vmul.f32 %v2400, %v2426
        %v2428 = vmul.f32 %v2402, %v2426
        %v2429 = vrcp.pop %v2412
        %v2430 = vmul.f32 %v2412, %v2429
        %v2431 = vsub.f32 1.0, %v2430
        %v2432 = vmul.f32 %v2429, %v2431
        %v2433 = vadd.f32 %v2429, %v2432
        %vm2434 = vweird.f32 %v2412
        %vm2435 = vweird.f32 %v2429
        %vm2436 = vmor %vm2434, %vm2435
        %v2437 = vsel %vm2436, %v2429, %v2433
        %v2438 = vand.u32 2147483647, %v2412
        %vm2439 = vcmp.eq.f32.partialorder %v2438, 8.507059e+37
        %v2440 = vand.u32 %v2412, 2147483648
        %v2441 = vor.u32 1.1754944e-38, %v2440
        %v2442 = vsel %vm2439, %v2441, %v2437
        %v2443 = vmul.f32 %v2404, %v2442
        %v2444 = vmul.f32 %v2406, %v2442
        %v2445 = vpack.c.bf16 %v2443, %v2427
        %v2446 = vpack.c.bf16 %v2444, %v2428
        %v2448 = vunpack.c.l.b16 %v761
        %v2449 = vunpack.c.h.b16 %v761
        %v2450 = vpack.c.b16 %v2448, %v2448
        %v2451 = vpack.c.b16 %v2449, %v2449
        %2454 = vmatpush.bf16.xpose.msra.mxu0 0
        %2455 = vmatpush.bf16.xpose.msra.mxu0 0
        %2456 = vmatpush.bf16.xpose.msra.mxu0 0
        %2457 = vmatpush.bf16.xpose.msra.mxu0 0
        %2458 = vmatpush.bf16.xpose.msra.mxu0 0
        %2459 = vmatpush.bf16.xpose.msra.mxu0 0
        %2460 = vmatpush.bf16.xpose.msra.mxu0 0
        %2461 = vmatpush.bf16.xpose.msra.mxu0 %v2445
        %2462 = vmatmul.bf16.gmra.mxu0 %v2450
        %v2463 = vpop.f32.mrf.mxu0
        %v2464 = vadd.f32 0.0, %v2463
        %v2465 = vpop.f32.mrf.mxu0
        %2466 = vdwg.mxu0
        %2467 = vmatpush.bf16.xpose.msra.mxu0 0
        %2468 = vmatpush.bf16.xpose.msra.mxu0 0
        %2469 = vmatpush.bf16.xpose.msra.mxu0 0
        %2470 = vmatpush.bf16.xpose.msra.mxu0 0
        %2471 = vmatpush.bf16.xpose.msra.mxu0 0
        %2472 = vmatpush.bf16.xpose.msra.mxu0 0
        %2473 = vmatpush.bf16.xpose.msra.mxu0 0
        %2474 = vmatpush.bf16.xpose.msra.mxu0 %v2446
        %2475 = vmatmul.bf16.gmra.mxu0 %v2451
        %v2476 = vpop.f32.mrf.mxu0
        %v2477 = vadd.f32 %v2464, %v2476
        %v2478 = vpop.f32.mrf.mxu0
        %2479 = vdwg.mxu0
        %s2480 = scalar_lea.vmem [#allocation13], 48
        %v2481 = vld [vmem:[%s2480] sm:$0xff]
        %v2482 = vld [vmem:[%s2480 + $0x8] sm:$0xff]
        %v2483 = vunpack.c.l.bf16 %v2481
        %v2484 = vunpack.c.h.bf16 %v2481
        %v2485 = vunpack.c.l.bf16 %v2482
        %v2486 = vunpack.c.h.bf16 %v2482
        %v2487 = vpack.c.b16 %v784, %v784
        %v2488 = vpack.c.b16 %v785, %v785
        %v2490 = vsel %vm1487, %v2487, 0
        %v2493 = vsel %vm1487, %v2488, 0
        %2495 = vmatpush.bf16.msra.mxu0 0
        %2496 = vmatpush.bf16.msra.mxu0 0
        %2497 = vmatpush.bf16.msra.mxu0 0
        %2498 = vmatpush.bf16.msra.mxu0 0
        %2499 = vmatpush.bf16.msra.mxu0 0
        %2500 = vmatpush.bf16.msra.mxu0 0
        %2501 = vmatpush.bf16.msra.mxu0 0
        %2502 = vmatpush.bf16.msra.mxu0 %v2490
        %2503 = vmatmul.bf16.gmra.mxu0 %v2353
        %v2504 = vpop.f32.mrf.mxu0
        %v2505 = vadd.f32 %v2483, %v2504
        %v2506 = vpop.f32.mrf.mxu0
        %v2507 = vadd.f32 %v2485, %v2506
        %2508 = vdwg.mxu0
        %2509 = vmatpush.bf16.msra.mxu0 0
        %2510 = vmatpush.bf16.msra.mxu0 0
        %2511 = vmatpush.bf16.msra.mxu0 0
        %2512 = vmatpush.bf16.msra.mxu0 0
        %2513 = vmatpush.bf16.msra.mxu0 0
        %2514 = vmatpush.bf16.msra.mxu0 0
        %2515 = vmatpush.bf16.msra.mxu0 0
        %2516 = vmatpush.bf16.msra.mxu0 %v2493
        %2517 = vmatmul.bf16.gmra.mxu0 %v2353
        %v2518 = vpop.f32.mrf.mxu0
        %v2519 = vadd.f32 %v2484, %v2518
        %v2520 = vpop.f32.mrf.mxu0
        %v2521 = vadd.f32 %v2486, %v2520
        %2522 = vdwg.mxu0
        %v2523 = vmax.f32 %v2505, %v2507
        %v2524 = vrot.slane %v2523, 4
        %v2525 = vmax.f32 %v2523, %v2524
        %v2526 = vrot.slane %v2525, 2
        %v2527 = vmax.f32 %v2525, %v2526
        %v2528 = vrot.slane %v2527, 1
        %v2529 = vmax.f32 %v2527, %v2528
        %v2530 = vmax.f32 %v2519, %v2521
        %v2531 = vrot.slane %v2530, 4
        %v2532 = vmax.f32 %v2530, %v2531
        %v2533 = vrot.slane %v2532, 2
        %v2534 = vmax.f32 %v2532, %v2533
        %v2535 = vrot.slane %v2534, 1
        %v2536 = vmax.f32 %v2534, %v2535
        %v2537 = vsub.f32 %v2505, %v2529
        %v2538 = vsub.f32 %v2519, %v2536
        %v2539 = vsub.f32 %v2507, %v2529
        %v2540 = vsub.f32 %v2521, %v2536
        %v2541 = vmul.f32 %v2537, 1.442695
        %v2542 = vpow.pop %v2541
        %v2543 = vmul.f32 %v2538, 1.442695
        %v2544 = vpow.pop %v2543
        %v2545 = vmul.f32 %v2539, 1.442695
        %v2546 = vpow.pop %v2545
        %v2547 = vmul.f32 %v2540, 1.442695
        %v2548 = vpow.pop %v2547
        %v2549 = vadd.f32 %v2542, %v2546
        %v2550 = vrot.slane %v2549, 4
        %v2551 = vadd.f32 %v2549, %v2550
        %v2552 = vrot.slane %v2551, 2
        %v2553 = vadd.f32 %v2551, %v2552
        %v2554 = vrot.slane %v2553, 1
        %v2555 = vadd.f32 %v2553, %v2554
        %v2556 = vadd.f32 %v2544, %v2548
        %v2557 = vrot.slane %v2556, 4
        %v2558 = vadd.f32 %v2556, %v2557
        %v2559 = vrot.slane %v2558, 2
        %v2560 = vadd.f32 %v2558, %v2559
        %v2561 = vrot.slane %v2560, 1
        %v2562 = vadd.f32 %v2560, %v2561
        %v2563 = vrcp.pop %v2555
        %v2564 = vmul.f32 %v2555, %v2563
        %v2565 = vsub.f32 1.0, %v2564
        %v2566 = vmul.f32 %v2563, %v2565
        %v2567 = vadd.f32 %v2563, %v2566
        %vm2568 = vweird.f32 %v2555
        %vm2569 = vweird.f32 %v2563
        %vm2570 = vmor %vm2568, %vm2569
        %v2571 = vsel %vm2570, %v2563, %v2567
        %v2572 = vand.u32 2147483647, %v2555
        %vm2573 = vcmp.eq.f32.partialorder %v2572, 8.507059e+37
        %v2574 = vand.u32 %v2555, 2147483648
        %v2575 = vor.u32 1.1754944e-38, %v2574
        %v2576 = vsel %vm2573, %v2575, %v2571
        %v2577 = vmul.f32 %v2542, %v2576
        %v2578 = vrcp.pop %v2562
        %v2579 = vmul.f32 %v2562, %v2578
        %v2580 = vsub.f32 1.0, %v2579
        %v2581 = vmul.f32 %v2578, %v2580
        %v2582 = vadd.f32 %v2578, %v2581
        %vm2583 = vweird.f32 %v2562
        %vm2584 = vweird.f32 %v2578
        %vm2585 = vmor %vm2583, %vm2584
        %v2586 = vsel %vm2585, %v2578, %v2582
        %v2587 = vand.u32 2147483647, %v2562
        %vm2588 = vcmp.eq.f32.partialorder %v2587, 8.507059e+37
        %v2589 = vand.u32 %v2562, 2147483648
        %v2590 = vor.u32 1.1754944e-38, %v2589
        %v2591 = vsel %vm2588, %v2590, %v2586
        %v2592 = vmul.f32 %v2544, %v2591
        %v2593 = vmul.f32 %v2546, %v2576
        %v2594 = vmul.f32 %v2548, %v2591
        %v2595 = vpack.c.bf16 %v2593, %v2577
        %v2596 = vpack.c.bf16 %v2594, %v2592
        %v2597 = vpack.c.bf16 %v2477, %v2477
        %v2599 = vsel %vm1730, %v2597, 0
        %2601 = vmatpush.bf16.msra.mxu0 0
        %2602 = vmatpush.bf16.msra.mxu0 0
        %2603 = vmatpush.bf16.msra.mxu0 0
        %2604 = vmatpush.bf16.msra.mxu0 0
        %2605 = vmatpush.bf16.msra.mxu0 0
        %2606 = vmatpush.bf16.msra.mxu0 0
        %2607 = vmatpush.bf16.msra.mxu0 0
        %2608 = vmatpush.bf16.msra.mxu0 %v2595
        %2609 = vmatmul.bf16.gmra.mxu0 %v2599
        %v2610 = vpop.f32.mrf.mxu0
        %v2611 = vadd.f32 0.0, %v2610
        %v2612 = vpop.f32.mrf.mxu0
        %2613 = vdwg.mxu0
        %2614 = vmatpush.bf16.msra.mxu0 0
        %2615 = vmatpush.bf16.msra.mxu0 0
        %2616 = vmatpush.bf16.msra.mxu0 0
        %2617 = vmatpush.bf16.msra.mxu0 0
        %2618 = vmatpush.bf16.msra.mxu0 0
        %2619 = vmatpush.bf16.msra.mxu0 0
        %2620 = vmatpush.bf16.msra.mxu0 0
        %2621 = vmatpush.bf16.msra.mxu0 %v2596
        %2622 = vmatmul.bf16.gmra.mxu0 %v2599
        %v2623 = vpop.f32.mrf.mxu0
        %v2624 = vadd.f32 0.0, %v2623
        %v2625 = vpop.f32.mrf.mxu0
        %2626 = vdwg.mxu0
        %v2627 = vadd.f32 %v1744, %v1459
        %v2628 = vadd.f32 %v1757, %v1460
        %v2629 = vadd.f32 %v2033, %v1461
        %v2630 = vadd.f32 %v2046, %v1462
        %v2631 = vadd.f32 %v2322, %v1463
        %v2632 = vadd.f32 %v2335, %v1464
        %v2633 = vadd.f32 %v2611, %v1465
        %v2634 = vadd.f32 %v2624, %v1466
        %v2635 = vpack.c.bf16 %v2629, %v2627
        %v2636 = vpack.c.bf16 %v2630, %v2628
        %v2637 = vpack.c.bf16 %v2633, %v2631
        %v2638 = vpack.c.bf16 %v2634, %v2632
        %v2639 = vld [vmem:[#allocation10] sm:$0xf]
        %v2640 = vld [vmem:[#allocation10 + $0x4] sm:$0xf]
        %v2641 = vld [vmem:[#allocation10 + $0x8] sm:$0xf]
        %v2642 = vld [vmem:[#allocation10 + $0xc] sm:$0xf]
        %2643 = vset.pattern.permute.xlu0 4
        %2644 = vperm.xlu0 %2643, %v519
        %v2645 = vpop.permute.xlu0 %2644
        %2647 = vset.pattern.permute.xlu0 4
        %2648 = vperm.xlu0 %2647, %v520
        %v2649 = vpop.permute.xlu0 %2648
        %2651 = vset.pattern.permute.xlu0 4
        %2652 = vperm.xlu0 %2651, %v521
        %v2653 = vpop.permute.xlu0 %2652
        %2655 = vset.pattern.permute.xlu0 4
        %2656 = vperm.xlu0 %2655, %v522
        %v2657 = vpop.permute.xlu0 %2656
        %v2663 = vunpack.c.l.b16 %v2639
        %v2664 = vunpack.c.l.b16 %v2640
        %v2665 = vunpack.c.l.b16 %v2641
        %v2666 = vunpack.c.l.b16 %v2642
        %v2667 = vpack.c.b16 %v2664, %v2663
        %v2668 = vpack.c.b16 %v2666, %v2665
        %v2670 = vsel %vm557, %v2667, 0
        %v2673 = vsel %vm557, %v2668, 0
        %2675 = vmatpush.bf16.msra.mxu0 0
        %2676 = vmatpush.bf16.msra.mxu0 0
        %2677 = vmatpush.bf16.msra.mxu0 0
        %2678 = vmatpush.bf16.msra.mxu0 0
        %2679 = vmatpush.bf16.msra.mxu0 0
        %2680 = vmatpush.bf16.msra.mxu0 0
        %2681 = vmatpush.bf16.msra.mxu0 %v2637
        %2682 = vmatpush.bf16.msra.mxu0 %v2635
        %2683 = vmatmul.bf16.gmra.mxu0 %v2670
        %v2684 = vpop.f32.mrf.mxu0
        %v2685 = vadd.f32 %v2645, %v2684
        %v2686 = vpop.f32.mrf.mxu0
        %v2687 = vadd.f32 %v2649, %v2686
        %2688 = vmatmul.bf16.gmra.mxu0 %v2673
        %v2689 = vpop.f32.mrf.mxu0
        %v2690 = vadd.f32 %v2653, %v2689
        %v2691 = vpop.f32.mrf.mxu0
        %v2692 = vadd.f32 %v2657, %v2691
        %2693 = vdwg.mxu0
        %2694 = vmatpush.bf16.msra.mxu0 0
        %2695 = vmatpush.bf16.msra.mxu0 0
        %2696 = vmatpush.bf16.msra.mxu0 0
        %2697 = vmatpush.bf16.msra.mxu0 0
        %2698 = vmatpush.bf16.msra.mxu0 0
        %2699 = vmatpush.bf16.msra.mxu0 0
        %2700 = vmatpush.bf16.msra.mxu0 %v2638
        %2701 = vmatpush.bf16.msra.mxu0 %v2636
        %2702 = vmatmul.bf16.gmra.mxu0 %v2670
        %v2703 = vpop.f32.mrf.mxu0
        %v2704 = vadd.f32 %v2645, %v2703
        %v2705 = vpop.f32.mrf.mxu0
        %v2706 = vadd.f32 %v2649, %v2705
        %2707 = vmatmul.bf16.gmra.mxu0 %v2673
        %v2708 = vpop.f32.mrf.mxu0
        %v2709 = vadd.f32 %v2653, %v2708
        %v2710 = vpop.f32.mrf.mxu0
        %v2711 = vadd.f32 %v2657, %v2710
        %2712 = vdwg.mxu0
        %v2713 = vxor.u32 %v2685, 2147483648
        %v2714 = vxor.u32 %v2704, 2147483648
        %v2715 = vxor.u32 %v2687, 2147483648
        %v2716 = vxor.u32 %v2706, 2147483648
        %v2717 = vxor.u32 %v2690, 2147483648
        %v2718 = vxor.u32 %v2709, 2147483648
        %v2719 = vxor.u32 %v2692, 2147483648
        %v2720 = vxor.u32 %v2711, 2147483648
        %v2721 = vmul.f32 %v2713, 1.442695
        %v2722 = vpow.pop %v2721
        %v2723 = vmul.f32 %v2714, 1.442695
        %v2724 = vpow.pop %v2723
        %v2725 = vmul.f32 %v2715, 1.442695
        %v2726 = vpow.pop %v2725
        %v2727 = vmul.f32 %v2716, 1.442695
        %v2728 = vpow.pop %v2727
        %v2729 = vmul.f32 %v2717, 1.442695
        %v2730 = vpow.pop %v2729
        %v2731 = vmul.f32 %v2718, 1.442695
        %v2732 = vpow.pop %v2731
        %v2733 = vmul.f32 %v2719, 1.442695
        %v2734 = vpow.pop %v2733
        %v2735 = vmul.f32 %v2720, 1.442695
        %v2736 = vpow.pop %v2735
        %v2737 = vadd.f32 %v2722, 1.0
        %v2738 = vadd.f32 %v2724, 1.0
        %v2739 = vadd.f32 %v2726, 1.0
        %v2740 = vadd.f32 %v2728, 1.0
        %v2741 = vadd.f32 %v2730, 1.0
        %v2742 = vadd.f32 %v2732, 1.0
        %v2743 = vadd.f32 %v2734, 1.0
        %v2744 = vadd.f32 %v2736, 1.0
        %v2745 = vrcp.pop %v2737
        %v2746 = vmul.f32 %v2737, %v2745
        %v2747 = vsub.f32 1.0, %v2746
        %v2748 = vmul.f32 %v2745, %v2747
        %v2749 = vadd.f32 %v2745, %v2748
        %vm2750 = vweird.f32 %v2737
        %vm2751 = vweird.f32 %v2745
        %vm2752 = vmor %vm2750, %vm2751
        %v2753 = vsel %vm2752, %v2745, %v2749
        %v2754 = vand.u32 2147483647, %v2737
        %vm2755 = vcmp.eq.f32.partialorder %v2754, 8.507059e+37
        %v2756 = vand.u32 %v2737, 2147483648
        %v2757 = vor.u32 1.1754944e-38, %v2756
        %v2758 = vsel %vm2755, %v2757, %v2753
        %v2759 = vmul.f32 1.0, %v2758
        %v2760 = vrcp.pop %v2738
        %v2761 = vmul.f32 %v2738, %v2760
        %v2762 = vsub.f32 1.0, %v2761
        %v2763 = vmul.f32 %v2760, %v2762
        %v2764 = vadd.f32 %v2760, %v2763
        %vm2765 = vweird.f32 %v2738
        %vm2766 = vweird.f32 %v2760
        %vm2767 = vmor %vm2765, %vm2766
        %v2768 = vsel %vm2767, %v2760, %v2764
        %v2769 = vand.u32 2147483647, %v2738
        %vm2770 = vcmp.eq.f32.partialorder %v2769, 8.507059e+37
        %v2771 = vand.u32 %v2738, 2147483648
        %v2772 = vor.u32 1.1754944e-38, %v2771
        %v2773 = vsel %vm2770, %v2772, %v2768
        %v2774 = vmul.f32 1.0, %v2773
        %v2775 = vrcp.pop %v2739
        %v2776 = vmul.f32 %v2739, %v2775
        %v2777 = vsub.f32 1.0, %v2776
        %v2778 = vmul.f32 %v2775, %v2777
        %v2779 = vadd.f32 %v2775, %v2778
        %vm2780 = vweird.f32 %v2739
        %vm2781 = vweird.f32 %v2775
        %vm2782 = vmor %vm2780, %vm2781
        %v2783 = vsel %vm2782, %v2775, %v2779
        %v2784 = vand.u32 2147483647, %v2739
        %vm2785 = vcmp.eq.f32.partialorder %v2784, 8.507059e+37
        %v2786 = vand.u32 %v2739, 2147483648
        %v2787 = vor.u32 1.1754944e-38, %v2786
        %v2788 = vsel %vm2785, %v2787, %v2783
        %v2789 = vmul.f32 1.0, %v2788
        %v2790 = vrcp.pop %v2740
        %v2791 = vmul.f32 %v2740, %v2790
        %v2792 = vsub.f32 1.0, %v2791
        %v2793 = vmul.f32 %v2790, %v2792
        %v2794 = vadd.f32 %v2790, %v2793
        %vm2795 = vweird.f32 %v2740
        %vm2796 = vweird.f32 %v2790
        %vm2797 = vmor %vm2795, %vm2796
        %v2798 = vsel %vm2797, %v2790, %v2794
        %v2799 = vand.u32 2147483647, %v2740
        %vm2800 = vcmp.eq.f32.partialorder %v2799, 8.507059e+37
        %v2801 = vand.u32 %v2740, 2147483648
        %v2802 = vor.u32 1.1754944e-38, %v2801
        %v2803 = vsel %vm2800, %v2802, %v2798
        %v2804 = vmul.f32 1.0, %v2803
        %v2805 = vrcp.pop %v2741
        %v2806 = vmul.f32 %v2741, %v2805
        %v2807 = vsub.f32 1.0, %v2806
        %v2808 = vmul.f32 %v2805, %v2807
        %v2809 = vadd.f32 %v2805, %v2808
        %vm2810 = vweird.f32 %v2741
        %vm2811 = vweird.f32 %v2805
        %vm2812 = vmor %vm2810, %vm2811
        %v2813 = vsel %vm2812, %v2805, %v2809
        %v2814 = vand.u32 2147483647, %v2741
        %vm2815 = vcmp.eq.f32.partialorder %v2814, 8.507059e+37
        %v2816 = vand.u32 %v2741, 2147483648
        %v2817 = vor.u32 1.1754944e-38, %v2816
        %v2818 = vsel %vm2815, %v2817, %v2813
        %v2819 = vmul.f32 1.0, %v2818
        %v2820 = vrcp.pop %v2742
        %v2821 = vmul.f32 %v2742, %v2820
        %v2822 = vsub.f32 1.0, %v2821
        %v2823 = vmul.f32 %v2820, %v2822
        %v2824 = vadd.f32 %v2820, %v2823
        %vm2825 = vweird.f32 %v2742
        %vm2826 = vweird.f32 %v2820
        %vm2827 = vmor %vm2825, %vm2826
        %v2828 = vsel %vm2827, %v2820, %v2824
        %v2829 = vand.u32 2147483647, %v2742
        %vm2830 = vcmp.eq.f32.partialorder %v2829, 8.507059e+37
        %v2831 = vand.u32 %v2742, 2147483648
        %v2832 = vor.u32 1.1754944e-38, %v2831
        %v2833 = vsel %vm2830, %v2832, %v2828
        %v2834 = vmul.f32 1.0, %v2833
        %v2835 = vrcp.pop %v2743
        %v2836 = vmul.f32 %v2743, %v2835
        %v2837 = vsub.f32 1.0, %v2836
        %v2838 = vmul.f32 %v2835, %v2837
        %v2839 = vadd.f32 %v2835, %v2838
        %vm2840 = vweird.f32 %v2743
        %vm2841 = vweird.f32 %v2835
        %vm2842 = vmor %vm2840, %vm2841
        %v2843 = vsel %vm2842, %v2835, %v2839
        %v2844 = vand.u32 2147483647, %v2743
        %vm2845 = vcmp.eq.f32.partialorder %v2844, 8.507059e+37
        %v2846 = vand.u32 %v2743, 2147483648
        %v2847 = vor.u32 1.1754944e-38, %v2846
        %v2848 = vsel %vm2845, %v2847, %v2843
        %v2849 = vmul.f32 1.0, %v2848
        %v2850 = vrcp.pop %v2744
        %v2851 = vmul.f32 %v2744, %v2850
        %v2852 = vsub.f32 1.0, %v2851
        %v2853 = vmul.f32 %v2850, %v2852
        %v2854 = vadd.f32 %v2850, %v2853
        %vm2855 = vweird.f32 %v2744
        %vm2856 = vweird.f32 %v2850
        %vm2857 = vmor %vm2855, %vm2856
        %v2858 = vsel %vm2857, %v2850, %v2854
        %v2859 = vand.u32 2147483647, %v2744
        %vm2860 = vcmp.eq.f32.partialorder %v2859, 8.507059e+37
        %v2861 = vand.u32 %v2744, 2147483648
        %v2862 = vor.u32 1.1754944e-38, %v2861
        %v2863 = vsel %vm2860, %v2862, %v2858
        %v2864 = vmul.f32 1.0, %v2863
        %v2865 = vmul.f32 %v507, %v2759
        %v2866 = vmul.f32 %v508, %v2774
        %v2867 = vmul.f32 %v509, %v2789
        %v2868 = vmul.f32 %v510, %v2804
        %v2869 = vmul.f32 %v511, %v2819
        %v2870 = vmul.f32 %v512, %v2834
        %v2871 = vmul.f32 %v513, %v2849
        %v2872 = vmul.f32 %v514, %v2864
        %2873 = vst [vmem:[%s505] sm:$0xff] %v2865
        %2874 = vst [vmem:[%s505 + $0x8] sm:$0xff] %v2866
        %2875 = vst [vmem:[%s505 + $0x10] sm:$0xff] %v2867
        %2876 = vst [vmem:[%s505 + $0x18] sm:$0xff] %v2868
        %2877 = vst [vmem:[%s505 + $0x20] sm:$0xff] %v2869
        %2878 = vst [vmem:[%s505 + $0x28] sm:$0xff] %v2870
        %2879 = vst [vmem:[%s505 + $0x30] sm:$0xff] %v2871
        %2880 = vst [vmem:[%s505 + $0x38] sm:$0xff] %v2872
        %s2881 = sand.u32 %s275, 1
        %s2882 = scalar_lea.sflag [#allocation4], %s2881
        %s2883 = sand.u32 %s275, 1
        %s2884 = smul.addr %s2883, 64
        %s2885 = scalar_lea.vmem [#allocation14], %s2884
        // Predicated region
        $region93: #{tpu_custom_call.1} parent=63 // pred_check
          %p2886 = pneg %p285
        $region94: #{tpu_custom_call.1} parent=63 // pred_check_branch
          %2888 = sbr.rel (%p2886) target = $region96
        $region95: #{tpu_custom_call.1} parent=63 // pred_region
          %2890 = vsyncadd %s2882, 0
          %s2891 = smul.addr %s31, 8
          %s2892 = smul.addr %s2891, 8
          %s2893 = scalar_lea.hbm %s11, %s2892
          %s2894 = sshll.u32 %s2885, 4
          %s2895 = int_to_ptr.vmem [resolvable:$true] %s2894
          %s2896 = sshll.u32 %s2893, 4
          %s2897 = int_to_ptr.hbm [resolvable:$true] %s2896
          %2902 = dma.vmem_to_hbm [thread:$0]  %s2895, 1024, %s2897, %s2882, 256, 256, 16
        $region96: #{tpu_custom_call.1} parent=63 // pred_fallthru
          _
      $region64: #{tpu_custom_call.1} parent=5 // pred_fallthru
        _
      %p2903 = scmp.le.s32.totalorder 2, %s26
      // Predicated region
      $region97: #{tpu_custom_call.1} parent=5 // pred_check
        %p2904 = pneg %p2903
      $region98: #{tpu_custom_call.1} parent=5 // pred_check_branch
        %2906 = sbr.rel (%p2904) target = $region100
      $region99: #{tpu_custom_call.1} parent=5 // pred_region
        %s2907 = ssub.s32 %s26, 2
        // Predicated region
        $region101: #{tpu_custom_call.1} parent=99 // pred_check
          %p2908 = pneg %p291
        $region102: #{tpu_custom_call.1} parent=99 // pred_check_branch
          %2910 = sbr.rel (%p2908) target = $region104
        $region103: #{tpu_custom_call.1} parent=99 // pred_region
          %s2911 = sand.u32 %s276, 1
          %s2912 = scalar_lea.sflag [#allocation4], %s2911
          %s2913 = sand.u32 %s276, 1
          %s2914 = smul.addr %s2913, 64
          %s2915 = scalar_lea.vmem [#allocation14], %s2914
          %2917 = dma.done %s2912, 1024
        $region104: #{tpu_custom_call.1} parent=99 // pred_fallthru
          _
      $region100: #{tpu_custom_call.1} parent=5 // pred_fallthru
        _
    $region6: #{tpu_custom_call.1} parent=1 // loop_footer
      %s30 = sadd.s32 1, %s26
    $region7: #{tpu_custom_call.1} parent=1 // loop_footer_branch
      %25 = sbr.rel target = $region3
    $region8: #{tpu_custom_call.1} parent=1 // loop_exit
      _
    %2918 = vsyncpa [#allocation3], 1
    %s2919 = scalar_lea.sflag [#allocation3], 1
    %2920 = vsyncpa %s2919, 1
    %2921 = vsyncpa [#allocation6], 1
    %2922 = vsyncpa [#allocation9], 1
    %2923 = vsyncpa [#allocation12], 1
    %2924 = vsyncpa [#allocation4], 1
    %s2925 = scalar_lea.sflag [#allocation4], 1
    %2926 = vsyncpa %s2925, 1

// kernel: tpu_custom_call.1
$region0: #{tpu_custom_call.1}
  #allocation0 [shape = 'u32[]', space=smem, size = 0x4, offset = 0x4, fixed_abs, tag = 'smem constant byte address 0x4 - core index']
  #allocation1 [shape = 'u32[72,128]{1,0:T(1,128)}', space=vmem, size = 0x9000, scoped, tag = 'internal scratch']
  %s0 = inlined_call_operand.hbm [shape: f32[2,32,256], index: 0, kind: input, shape index: {}]
  %s1 = inlined_call_operand.hbm [shape: bf16[32,32], index: 1, kind: input, shape index: {}]
  %s2 = inlined_call_operand.hbm [shape: bf16[32,32], index: 2, kind: input, shape index: {}]
  %s3 = inlined_call_operand.hbm [shape: bf16[32,32], index: 3, kind: input, shape index: {}]
  %s4 = inlined_call_operand.hbm [shape: bf16[32,32], index: 4, kind: input, shape index: {}]
  %s5 = inlined_call_operand.vmem [shape: f32[32,5], index: 5, kind: input, shape index: {}]
  %s6 = inlined_call_operand.vmem [shape: f32[32,9], index: 6, kind: input, shape index: {}]
  %s7 = inlined_call_operand.hbm [shape: bf16[16,256], index: 7, kind: input, shape index: {}]
  %s8 = inlined_call_operand.vmem [shape: f32[9,1,256], index: 8, kind: input, shape index: {}]
  %s9 = inlined_call_operand.vmem [shape: bf16[4,16,256], index: 9, kind: input, shape index: {}]
  %s10 = inlined_call_operand.hbm [shape: bf16[4,16,256], index: 10, kind: input, shape index: {}]
  %s11 = inlined_call_operand.hbm [shape: f32[2,32,256], index: 11, kind: output, shape index: {}]
  %s12 = sld [smem:[#allocation0]]
  $region105: #{tpu_custom_call.1} parent=0
    _
  %s14 = ssub.s32 1, %s12
  %s15 = scalar_select 0, %s14, %s12
  $region1: #{tpu_custom_call.1} parent=0
    #allocation2 [shape = 'u8[65536]{0}', space=vmem, size = 0x10000, scoped, tag = 'input window, operand 0']
    #allocation3 [shape = 's32[2]{0}', space=sflag, size = 0x8, scoped, tag = 'scoped memory for tpu_custom_call.1']
    #allocation4 [shape = 's32[2]{0}', space=sflag, size = 0x8, scoped, tag = 'scoped memory for tpu_custom_call.1']
    #allocation5 [shape = 'u8[8192]{0}', space=vmem, size = 0x2000, scoped, tag = 'input window, operand 1, single buffered']
    #allocation6 [shape = 's32[1]{0}', space=sflag, size = 0x4, scoped, tag = 'scoped memory for tpu_custom_call.1']
    #allocation7 [shape = 'u8[8192]{0}', space=vmem, size = 0x2000, scoped, tag = 'input window, operand 2, single buffered']
    #allocation8 [shape = 'u8[8192]{0}', space=vmem, size = 0x2000, scoped, tag = 'input window, operand 3, single buffered']
    #allocation9 [shape = 's32[1]{0}', space=sflag, size = 0x4, scoped, tag = 'scoped memory for tpu_custom_call.1']
    #allocation10 [shape = 'u8[8192]{0}', space=vmem, size = 0x2000, scoped, tag = 'input window, operand 4, single buffered']
    #allocation11 [shape = 'u8[8192]{0}', space=vmem, size = 0x2000, scoped, tag = 'input window, operand 7, single buffered']
    #allocation12 [shape = 's32[1]{0}', space=sflag, size = 0x4, scoped, tag = 'scoped memory for tpu_custom_call.1']
    #allocation13 [shape = 'u8[32768]{0}', space=vmem, size = 0x8000, scoped, tag = 'input window, operand 10, single buffered']
    #allocation14 [shape = 'u8[65536]{0}', space=vmem, size = 0x10000, scoped, tag = 'output window, operand 0']
    %16 = vsyncpa [#allocation3], 0
    %s17 = scalar_lea.sflag [#allocation3], 1
    %18 = vsyncpa %s17, 0
    %19 = vsyncpa [#allocation6], 0
    %20 = vsyncpa [#allocation9], 0
    %21 = vsyncpa [#allocation12], 0
    %22 = vsyncpa [#allocation4], 0
    %s23 = scalar_lea.sflag [#allocation4], 1
    %24 = vsyncpa %s23, 0
    loop: start=0, step=1, limit=4
    $region2: #{tpu_custom_call.1} parent=1 // loop_pre_header
      _
    $region3: #{tpu_custom_call.1} parent=1 // loop_header
      %s26 = sphi 0, %s30
      %p27 = scmp.ge.s32.totalorder %s26, 4
      %s36 = sphi 0, %s38
      %s39 = sphi 0, %s36
      %s40 = sphi 0, %s39
      %s56 = sphi 0, %s40
      %s60 = sphi 0, %s60
      %s62 = sphi 0, %s60
      %s63 = sphi 0, %s62
      %s77 = sphi 0, %s63
      %s81 = sphi 0, %s81
      %s83 = sphi 0, %s81
      %s84 = sphi 0, %s83
      %s98 = sphi 0, %s84
      %s102 = sphi 0, %s102
      %s104 = sphi 0, %s102
      %s105 = sphi 0, %s104
      %s119 = sphi 0, %s105
      %s123 = sphi 0, %s123
      %s125 = sphi 0, %s123
      %s126 = sphi 0, %s125
      %s140 = sphi 0, %s126
      %s144 = sphi 0, %s144
      %s146 = sphi 0, %s144
      %s147 = sphi 0, %s146
      %s161 = sphi 0, %s147
      %s165 = sphi 0, %s165
      %s167 = sphi 0, %s165
      %s168 = sphi 0, %s167
      %s182 = sphi 0, %s168
      %s186 = sphi 0, %s186
      %s188 = sphi 0, %s186
      %s189 = sphi 0, %s188
      %s203 = sphi 0, %s189
      %s207 = sphi 0, %s207
      %s209 = sphi 0, %s207
      %s210 = sphi 0, %s209
      %s224 = sphi 0, %s210
      %s228 = sphi 0, %s228
      %s230 = sphi 0, %s228
      %s231 = sphi 0, %s230
      %s245 = sphi 0, %s231
      %s249 = sphi 0, %s249
      %s251 = sphi 0, %s249
      %s252 = sphi 0, %s251
      %s266 = sphi 0, %s252
      %s272 = sphi 0, %s274
      %s275 = sphi 0, %s272
      %s276 = sphi 0, %s275
      %s292 = sphi 0, %s276
    $region4: #{tpu_custom_call.1} parent=1 // loop_header_branch
      %29 = sbr.rel (%p27) target = $region8
    $region5: #{tpu_custom_call.1} parent=1 // loop_body
      %s31 = ssub.s32 %s26, 1
      %s32 = ssub.s32 %s26, 2
      %s33 = sadd.s32 %s26, 1
      %s34 = ssub.s32 %s26, %s33
      %p35 = scmp.eq.s32.totalorder %s34, 0
      %s37 = sadd.s32 %s36, 1
      %s38 = scalar_select %p35, %s36, %s37
      %p41 = pneg %p35
      %p42 = scmp.eq.s32.totalorder %s26, 1
      %p43 = por %p41, %p42
      %p44 = scmp.ne.s32.totalorder %s36, %s39
      %p45 = scmp.eq.s32.totalorder %s26, 0
      %p46 = por %p44, %p45
      %p47 = scmp.ne.s32.totalorder %s36, %s39
      %p48 = scmp.eq.s32.totalorder %s31, 1
      %p49 = por %p47, %p48
      %p50 = scmp.ne.s32.totalorder %s39, %s40
      %p51 = scmp.eq.s32.totalorder %s31, 0
      %p52 = por %p50, %p51
      %p53 = scmp.ne.s32.totalorder %s39, %s40
      %p54 = scmp.eq.s32.totalorder %s32, 1
      %p55 = por %p53, %p54
      %p57 = scmp.ne.s32.totalorder %s40, %s56
      %p58 = scmp.eq.s32.totalorder %s32, 0
      %p59 = por %p57, %p58
      %s61 = sadd.s32 %s60, 1
      %p64 = scmp.eq.s32.totalorder %s26, 1
      %p65 = scmp.ne.s32.totalorder %s60, %s62
      %p66 = scmp.eq.s32.totalorder %s26, 0
      %p67 = por %p65, %p66
      %p68 = scmp.ne.s32.totalorder %s60, %s62
      %p69 = scmp.eq.s32.totalorder %s31, 1
      %p70 = por %p68, %p69
      %p71 = scmp.ne.s32.totalorder %s62, %s63
      %p72 = scmp.eq.s32.totalorder %s31, 0
      %p73 = por %p71, %p72
      %p74 = scmp.ne.s32.totalorder %s62, %s63
      %p75 = scmp.eq.s32.totalorder %s32, 1
      %p76 = por %p74, %p75
      %p78 = scmp.ne.s32.totalorder %s63, %s77
      %p79 = scmp.eq.s32.totalorder %s32, 0
      %p80 = por %p78, %p79
      %s82 = sadd.s32 %s81, 1
      %p85 = scmp.eq.s32.totalorder %s26, 1
      %p86 = scmp.ne.s32.totalorder %s81, %s83
      %p87 = scmp.eq.s32.totalorder %s26, 0
      %p88 = por %p86, %p87
      %p89 = scmp.ne.s32.totalorder %s81, %s83
      %p90 = scmp.eq.s32.totalorder %s31, 1
      %p91 = por %p89, %p90
      %p92 = scmp.ne.s32.totalorder %s83, %s84
      %p93 = scmp.eq.s32.totalorder %s31, 0
      %p94 = por %p92, %p93
      %p95 = scmp.ne.s32.totalorder %s83, %s84
      %p96 = scmp.eq.s32.totalorder %s32, 1
      %p97 = por %p95, %p96
      %p99 = scmp.ne.s32.totalorder %s84, %s98
      %p100 = scmp.eq.s32.totalorder %s32, 0
      %p101 = por %p99, %p100
      %s103 = sadd.s32 %s102, 1
      %p106 = scmp.eq.s32.totalorder %s26, 1
      %p107 = scmp.ne.s32.totalorder %s102, %s104
      %p108 = scmp.eq.s32.totalorder %s26, 0
      %p109 = por %p107, %p108
      %p110 = scmp.ne.s32.totalorder %s102, %s104
      %p111 = scmp.eq.s32.totalorder %s31, 1
      %p112 = por %p110, %p111
      %p113 = scmp.ne.s32.totalorder %s104, %s105
      %p114 = scmp.eq.s32.totalorder %s31, 0
      %p115 = por %p113, %p114
      %p116 = scmp.ne.s32.totalorder %s104, %s105
      %p117 = scmp.eq.s32.totalorder %s32, 1
      %p118 = por %p116, %p117
      %p120 = scmp.ne.s32.totalorder %s105, %s119
      %p121 = scmp.eq.s32.totalorder %s32, 0
      %p122 = por %p120, %p121
      %s124 = sadd.s32 %s123, 1
      %p127 = scmp.eq.s32.totalorder %s26, 1
      %p128 = scmp.ne.s32.totalorder %s123, %s125
      %p129 = scmp.eq.s32.totalorder %s26, 0
      %p130 = por %p128, %p129
      %p131 = scmp.ne.s32.totalorder %s123, %s125
      %p132 = scmp.eq.s32.totalorder %s31, 1
      %p133 = por %p131, %p132
      %p134 = scmp.ne.s32.totalorder %s125, %s126
      %p135 = scmp.eq.s32.totalorder %s31, 0
      %p136 = por %p134, %p135
      %p137 = scmp.ne.s32.totalorder %s125, %s126
      %p138 = scmp.eq.s32.totalorder %s32, 1
      %p139 = por %p137, %p138
      %p141 = scmp.ne.s32.totalorder %s126, %s140
      %p142 = scmp.eq.s32.totalorder %s32, 0
      %p143 = por %p141, %p142
      %s145 = sadd.s32 %s144, 1
      %p148 = scmp.eq.s32.totalorder %s26, 1
      %p149 = scmp.ne.s32.totalorder %s144, %s146
      %p150 = scmp.eq.s32.totalorder %s26, 0
      %p151 = por %p149, %p150
      %p152 = scmp.ne.s32.totalorder %s144, %s146
      %p153 = scmp.eq.s32.totalorder %s31, 1
      %p154 = por %p152, %p153
      %p155 = scmp.ne.s32.totalorder %s146, %s147
      %p156 = scmp.eq.s32.totalorder %s31, 0
      %p157 = por %p155, %p156
      %p158 = scmp.ne.s32.totalorder %s146, %s147
      %p159 = scmp.eq.s32.totalorder %s32, 1
      %p160 = por %p158, %p159
      %p162 = scmp.ne.s32.totalorder %s147, %s161
      %p163 = scmp.eq.s32.totalorder %s32, 0
      %p164 = por %p162, %p163
      %s166 = sadd.s32 %s165, 1
      %p169 = scmp.eq.s32.totalorder %s26, 1
      %p170 = scmp.ne.s32.totalorder %s165, %s167
      %p171 = scmp.eq.s32.totalorder %s26, 0
      %p172 = por %p170, %p171
      %p173 = scmp.ne.s32.totalorder %s165, %s167
      %p174 = scmp.eq.s32.totalorder %s31, 1
      %p175 = por %p173, %p174
      %p176 = scmp.ne.s32.totalorder %s167, %s168
      %p177 = scmp.eq.s32.totalorder %s31, 0
      %p178 = por %p176, %p177
      %p179 = scmp.ne.s32.totalorder %s167, %s168
      %p180 = scmp.eq.s32.totalorder %s32, 1
      %p181 = por %p179, %p180
      %p183 = scmp.ne.s32.totalorder %s168, %s182
      %p184 = scmp.eq.s32.totalorder %s32, 0
      %p185 = por %p183, %p184
      %s187 = sadd.s32 %s186, 1
      %p190 = scmp.eq.s32.totalorder %s26, 1
      %p191 = scmp.ne.s32.totalorder %s186, %s188
      %p192 = scmp.eq.s32.totalorder %s26, 0
      %p193 = por %p191, %p192
      %p194 = scmp.ne.s32.totalorder %s186, %s188
      %p195 = scmp.eq.s32.totalorder %s31, 1
      %p196 = por %p194, %p195
      %p197 = scmp.ne.s32.totalorder %s188, %s189
      %p198 = scmp.eq.s32.totalorder %s31, 0
      %p199 = por %p197, %p198
      %p200 = scmp.ne.s32.totalorder %s188, %s189
      %p201 = scmp.eq.s32.totalorder %s32, 1
      %p202 = por %p200, %p201
      %p204 = scmp.ne.s32.totalorder %s189, %s203
      %p205 = scmp.eq.s32.totalorder %s32, 0
      %p206 = por %p204, %p205
      %s208 = sadd.s32 %s207, 1
      %p211 = scmp.eq.s32.totalorder %s26, 1
      %p212 = scmp.ne.s32.totalorder %s207, %s209
      %p213 = scmp.eq.s32.totalorder %s26, 0
      %p214 = por %p212, %p213
      %p215 = scmp.ne.s32.totalorder %s207, %s209
      %p216 = scmp.eq.s32.totalorder %s31, 1
      %p217 = por %p215, %p216
      %p218 = scmp.ne.s32.totalorder %s209, %s210
      %p219 = scmp.eq.s32.totalorder %s31, 0
      %p220 = por %p218, %p219
      %p221 = scmp.ne.s32.totalorder %s209, %s210
      %p222 = scmp.eq.s32.totalorder %s32, 1
      %p223 = por %p221, %p222
      %p225 = scmp.ne.s32.totalorder %s210, %s224
      %p226 = scmp.eq.s32.totalorder %s32, 0
      %p227 = por %p225, %p226
      %s229 = sadd.s32 %s228, 1
      %p232 = scmp.eq.s32.totalorder %s26, 1
      %p233 = scmp.ne.s32.totalorder %s228, %s230
      %p234 = scmp.eq.s32.totalorder %s26, 0
      %p235 = por %p233, %p234
      %p236 = scmp.ne.s32.totalorder %s228, %s230
      %p237 = scmp.eq.s32.totalorder %s31, 1
      %p238 = por %p236, %p237
      %p239 = scmp.ne.s32.totalorder %s230, %s231
      %p240 = scmp.eq.s32.totalorder %s31, 0
      %p241 = por %p239, %p240
      %p242 = scmp.ne.s32.totalorder %s230, %s231
      %p243 = scmp.eq.s32.totalorder %s32, 1
      %p244 = por %p242, %p243
      %p246 = scmp.ne.s32.totalorder %s231, %s245
      %p247 = scmp.eq.s32.totalorder %s32, 0
      %p248 = por %p246, %p247
      %s250 = sadd.s32 %s249, 1
      %p253 = scmp.eq.s32.totalorder %s26, 1
      %p254 = scmp.ne.s32.totalorder %s249, %s251
      %p255 = scmp.eq.s32.totalorder %s26, 0
      %p256 = por %p254, %p255
      %p257 = scmp.ne.s32.totalorder %s249, %s251
      %p258 = scmp.eq.s32.totalorder %s31, 1
      %p259 = por %p257, %p258
      %p260 = scmp.ne.s32.totalorder %s251, %s252
      %p261 = scmp.eq.s32.totalorder %s31, 0
      %p262 = por %p260, %p261
      %p263 = scmp.ne.s32.totalorder %s251, %s252
      %p264 = scmp.eq.s32.totalorder %s32, 1
      %p265 = por %p263, %p264
      %p267 = scmp.ne.s32.totalorder %s252, %s266
      %p268 = scmp.eq.s32.totalorder %s32, 0
      %p269 = por %p267, %p268
      %s270 = ssub.s32 %s26, %s33
      %p271 = scmp.eq.s32.totalorder %s270, 0
      %s273 = sadd.s32 %s272, 1
      %s274 = scalar_select %p271, %s272, %s273
      %p277 = pneg %p271
      %p278 = scmp.eq.s32.totalorder %s26, 1
      %p279 = por %p277, %p278
      %p280 = scmp.ne.s32.totalorder %s272, %s275
      %p281 = scmp.eq.s32.totalorder %s26, 0
      %p282 = por %p280, %p281
      %p283 = scmp.ne.s32.totalorder %s272, %s275
      %p284 = scmp.eq.s32.totalorder %s31, 1
      %p285 = por %p283, %p284
      %p286 = scmp.ne.s32.totalorder %s275, %s276
      %p287 = scmp.eq.s32.totalorder %s31, 0
      %p288 = por %p286, %p287
      %p289 = scmp.ne.s32.totalorder %s275, %s276
      %p290 = scmp.eq.s32.totalorder %s32, 1
      %p291 = por %p289, %p290
      %p293 = scmp.ne.s32.totalorder %s276, %s292
      %p294 = scmp.eq.s32.totalorder %s32, 0
      %p295 = por %p293, %p294
      %p296 = scmp.le.s32.totalorder 1, %s26
      %p297 = scmp.lt.s32.totalorder %s26, 3
      %p298 = pnand %p296, %p297
      %p299 = pneg %p298
      // Predicated region
      $region9: #{tpu_custom_call.1} parent=5 // pred_check
        _
      $region10: #{tpu_custom_call.1} parent=5 // pred_check_branch
        %301 = sbr.rel (%p298) target = $region12
      $region11: #{tpu_custom_call.1} parent=5 // pred_region
        %s302 = ssub.s32 %s26, 1
        // Predicated region
        $region13: #{tpu_custom_call.1} parent=11 // pred_check
          %p303 = pneg %p73
        $region14: #{tpu_custom_call.1} parent=11 // pred_check_branch
          %305 = sbr.rel (%p303) target = $region16
        $region15: #{tpu_custom_call.1} parent=11 // pred_region
          %307 = vsyncadd [#allocation6], 0
          %s308 = sshll.u32 %s1, 4
          %s309 = int_to_ptr.hbm [resolvable:$true] %s308
          %s310 = sshll.u32 [#allocation5], 4
          %s311 = int_to_ptr.vmem [resolvable:$true] %s310
          %316 = dma.hbm_to_vmem [thread:$0]  %s309, 256, %s311, [#allocation6], 64, 64, 4
        $region16: #{tpu_custom_call.1} parent=11 // pred_fallthru
          _
        // Predicated region
        $region17: #{tpu_custom_call.1} parent=11 // pred_check
          %p317 = pneg %p94
        $region18: #{tpu_custom_call.1} parent=11 // pred_check_branch
          %319 = sbr.rel (%p317) target = $region20
        $region19: #{tpu_custom_call.1} parent=11 // pred_region
          %321 = vsyncadd [#allocation6], 0
          %s322 = sshll.u32 %s2, 4
          %s323 = int_to_ptr.hbm [resolvable:$true] %s322
          %s324 = sshll.u32 [#allocation7], 4
          %s325 = int_to_ptr.vmem [resolvable:$true] %s324
          %330 = dma.hbm_to_vmem [thread:$0]  %s323, 256, %s325, [#allocation6], 64, 64, 4
        $region20: #{tpu_custom_call.1} parent=11 // pred_fallthru
          _
        // Predicated region
        $region21: #{tpu_custom_call.1} parent=11 // pred_check
          %p331 = pneg %p115
        $region22: #{tpu_custom_call.1} parent=11 // pred_check_branch
          %333 = sbr.rel (%p331) target = $region24
        $region23: #{tpu_custom_call.1} parent=11 // pred_region
          %335 = vsyncadd [#allocation9], 0
          %s336 = sshll.u32 %s3, 4
          %s337 = int_to_ptr.hbm [resolvable:$true] %s336
          %s338 = sshll.u32 [#allocation8], 4
          %s339 = int_to_ptr.vmem [resolvable:$true] %s338
          %344 = dma.hbm_to_vmem [thread:$0]  %s337, 256, %s339, [#allocation9], 64, 64, 4
        $region24: #{tpu_custom_call.1} parent=11 // pred_fallthru
          _
        // Predicated region
        $region25: #{tpu_custom_call.1} parent=11 // pred_check
          %p345 = pneg %p136
        $region26: #{tpu_custom_call.1} parent=11 // pred_check_branch
          %347 = sbr.rel (%p345) target = $region28
        $region27: #{tpu_custom_call.1} parent=11 // pred_region
          %349 = vsyncadd [#allocation9], 0
          %s350 = sshll.u32 %s4, 4
          %s351 = int_to_ptr.hbm [resolvable:$true] %s350
          %s352 = sshll.u32 [#allocation10], 4
          %s353 = int_to_ptr.vmem [resolvable:$true] %s352
          %358 = dma.hbm_to_vmem [thread:$0]  %s351, 256, %s353, [#allocation9], 64, 64, 4
        $region28: #{tpu_custom_call.1} parent=11 // pred_fallthru
          _
        // Predicated region
        $region29: #{tpu_custom_call.1} parent=11 // pred_check
          %p359 = pneg %p157
        $region30: #{tpu_custom_call.1} parent=11 // pred_check_branch
          %361 = sbr.rel (%p359) target = $region32
        $region31: #{tpu_custom_call.1} parent=11 // pred_region
          _
        $region32: #{tpu_custom_call.1} parent=11 // pred_fallthru
          _
        // Predicated region
        $region33: #{tpu_custom_call.1} parent=11 // pred_check
          %p362 = pneg %p178
        $region34: #{tpu_custom_call.1} parent=11 // pred_check_branch
          %364 = sbr.rel (%p362) target = $region36
        $region35: #{tpu_custom_call.1} parent=11 // pred_region
          _
        $region36: #{tpu_custom_call.1} parent=11 // pred_fallthru
          _
        // Predicated region
        $region37: #{tpu_custom_call.1} parent=11 // pred_check
          %p365 = pneg %p199
        $region38: #{tpu_custom_call.1} parent=11 // pred_check_branch
          %367 = sbr.rel (%p365) target = $region40
        $region39: #{tpu_custom_call.1} parent=11 // pred_region
          %369 = vsyncadd [#allocation12], 0
          %s370 = sshll.u32 %s7, 4
          %s371 = int_to_ptr.hbm [resolvable:$true] %s370
          %s372 = sshll.u32 [#allocation11], 4
          %s373 = int_to_ptr.vmem [resolvable:$true] %s372
          %378 = dma.hbm_to_vmem [thread:$0]  %s371, 256, %s373, [#allocation12], 128, 128, 8
        $region40: #{tpu_custom_call.1} parent=11 // pred_fallthru
          _
        // Predicated region
        $region41: #{tpu_custom_call.1} parent=11 // pred_check
          %p379 = pneg %p220
        $region42: #{tpu_custom_call.1} parent=11 // pred_check_branch
          %381 = sbr.rel (%p379) target = $region44
        $region43: #{tpu_custom_call.1} parent=11 // pred_region
          _
        $region44: #{tpu_custom_call.1} parent=11 // pred_fallthru
          _
        // Predicated region
        $region45: #{tpu_custom_call.1} parent=11 // pred_check
          %p382 = pneg %p241
        $region46: #{tpu_custom_call.1} parent=11 // pred_check_branch
          %384 = sbr.rel (%p382) target = $region48
        $region47: #{tpu_custom_call.1} parent=11 // pred_region
          _
        $region48: #{tpu_custom_call.1} parent=11 // pred_fallthru
          _
        // Predicated region
        $region49: #{tpu_custom_call.1} parent=11 // pred_check
          %p385 = pneg %p262
        $region50: #{tpu_custom_call.1} parent=11 // pred_check_branch
          %387 = sbr.rel (%p385) target = $region52
        $region51: #{tpu_custom_call.1} parent=11 // pred_region
          %389 = vsyncadd [#allocation12], 0
          %s390 = sshll.u32 %s10, 4
          %s391 = int_to_ptr.hbm [resolvable:$true] %s390
          %s392 = sshll.u32 [#allocation13], 4
          %s393 = int_to_ptr.vmem [resolvable:$true] %s392
          %398 = dma.hbm_to_vmem [thread:$0]  %s391, 1024, %s393, [#allocation12], 128, 128, 8
        $region52: #{tpu_custom_call.1} parent=11 // pred_fallthru
          _
      $region12: #{tpu_custom_call.1} parent=5 // pred_fallthru
        _
      %p399 = scmp.lt.s32.totalorder %s26, 2
      // Predicated region
      $region53: #{tpu_custom_call.1} parent=5 // pred_check
        %p400 = pneg %p399
      $region54: #{tpu_custom_call.1} parent=5 // pred_check_branch
        %402 = sbr.rel (%p400) target = $region56
      $region55: #{tpu_custom_call.1} parent=5 // pred_region
        // Predicated region
        $region57: #{tpu_custom_call.1} parent=55 // pred_check
          %p403 = pneg %p46
        $region58: #{tpu_custom_call.1} parent=55 // pred_check_branch
          %405 = sbr.rel (%p403) target = $region60
        $region59: #{tpu_custom_call.1} parent=55 // pred_region
          %s406 = sand.u32 %s36, 1
          %s407 = scalar_lea.sflag [#allocation3], %s406
          %s408 = sand.u32 %s36, 1
          %s409 = smul.addr %s408, 64
          %s410 = scalar_lea.vmem [#allocation2], %s409
          %412 = vsyncadd %s407, 0
          %s413 = smul.addr %s26, 8
          %s414 = smul.addr %s413, 8
          %s415 = scalar_lea.hbm %s0, %s414
          %s416 = sshll.u32 %s415, 4
          %s417 = int_to_ptr.hbm [resolvable:$true] %s416
          %s418 = sshll.u32 %s410, 4
          %s419 = int_to_ptr.vmem [resolvable:$true] %s418
          %424 = dma.hbm_to_vmem [thread:$0]  %s417, 1024, %s419, %s407, 256, 256, 16
        $region60: #{tpu_custom_call.1} parent=55 // pred_fallthru
          _
      $region56: #{tpu_custom_call.1} parent=5 // pred_fallthru
        _
      %p425 = scmp.le.s32.totalorder 1, %s26
      %p426 = scmp.lt.s32.totalorder %s26, 3
      %p427 = pnand %p425, %p426
      %p428 = pneg %p427
      // Predicated region
      $region61: #{tpu_custom_call.1} parent=5 // pred_check
        _
      $region62: #{tpu_custom_call.1} parent=5 // pred_check_branch
        %430 = sbr.rel (%p427) target = $region64
      $region63: #{tpu_custom_call.1} parent=5 // pred_region
        %s431 = ssub.s32 %s26, 1
        %s432 = sand.u32 %s39, 1
        %s433 = scalar_lea.sflag [#allocation3], %s432
        %s434 = sand.u32 %s39, 1
        %s435 = smul.addr %s434, 64
        %s436 = scalar_lea.vmem [#allocation2], %s435
        // Predicated region
        $region65: #{tpu_custom_call.1} parent=63 // pred_check
          %p437 = pneg %p52
        $region66: #{tpu_custom_call.1} parent=63 // pred_check_branch
          %439 = sbr.rel (%p437) target = $region68
        $region67: #{tpu_custom_call.1} parent=63 // pred_region
          %441 = dma.done %s433, 1024
        $region68: #{tpu_custom_call.1} parent=63 // pred_fallthru
          _
        // Predicated region
        $region69: #{tpu_custom_call.1} parent=63 // pred_check
          %p442 = pneg %p73
        $region70: #{tpu_custom_call.1} parent=63 // pred_check_branch
          %444 = sbr.rel (%p442) target = $region72
        $region71: #{tpu_custom_call.1} parent=63 // pred_region
          %446 = dma.done [#allocation6], 256
        $region72: #{tpu_custom_call.1} parent=63 // pred_fallthru
          _
        // Predicated region
        $region73: #{tpu_custom_call.1} parent=63 // pred_check
          %p447 = pneg %p94
        $region74: #{tpu_custom_call.1} parent=63 // pred_check_branch
          %449 = sbr.rel (%p447) target = $region76
        $region75: #{tpu_custom_call.1} parent=63 // pred_region
          %451 = dma.done [#allocation6], 256
        $region76: #{tpu_custom_call.1} parent=63 // pred_fallthru
          _
        // Predicated region
        $region77: #{tpu_custom_call.1} parent=63 // pred_check
          %p452 = pneg %p115
        $region78: #{tpu_custom_call.1} parent=63 // pred_check_branch
          %454 = sbr.rel (%p452) target = $region80
        $region79: #{tpu_custom_call.1} parent=63 // pred_region
          %456 = dma.done [#allocation9], 256
        $region80: #{tpu_custom_call.1} parent=63 // pred_fallthru
          _
        // Predicated region
        $region81: #{tpu_custom_call.1} parent=63 // pred_check
          %p457 = pneg %p136
        $region82: #{tpu_custom_call.1} parent=63 // pred_check_branch
          %459 = sbr.rel (%p457) target = $region84
        $region83: #{tpu_custom_call.1} parent=63 // pred_region
          %461 = dma.done [#allocation9], 256
        $region84: #{tpu_custom_call.1} parent=63 // pred_fallthru
          _
        // Predicated region
        $region85: #{tpu_custom_call.1} parent=63 // pred_check
          %p462 = pneg %p199
        $region86: #{tpu_custom_call.1} parent=63 // pred_check_branch
          %464 = sbr.rel (%p462) target = $region88
        $region87: #{tpu_custom_call.1} parent=63 // pred_region
          %466 = dma.done [#allocation12], 256
        $region88: #{tpu_custom_call.1} parent=63 // pred_fallthru
          _
        // Predicated region
        $region89: #{tpu_custom_call.1} parent=63 // pred_check
          %p467 = pneg %p262
        $region90: #{tpu_custom_call.1} parent=63 // pred_check_branch
          %469 = sbr.rel (%p467) target = $region92
        $region91: #{tpu_custom_call.1} parent=63 // pred_region
          %471 = dma.done [#allocation12], 1024
        $region92: #{tpu_custom_call.1} parent=63 // pred_fallthru
          _
        %s472 = sand.u32 %s39, 1
        %s473 = scalar_lea.sflag [#allocation3], %s472
        %s474 = sand.u32 %s39, 1
        %s475 = smul.addr %s474, 64
        %s476 = scalar_lea.vmem [#allocation2], %s475
        %p477 = pneg %p52
        %p478 = pneg %p49
        %p479 = pneg %p73
        %p480 = pneg %p70
        %p481 = pneg %p94
        %p482 = pneg %p91
        %p483 = pneg %p115
        %p484 = pneg %p112
        %p485 = pneg %p136
        %p486 = pneg %p133
        %p487 = pneg %p157
        %p488 = pneg %p154
        %p489 = pneg %p178
        %p490 = pneg %p175
        %p491 = pneg %p199
        %p492 = pneg %p196
        %p493 = pneg %p220
        %p494 = pneg %p217
        %p495 = pneg %p241
        %p496 = pneg %p238
        %p497 = pneg %p262
        %p498 = pneg %p259
        %p499 = pneg %p288
        %p500 = pneg %p285
        %s501 = sand.u32 %s275, 1
        %s502 = scalar_lea.sflag [#allocation4], %s501
        %s503 = sand.u32 %s275, 1
        %s504 = smul.addr %s503, 64
        %s505 = scalar_lea.vmem [#allocation14], %s504
        %v507 = vld [vmem:[%s436] sm:$0xff]
        %v508 = vld [vmem:[%s436 + $0x8] sm:$0xff]
        %v509 = vld [vmem:[%s436 + $0x10] sm:$0xff]
        %v510 = vld [vmem:[%s436 + $0x18] sm:$0xff]
        %v511 = vld [vmem:[%s436 + $0x20] sm:$0xff]
        %v512 = vld [vmem:[%s436 + $0x28] sm:$0xff]
        %v513 = vld [vmem:[%s436 + $0x30] sm:$0xff]
        %v514 = vld [vmem:[%s436 + $0x38] sm:$0xff]
        %v515 = vpack.c.bf16 %v509, %v507
        %v516 = vpack.c.bf16 %v510, %v508
        %v517 = vpack.c.bf16 %v513, %v511
        %v518 = vpack.c.bf16 %v514, %v512
        %v519 = vld [vmem:[%s5] sm:$0xff]
        %v520 = vld [vmem:[%s5 + $0x8] sm:$0xff]
        %v521 = vld [vmem:[%s5 + $0x10] sm:$0xff]
        %v522 = vld [vmem:[%s5 + $0x18] sm:$0xff]
        %v523 = vld [vmem:[#allocation5] sm:$0xf]
        %v524 = vld [vmem:[#allocation5 + $0x4] sm:$0xf]
        %v525 = vld [vmem:[#allocation5 + $0x8] sm:$0xf]
        %v526 = vld [vmem:[#allocation5 + $0xc] sm:$0xf]
        %528 = vset.pattern.permute.xlu0 0
        %529 = vperm.xlu0 %528, %v519
        %v530 = vpop.permute.xlu0 %529
        %533 = vset.pattern.permute.xlu0 0
        %534 = vperm.xlu0 %533, %v520
        %v535 = vpop.permute.xlu0 %534
        %538 = vset.pattern.permute.xlu0 0
        %539 = vperm.xlu0 %538, %v521
        %v540 = vpop.permute.xlu0 %539
        %543 = vset.pattern.permute.xlu0 0
        %544 = vperm.xlu0 %543, %v522
        %v545 = vpop.permute.xlu0 %544
        %v551 = vunpack.c.l.b16 %v523
        %v552 = vunpack.c.l.b16 %v524
        %v553 = vunpack.c.l.b16 %v525
        %v554 = vunpack.c.l.b16 %v526
        %v555 = vpack.c.b16 %v552, %v551
        %v556 = vpack.c.b16 %v554, %v553
        %vm557 = vcmask 261120
        %v559 = vsel %vm557, %v555, 0
        %v562 = vsel %vm557, %v556, 0
        %564 = vmatpush.bf16.msra.mxu0 0
        %565 = vmatpush.bf16.msra.mxu0 0
        %566 = vmatpush.bf16.msra.mxu0 0
        %567 = vmatpush.bf16.msra.mxu0 0
        %568 = vmatpush.bf16.msra.mxu0 0
        %569 = vmatpush.bf16.msra.mxu0 0
        %570 = vmatpush.bf16.msra.mxu0 %v517
        %571 = vmatpush.bf16.msra.mxu0 %v515
        %572 = vmatmul.bf16.gmra.mxu0 %v559
        %v573 = vpop.f32.mrf.mxu0
        %v574 = vadd.f32 %v530, %v573
        %v575 = vpop.f32.mrf.mxu0
        %v576 = vadd.f32 %v535, %v575
        %577 = vmatmul.bf16.gmra.mxu0 %v562
        %v578 = vpop.f32.mrf.mxu0
        %v579 = vadd.f32 %v540, %v578
        %v580 = vpop.f32.mrf.mxu0
        %v581 = vadd.f32 %v545, %v580
        %582 = vdwg.mxu0
        %583 = vmatpush.bf16.msra.mxu0 0
        %584 = vmatpush.bf16.msra.mxu0 0
        %585 = vmatpush.bf16.msra.mxu0 0
        %586 = vmatpush.bf16.msra.mxu0 0
        %587 = vmatpush.bf16.msra.mxu0 0
        %588 = vmatpush.bf16.msra.mxu0 0
        %589 = vmatpush.bf16.msra.mxu0 %v518
        %590 = vmatpush.bf16.msra.mxu0 %v516
        %591 = vmatmul.bf16.gmra.mxu0 %v559
        %v592 = vpop.f32.mrf.mxu0
        %v593 = vadd.f32 %v530, %v592
        %v594 = vpop.f32.mrf.mxu0
        %v595 = vadd.f32 %v535, %v594
        %596 = vmatmul.bf16.gmra.mxu0 %v562
        %v597 = vpop.f32.mrf.mxu0
        %v598 = vadd.f32 %v540, %v597
        %v599 = vpop.f32.mrf.mxu0
        %v600 = vadd.f32 %v545, %v599
        %601 = vdwg.mxu0
        %v602 = vld [vmem:[#allocation7] sm:$0xf]
        %v603 = vld [vmem:[#allocation7 + $0x4] sm:$0xf]
        %v604 = vld [vmem:[#allocation7 + $0x8] sm:$0xf]
        %v605 = vld [vmem:[#allocation7 + $0xc] sm:$0xf]
        %606 = vset.pattern.permute.xlu0 1
        %607 = vperm.xlu0 %606, %v519
        %v608 = vpop.permute.xlu0 %607
        %610 = vset.pattern.permute.xlu0 1
        %611 = vperm.xlu0 %610, %v520
        %v612 = vpop.permute.xlu0 %611
        %614 = vset.pattern.permute.xlu0 1
        %615 = vperm.xlu0 %614, %v521
        %v616 = vpop.permute.xlu0 %615
        %618 = vset.pattern.permute.xlu0 1
        %619 = vperm.xlu0 %618, %v522
        %v620 = vpop.permute.xlu0 %619
        %v626 = vunpack.c.l.b16 %v602
        %v627 = vunpack.c.l.b16 %v603
        %v628 = vunpack.c.l.b16 %v604
        %v629 = vunpack.c.l.b16 %v605
        %v630 = vpack.c.b16 %v627, %v626
        %v631 = vpack.c.b16 %v629, %v628
        %v633 = vsel %vm557, %v630, 0
        %v636 = vsel %vm557, %v631, 0
        %638 = vmatpush.bf16.msra.mxu0 0
        %639 = vmatpush.bf16.msra.mxu0 0
        %640 = vmatpush.bf16.msra.mxu0 0
        %641 = vmatpush.bf16.msra.mxu0 0
        %642 = vmatpush.bf16.msra.mxu0 0
        %643 = vmatpush.bf16.msra.mxu0 0
        %644 = vmatpush.bf16.msra.mxu0 %v517
        %645 = vmatpush.bf16.msra.mxu0 %v515
        %646 = vmatmul.bf16.gmra.mxu0 %v633
        %v647 = vpop.f32.mrf.mxu0
        %v648 = vadd.f32 %v608, %v647
        %v649 = vpop.f32.mrf.mxu0
        %v650 = vadd.f32 %v612, %v649
        %651 = vmatmul.bf16.gmra.mxu0 %v636
        %v652 = vpop.f32.mrf.mxu0
        %v653 = vadd.f32 %v616, %v652
        %v654 = vpop.f32.mrf.mxu0
        %v655 = vadd.f32 %v620, %v654
        %656 = vdwg.mxu0
        %657 = vmatpush.bf16.msra.mxu0 0
        %658 = vmatpush.bf16.msra.mxu0 0
        %659 = vmatpush.bf16.msra.mxu0 0
        %660 = vmatpush.bf16.msra.mxu0 0
        %661 = vmatpush.bf16.msra.mxu0 0
        %662 = vmatpush.bf16.msra.mxu0 0
        %663 = vmatpush.bf16.msra.mxu0 %v518
        %664 = vmatpush.bf16.msra.mxu0 %v516
        %665 = vmatmul.bf16.gmra.mxu0 %v633
        %v666 = vpop.f32.mrf.mxu0
        %v667 = vadd.f32 %v608, %v666
        %v668 = vpop.f32.mrf.mxu0
        %v669 = vadd.f32 %v612, %v668
        %670 = vmatmul.bf16.gmra.mxu0 %v636
        %v671 = vpop.f32.mrf.mxu0
        %v672 = vadd.f32 %v616, %v671
        %v673 = vpop.f32.mrf.mxu0
        %v674 = vadd.f32 %v620, %v673
        %675 = vdwg.mxu0
        %v676 = vld [vmem:[#allocation8] sm:$0xf]
        %v677 = vld [vmem:[#allocation8 + $0x4] sm:$0xf]
        %v678 = vld [vmem:[#allocation8 + $0x8] sm:$0xf]
        %v679 = vld [vmem:[#allocation8 + $0xc] sm:$0xf]
        %680 = vset.pattern.permute.xlu0 2
        %681 = vperm.xlu0 %680, %v519
        %v682 = vpop.permute.xlu0 %681
        %684 = vset.pattern.permute.xlu0 2
        %685 = vperm.xlu0 %684, %v520
        %v686 = vpop.permute.xlu0 %685
        %688 = vset.pattern.permute.xlu0 2
        %689 = vperm.xlu0 %688, %v521
        %v690 = vpop.permute.xlu0 %689
        %692 = vset.pattern.permute.xlu0 2
        %693 = vperm.xlu0 %692, %v522
        %v694 = vpop.permute.xlu0 %693
        %v700 = vunpack.c.l.b16 %v676
        %v701 = vunpack.c.l.b16 %v677
        %v702 = vunpack.c.l.b16 %v678
        %v703 = vunpack.c.l.b16 %v679
        %v704 = vpack.c.b16 %v701, %v700
        %v705 = vpack.c.b16 %v703, %v702
        %v707 = vsel %vm557, %v704, 0
        %v710 = vsel %vm557, %v705, 0
        %712 = vmatpush.bf16.msra.mxu0 0
        %713 = vmatpush.bf16.msra.mxu0 0
        %714 = vmatpush.bf16.msra.mxu0 0
        %715 = vmatpush.bf16.msra.mxu0 0
        %716 = vmatpush.bf16.msra.mxu0 0
        %717 = vmatpush.bf16.msra.mxu0 0
        %718 = vmatpush.bf16.msra.mxu0 %v517
        %719 = vmatpush.bf16.msra.mxu0 %v515
        %720 = vmatmul.bf16.gmra.mxu0 %v707
        %v721 = vpop.f32.mrf.mxu0
        %v722 = vadd.f32 %v682, %v721
        %v723 = vpop.f32.mrf.mxu0
        %v724 = vadd.f32 %v686, %v723
        %725 = vmatmul.bf16.gmra.mxu0 %v710
        %v726 = vpop.f32.mrf.mxu0
        %v727 = vadd.f32 %v690, %v726
        %v728 = vpop.f32.mrf.mxu0
        %v729 = vadd.f32 %v694, %v728
        %730 = vdwg.mxu0
        %731 = vmatpush.bf16.msra.mxu0 0
        %732 = vmatpush.bf16.msra.mxu0 0
        %733 = vmatpush.bf16.msra.mxu0 0
        %734 = vmatpush.bf16.msra.mxu0 0
        %735 = vmatpush.bf16.msra.mxu0 0
        %736 = vmatpush.bf16.msra.mxu0 0
        %737 = vmatpush.bf16.msra.mxu0 %v518
        %738 = vmatpush.bf16.msra.mxu0 %v516
        %739 = vmatmul.bf16.gmra.mxu0 %v707
        %v740 = vpop.f32.mrf.mxu0
        %v741 = vadd.f32 %v682, %v740
        %v742 = vpop.f32.mrf.mxu0
        %v743 = vadd.f32 %v686, %v742
        %744 = vmatmul.bf16.gmra.mxu0 %v710
        %v745 = vpop.f32.mrf.mxu0
        %v746 = vadd.f32 %v690, %v745
        %v747 = vpop.f32.mrf.mxu0
        %v748 = vadd.f32 %v694, %v747
        %749 = vdwg.mxu0
        %v750 = vpack.c.bf16 %v593, %v574
        %v751 = vpack.c.bf16 %v595, %v576
        %v752 = vpack.c.bf16 %v598, %v579
        %v753 = vpack.c.bf16 %v600, %v581
        %v754 = vpack.c.bf16 %v667, %v648
        %v755 = vpack.c.bf16 %v669, %v650
        %v756 = vpack.c.bf16 %v672, %v653
        %v757 = vpack.c.bf16 %v674, %v655
        %v758 = vpack.c.bf16 %v741, %v722
        %v759 = vpack.c.bf16 %v743, %v724
        %v760 = vpack.c.bf16 %v746, %v727
        %v761 = vpack.c.bf16 %v748, %v729
        %v762 = vld [vmem:[#allocation11] sm:$0xff]
        %v763 = vld [vmem:[#allocation11 + $0x8] sm:$0xff]
        %v766 = vunpack.c.l.b16 %v762
        %v767 = vunpack.c.h.b16 %v762
        %v768 = vunpack.c.l.b16 %v763
        %v769 = vunpack.c.h.b16 %v763
        %v770 = vpack.c.b16 %v768, %v766
        %v771 = vpack.c.b16 %v769, %v767
        %v778 = vunpack.c.l.b16 %v750
        %v779 = vunpack.c.h.b16 %v750
        %v780 = vunpack.c.l.b16 %v751
        %v781 = vunpack.c.h.b16 %v751
        %v782 = vunpack.c.l.b16 %v752
        %v783 = vunpack.c.h.b16 %v752
        %v784 = vunpack.c.l.b16 %v753
        %v785 = vunpack.c.h.b16 %v753
        %v786 = vpack.c.b16 %v780, %v778
        %v787 = vpack.c.b16 %v781, %v779
        %v788 = vpack.c.b16 %v784, %v782
        %v789 = vpack.c.b16 %v785, %v783
        %794 = vmatpush.bf16.xpose.msra.mxu0 0
        %795 = vmatpush.bf16.xpose.msra.mxu0 0
        %796 = vmatpush.bf16.xpose.msra.mxu0 0
        %797 = vmatpush.bf16.xpose.msra.mxu0 0
        %798 = vmatpush.bf16.xpose.msra.mxu0 0
        %799 = vmatpush.bf16.xpose.msra.mxu0 0
        %800 = vmatpush.bf16.xpose.msra.mxu0 %v788
        %801 = vmatpush.bf16.xpose.msra.mxu0 %v786
        %802 = vmatmul.bf16.gmra.mxu0 %v770
        %v803 = vpop.f32.mrf.mxu0
        %v804 = vadd.f32 0.0, %v803
        %v805 = vpop.f32.mrf.mxu0
        %v806 = vadd.f32 0.0, %v805
        %807 = vdwg.mxu0
        %808 = vmatpush.bf16.xpose.msra.mxu0 0
        %809 = vmatpush.bf16.xpose.msra.mxu0 0
        %810 = vmatpush.bf16.xpose.msra.mxu0 0
        %811 = vmatpush.bf16.xpose.msra.mxu0 0
        %812 = vmatpush.bf16.xpose.msra.mxu0 0
        %813 = vmatpush.bf16.xpose.msra.mxu0 0
        %814 = vmatpush.bf16.xpose.msra.mxu0 %v789
        %815 = vmatpush.bf16.xpose.msra.mxu0 %v787
        %816 = vmatmul.bf16.gmra.mxu0 %v771
        %v817 = vpop.f32.mrf.mxu0
        %v818 = vadd.f32 %v804, %v817
        %v819 = vpop.f32.mrf.mxu0
        %v820 = vadd.f32 %v806, %v819
        %821 = vdwg.mxu0
        %v822 = vmul.f32 %v818, 0.35355338
        %v823 = vmul.f32 %v820, 0.35355338
        %v824 = vpack.c.bf16 %v822, %v822
        %v825 = vpack.c.bf16 %v823, %v823
        %v826 = vld [vmem:[%s6] sm:$0xff]
        %v827 = vld [vmem:[%s6 + $0x8] sm:$0xff]
        %v828 = vld [vmem:[%s6 + $0x10] sm:$0xff]
        %v829 = vld [vmem:[%s6 + $0x18] sm:$0xff]
        %830 = vrot.lane.b32.xlu0 %v722, 17
        %v831 = vpop.permute.xlu0 %830
        %832 = vrot.lane.b32.xlu0 %v724, 17
        %v833 = vpop.permute.xlu0 %832
        %834 = vrot.lane.b32.xlu0 %v727, 17
        %v835 = vpop.permute.xlu0 %834
        %836 = vrot.lane.b32.xlu0 %v729, 17
        %v837 = vpop.permute.xlu0 %836
        %838 = vrot.lane.b32.xlu0 %v741, 17
        %v839 = vpop.permute.xlu0 %838
        %840 = vrot.lane.b32.xlu0 %v743, 17
        %v841 = vpop.permute.xlu0 %840
        %842 = vrot.lane.b32.xlu0 %v746, 17
        %v843 = vpop.permute.xlu0 %842
        %844 = vrot.lane.b32.xlu0 %v748, 17
        %v845 = vpop.permute.xlu0 %844
        %v846 = vlaneseq
        %v847 = vand.u32 %v846, 127
        %vm848 = vcmp.lt.s32.totalorder %v847, 17
        %v849 = vsel %vm848, %v831, %v839
        %v850 = vsel %vm848, %v833, %v841
        %v851 = vsel %vm848, %v835, %v843
        %v852 = vsel %vm848, %v837, %v845
        %v853 = vsel %vm848, %v839, %v831
        %v854 = vsel %vm848, %v841, %v833
        %v855 = vsel %vm848, %v843, %v835
        %v856 = vsel %vm848, %v845, %v837
        %v857 = vld [vmem:[%s8] sm:$0x3]
        %v859 = vperm.slane %v857, 0
        %v860 = vperm.slane %v857, 1
        %v863 = vmul.f32 %v853, %v859
        %v864 = vmul.f32 %v849, %v860
        %v865 = vmul.f32 %v854, %v859
        %v866 = vmul.f32 %v850, %v860
        %v867 = vmul.f32 %v855, %v859
        %v868 = vmul.f32 %v851, %v860
        %v869 = vmul.f32 %v856, %v859
        %v870 = vmul.f32 %v852, %v860
        %872 = vset.pattern.permute.xlu0 0
        %873 = vperm.xlu0 %872, %v826
        %v874 = vpop.permute.xlu0 %873
        %877 = vset.pattern.permute.xlu0 0
        %878 = vperm.xlu0 %877, %v827
        %v879 = vpop.permute.xlu0 %878
        %882 = vset.pattern.permute.xlu0 0
        %883 = vperm.xlu0 %882, %v828
        %v884 = vpop.permute.xlu0 %883
        %887 = vset.pattern.permute.xlu0 0
        %888 = vperm.xlu0 %887, %v829
        %v889 = vpop.permute.xlu0 %888
        %v891 = vmul.f32 %v863, %v874
        %v892 = vmul.f32 %v864, %v874
        %v893 = vmul.f32 %v865, %v879
        %v894 = vmul.f32 %v866, %v879
        %v895 = vmul.f32 %v867, %v884
        %v896 = vmul.f32 %v868, %v884
        %v897 = vmul.f32 %v869, %v889
        %v898 = vmul.f32 %v870, %v889
        %v899 = vadd.f32 %v891, 0.0
        %v900 = vadd.f32 %v892, 0.0
        %v901 = vadd.f32 %v893, 0.0
        %v902 = vadd.f32 %v894, 0.0
        %v903 = vadd.f32 %v895, 0.0
        %v904 = vadd.f32 %v896, 0.0
        %v905 = vadd.f32 %v897, 0.0
        %v906 = vadd.f32 %v898, 0.0
        %907 = vrot.lane.b32.xlu0 %v722, 16
        %v908 = vpop.permute.xlu0 %907
        %909 = vrot.lane.b32.xlu0 %v724, 16
        %v910 = vpop.permute.xlu0 %909
        %911 = vrot.lane.b32.xlu0 %v727, 16
        %v912 = vpop.permute.xlu0 %911
        %913 = vrot.lane.b32.xlu0 %v729, 16
        %v914 = vpop.permute.xlu0 %913
        %915 = vrot.lane.b32.xlu0 %v741, 16
        %v916 = vpop.permute.xlu0 %915
        %917 = vrot.lane.b32.xlu0 %v743, 16
        %v918 = vpop.permute.xlu0 %917
        %919 = vrot.lane.b32.xlu0 %v746, 16
        %v920 = vpop.permute.xlu0 %919
        %921 = vrot.lane.b32.xlu0 %v748, 16
        %v922 = vpop.permute.xlu0 %921
        %vm923 = vcmp.lt.s32.totalorder %v847, 16
        %v924 = vsel %vm923, %v908, %v916
        %v925 = vsel %vm923, %v910, %v918
        %v926 = vsel %vm923, %v912, %v920
        %v927 = vsel %vm923, %v914, %v922
        %v928 = vsel %vm923, %v916, %v908
        %v929 = vsel %vm923, %v918, %v910
        %v930 = vsel %vm923, %v920, %v912
        %v931 = vsel %vm923, %v922, %v914
        %s932 = scalar_lea.vmem %s8, 2
        %v933 = vld [vmem:[%s932] sm:$0x3]
        %v935 = vperm.slane %v933, 0
        %v936 = vperm.slane %v933, 1
        %v939 = vmul.f32 %v928, %v935
        %v940 = vmul.f32 %v924, %v936
        %v941 = vmul.f32 %v929, %v935
        %v942 = vmul.f32 %v925, %v936
        %v943 = vmul.f32 %v930, %v935
        %v944 = vmul.f32 %v926, %v936
        %v945 = vmul.f32 %v931, %v935
        %v946 = vmul.f32 %v927, %v936
        %947 = vset.pattern.permute.xlu0 1
        %948 = vperm.xlu0 %947, %v826
        %v949 = vpop.permute.xlu0 %948
        %951 = vset.pattern.permute.xlu0 1
        %952 = vperm.xlu0 %951, %v827
        %v953 = vpop.permute.xlu0 %952
        %955 = vset.pattern.permute.xlu0 1
        %956 = vperm.xlu0 %955, %v828
        %v957 = vpop.permute.xlu0 %956
        %959 = vset.pattern.permute.xlu0 1
        %960 = vperm.xlu0 %959, %v829
        %v961 = vpop.permute.xlu0 %960
        %v963 = vmul.f32 %v939, %v949
        %v964 = vmul.f32 %v940, %v949
        %v965 = vmul.f32 %v941, %v953
        %v966 = vmul.f32 %v942, %v953
        %v967 = vmul.f32 %v943, %v957
        %v968 = vmul.f32 %v944, %v957
        %v969 = vmul.f32 %v945, %v961
        %v970 = vmul.f32 %v946, %v961
        %v971 = vadd.f32 %v899, %v963
        %v972 = vadd.f32 %v900, %v964
        %v973 = vadd.f32 %v901, %v965
        %v974 = vadd.f32 %v902, %v966
        %v975 = vadd.f32 %v903, %v967
        %v976 = vadd.f32 %v904, %v968
        %v977 = vadd.f32 %v905, %v969
        %v978 = vadd.f32 %v906, %v970
        %979 = vrot.lane.b32.xlu0 %v722, 15
        %v980 = vpop.permute.xlu0 %979
        %981 = vrot.lane.b32.xlu0 %v724, 15
        %v982 = vpop.permute.xlu0 %981
        %983 = vrot.lane.b32.xlu0 %v727, 15
        %v984 = vpop.permute.xlu0 %983
        %985 = vrot.lane.b32.xlu0 %v729, 15
        %v986 = vpop.permute.xlu0 %985
        %987 = vrot.lane.b32.xlu0 %v741, 15
        %v988 = vpop.permute.xlu0 %987
        %989 = vrot.lane.b32.xlu0 %v743, 15
        %v990 = vpop.permute.xlu0 %989
        %991 = vrot.lane.b32.xlu0 %v746, 15
        %v992 = vpop.permute.xlu0 %991
        %993 = vrot.lane.b32.xlu0 %v748, 15
        %v994 = vpop.permute.xlu0 %993
        %vm995 = vcmp.lt.s32.totalorder %v847, 15
        %v996 = vsel %vm995, %v980, %v988
        %v997 = vsel %vm995, %v982, %v990
        %v998 = vsel %vm995, %v984, %v992
        %v999 = vsel %vm995, %v986, %v994
        %v1000 = vsel %vm995, %v988, %v980
        %v1001 = vsel %vm995, %v990, %v982
        %v1002 = vsel %vm995, %v992, %v984
        %v1003 = vsel %vm995, %v994, %v986
        %s1004 = scalar_lea.vmem %s8, 4
        %v1005 = vld [vmem:[%s1004] sm:$0x3]
        %v1007 = vperm.slane %v1005, 0
        %v1008 = vperm.slane %v1005, 1
        %v1011 = vmul.f32 %v1000, %v1007
        %v1012 = vmul.f32 %v996, %v1008
        %v1013 = vmul.f32 %v1001, %v1007
        %v1014 = vmul.f32 %v997, %v1008
        %v1015 = vmul.f32 %v1002, %v1007
        %v1016 = vmul.f32 %v998, %v1008
        %v1017 = vmul.f32 %v1003, %v1007
        %v1018 = vmul.f32 %v999, %v1008
        %1019 = vset.pattern.permute.xlu0 2
        %1020 = vperm.xlu0 %1019, %v826
        %v1021 = vpop.permute.xlu0 %1020
        %1023 = vset.pattern.permute.xlu0 2
        %1024 = vperm.xlu0 %1023, %v827
        %v1025 = vpop.permute.xlu0 %1024
        %1027 = vset.pattern.permute.xlu0 2
        %1028 = vperm.xlu0 %1027, %v828
        %v1029 = vpop.permute.xlu0 %1028
        %1031 = vset.pattern.permute.xlu0 2
        %1032 = vperm.xlu0 %1031, %v829
        %v1033 = vpop.permute.xlu0 %1032
        %v1035 = vmul.f32 %v1011, %v1021
        %v1036 = vmul.f32 %v1012, %v1021
        %v1037 = vmul.f32 %v1013, %v1025
        %v1038 = vmul.f32 %v1014, %v1025
        %v1039 = vmul.f32 %v1015, %v1029
        %v1040 = vmul.f32 %v1016, %v1029
        %v1041 = vmul.f32 %v1017, %v1033
        %v1042 = vmul.f32 %v1018, %v1033
        %v1043 = vadd.f32 %v971, %v1035
        %v1044 = vadd.f32 %v972, %v1036
        %v1045 = vadd.f32 %v973, %v1037
        %v1046 = vadd.f32 %v974, %v1038
        %v1047 = vadd.f32 %v975, %v1039
        %v1048 = vadd.f32 %v976, %v1040
        %v1049 = vadd.f32 %v977, %v1041
        %v1050 = vadd.f32 %v978, %v1042
        %1051 = vrot.lane.b32.xlu0 %v722, 1
        %v1052 = vpop.permute.xlu0 %1051
        %1053 = vrot.lane.b32.xlu0 %v724, 1
        %v1054 = vpop.permute.xlu0 %1053
        %1055 = vrot.lane.b32.xlu0 %v727, 1
        %v1056 = vpop.permute.xlu0 %1055
        %1057 = vrot.lane.b32.xlu0 %v729, 1
        %v1058 = vpop.permute.xlu0 %1057
        %1059 = vrot.lane.b32.xlu0 %v741, 1
        %v1060 = vpop.permute.xlu0 %1059
        %1061 = vrot.lane.b32.xlu0 %v743, 1
        %v1062 = vpop.permute.xlu0 %1061
        %1063 = vrot.lane.b32.xlu0 %v746, 1
        %v1064 = vpop.permute.xlu0 %1063
        %1065 = vrot.lane.b32.xlu0 %v748, 1
        %v1066 = vpop.permute.xlu0 %1065
        %vm1067 = vcmp.lt.s32.totalorder %v847, 1
        %v1068 = vsel %vm1067, %v1052, %v1060
        %v1069 = vsel %vm1067, %v1054, %v1062
        %v1070 = vsel %vm1067, %v1056, %v1064
        %v1071 = vsel %vm1067, %v1058, %v1066
        %v1072 = vsel %vm1067, %v1060, %v1052
        %v1073 = vsel %vm1067, %v1062, %v1054
        %v1074 = vsel %vm1067, %v1064, %v1056
        %v1075 = vsel %vm1067, %v1066, %v1058
        %s1076 = scalar_lea.vmem %s8, 6
        %v1077 = vld [vmem:[%s1076] sm:$0x3]
        %v1079 = vperm.slane %v1077, 0
        %v1080 = vperm.slane %v1077, 1
        %v1083 = vmul.f32 %v1072, %v1079
        %v1084 = vmul.f32 %v1068, %v1080
        %v1085 = vmul.f32 %v1073, %v1079
        %v1086 = vmul.f32 %v1069, %v1080
        %v1087 = vmul.f32 %v1074, %v1079
        %v1088 = vmul.f32 %v1070, %v1080
        %v1089 = vmul.f32 %v1075, %v1079
        %v1090 = vmul.f32 %v1071, %v1080
        %1091 = vset.pattern.permute.xlu0 3
        %1092 = vperm.xlu0 %1091, %v826
        %v1093 = vpop.permute.xlu0 %1092
        %1095 = vset.pattern.permute.xlu0 3
        %1096 = vperm.xlu0 %1095, %v827
        %v1097 = vpop.permute.xlu0 %1096
        %1099 = vset.pattern.permute.xlu0 3
        %1100 = vperm.xlu0 %1099, %v828
        %v1101 = vpop.permute.xlu0 %1100
        %1103 = vset.pattern.permute.xlu0 3
        %1104 = vperm.xlu0 %1103, %v829
        %v1105 = vpop.permute.xlu0 %1104
        %v1107 = vmul.f32 %v1083, %v1093
        %v1108 = vmul.f32 %v1084, %v1093
        %v1109 = vmul.f32 %v1085, %v1097
        %v1110 = vmul.f32 %v1086, %v1097
        %v1111 = vmul.f32 %v1087, %v1101
        %v1112 = vmul.f32 %v1088, %v1101
        %v1113 = vmul.f32 %v1089, %v1105
        %v1114 = vmul.f32 %v1090, %v1105
        %v1115 = vadd.f32 %v1043, %v1107
        %v1116 = vadd.f32 %v1044, %v1108
        %v1117 = vadd.f32 %v1045, %v1109
        %v1118 = vadd.f32 %v1046, %v1110
        %v1119 = vadd.f32 %v1047, %v1111
        %v1120 = vadd.f32 %v1048, %v1112
        %v1121 = vadd.f32 %v1049, %v1113
        %v1122 = vadd.f32 %v1050, %v1114
        %1123 = vset.pattern.permute.xlu0 4
        %1124 = vperm.xlu0 %1123, %v826
        %v1125 = vpop.permute.xlu0 %1124
        %1127 = vset.pattern.permute.xlu0 4
        %1128 = vperm.xlu0 %1127, %v827
        %v1129 = vpop.permute.xlu0 %1128
        %1131 = vset.pattern.permute.xlu0 4
        %1132 = vperm.xlu0 %1131, %v828
        %v1133 = vpop.permute.xlu0 %1132
        %1135 = vset.pattern.permute.xlu0 4
        %1136 = vperm.xlu0 %1135, %v829
        %v1137 = vpop.permute.xlu0 %1136
        %v1139 = vmul.f32 %v722, %v1125
        %v1140 = vmul.f32 %v741, %v1125
        %v1141 = vmul.f32 %v724, %v1129
        %v1142 = vmul.f32 %v743, %v1129
        %v1143 = vmul.f32 %v727, %v1133
        %v1144 = vmul.f32 %v746, %v1133
        %v1145 = vmul.f32 %v729, %v1137
        %v1146 = vmul.f32 %v748, %v1137
        %v1147 = vadd.f32 %v1115, %v1139
        %v1148 = vadd.f32 %v1116, %v1140
        %v1149 = vadd.f32 %v1117, %v1141
        %v1150 = vadd.f32 %v1118, %v1142
        %v1151 = vadd.f32 %v1119, %v1143
        %v1152 = vadd.f32 %v1120, %v1144
        %v1153 = vadd.f32 %v1121, %v1145
        %v1154 = vadd.f32 %v1122, %v1146
        %1155 = vrot.lane.b32.xlu0 %v722, 127
        %v1156 = vpop.permute.xlu0 %1155
        %1157 = vrot.lane.b32.xlu0 %v724, 127
        %v1158 = vpop.permute.xlu0 %1157
        %1159 = vrot.lane.b32.xlu0 %v727, 127
        %v1160 = vpop.permute.xlu0 %1159
        %1161 = vrot.lane.b32.xlu0 %v729, 127
        %v1162 = vpop.permute.xlu0 %1161
        %1163 = vrot.lane.b32.xlu0 %v741, 127
        %v1164 = vpop.permute.xlu0 %1163
        %1165 = vrot.lane.b32.xlu0 %v743, 127
        %v1166 = vpop.permute.xlu0 %1165
        %1167 = vrot.lane.b32.xlu0 %v746, 127
        %v1168 = vpop.permute.xlu0 %1167
        %1169 = vrot.lane.b32.xlu0 %v748, 127
        %v1170 = vpop.permute.xlu0 %1169
        %vm1171 = vcmp.lt.s32.totalorder %v847, 127
        %v1172 = vsel %vm1171, %v1156, %v1164
        %v1173 = vsel %vm1171, %v1158, %v1166
        %v1174 = vsel %vm1171, %v1160, %v1168
        %v1175 = vsel %vm1171, %v1162, %v1170
        %v1176 = vsel %vm1171, %v1164, %v1156
        %v1177 = vsel %vm1171, %v1166, %v1158
        %v1178 = vsel %vm1171, %v1168, %v1160
        %v1179 = vsel %vm1171, %v1170, %v1162
        %s1180 = scalar_lea.vmem %s8, 10
        %v1181 = vld [vmem:[%s1180] sm:$0x3]
        %v1183 = vperm.slane %v1181, 0
        %v1184 = vperm.slane %v1181, 1
        %v1187 = vmul.f32 %v1172, %v1183
        %v1188 = vmul.f32 %v1176, %v1184
        %v1189 = vmul.f32 %v1173, %v1183
        %v1190 = vmul.f32 %v1177, %v1184
        %v1191 = vmul.f32 %v1174, %v1183
        %v1192 = vmul.f32 %v1178, %v1184
        %v1193 = vmul.f32 %v1175, %v1183
        %v1194 = vmul.f32 %v1179, %v1184
        %1195 = vset.pattern.permute.xlu0 5
        %1196 = vperm.xlu0 %1195, %v826
        %v1197 = vpop.permute.xlu0 %1196
        %1199 = vset.pattern.permute.xlu0 5
        %1200 = vperm.xlu0 %1199, %v827
        %v1201 = vpop.permute.xlu0 %1200
        %1203 = vset.pattern.permute.xlu0 5
        %1204 = vperm.xlu0 %1203, %v828
        %v1205 = vpop.permute.xlu0 %1204
        %1207 = vset.pattern.permute.xlu0 5
        %1208 = vperm.xlu0 %1207, %v829
        %v1209 = vpop.permute.xlu0 %1208
        %v1211 = vmul.f32 %v1187, %v1197
        %v1212 = vmul.f32 %v1188, %v1197
        %v1213 = vmul.f32 %v1189, %v1201
        %v1214 = vmul.f32 %v1190, %v1201
        %v1215 = vmul.f32 %v1191, %v1205
        %v1216 = vmul.f32 %v1192, %v1205
        %v1217 = vmul.f32 %v1193, %v1209
        %v1218 = vmul.f32 %v1194, %v1209
        %v1219 = vadd.f32 %v1147, %v1211
        %v1220 = vadd.f32 %v1148, %v1212
        %v1221 = vadd.f32 %v1149, %v1213
        %v1222 = vadd.f32 %v1150, %v1214
        %v1223 = vadd.f32 %v1151, %v1215
        %v1224 = vadd.f32 %v1152, %v1216
        %v1225 = vadd.f32 %v1153, %v1217
        %v1226 = vadd.f32 %v1154, %v1218
        %1227 = vrot.lane.b32.xlu0 %v722, 113
        %v1228 = vpop.permute.xlu0 %1227
        %1229 = vrot.lane.b32.xlu0 %v724, 113
        %v1230 = vpop.permute.xlu0 %1229
        %1231 = vrot.lane.b32.xlu0 %v727, 113
        %v1232 = vpop.permute.xlu0 %1231
        %1233 = vrot.lane.b32.xlu0 %v729, 113
        %v1234 = vpop.permute.xlu0 %1233
        %1235 = vrot.lane.b32.xlu0 %v741, 113
        %v1236 = vpop.permute.xlu0 %1235
        %1237 = vrot.lane.b32.xlu0 %v743, 113
        %v1238 = vpop.permute.xlu0 %1237
        %1239 = vrot.lane.b32.xlu0 %v746, 113
        %v1240 = vpop.permute.xlu0 %1239
        %1241 = vrot.lane.b32.xlu0 %v748, 113
        %v1242 = vpop.permute.xlu0 %1241
        %vm1243 = vcmp.lt.s32.totalorder %v847, 113
        %v1244 = vsel %vm1243, %v1228, %v1236
        %v1245 = vsel %vm1243, %v1230, %v1238
        %v1246 = vsel %vm1243, %v1232, %v1240
        %v1247 = vsel %vm1243, %v1234, %v1242
        %v1248 = vsel %vm1243, %v1236, %v1228
        %v1249 = vsel %vm1243, %v1238, %v1230
        %v1250 = vsel %vm1243, %v1240, %v1232
        %v1251 = vsel %vm1243, %v1242, %v1234
        %s1252 = scalar_lea.vmem %s8, 12
        %v1253 = vld [vmem:[%s1252] sm:$0x3]
        %v1255 = vperm.slane %v1253, 0
        %v1256 = vperm.slane %v1253, 1
        %v1259 = vmul.f32 %v1244, %v1255
        %v1260 = vmul.f32 %v1248, %v1256
        %v1261 = vmul.f32 %v1245, %v1255
        %v1262 = vmul.f32 %v1249, %v1256
        %v1263 = vmul.f32 %v1246, %v1255
        %v1264 = vmul.f32 %v1250, %v1256
        %v1265 = vmul.f32 %v1247, %v1255
        %v1266 = vmul.f32 %v1251, %v1256
        %1267 = vset.pattern.permute.xlu0 6
        %1268 = vperm.xlu0 %1267, %v826
        %v1269 = vpop.permute.xlu0 %1268
        %1271 = vset.pattern.permute.xlu0 6
        %1272 = vperm.xlu0 %1271, %v827
        %v1273 = vpop.permute.xlu0 %1272
        %1275 = vset.pattern.permute.xlu0 6
        %1276 = vperm.xlu0 %1275, %v828
        %v1277 = vpop.permute.xlu0 %1276
        %1279 = vset.pattern.permute.xlu0 6
        %1280 = vperm.xlu0 %1279, %v829
        %v1281 = vpop.permute.xlu0 %1280
        %v1283 = vmul.f32 %v1259, %v1269
        %v1284 = vmul.f32 %v1260, %v1269
        %v1285 = vmul.f32 %v1261, %v1273
        %v1286 = vmul.f32 %v1262, %v1273
        %v1287 = vmul.f32 %v1263, %v1277
        %v1288 = vmul.f32 %v1264, %v1277
        %v1289 = vmul.f32 %v1265, %v1281
        %v1290 = vmul.f32 %v1266, %v1281
        %v1291 = vadd.f32 %v1219, %v1283
        %v1292 = vadd.f32 %v1220, %v1284
        %v1293 = vadd.f32 %v1221, %v1285
        %v1294 = vadd.f32 %v1222, %v1286
        %v1295 = vadd.f32 %v1223, %v1287
        %v1296 = vadd.f32 %v1224, %v1288
        %v1297 = vadd.f32 %v1225, %v1289
        %v1298 = vadd.f32 %v1226, %v1290
        %1299 = vrot.lane.b32.xlu0 %v722, 112
        %v1300 = vpop.permute.xlu0 %1299
        %1301 = vrot.lane.b32.xlu0 %v724, 112
        %v1302 = vpop.permute.xlu0 %1301
        %1303 = vrot.lane.b32.xlu0 %v727, 112
        %v1304 = vpop.permute.xlu0 %1303
        %1305 = vrot.lane.b32.xlu0 %v729, 112
        %v1306 = vpop.permute.xlu0 %1305
        %1307 = vrot.lane.b32.xlu0 %v741, 112
        %v1308 = vpop.permute.xlu0 %1307
        %1309 = vrot.lane.b32.xlu0 %v743, 112
        %v1310 = vpop.permute.xlu0 %1309
        %1311 = vrot.lane.b32.xlu0 %v746, 112
        %v1312 = vpop.permute.xlu0 %1311
        %1313 = vrot.lane.b32.xlu0 %v748, 112
        %v1314 = vpop.permute.xlu0 %1313
        %vm1315 = vcmp.lt.s32.totalorder %v847, 112
        %v1316 = vsel %vm1315, %v1300, %v1308
        %v1317 = vsel %vm1315, %v1302, %v1310
        %v1318 = vsel %vm1315, %v1304, %v1312
        %v1319 = vsel %vm1315, %v1306, %v1314
        %v1320 = vsel %vm1315, %v1308, %v1300
        %v1321 = vsel %vm1315, %v1310, %v1302
        %v1322 = vsel %vm1315, %v1312, %v1304
        %v1323 = vsel %vm1315, %v1314, %v1306
        %s1324 = scalar_lea.vmem %s8, 14
        %v1325 = vld [vmem:[%s1324] sm:$0x3]
        %v1327 = vperm.slane %v1325, 0
        %v1328 = vperm.slane %v1325, 1
        %v1331 = vmul.f32 %v1316, %v1327
        %v1332 = vmul.f32 %v1320, %v1328
        %v1333 = vmul.f32 %v1317, %v1327
        %v1334 = vmul.f32 %v1321, %v1328
        %v1335 = vmul.f32 %v1318, %v1327
        %v1336 = vmul.f32 %v1322, %v1328
        %v1337 = vmul.f32 %v1319, %v1327
        %v1338 = vmul.f32 %v1323, %v1328
        %1339 = vset.pattern.permute.xlu0 7
        %1340 = vperm.xlu0 %1339, %v826
        %v1341 = vpop.permute.xlu0 %1340
        %1343 = vset.pattern.permute.xlu0 7
        %1344 = vperm.xlu0 %1343, %v827
        %v1345 = vpop.permute.xlu0 %1344
        %1347 = vset.pattern.permute.xlu0 7
        %1348 = vperm.xlu0 %1347, %v828
        %v1349 = vpop.permute.xlu0 %1348
        %1351 = vset.pattern.permute.xlu0 7
        %1352 = vperm.xlu0 %1351, %v829
        %v1353 = vpop.permute.xlu0 %1352
        %v1355 = vmul.f32 %v1331, %v1341
        %v1356 = vmul.f32 %v1332, %v1341
        %v1357 = vmul.f32 %v1333, %v1345
        %v1358 = vmul.f32 %v1334, %v1345
        %v1359 = vmul.f32 %v1335, %v1349
        %v1360 = vmul.f32 %v1336, %v1349
        %v1361 = vmul.f32 %v1337, %v1353
        %v1362 = vmul.f32 %v1338, %v1353
        %v1363 = vadd.f32 %v1291, %v1355
        %v1364 = vadd.f32 %v1292, %v1356
        %v1365 = vadd.f32 %v1293, %v1357
        %v1366 = vadd.f32 %v1294, %v1358
        %v1367 = vadd.f32 %v1295, %v1359
        %v1368 = vadd.f32 %v1296, %v1360
        %v1369 = vadd.f32 %v1297, %v1361
        %v1370 = vadd.f32 %v1298, %v1362
        %1371 = vrot.lane.b32.xlu0 %v722, 111
        %v1372 = vpop.permute.xlu0 %1371
        %1373 = vrot.lane.b32.xlu0 %v724, 111
        %v1374 = vpop.permute.xlu0 %1373
        %1375 = vrot.lane.b32.xlu0 %v727, 111
        %v1376 = vpop.permute.xlu0 %1375
        %1377 = vrot.lane.b32.xlu0 %v729, 111
        %v1378 = vpop.permute.xlu0 %1377
        %1379 = vrot.lane.b32.xlu0 %v741, 111
        %v1380 = vpop.permute.xlu0 %1379
        %1381 = vrot.lane.b32.xlu0 %v743, 111
        %v1382 = vpop.permute.xlu0 %1381
        %1383 = vrot.lane.b32.xlu0 %v746, 111
        %v1384 = vpop.permute.xlu0 %1383
        %1385 = vrot.lane.b32.xlu0 %v748, 111
        %v1386 = vpop.permute.xlu0 %1385
        %vm1387 = vcmp.lt.s32.totalorder %v847, 111
        %v1388 = vsel %vm1387, %v1372, %v1380
        %v1389 = vsel %vm1387, %v1374, %v1382
        %v1390 = vsel %vm1387, %v1376, %v1384
        %v1391 = vsel %vm1387, %v1378, %v1386
        %v1392 = vsel %vm1387, %v1380, %v1372
        %v1393 = vsel %vm1387, %v1382, %v1374
        %v1394 = vsel %vm1387, %v1384, %v1376
        %v1395 = vsel %vm1387, %v1386, %v1378
        %s1396 = scalar_lea.vmem %s8, 16
        %v1397 = vld [vmem:[%s1396] sm:$0x3]
        %v1399 = vperm.slane %v1397, 0
        %v1400 = vperm.slane %v1397, 1
        %v1403 = vmul.f32 %v1388, %v1399
        %v1404 = vmul.f32 %v1392, %v1400
        %v1405 = vmul.f32 %v1389, %v1399
        %v1406 = vmul.f32 %v1393, %v1400
        %v1407 = vmul.f32 %v1390, %v1399
        %v1408 = vmul.f32 %v1394, %v1400
        %v1409 = vmul.f32 %v1391, %v1399
        %v1410 = vmul.f32 %v1395, %v1400
        %1411 = vset.pattern.permute.xlu0 8
        %1412 = vperm.xlu0 %1411, %v826
        %v1413 = vpop.permute.xlu0 %1412
        %1415 = vset.pattern.permute.xlu0 8
        %1416 = vperm.xlu0 %1415, %v827
        %v1417 = vpop.permute.xlu0 %1416
        %1419 = vset.pattern.permute.xlu0 8
        %1420 = vperm.xlu0 %1419, %v828
        %v1421 = vpop.permute.xlu0 %1420
        %1423 = vset.pattern.permute.xlu0 8
        %1424 = vperm.xlu0 %1423, %v829
        %v1425 = vpop.permute.xlu0 %1424
        %v1427 = vmul.f32 %v1403, %v1413
        %v1428 = vmul.f32 %v1404, %v1413
        %v1429 = vmul.f32 %v1405, %v1417
        %v1430 = vmul.f32 %v1406, %v1417
        %v1431 = vmul.f32 %v1407, %v1421
        %v1432 = vmul.f32 %v1408, %v1421
        %v1433 = vmul.f32 %v1409, %v1425
        %v1434 = vmul.f32 %v1410, %v1425
        %v1435 = vadd.f32 %v1363, %v1427
        %v1436 = vadd.f32 %v1364, %v1428
        %v1437 = vadd.f32 %v1365, %v1429
        %v1438 = vadd.f32 %v1366, %v1430
        %v1439 = vadd.f32 %v1367, %v1431
        %v1440 = vadd.f32 %v1368, %v1432
        %v1441 = vadd.f32 %v1369, %v1433
        %v1442 = vadd.f32 %v1370, %v1434
        %1443 = vset.pattern.permute.xlu0 3
        %1444 = vperm.xlu0 %1443, %v519
        %v1445 = vpop.permute.xlu0 %1444
        %1447 = vset.pattern.permute.xlu0 3
        %1448 = vperm.xlu0 %1447, %v520
        %v1449 = vpop.permute.xlu0 %1448
        %1451 = vset.pattern.permute.xlu0 3
        %1452 = vperm.xlu0 %1451, %v521
        %v1453 = vpop.permute.xlu0 %1452
        %1455 = vset.pattern.permute.xlu0 3
        %1456 = vperm.xlu0 %1455, %v522
        %v1457 = vpop.permute.xlu0 %1456
        %v1459 = vadd.f32 %v1435, %v1445
        %v1460 = vadd.f32 %v1436, %v1445
        %v1461 = vadd.f32 %v1437, %v1449
        %v1462 = vadd.f32 %v1438, %v1449
        %v1463 = vadd.f32 %v1439, %v1453
        %v1464 = vadd.f32 %v1440, %v1453
        %v1465 = vadd.f32 %v1441, %v1457
        %v1466 = vadd.f32 %v1442, %v1457
        %v1467 = vld [vmem:[%s9] sm:$0xff]
        %v1468 = vld [vmem:[%s9 + $0x8] sm:$0xff]
        %v1469 = vunpack.c.l.bf16 %v1467
        %v1470 = vunpack.c.h.bf16 %v1467
        %v1471 = vunpack.c.l.bf16 %v1468
        %v1472 = vunpack.c.h.bf16 %v1468
        %v1475 = vunpack.c.l.b16 %v824
        %v1476 = vunpack.c.l.b16 %v825
        %v1477 = vpack.c.b16 %v1476, %v1475
        %v1479 = vunpack.c.l.b16 %v754
        %v1480 = vunpack.c.h.b16 %v754
        %v1481 = vpack.c.b16 %v1479, %v1479
        %v1482 = vpack.c.b16 %v1480, %v1480
        %vm1483 = vcmask 64512
        %v1485 = vsel %vm1483, %v1477, 0
        %vm1487 = vcmask 1043456
        %v1489 = vsel %vm1487, %v1481, 0
        %v1492 = vsel %vm1487, %v1482, 0
        %1494 = vmatpush.bf16.msra.mxu0 0
        %1495 = vmatpush.bf16.msra.mxu0 0
        %1496 = vmatpush.bf16.msra.mxu0 0
        %1497 = vmatpush.bf16.msra.mxu0 0
        %1498 = vmatpush.bf16.msra.mxu0 0
        %1499 = vmatpush.bf16.msra.mxu0 0
        %1500 = vmatpush.bf16.msra.mxu0 0
        %1501 = vmatpush.bf16.msra.mxu0 %v1489
        %1502 = vmatmul.bf16.gmra.mxu0 %v1485
        %v1503 = vpop.f32.mrf.mxu0
        %v1504 = vadd.f32 %v1469, %v1503
        %v1505 = vpop.f32.mrf.mxu0
        %v1506 = vadd.f32 %v1471, %v1505
        %1507 = vdwg.mxu0
        %1508 = vmatpush.bf16.msra.mxu0 0
        %1509 = vmatpush.bf16.msra.mxu0 0
        %1510 = vmatpush.bf16.msra.mxu0 0
        %1511 = vmatpush.bf16.msra.mxu0 0
        %1512 = vmatpush.bf16.msra.mxu0 0
        %1513 = vmatpush.bf16.msra.mxu0 0
        %1514 = vmatpush.bf16.msra.mxu0 0
        %1515 = vmatpush.bf16.msra.mxu0 %v1492
        %1516 = vmatmul.bf16.gmra.mxu0 %v1485
        %v1517 = vpop.f32.mrf.mxu0
        %v1518 = vadd.f32 %v1470, %v1517
        %v1519 = vpop.f32.mrf.mxu0
        %v1520 = vadd.f32 %v1472, %v1519
        %1521 = vdwg.mxu0
        %v1522 = vmax.f32 %v1504, %v1518
        %1523 = vmax.xlane.f32.xlu0 %v1522
        %v1524 = vpop.xlane.xlu0 %1523
        %v1525 = vmax.f32 %v1506, %v1520
        %1526 = vmax.xlane.f32.xlu0 %v1525
        %v1527 = vpop.xlane.xlu0 %1526
        %v1528 = vsub.f32 %v1504, %v1524
        %v1529 = vsub.f32 %v1518, %v1524
        %v1530 = vsub.f32 %v1506, %v1527
        %v1531 = vsub.f32 %v1520, %v1527
        %v1532 = vmul.f32 %v1528, 1.442695
        %v1533 = vpow.pop %v1532
        %v1534 = vmul.f32 %v1529, 1.442695
        %v1535 = vpow.pop %v1534
        %v1536 = vmul.f32 %v1530, 1.442695
        %v1537 = vpow.pop %v1536
        %v1538 = vmul.f32 %v1531, 1.442695
        %v1539 = vpow.pop %v1538
        %v1540 = vadd.f32 %v1533, %v1535
        %1541 = vadd.xlane.f32.xlu0 %v1540
        %v1542 = vpop.xlane.xlu0 %1541
        %v1543 = vadd.f32 %v1537, %v1539
        %1544 = vadd.xlane.f32.xlu0 %v1543
        %v1545 = vpop.xlane.xlu0 %1544
        %v1546 = vrcp.pop %v1542
        %v1547 = vmul.f32 %v1542, %v1546
        %v1548 = vsub.f32 1.0, %v1547
        %v1549 = vmul.f32 %v1546, %v1548
        %v1550 = vadd.f32 %v1546, %v1549
        %vm1551 = vweird.f32 %v1542
        %vm1552 = vweird.f32 %v1546
        %vm1553 = vmor %vm1551, %vm1552
        %v1554 = vsel %vm1553, %v1546, %v1550
        %v1555 = vand.u32 2147483647, %v1542
        %vm1556 = vcmp.eq.f32.partialorder %v1555, 8.507059e+37
        %v1557 = vand.u32 %v1542, 2147483648
        %v1558 = vor.u32 1.1754944e-38, %v1557
        %v1559 = vsel %vm1556, %v1558, %v1554
        %v1560 = vmul.f32 %v1533, %v1559
        %v1561 = vmul.f32 %v1535, %v1559
        %v1562 = vrcp.pop %v1545
        %v1563 = vmul.f32 %v1545, %v1562
        %v1564 = vsub.f32 1.0, %v1563
        %v1565 = vmul.f32 %v1562, %v1564
        %v1566 = vadd.f32 %v1562, %v1565
        %vm1567 = vweird.f32 %v1545
        %vm1568 = vweird.f32 %v1562
        %vm1569 = vmor %vm1567, %vm1568
        %v1570 = vsel %vm1569, %v1562, %v1566
        %v1571 = vand.u32 2147483647, %v1545
        %vm1572 = vcmp.eq.f32.partialorder %v1571, 8.507059e+37
        %v1573 = vand.u32 %v1545, 2147483648
        %v1574 = vor.u32 1.1754944e-38, %v1573
        %v1575 = vsel %vm1572, %v1574, %v1570
        %v1576 = vmul.f32 %v1537, %v1575
        %v1577 = vmul.f32 %v1539, %v1575
        %v1578 = vpack.c.bf16 %v1576, %v1560
        %v1579 = vpack.c.bf16 %v1577, %v1561
        %v1581 = vunpack.c.l.b16 %v758
        %v1582 = vunpack.c.h.b16 %v758
        %v1583 = vpack.c.b16 %v1581, %v1581
        %v1584 = vpack.c.b16 %v1582, %v1582
        %1587 = vmatpush.bf16.xpose.msra.mxu0 0
        %1588 = vmatpush.bf16.xpose.msra.mxu0 0
        %1589 = vmatpush.bf16.xpose.msra.mxu0 0
        %1590 = vmatpush.bf16.xpose.msra.mxu0 0
        %1591 = vmatpush.bf16.xpose.msra.mxu0 0
        %1592 = vmatpush.bf16.xpose.msra.mxu0 0
        %1593 = vmatpush.bf16.xpose.msra.mxu0 0
        %1594 = vmatpush.bf16.xpose.msra.mxu0 %v1578
        %1595 = vmatmul.bf16.gmra.mxu0 %v1583
        %v1596 = vpop.f32.mrf.mxu0
        %v1597 = vadd.f32 0.0, %v1596
        %v1598 = vpop.f32.mrf.mxu0
        %1599 = vdwg.mxu0
        %1600 = vmatpush.bf16.xpose.msra.mxu0 0
        %1601 = vmatpush.bf16.xpose.msra.mxu0 0
        %1602 = vmatpush.bf16.xpose.msra.mxu0 0
        %1603 = vmatpush.bf16.xpose.msra.mxu0 0
        %1604 = vmatpush.bf16.xpose.msra.mxu0 0
        %1605 = vmatpush.bf16.xpose.msra.mxu0 0
        %1606 = vmatpush.bf16.xpose.msra.mxu0 0
        %1607 = vmatpush.bf16.xpose.msra.mxu0 %v1579
        %1608 = vmatmul.bf16.gmra.mxu0 %v1584
        %v1609 = vpop.f32.mrf.mxu0
        %v1610 = vadd.f32 %v1597, %v1609
        %v1611 = vpop.f32.mrf.mxu0
        %1612 = vdwg.mxu0
        %v1613 = vld [vmem:[#allocation13] sm:$0xff]
        %v1614 = vld [vmem:[#allocation13 + $0x8] sm:$0xff]
        %v1615 = vunpack.c.l.bf16 %v1613
        %v1616 = vunpack.c.h.bf16 %v1613
        %v1617 = vunpack.c.l.bf16 %v1614
        %v1618 = vunpack.c.h.bf16 %v1614
        %v1619 = vpack.c.b16 %v778, %v778
        %v1620 = vpack.c.b16 %v779, %v779
        %v1622 = vsel %vm1487, %v1619, 0
        %v1625 = vsel %vm1487, %v1620, 0
        %1627 = vmatpush.bf16.msra.mxu0 0
        %1628 = vmatpush.bf16.msra.mxu0 0
        %1629 = vmatpush.bf16.msra.mxu0 0
        %1630 = vmatpush.bf16.msra.mxu0 0
        %1631 = vmatpush.bf16.msra.mxu0 0
        %1632 = vmatpush.bf16.msra.mxu0 0
        %1633 = vmatpush.bf16.msra.mxu0 0
        %1634 = vmatpush.bf16.msra.mxu0 %v1622
        %1635 = vmatmul.bf16.gmra.mxu0 %v1485
        %v1636 = vpop.f32.mrf.mxu0
        %v1637 = vadd.f32 %v1615, %v1636
        %v1638 = vpop.f32.mrf.mxu0
        %v1639 = vadd.f32 %v1617, %v1638
        %1640 = vdwg.mxu0
        %1641 = vmatpush.bf16.msra.mxu0 0
        %1642 = vmatpush.bf16.msra.mxu0 0
        %1643 = vmatpush.bf16.msra.mxu0 0
        %1644 = vmatpush.bf16.msra.mxu0 0
        %1645 = vmatpush.bf16.msra.mxu0 0
        %1646 = vmatpush.bf16.msra.mxu0 0
        %1647 = vmatpush.bf16.msra.mxu0 0
        %1648 = vmatpush.bf16.msra.mxu0 %v1625
        %1649 = vmatmul.bf16.gmra.mxu0 %v1485
        %v1650 = vpop.f32.mrf.mxu0
        %v1651 = vadd.f32 %v1616, %v1650
        %v1652 = vpop.f32.mrf.mxu0
        %v1653 = vadd.f32 %v1618, %v1652
        %1654 = vdwg.mxu0
        %v1655 = vmax.f32 %v1637, %v1639
        %v1656 = vrot.slane %v1655, 4
        %v1657 = vmax.f32 %v1655, %v1656
        %v1658 = vrot.slane %v1657, 2
        %v1659 = vmax.f32 %v1657, %v1658
        %v1660 = vrot.slane %v1659, 1
        %v1661 = vmax.f32 %v1659, %v1660
        %v1662 = vmax.f32 %v1651, %v1653
        %v1663 = vrot.slane %v1662, 4
        %v1664 = vmax.f32 %v1662, %v1663
        %v1665 = vrot.slane %v1664, 2
        %v1666 = vmax.f32 %v1664, %v1665
        %v1667 = vrot.slane %v1666, 1
        %v1668 = vmax.f32 %v1666, %v1667
        %v1669 = vsub.f32 %v1637, %v1661
        %v1670 = vsub.f32 %v1651, %v1668
        %v1671 = vsub.f32 %v1639, %v1661
        %v1672 = vsub.f32 %v1653, %v1668
        %v1673 = vmul.f32 %v1669, 1.442695
        %v1674 = vpow.pop %v1673
        %v1675 = vmul.f32 %v1670, 1.442695
        %v1676 = vpow.pop %v1675
        %v1677 = vmul.f32 %v1671, 1.442695
        %v1678 = vpow.pop %v1677
        %v1679 = vmul.f32 %v1672, 1.442695
        %v1680 = vpow.pop %v1679
        %v1681 = vadd.f32 %v1674, %v1678
        %v1682 = vrot.slane %v1681, 4
        %v1683 = vadd.f32 %v1681, %v1682
        %v1684 = vrot.slane %v1683, 2
        %v1685 = vadd.f32 %v1683, %v1684
        %v1686 = vrot.slane %v1685, 1
        %v1687 = vadd.f32 %v1685, %v1686
        %v1688 = vadd.f32 %v1676, %v1680
        %v1689 = vrot.slane %v1688, 4
        %v1690 = vadd.f32 %v1688, %v1689
        %v1691 = vrot.slane %v1690, 2
        %v1692 = vadd.f32 %v1690, %v1691
        %v1693 = vrot.slane %v1692, 1
        %v1694 = vadd.f32 %v1692, %v1693
        %v1695 = vrcp.pop %v1687
        %v1696 = vmul.f32 %v1687, %v1695
        %v1697 = vsub.f32 1.0, %v1696
        %v1698 = vmul.f32 %v1695, %v1697
        %v1699 = vadd.f32 %v1695, %v1698
        %vm1700 = vweird.f32 %v1687
        %vm1701 = vweird.f32 %v1695
        %vm1702 = vmor %vm1700, %vm1701
        %v1703 = vsel %vm1702, %v1695, %v1699
        %v1704 = vand.u32 2147483647, %v1687
        %vm1705 = vcmp.eq.f32.partialorder %v1704, 8.507059e+37
        %v1706 = vand.u32 %v1687, 2147483648
        %v1707 = vor.u32 1.1754944e-38, %v1706
        %v1708 = vsel %vm1705, %v1707, %v1703
        %v1709 = vmul.f32 %v1674, %v1708
        %v1710 = vrcp.pop %v1694
        %v1711 = vmul.f32 %v1694, %v1710
        %v1712 = vsub.f32 1.0, %v1711
        %v1713 = vmul.f32 %v1710, %v1712
        %v1714 = vadd.f32 %v1710, %v1713
        %vm1715 = vweird.f32 %v1694
        %vm1716 = vweird.f32 %v1710
        %vm1717 = vmor %vm1715, %vm1716
        %v1718 = vsel %vm1717, %v1710, %v1714
        %v1719 = vand.u32 2147483647, %v1694
        %vm1720 = vcmp.eq.f32.partialorder %v1719, 8.507059e+37
        %v1721 = vand.u32 %v1694, 2147483648
        %v1722 = vor.u32 1.1754944e-38, %v1721
        %v1723 = vsel %vm1720, %v1722, %v1718
        %v1724 = vmul.f32 %v1676, %v1723
        %v1725 = vmul.f32 %v1678, %v1708
        %v1726 = vmul.f32 %v1680, %v1723
        %v1727 = vpack.c.bf16 %v1725, %v1709
        %v1728 = vpack.c.bf16 %v1726, %v1724
        %v1729 = vpack.c.bf16 %v1610, %v1610
        %vm1730 = vcmask 130048
        %v1732 = vsel %vm1730, %v1729, 0
        %1734 = vmatpush.bf16.msra.mxu0 0
        %1735 = vmatpush.bf16.msra.mxu0 0
        %1736 = vmatpush.bf16.msra.mxu0 0
        %1737 = vmatpush.bf16.msra.mxu0 0
        %1738 = vmatpush.bf16.msra.mxu0 0
        %1739 = vmatpush.bf16.msra.mxu0 0
        %1740 = vmatpush.bf16.msra.mxu0 0
        %1741 = vmatpush.bf16.msra.mxu0 %v1727
        %1742 = vmatmul.bf16.gmra.mxu0 %v1732
        %v1743 = vpop.f32.mrf.mxu0
        %v1744 = vadd.f32 0.0, %v1743
        %v1745 = vpop.f32.mrf.mxu0
        %1746 = vdwg.mxu0
        %1747 = vmatpush.bf16.msra.mxu0 0
        %1748 = vmatpush.bf16.msra.mxu0 0
        %1749 = vmatpush.bf16.msra.mxu0 0
        %1750 = vmatpush.bf16.msra.mxu0 0
        %1751 = vmatpush.bf16.msra.mxu0 0
        %1752 = vmatpush.bf16.msra.mxu0 0
        %1753 = vmatpush.bf16.msra.mxu0 0
        %1754 = vmatpush.bf16.msra.mxu0 %v1728
        %1755 = vmatmul.bf16.gmra.mxu0 %v1732
        %v1756 = vpop.f32.mrf.mxu0
        %v1757 = vadd.f32 0.0, %v1756
        %v1758 = vpop.f32.mrf.mxu0
        %1759 = vdwg.mxu0
        %s1760 = scalar_lea.vmem %s9, 16
        %v1761 = vld [vmem:[%s1760] sm:$0xff]
        %v1762 = vld [vmem:[%s1760 + $0x8] sm:$0xff]
        %v1763 = vunpack.c.l.bf16 %v1761
        %v1764 = vunpack.c.h.bf16 %v1761
        %v1765 = vunpack.c.l.bf16 %v1762
        %v1766 = vunpack.c.h.bf16 %v1762
        %1767 = vrot.lane.b32.xlu0 %v1477, 120
        %v1768 = vpop.permute.xlu0 %1767
        %v1770 = vunpack.c.l.b16 %v755
        %v1771 = vunpack.c.h.b16 %v755
        %v1772 = vpack.c.b16 %v1770, %v1770
        %v1773 = vpack.c.b16 %v1771, %v1771
        %v1775 = vsel %vm1483, %v1768, 0
        %v1778 = vsel %vm1487, %v1772, 0
        %v1781 = vsel %vm1487, %v1773, 0
        %1783 = vmatpush.bf16.msra.mxu0 0
        %1784 = vmatpush.bf16.msra.mxu0 0
        %1785 = vmatpush.bf16.msra.mxu0 0
        %1786 = vmatpush.bf16.msra.mxu0 0
        %1787 = vmatpush.bf16.msra.mxu0 0
        %1788 = vmatpush.bf16.msra.mxu0 0
        %1789 = vmatpush.bf16.msra.mxu0 0
        %1790 = vmatpush.bf16.msra.mxu0 %v1778
        %1791 = vmatmul.bf16.gmra.mxu0 %v1775
        %v1792 = vpop.f32.mrf.mxu0
        %v1793 = vadd.f32 %v1763, %v1792
        %v1794 = vpop.f32.mrf.mxu0
        %v1795 = vadd.f32 %v1765, %v1794
        %1796 = vdwg.mxu0
        %1797 = vmatpush.bf16.msra.mxu0 0
        %1798 = vmatpush.bf16.msra.mxu0 0
        %1799 = vmatpush.bf16.msra.mxu0 0
        %1800 = vmatpush.bf16.msra.mxu0 0
        %1801 = vmatpush.bf16.msra.mxu0 0
        %1802 = vmatpush.bf16.msra.mxu0 0
        %1803 = vmatpush.bf16.msra.mxu0 0
        %1804 = vmatpush.bf16.msra.mxu0 %v1781
        %1805 = vmatmul.bf16.gmra.mxu0 %v1775
        %v1806 = vpop.f32.mrf.mxu0
        %v1807 = vadd.f32 %v1764, %v1806
        %v1808 = vpop.f32.mrf.mxu0
        %v1809 = vadd.f32 %v1766, %v1808
        %1810 = vdwg.mxu0
        %v1811 = vmax.f32 %v1793, %v1807
        %1812 = vmax.xlane.f32.xlu0 %v1811
        %v1813 = vpop.xlane.xlu0 %1812
        %v1814 = vmax.f32 %v1795, %v1809
        %1815 = vmax.xlane.f32.xlu0 %v1814
        %v1816 = vpop.xlane.xlu0 %1815
        %v1817 = vsub.f32 %v1793, %v1813
        %v1818 = vsub.f32 %v1807, %v1813
        %v1819 = vsub.f32 %v1795, %v1816
        %v1820 = vsub.f32 %v1809, %v1816
        %v1821 = vmul.f32 %v1817, 1.442695
        %v1822 = vpow.pop %v1821
        %v1823 = vmul.f32 %v1818, 1.442695
        %v1824 = vpow.pop %v1823
        %v1825 = vmul.f32 %v1819, 1.442695
        %v1826 = vpow.pop %v1825
        %v1827 = vmul.f32 %v1820, 1.442695
        %v1828 = vpow.pop %v1827
        %v1829 = vadd.f32 %v1822, %v1824
        %1830 = vadd.xlane.f32.xlu0 %v1829
        %v1831 = vpop.xlane.xlu0 %1830
        %v1832 = vadd.f32 %v1826, %v1828
        %1833 = vadd.xlane.f32.xlu0 %v1832
        %v1834 = vpop.xlane.xlu0 %1833
        %v1835 = vrcp.pop %v1831
        %v1836 = vmul.f32 %v1831, %v1835
        %v1837 = vsub.f32 1.0, %v1836
        %v1838 = vmul.f32 %v1835, %v1837
        %v1839 = vadd.f32 %v1835, %v1838
        %vm1840 = vweird.f32 %v1831
        %vm1841 = vweird.f32 %v1835
        %vm1842 = vmor %vm1840, %vm1841
        %v1843 = vsel %vm1842, %v1835, %v1839
        %v1844 = vand.u32 2147483647, %v1831
        %vm1845 = vcmp.eq.f32.partialorder %v1844, 8.507059e+37
        %v1846 = vand.u32 %v1831, 2147483648
        %v1847 = vor.u32 1.1754944e-38, %v1846
        %v1848 = vsel %vm1845, %v1847, %v1843
        %v1849 = vmul.f32 %v1822, %v1848
        %v1850 = vmul.f32 %v1824, %v1848
        %v1851 = vrcp.pop %v1834
        %v1852 = vmul.f32 %v1834, %v1851
        %v1853 = vsub.f32 1.0, %v1852
        %v1854 = vmul.f32 %v1851, %v1853
        %v1855 = vadd.f32 %v1851, %v1854
        %vm1856 = vweird.f32 %v1834
        %vm1857 = vweird.f32 %v1851
        %vm1858 = vmor %vm1856, %vm1857
        %v1859 = vsel %vm1858, %v1851, %v1855
        %v1860 = vand.u32 2147483647, %v1834
        %vm1861 = vcmp.eq.f32.partialorder %v1860, 8.507059e+37
        %v1862 = vand.u32 %v1834, 2147483648
        %v1863 = vor.u32 1.1754944e-38, %v1862
        %v1864 = vsel %vm1861, %v1863, %v1859
        %v1865 = vmul.f32 %v1826, %v1864
        %v1866 = vmul.f32 %v1828, %v1864
        %v1867 = vpack.c.bf16 %v1865, %v1849
        %v1868 = vpack.c.bf16 %v1866, %v1850
        %v1870 = vunpack.c.l.b16 %v759
        %v1871 = vunpack.c.h.b16 %v759
        %v1872 = vpack.c.b16 %v1870, %v1870
        %v1873 = vpack.c.b16 %v1871, %v1871
        %1876 = vmatpush.bf16.xpose.msra.mxu0 0
        %1877 = vmatpush.bf16.xpose.msra.mxu0 0
        %1878 = vmatpush.bf16.xpose.msra.mxu0 0
        %1879 = vmatpush.bf16.xpose.msra.mxu0 0
        %1880 = vmatpush.bf16.xpose.msra.mxu0 0
        %1881 = vmatpush.bf16.xpose.msra.mxu0 0
        %1882 = vmatpush.bf16.xpose.msra.mxu0 0
        %1883 = vmatpush.bf16.xpose.msra.mxu0 %v1867
        %1884 = vmatmul.bf16.gmra.mxu0 %v1872
        %v1885 = vpop.f32.mrf.mxu0
        %v1886 = vadd.f32 0.0, %v1885
        %v1887 = vpop.f32.mrf.mxu0
        %1888 = vdwg.mxu0
        %1889 = vmatpush.bf16.xpose.msra.mxu0 0
        %1890 = vmatpush.bf16.xpose.msra.mxu0 0
        %1891 = vmatpush.bf16.xpose.msra.mxu0 0
        %1892 = vmatpush.bf16.xpose.msra.mxu0 0
        %1893 = vmatpush.bf16.xpose.msra.mxu0 0
        %1894 = vmatpush.bf16.xpose.msra.mxu0 0
        %1895 = vmatpush.bf16.xpose.msra.mxu0 0
        %1896 = vmatpush.bf16.xpose.msra.mxu0 %v1868
        %1897 = vmatmul.bf16.gmra.mxu0 %v1873
        %v1898 = vpop.f32.mrf.mxu0
        %v1899 = vadd.f32 %v1886, %v1898
        %v1900 = vpop.f32.mrf.mxu0
        %1901 = vdwg.mxu0
        %s1902 = scalar_lea.vmem [#allocation13], 16
        %v1903 = vld [vmem:[%s1902] sm:$0xff]
        %v1904 = vld [vmem:[%s1902 + $0x8] sm:$0xff]
        %v1905 = vunpack.c.l.bf16 %v1903
        %v1906 = vunpack.c.h.bf16 %v1903
        %v1907 = vunpack.c.l.bf16 %v1904
        %v1908 = vunpack.c.h.bf16 %v1904
        %v1909 = vpack.c.b16 %v780, %v780
        %v1910 = vpack.c.b16 %v781, %v781
        %v1912 = vsel %vm1487, %v1909, 0
        %v1915 = vsel %vm1487, %v1910, 0
        %1917 = vmatpush.bf16.msra.mxu0 0
        %1918 = vmatpush.bf16.msra.mxu0 0
        %1919 = vmatpush.bf16.msra.mxu0 0
        %1920 = vmatpush.bf16.msra.mxu0 0
        %1921 = vmatpush.bf16.msra.mxu0 0
        %1922 = vmatpush.bf16.msra.mxu0 0
        %1923 = vmatpush.bf16.msra.mxu0 0
        %1924 = vmatpush.bf16.msra.mxu0 %v1912
        %1925 = vmatmul.bf16.gmra.mxu0 %v1775
        %v1926 = vpop.f32.mrf.mxu0
        %v1927 = vadd.f32 %v1905, %v1926
        %v1928 = vpop.f32.mrf.mxu0
        %v1929 = vadd.f32 %v1907, %v1928
        %1930 = vdwg.mxu0
        %1931 = vmatpush.bf16.msra.mxu0 0
        %1932 = vmatpush.bf16.msra.mxu0 0
        %1933 = vmatpush.bf16.msra.mxu0 0
        %1934 = vmatpush.bf16.msra.mxu0 0
        %1935 = vmatpush.bf16.msra.mxu0 0
        %1936 = vmatpush.bf16.msra.mxu0 0
        %1937 = vmatpush.bf16.msra.mxu0 0
        %1938 = vmatpush.bf16.msra.mxu0 %v1915
        %1939 = vmatmul.bf16.gmra.mxu0 %v1775
        %v1940 = vpop.f32.mrf.mxu0
        %v1941 = vadd.f32 %v1906, %v1940
        %v1942 = vpop.f32.mrf.mxu0
        %v1943 = vadd.f32 %v1908, %v1942
        %1944 = vdwg.mxu0
        %v1945 = vmax.f32 %v1927, %v1929
        %v1946 = vrot.slane %v1945, 4
        %v1947 = vmax.f32 %v1945, %v1946
        %v1948 = vrot.slane %v1947, 2
        %v1949 = vmax.f32 %v1947, %v1948
        %v1950 = vrot.slane %v1949, 1
        %v1951 = vmax.f32 %v1949, %v1950
        %v1952 = vmax.f32 %v1941, %v1943
        %v1953 = vrot.slane %v1952, 4
        %v1954 = vmax.f32 %v1952, %v1953
        %v1955 = vrot.slane %v1954, 2
        %v1956 = vmax.f32 %v1954, %v1955
        %v1957 = vrot.slane %v1956, 1
        %v1958 = vmax.f32 %v1956, %v1957
        %v1959 = vsub.f32 %v1927, %v1951
        %v1960 = vsub.f32 %v1941, %v1958
        %v1961 = vsub.f32 %v1929, %v1951
        %v1962 = vsub.f32 %v1943, %v1958
        %v1963 = vmul.f32 %v1959, 1.442695
        %v1964 = vpow.pop %v1963
        %v1965 = vmul.f32 %v1960, 1.442695
        %v1966 = vpow.pop %v1965
        %v1967 = vmul.f32 %v1961, 1.442695
        %v1968 = vpow.pop %v1967
        %v1969 = vmul.f32 %v1962, 1.442695
        %v1970 = vpow.pop %v1969
        %v1971 = vadd.f32 %v1964, %v1968
        %v1972 = vrot.slane %v1971, 4
        %v1973 = vadd.f32 %v1971, %v1972
        %v1974 = vrot.slane %v1973, 2
        %v1975 = vadd.f32 %v1973, %v1974
        %v1976 = vrot.slane %v1975, 1
        %v1977 = vadd.f32 %v1975, %v1976
        %v1978 = vadd.f32 %v1966, %v1970
        %v1979 = vrot.slane %v1978, 4
        %v1980 = vadd.f32 %v1978, %v1979
        %v1981 = vrot.slane %v1980, 2
        %v1982 = vadd.f32 %v1980, %v1981
        %v1983 = vrot.slane %v1982, 1
        %v1984 = vadd.f32 %v1982, %v1983
        %v1985 = vrcp.pop %v1977
        %v1986 = vmul.f32 %v1977, %v1985
        %v1987 = vsub.f32 1.0, %v1986
        %v1988 = vmul.f32 %v1985, %v1987
        %v1989 = vadd.f32 %v1985, %v1988
        %vm1990 = vweird.f32 %v1977
        %vm1991 = vweird.f32 %v1985
        %vm1992 = vmor %vm1990, %vm1991
        %v1993 = vsel %vm1992, %v1985, %v1989
        %v1994 = vand.u32 2147483647, %v1977
        %vm1995 = vcmp.eq.f32.partialorder %v1994, 8.507059e+37
        %v1996 = vand.u32 %v1977, 2147483648
        %v1997 = vor.u32 1.1754944e-38, %v1996
        %v1998 = vsel %vm1995, %v1997, %v1993
        %v1999 = vmul.f32 %v1964, %v1998
        %v2000 = vrcp.pop %v1984
        %v2001 = vmul.f32 %v1984, %v2000
        %v2002 = vsub.f32 1.0, %v2001
        %v2003 = vmul.f32 %v2000, %v2002
        %v2004 = vadd.f32 %v2000, %v2003
        %vm2005 = vweird.f32 %v1984
        %vm2006 = vweird.f32 %v2000
        %vm2007 = vmor %vm2005, %vm2006
        %v2008 = vsel %vm2007, %v2000, %v2004
        %v2009 = vand.u32 2147483647, %v1984
        %vm2010 = vcmp.eq.f32.partialorder %v2009, 8.507059e+37
        %v2011 = vand.u32 %v1984, 2147483648
        %v2012 = vor.u32 1.1754944e-38, %v2011
        %v2013 = vsel %vm2010, %v2012, %v2008
        %v2014 = vmul.f32 %v1966, %v2013
        %v2015 = vmul.f32 %v1968, %v1998
        %v2016 = vmul.f32 %v1970, %v2013
        %v2017 = vpack.c.bf16 %v2015, %v1999
        %v2018 = vpack.c.bf16 %v2016, %v2014
        %v2019 = vpack.c.bf16 %v1899, %v1899
        %v2021 = vsel %vm1730, %v2019, 0
        %2023 = vmatpush.bf16.msra.mxu0 0
        %2024 = vmatpush.bf16.msra.mxu0 0
        %2025 = vmatpush.bf16.msra.mxu0 0
        %2026 = vmatpush.bf16.msra.mxu0 0
        %2027 = vmatpush.bf16.msra.mxu0 0
        %2028 = vmatpush.bf16.msra.mxu0 0
        %2029 = vmatpush.bf16.msra.mxu0 0
        %2030 = vmatpush.bf16.msra.mxu0 %v2017
        %2031 = vmatmul.bf16.gmra.mxu0 %v2021
        %v2032 = vpop.f32.mrf.mxu0
        %v2033 = vadd.f32 0.0, %v2032
        %v2034 = vpop.f32.mrf.mxu0
        %2035 = vdwg.mxu0
        %2036 = vmatpush.bf16.msra.mxu0 0
        %2037 = vmatpush.bf16.msra.mxu0 0
        %2038 = vmatpush.bf16.msra.mxu0 0
        %2039 = vmatpush.bf16.msra.mxu0 0
        %2040 = vmatpush.bf16.msra.mxu0 0
        %2041 = vmatpush.bf16.msra.mxu0 0
        %2042 = vmatpush.bf16.msra.mxu0 0
        %2043 = vmatpush.bf16.msra.mxu0 %v2018
        %2044 = vmatmul.bf16.gmra.mxu0 %v2021
        %v2045 = vpop.f32.mrf.mxu0
        %v2046 = vadd.f32 0.0, %v2045
        %v2047 = vpop.f32.mrf.mxu0
        %2048 = vdwg.mxu0
        %s2049 = scalar_lea.vmem %s9, 32
        %v2050 = vld [vmem:[%s2049] sm:$0xff]
        %v2051 = vld [vmem:[%s2049 + $0x8] sm:$0xff]
        %v2052 = vunpack.c.l.bf16 %v2050
        %v2053 = vunpack.c.h.bf16 %v2050
        %v2054 = vunpack.c.l.bf16 %v2051
        %v2055 = vunpack.c.h.bf16 %v2051
        %2056 = vrot.lane.b32.xlu0 %v1477, 112
        %v2057 = vpop.permute.xlu0 %2056
        %v2059 = vunpack.c.l.b16 %v756
        %v2060 = vunpack.c.h.b16 %v756
        %v2061 = vpack.c.b16 %v2059, %v2059
        %v2062 = vpack.c.b16 %v2060, %v2060
        %v2064 = vsel %vm1483, %v2057, 0
        %v2067 = vsel %vm1487, %v2061, 0
        %v2070 = vsel %vm1487, %v2062, 0
        %2072 = vmatpush.bf16.msra.mxu0 0
        %2073 = vmatpush.bf16.msra.mxu0 0
        %2074 = vmatpush.bf16.msra.mxu0 0
        %2075 = vmatpush.bf16.msra.mxu0 0
        %2076 = vmatpush.bf16.msra.mxu0 0
        %2077 = vmatpush.bf16.msra.mxu0 0
        %2078 = vmatpush.bf16.msra.mxu0 0
        %2079 = vmatpush.bf16.msra.mxu0 %v2067
        %2080 = vmatmul.bf16.gmra.mxu0 %v2064
        %v2081 = vpop.f32.mrf.mxu0
        %v2082 = vadd.f32 %v2052, %v2081
        %v2083 = vpop.f32.mrf.mxu0
        %v2084 = vadd.f32 %v2054, %v2083
        %2085 = vdwg.mxu0
        %2086 = vmatpush.bf16.msra.mxu0 0
        %2087 = vmatpush.bf16.msra.mxu0 0
        %2088 = vmatpush.bf16.msra.mxu0 0
        %2089 = vmatpush.bf16.msra.mxu0 0
        %2090 = vmatpush.bf16.msra.mxu0 0
        %2091 = vmatpush.bf16.msra.mxu0 0
        %2092 = vmatpush.bf16.msra.mxu0 0
        %2093 = vmatpush.bf16.msra.mxu0 %v2070
        %2094 = vmatmul.bf16.gmra.mxu0 %v2064
        %v2095 = vpop.f32.mrf.mxu0
        %v2096 = vadd.f32 %v2053, %v2095
        %v2097 = vpop.f32.mrf.mxu0
        %v2098 = vadd.f32 %v2055, %v2097
        %2099 = vdwg.mxu0
        %v2100 = vmax.f32 %v2082, %v2096
        %2101 = vmax.xlane.f32.xlu0 %v2100
        %v2102 = vpop.xlane.xlu0 %2101
        %v2103 = vmax.f32 %v2084, %v2098
        %2104 = vmax.xlane.f32.xlu0 %v2103
        %v2105 = vpop.xlane.xlu0 %2104
        %v2106 = vsub.f32 %v2082, %v2102
        %v2107 = vsub.f32 %v2096, %v2102
        %v2108 = vsub.f32 %v2084, %v2105
        %v2109 = vsub.f32 %v2098, %v2105
        %v2110 = vmul.f32 %v2106, 1.442695
        %v2111 = vpow.pop %v2110
        %v2112 = vmul.f32 %v2107, 1.442695
        %v2113 = vpow.pop %v2112
        %v2114 = vmul.f32 %v2108, 1.442695
        %v2115 = vpow.pop %v2114
        %v2116 = vmul.f32 %v2109, 1.442695
        %v2117 = vpow.pop %v2116
        %v2118 = vadd.f32 %v2111, %v2113
        %2119 = vadd.xlane.f32.xlu0 %v2118
        %v2120 = vpop.xlane.xlu0 %2119
        %v2121 = vadd.f32 %v2115, %v2117
        %2122 = vadd.xlane.f32.xlu0 %v2121
        %v2123 = vpop.xlane.xlu0 %2122
        %v2124 = vrcp.pop %v2120
        %v2125 = vmul.f32 %v2120, %v2124
        %v2126 = vsub.f32 1.0, %v2125
        %v2127 = vmul.f32 %v2124, %v2126
        %v2128 = vadd.f32 %v2124, %v2127
        %vm2129 = vweird.f32 %v2120
        %vm2130 = vweird.f32 %v2124
        %vm2131 = vmor %vm2129, %vm2130
        %v2132 = vsel %vm2131, %v2124, %v2128
        %v2133 = vand.u32 2147483647, %v2120
        %vm2134 = vcmp.eq.f32.partialorder %v2133, 8.507059e+37
        %v2135 = vand.u32 %v2120, 2147483648
        %v2136 = vor.u32 1.1754944e-38, %v2135
        %v2137 = vsel %vm2134, %v2136, %v2132
        %v2138 = vmul.f32 %v2111, %v2137
        %v2139 = vmul.f32 %v2113, %v2137
        %v2140 = vrcp.pop %v2123
        %v2141 = vmul.f32 %v2123, %v2140
        %v2142 = vsub.f32 1.0, %v2141
        %v2143 = vmul.f32 %v2140, %v2142
        %v2144 = vadd.f32 %v2140, %v2143
        %vm2145 = vweird.f32 %v2123
        %vm2146 = vweird.f32 %v2140
        %vm2147 = vmor %vm2145, %vm2146
        %v2148 = vsel %vm2147, %v2140, %v2144
        %v2149 = vand.u32 2147483647, %v2123
        %vm2150 = vcmp.eq.f32.partialorder %v2149, 8.507059e+37
        %v2151 = vand.u32 %v2123, 2147483648
        %v2152 = vor.u32 1.1754944e-38, %v2151
        %v2153 = vsel %vm2150, %v2152, %v2148
        %v2154 = vmul.f32 %v2115, %v2153
        %v2155 = vmul.f32 %v2117, %v2153
        %v2156 = vpack.c.bf16 %v2154, %v2138
        %v2157 = vpack.c.bf16 %v2155, %v2139
        %v2159 = vunpack.c.l.b16 %v760
        %v2160 = vunpack.c.h.b16 %v760
        %v2161 = vpack.c.b16 %v2159, %v2159
        %v2162 = vpack.c.b16 %v2160, %v2160
        %2165 = vmatpush.bf16.xpose.msra.mxu0 0
        %2166 = vmatpush.bf16.xpose.msra.mxu0 0
        %2167 = vmatpush.bf16.xpose.msra.mxu0 0
        %2168 = vmatpush.bf16.xpose.msra.mxu0 0
        %2169 = vmatpush.bf16.xpose.msra.mxu0 0
        %2170 = vmatpush.bf16.xpose.msra.mxu0 0
        %2171 = vmatpush.bf16.xpose.msra.mxu0 0
        %2172 = vmatpush.bf16.xpose.msra.mxu0 %v2156
        %2173 = vmatmul.bf16.gmra.mxu0 %v2161
        %v2174 = vpop.f32.mrf.mxu0
        %v2175 = vadd.f32 0.0, %v2174
        %v2176 = vpop.f32.mrf.mxu0
        %2177 = vdwg.mxu0
        %2178 = vmatpush.bf16.xpose.msra.mxu0 0
        %2179 = vmatpush.bf16.xpose.msra.mxu0 0
        %2180 = vmatpush.bf16.xpose.msra.mxu0 0
        %2181 = vmatpush.bf16.xpose.msra.mxu0 0
        %2182 = vmatpush.bf16.xpose.msra.mxu0 0
        %2183 = vmatpush.bf16.xpose.msra.mxu0 0
        %2184 = vmatpush.bf16.xpose.msra.mxu0 0
        %2185 = vmatpush.bf16.xpose.msra.mxu0 %v2157
        %2186 = vmatmul.bf16.gmra.mxu0 %v2162
        %v2187 = vpop.f32.mrf.mxu0
        %v2188 = vadd.f32 %v2175, %v2187
        %v2189 = vpop.f32.mrf.mxu0
        %2190 = vdwg.mxu0
        %s2191 = scalar_lea.vmem [#allocation13], 32
        %v2192 = vld [vmem:[%s2191] sm:$0xff]
        %v2193 = vld [vmem:[%s2191 + $0x8] sm:$0xff]
        %v2194 = vunpack.c.l.bf16 %v2192
        %v2195 = vunpack.c.h.bf16 %v2192
        %v2196 = vunpack.c.l.bf16 %v2193
        %v2197 = vunpack.c.h.bf16 %v2193
        %v2198 = vpack.c.b16 %v782, %v782
        %v2199 = vpack.c.b16 %v783, %v783
        %v2201 = vsel %vm1487, %v2198, 0
        %v2204 = vsel %vm1487, %v2199, 0
        %2206 = vmatpush.bf16.msra.mxu0 0
        %2207 = vmatpush.bf16.msra.mxu0 0
        %2208 = vmatpush.bf16.msra.mxu0 0
        %2209 = vmatpush.bf16.msra.mxu0 0
        %2210 = vmatpush.bf16.msra.mxu0 0
        %2211 = vmatpush.bf16.msra.mxu0 0
        %2212 = vmatpush.bf16.msra.mxu0 0
        %2213 = vmatpush.bf16.msra.mxu0 %v2201
        %2214 = vmatmul.bf16.gmra.mxu0 %v2064
        %v2215 = vpop.f32.mrf.mxu0
        %v2216 = vadd.f32 %v2194, %v2215
        %v2217 = vpop.f32.mrf.mxu0
        %v2218 = vadd.f32 %v2196, %v2217
        %2219 = vdwg.mxu0
        %2220 = vmatpush.bf16.msra.mxu0 0
        %2221 = vmatpush.bf16.msra.mxu0 0
        %2222 = vmatpush.bf16.msra.mxu0 0
        %2223 = vmatpush.bf16.msra.mxu0 0
        %2224 = vmatpush.bf16.msra.mxu0 0
        %2225 = vmatpush.bf16.msra.mxu0 0
        %2226 = vmatpush.bf16.msra.mxu0 0
        %2227 = vmatpush.bf16.msra.mxu0 %v2204
        %2228 = vmatmul.bf16.gmra.mxu0 %v2064
        %v2229 = vpop.f32.mrf.mxu0
        %v2230 = vadd.f32 %v2195, %v2229
        %v2231 = vpop.f32.mrf.mxu0
        %v2232 = vadd.f32 %v2197, %v2231
        %2233 = vdwg.mxu0
        %v2234 = vmax.f32 %v2216, %v2218
        %v2235 = vrot.slane %v2234, 4
        %v2236 = vmax.f32 %v2234, %v2235
        %v2237 = vrot.slane %v2236, 2
        %v2238 = vmax.f32 %v2236, %v2237
        %v2239 = vrot.slane %v2238, 1
        %v2240 = vmax.f32 %v2238, %v2239
        %v2241 = vmax.f32 %v2230, %v2232
        %v2242 = vrot.slane %v2241, 4
        %v2243 = vmax.f32 %v2241, %v2242
        %v2244 = vrot.slane %v2243, 2
        %v2245 = vmax.f32 %v2243, %v2244
        %v2246 = vrot.slane %v2245, 1
        %v2247 = vmax.f32 %v2245, %v2246
        %v2248 = vsub.f32 %v2216, %v2240
        %v2249 = vsub.f32 %v2230, %v2247
        %v2250 = vsub.f32 %v2218, %v2240
        %v2251 = vsub.f32 %v2232, %v2247
        %v2252 = vmul.f32 %v2248, 1.442695
        %v2253 = vpow.pop %v2252
        %v2254 = vmul.f32 %v2249, 1.442695
        %v2255 = vpow.pop %v2254
        %v2256 = vmul.f32 %v2250, 1.442695
        %v2257 = vpow.pop %v2256
        %v2258 = vmul.f32 %v2251, 1.442695
        %v2259 = vpow.pop %v2258
        %v2260 = vadd.f32 %v2253, %v2257
        %v2261 = vrot.slane %v2260, 4
        %v2262 = vadd.f32 %v2260, %v2261
        %v2263 = vrot.slane %v2262, 2
        %v2264 = vadd.f32 %v2262, %v2263
        %v2265 = vrot.slane %v2264, 1
        %v2266 = vadd.f32 %v2264, %v2265
        %v2267 = vadd.f32 %v2255, %v2259
        %v2268 = vrot.slane %v2267, 4
        %v2269 = vadd.f32 %v2267, %v2268
        %v2270 = vrot.slane %v2269, 2
        %v2271 = vadd.f32 %v2269, %v2270
        %v2272 = vrot.slane %v2271, 1
        %v2273 = vadd.f32 %v2271, %v2272
        %v2274 = vrcp.pop %v2266
        %v2275 = vmul.f32 %v2266, %v2274
        %v2276 = vsub.f32 1.0, %v2275
        %v2277 = vmul.f32 %v2274, %v2276
        %v2278 = vadd.f32 %v2274, %v2277
        %vm2279 = vweird.f32 %v2266
        %vm2280 = vweird.f32 %v2274
        %vm2281 = vmor %vm2279, %vm2280
        %v2282 = vsel %vm2281, %v2274, %v2278
        %v2283 = vand.u32 2147483647, %v2266
        %vm2284 = vcmp.eq.f32.partialorder %v2283, 8.507059e+37
        %v2285 = vand.u32 %v2266, 2147483648
        %v2286 = vor.u32 1.1754944e-38, %v2285
        %v2287 = vsel %vm2284, %v2286, %v2282
        %v2288 = vmul.f32 %v2253, %v2287
        %v2289 = vrcp.pop %v2273
        %v2290 = vmul.f32 %v2273, %v2289
        %v2291 = vsub.f32 1.0, %v2290
        %v2292 = vmul.f32 %v2289, %v2291
        %v2293 = vadd.f32 %v2289, %v2292
        %vm2294 = vweird.f32 %v2273
        %vm2295 = vweird.f32 %v2289
        %vm2296 = vmor %vm2294, %vm2295
        %v2297 = vsel %vm2296, %v2289, %v2293
        %v2298 = vand.u32 2147483647, %v2273
        %vm2299 = vcmp.eq.f32.partialorder %v2298, 8.507059e+37
        %v2300 = vand.u32 %v2273, 2147483648
        %v2301 = vor.u32 1.1754944e-38, %v2300
        %v2302 = vsel %vm2299, %v2301, %v2297
        %v2303 = vmul.f32 %v2255, %v2302
        %v2304 = vmul.f32 %v2257, %v2287
        %v2305 = vmul.f32 %v2259, %v2302
        %v2306 = vpack.c.bf16 %v2304, %v2288
        %v2307 = vpack.c.bf16 %v2305, %v2303
        %v2308 = vpack.c.bf16 %v2188, %v2188
        %v2310 = vsel %vm1730, %v2308, 0
        %2312 = vmatpush.bf16.msra.mxu0 0
        %2313 = vmatpush.bf16.msra.mxu0 0
        %2314 = vmatpush.bf16.msra.mxu0 0
        %2315 = vmatpush.bf16.msra.mxu0 0
        %2316 = vmatpush.bf16.msra.mxu0 0
        %2317 = vmatpush.bf16.msra.mxu0 0
        %2318 = vmatpush.bf16.msra.mxu0 0
        %2319 = vmatpush.bf16.msra.mxu0 %v2306
        %2320 = vmatmul.bf16.gmra.mxu0 %v2310
        %v2321 = vpop.f32.mrf.mxu0
        %v2322 = vadd.f32 0.0, %v2321
        %v2323 = vpop.f32.mrf.mxu0
        %2324 = vdwg.mxu0
        %2325 = vmatpush.bf16.msra.mxu0 0
        %2326 = vmatpush.bf16.msra.mxu0 0
        %2327 = vmatpush.bf16.msra.mxu0 0
        %2328 = vmatpush.bf16.msra.mxu0 0
        %2329 = vmatpush.bf16.msra.mxu0 0
        %2330 = vmatpush.bf16.msra.mxu0 0
        %2331 = vmatpush.bf16.msra.mxu0 0
        %2332 = vmatpush.bf16.msra.mxu0 %v2307
        %2333 = vmatmul.bf16.gmra.mxu0 %v2310
        %v2334 = vpop.f32.mrf.mxu0
        %v2335 = vadd.f32 0.0, %v2334
        %v2336 = vpop.f32.mrf.mxu0
        %2337 = vdwg.mxu0
        %s2338 = scalar_lea.vmem %s9, 48
        %v2339 = vld [vmem:[%s2338] sm:$0xff]
        %v2340 = vld [vmem:[%s2338 + $0x8] sm:$0xff]
        %v2341 = vunpack.c.l.bf16 %v2339
        %v2342 = vunpack.c.h.bf16 %v2339
        %v2343 = vunpack.c.l.bf16 %v2340
        %v2344 = vunpack.c.h.bf16 %v2340
        %2345 = vrot.lane.b32.xlu0 %v1477, 104
        %v2346 = vpop.permute.xlu0 %2345
        %v2348 = vunpack.c.l.b16 %v757
        %v2349 = vunpack.c.h.b16 %v757
        %v2350 = vpack.c.b16 %v2348, %v2348
        %v2351 = vpack.c.b16 %v2349, %v2349
        %v2353 = vsel %vm1483, %v2346, 0
        %v2356 = vsel %vm1487, %v2350, 0
        %v2359 = vsel %vm1487, %v2351, 0
        %2361 = vmatpush.bf16.msra.mxu0 0
        %2362 = vmatpush.bf16.msra.mxu0 0
        %2363 = vmatpush.bf16.msra.mxu0 0
        %2364 = vmatpush.bf16.msra.mxu0 0
        %2365 = vmatpush.bf16.msra.mxu0 0
        %2366 = vmatpush.bf16.msra.mxu0 0
        %2367 = vmatpush.bf16.msra.mxu0 0
        %2368 = vmatpush.bf16.msra.mxu0 %v2356
        %2369 = vmatmul.bf16.gmra.mxu0 %v2353
        %v2370 = vpop.f32.mrf.mxu0
        %v2371 = vadd.f32 %v2341, %v2370
        %v2372 = vpop.f32.mrf.mxu0
        %v2373 = vadd.f32 %v2343, %v2372
        %2374 = vdwg.mxu0
        %2375 = vmatpush.bf16.msra.mxu0 0
        %2376 = vmatpush.bf16.msra.mxu0 0
        %2377 = vmatpush.bf16.msra.mxu0 0
        %2378 = vmatpush.bf16.msra.mxu0 0
        %2379 = vmatpush.bf16.msra.mxu0 0
        %2380 = vmatpush.bf16.msra.mxu0 0
        %2381 = vmatpush.bf16.msra.mxu0 0
        %2382 = vmatpush.bf16.msra.mxu0 %v2359
        %2383 = vmatmul.bf16.gmra.mxu0 %v2353
        %v2384 = vpop.f32.mrf.mxu0
        %v2385 = vadd.f32 %v2342, %v2384
        %v2386 = vpop.f32.mrf.mxu0
        %v2387 = vadd.f32 %v2344, %v2386
        %2388 = vdwg.mxu0
        %v2389 = vmax.f32 %v2371, %v2385
        %2390 = vmax.xlane.f32.xlu0 %v2389
        %v2391 = vpop.xlane.xlu0 %2390
        %v2392 = vmax.f32 %v2373, %v2387
        %2393 = vmax.xlane.f32.xlu0 %v2392
        %v2394 = vpop.xlane.xlu0 %2393
        %v2395 = vsub.f32 %v2371, %v2391
        %v2396 = vsub.f32 %v2385, %v2391
        %v2397 = vsub.f32 %v2373, %v2394
        %v2398 = vsub.f32 %v2387, %v2394
        %v2399 = vmul.f32 %v2395, 1.442695
        %v2400 = vpow.pop %v2399
        %v2401 = vmul.f32 %v2396, 1.442695
        %v2402 = vpow.pop %v2401
        %v2403 = vmul.f32 %v2397, 1.442695
        %v2404 = vpow.pop %v2403
        %v2405 = vmul.f32 %v2398, 1.442695
        %v2406 = vpow.pop %v2405
        %v2407 = vadd.f32 %v2400, %v2402
        %2408 = vadd.xlane.f32.xlu0 %v2407
        %v2409 = vpop.xlane.xlu0 %2408
        %v2410 = vadd.f32 %v2404, %v2406
        %2411 = vadd.xlane.f32.xlu0 %v2410
        %v2412 = vpop.xlane.xlu0 %2411
        %v2413 = vrcp.pop %v2409
        %v2414 = vmul.f32 %v2409, %v2413
        %v2415 = vsub.f32 1.0, %v2414
        %v2416 = vmul.f32 %v2413, %v2415
        %v2417 = vadd.f32 %v2413, %v2416
        %vm2418 = vweird.f32 %v2409
        %vm2419 = vweird.f32 %v2413
        %vm2420 = vmor %vm2418, %vm2419
        %v2421 = vsel %vm2420, %v2413, %v2417
        %v2422 = vand.u32 2147483647, %v2409
        %vm2423 = vcmp.eq.f32.partialorder %v2422, 8.507059e+37
        %v2424 = vand.u32 %v2409, 2147483648
        %v2425 = vor.u32 1.1754944e-38, %v2424
        %v2426 = vsel %vm2423, %v2425, %v2421
        %v2427 = vmul.f32 %v2400, %v2426
        %v2428 = vmul.f32 %v2402, %v2426
        %v2429 = vrcp.pop %v2412
        %v2430 = vmul.f32 %v2412, %v2429
        %v2431 = vsub.f32 1.0, %v2430
        %v2432 = vmul.f32 %v2429, %v2431
        %v2433 = vadd.f32 %v2429, %v2432
        %vm2434 = vweird.f32 %v2412
        %vm2435 = vweird.f32 %v2429
        %vm2436 = vmor %vm2434, %vm2435
        %v2437 = vsel %vm2436, %v2429, %v2433
        %v2438 = vand.u32 2147483647, %v2412
        %vm2439 = vcmp.eq.f32.partialorder %v2438, 8.507059e+37
        %v2440 = vand.u32 %v2412, 2147483648
        %v2441 = vor.u32 1.1754944e-38, %v2440
        %v2442 = vsel %vm2439, %v2441, %v2437
        %v2443 = vmul.f32 %v2404, %v2442
        %v2444 = vmul.f32 %v2406, %v2442
        %v2445 = vpack.c.bf16 %v2443, %v2427
        %v2446 = vpack.c.bf16 %v2444, %v2428
        %v2448 = vunpack.c.l.b16 %v761
        %v2449 = vunpack.c.h.b16 %v761
        %v2450 = vpack.c.b16 %v2448, %v2448
        %v2451 = vpack.c.b16 %v2449, %v2449
        %2454 = vmatpush.bf16.xpose.msra.mxu0 0
        %2455 = vmatpush.bf16.xpose.msra.mxu0 0
        %2456 = vmatpush.bf16.xpose.msra.mxu0 0
        %2457 = vmatpush.bf16.xpose.msra.mxu0 0
        %2458 = vmatpush.bf16.xpose.msra.mxu0 0
        %2459 = vmatpush.bf16.xpose.msra.mxu0 0
        %2460 = vmatpush.bf16.xpose.msra.mxu0 0
        %2461 = vmatpush.bf16.xpose.msra.mxu0 %v2445
        %2462 = vmatmul.bf16.gmra.mxu0 %v2450
        %v2463 = vpop.f32.mrf.mxu0
        %v2464 = vadd.f32 0.0, %v2463
        %v2465 = vpop.f32.mrf.mxu0
        %2466 = vdwg.mxu0
        %2467 = vmatpush.bf16.xpose.msra.mxu0 0
        %2468 = vmatpush.bf16.xpose.msra.mxu0 0
        %2469 = vmatpush.bf16.xpose.msra.mxu0 0
        %2470 = vmatpush.bf16.xpose.msra.mxu0 0
        %2471 = vmatpush.bf16.xpose.msra.mxu0 0
        %2472 = vmatpush.bf16.xpose.msra.mxu0 0
        %2473 = vmatpush.bf16.xpose.msra.mxu0 0
        %2474 = vmatpush.bf16.xpose.msra.mxu0 %v2446
        %2475 = vmatmul.bf16.gmra.mxu0 %v2451
        %v2476 = vpop.f32.mrf.mxu0
        %v2477 = vadd.f32 %v2464, %v2476
        %v2478 = vpop.f32.mrf.mxu0
        %2479 = vdwg.mxu0
        %s2480 = scalar_lea.vmem [#allocation13], 48
        %v2481 = vld [vmem:[%s2480] sm:$0xff]
        %v2482 = vld [vmem:[%s2480 + $0x8] sm:$0xff]
        %v2483 = vunpack.c.l.bf16 %v2481
        %v2484 = vunpack.c.h.bf16 %v2481
        %v2485 = vunpack.c.l.bf16 %v2482
        %v2486 = vunpack.c.h.bf16 %v2482
        %v2487 = vpack.c.b16 %v784, %v784
        %v2488 = vpack.c.b16 %v785, %v785
        %v2490 = vsel %vm1487, %v2487, 0
        %v2493 = vsel %vm1487, %v2488, 0
        %2495 = vmatpush.bf16.msra.mxu0 0
        %2496 = vmatpush.bf16.msra.mxu0 0
        %2497 = vmatpush.bf16.msra.mxu0 0
        %2498 = vmatpush.bf16.msra.mxu0 0
        %2499 = vmatpush.bf16.msra.mxu0 0
        %2500 = vmatpush.bf16.msra.mxu0 0
        %2501 = vmatpush.bf16.msra.mxu0 0
        %2502 = vmatpush.bf16.msra.mxu0 %v2490
        %2503 = vmatmul.bf16.gmra.mxu0 %v2353
        %v2504 = vpop.f32.mrf.mxu0
        %v2505 = vadd.f32 %v2483, %v2504
        %v2506 = vpop.f32.mrf.mxu0
        %v2507 = vadd.f32 %v2485, %v2506
        %2508 = vdwg.mxu0
        %2509 = vmatpush.bf16.msra.mxu0 0
        %2510 = vmatpush.bf16.msra.mxu0 0
        %2511 = vmatpush.bf16.msra.mxu0 0
        %2512 = vmatpush.bf16.msra.mxu0 0
        %2513 = vmatpush.bf16.msra.mxu0 0
        %2514 = vmatpush.bf16.msra.mxu0 0
        %2515 = vmatpush.bf16.msra.mxu0 0
        %2516 = vmatpush.bf16.msra.mxu0 %v2493
        %2517 = vmatmul.bf16.gmra.mxu0 %v2353
        %v2518 = vpop.f32.mrf.mxu0
        %v2519 = vadd.f32 %v2484, %v2518
        %v2520 = vpop.f32.mrf.mxu0
        %v2521 = vadd.f32 %v2486, %v2520
        %2522 = vdwg.mxu0
        %v2523 = vmax.f32 %v2505, %v2507
        %v2524 = vrot.slane %v2523, 4
        %v2525 = vmax.f32 %v2523, %v2524
        %v2526 = vrot.slane %v2525, 2
        %v2527 = vmax.f32 %v2525, %v2526
        %v2528 = vrot.slane %v2527, 1
        %v2529 = vmax.f32 %v2527, %v2528
        %v2530 = vmax.f32 %v2519, %v2521
        %v2531 = vrot.slane %v2530, 4
        %v2532 = vmax.f32 %v2530, %v2531
        %v2533 = vrot.slane %v2532, 2
        %v2534 = vmax.f32 %v2532, %v2533
        %v2535 = vrot.slane %v2534, 1
        %v2536 = vmax.f32 %v2534, %v2535
        %v2537 = vsub.f32 %v2505, %v2529
        %v2538 = vsub.f32 %v2519, %v2536
        %v2539 = vsub.f32 %v2507, %v2529
        %v2540 = vsub.f32 %v2521, %v2536
        %v2541 = vmul.f32 %v2537, 1.442695
        %v2542 = vpow.pop %v2541
        %v2543 = vmul.f32 %v2538, 1.442695
        %v2544 = vpow.pop %v2543
        %v2545 = vmul.f32 %v2539, 1.442695
        %v2546 = vpow.pop %v2545
        %v2547 = vmul.f32 %v2540, 1.442695
        %v2548 = vpow.pop %v2547
        %v2549 = vadd.f32 %v2542, %v2546
        %v2550 = vrot.slane %v2549, 4
        %v2551 = vadd.f32 %v2549, %v2550
        %v2552 = vrot.slane %v2551, 2
        %v2553 = vadd.f32 %v2551, %v2552
        %v2554 = vrot.slane %v2553, 1
        %v2555 = vadd.f32 %v2553, %v2554
        %v2556 = vadd.f32 %v2544, %v2548
        %v2557 = vrot.slane %v2556, 4
        %v2558 = vadd.f32 %v2556, %v2557
        %v2559 = vrot.slane %v2558, 2
        %v2560 = vadd.f32 %v2558, %v2559
        %v2561 = vrot.slane %v2560, 1
        %v2562 = vadd.f32 %v2560, %v2561
        %v2563 = vrcp.pop %v2555
        %v2564 = vmul.f32 %v2555, %v2563
        %v2565 = vsub.f32 1.0, %v2564
        %v2566 = vmul.f32 %v2563, %v2565
        %v2567 = vadd.f32 %v2563, %v2566
        %vm2568 = vweird.f32 %v2555
        %vm2569 = vweird.f32 %v2563
        %vm2570 = vmor %vm2568, %vm2569
        %v2571 = vsel %vm2570, %v2563, %v2567
        %v2572 = vand.u32 2147483647, %v2555
        %vm2573 = vcmp.eq.f32.partialorder %v2572, 8.507059e+37
        %v2574 = vand.u32 %v2555, 2147483648
        %v2575 = vor.u32 1.1754944e-38, %v2574
        %v2576 = vsel %vm2573, %v2575, %v2571
        %v2577 = vmul.f32 %v2542, %v2576
        %v2578 = vrcp.pop %v2562
        %v2579 = vmul.f32 %v2562, %v2578
        %v2580 = vsub.f32 1.0, %v2579
        %v2581 = vmul.f32 %v2578, %v2580
        %v2582 = vadd.f32 %v2578, %v2581
        %vm2583 = vweird.f32 %v2562
        %vm2584 = vweird.f32 %v2578
        %vm2585 = vmor %vm2583, %vm2584
        %v2586 = vsel %vm2585, %v2578, %v2582
        %v2587 = vand.u32 2147483647, %v2562
        %vm2588 = vcmp.eq.f32.partialorder %v2587, 8.507059e+37
        %v2589 = vand.u32 %v2562, 2147483648
        %v2590 = vor.u32 1.1754944e-38, %v2589
        %v2591 = vsel %vm2588, %v2590, %v2586
        %v2592 = vmul.f32 %v2544, %v2591
        %v2593 = vmul.f32 %v2546, %v2576
        %v2594 = vmul.f32 %v2548, %v2591
        %v2595 = vpack.c.bf16 %v2593, %v2577
        %v2596 = vpack.c.bf16 %v2594, %v2592
        %v2597 = vpack.c.bf16 %v2477, %v2477
        %v2599 = vsel %vm1730, %v2597, 0
        %2601 = vmatpush.bf16.msra.mxu0 0
        %2602 = vmatpush.bf16.msra.mxu0 0
        %2603 = vmatpush.bf16.msra.mxu0 0
        %2604 = vmatpush.bf16.msra.mxu0 0
        %2605 = vmatpush.bf16.msra.mxu0 0
        %2606 = vmatpush.bf16.msra.mxu0 0
        %2607 = vmatpush.bf16.msra.mxu0 0
        %2608 = vmatpush.bf16.msra.mxu0 %v2595
        %2609 = vmatmul.bf16.gmra.mxu0 %v2599
        %v2610 = vpop.f32.mrf.mxu0
        %v2611 = vadd.f32 0.0, %v2610
        %v2612 = vpop.f32.mrf.mxu0
        %2613 = vdwg.mxu0
        %2614 = vmatpush.bf16.msra.mxu0 0
        %2615 = vmatpush.bf16.msra.mxu0 0
        %2616 = vmatpush.bf16.msra.mxu0 0
        %2617 = vmatpush.bf16.msra.mxu0 0
        %2618 = vmatpush.bf16.msra.mxu0 0
        %2619 = vmatpush.bf16.msra.mxu0 0
        %2620 = vmatpush.bf16.msra.mxu0 0
        %2621 = vmatpush.bf16.msra.mxu0 %v2596
        %2622 = vmatmul.bf16.gmra.mxu0 %v2599
        %v2623 = vpop.f32.mrf.mxu0
        %v2624 = vadd.f32 0.0, %v2623
        %v2625 = vpop.f32.mrf.mxu0
        %2626 = vdwg.mxu0
        %v2627 = vadd.f32 %v1744, %v1459
        %v2628 = vadd.f32 %v1757, %v1460
        %v2629 = vadd.f32 %v2033, %v1461
        %v2630 = vadd.f32 %v2046, %v1462
        %v2631 = vadd.f32 %v2322, %v1463
        %v2632 = vadd.f32 %v2335, %v1464
        %v2633 = vadd.f32 %v2611, %v1465
        %v2634 = vadd.f32 %v2624, %v1466
        %v2635 = vpack.c.bf16 %v2629, %v2627
        %v2636 = vpack.c.bf16 %v2630, %v2628
        %v2637 = vpack.c.bf16 %v2633, %v2631
        %v2638 = vpack.c.bf16 %v2634, %v2632
        %v2639 = vld [vmem:[#allocation10] sm:$0xf]
        %v2640 = vld [vmem:[#allocation10 + $0x4] sm:$0xf]
        %v2641 = vld [vmem:[#allocation10 + $0x8] sm:$0xf]
        %v2642 = vld [vmem:[#allocation10 + $0xc] sm:$0xf]
        %2643 = vset.pattern.permute.xlu0 4
        %2644 = vperm.xlu0 %2643, %v519
        %v2645 = vpop.permute.xlu0 %2644
        %2647 = vset.pattern.permute.xlu0 4
        %2648 = vperm.xlu0 %2647, %v520
        %v2649 = vpop.permute.xlu0 %2648
        %2651 = vset.pattern.permute.xlu0 4
        %2652 = vperm.xlu0 %2651, %v521
        %v2653 = vpop.permute.xlu0 %2652
        %2655 = vset.pattern.permute.xlu0 4
        %2656 = vperm.xlu0 %2655, %v522
        %v2657 = vpop.permute.xlu0 %2656
        %v2663 = vunpack.c.l.b16 %v2639
        %v2664 = vunpack.c.l.b16 %v2640
        %v2665 = vunpack.c.l.b16 %v2641
        %v2666 = vunpack.c.l.b16 %v2642
        %v2667 = vpack.c.b16 %v2664, %v2663
        %v2668 = vpack.c.b16 %v2666, %v2665
        %v2670 = vsel %vm557, %v2667, 0
        %v2673 = vsel %vm557, %v2668, 0
        %2675 = vmatpush.bf16.msra.mxu0 0
        %2676 = vmatpush.bf16.msra.mxu0 0
        %2677 = vmatpush.bf16.msra.mxu0 0
        %2678 = vmatpush.bf16.msra.mxu0 0
        %2679 = vmatpush.bf16.msra.mxu0 0
        %2680 = vmatpush.bf16.msra.mxu0 0
        %2681 = vmatpush.bf16.msra.mxu0 %v2637
        %2682 = vmatpush.bf16.msra.mxu0 %v2635
        %2683 = vmatmul.bf16.gmra.mxu0 %v2670
        %v2684 = vpop.f32.mrf.mxu0
        %v2685 = vadd.f32 %v2645, %v2684
        %v2686 = vpop.f32.mrf.mxu0
        %v2687 = vadd.f32 %v2649, %v2686
        %2688 = vmatmul.bf16.gmra.mxu0 %v2673
        %v2689 = vpop.f32.mrf.mxu0
        %v2690 = vadd.f32 %v2653, %v2689
        %v2691 = vpop.f32.mrf.mxu0
        %v2692 = vadd.f32 %v2657, %v2691
        %2693 = vdwg.mxu0
        %2694 = vmatpush.bf16.msra.mxu0 0
        %2695 = vmatpush.bf16.msra.mxu0 0
        %2696 = vmatpush.bf16.msra.mxu0 0
        %2697 = vmatpush.bf16.msra.mxu0 0
        %2698 = vmatpush.bf16.msra.mxu0 0
        %2699 = vmatpush.bf16.msra.mxu0 0
        %2700 = vmatpush.bf16.msra.mxu0 %v2638
        %2701 = vmatpush.bf16.msra.mxu0 %v2636
        %2702 = vmatmul.bf16.gmra.mxu0 %v2670
        %v2703 = vpop.f32.mrf.mxu0
        %v2704 = vadd.f32 %v2645, %v2703
        %v2705 = vpop.f32.mrf.mxu0
        %v2706 = vadd.f32 %v2649, %v2705
        %2707 = vmatmul.bf16.gmra.mxu0 %v2673
        %v2708 = vpop.f32.mrf.mxu0
        %v2709 = vadd.f32 %v2653, %v2708
        %v2710 = vpop.f32.mrf.mxu0
        %v2711 = vadd.f32 %v2657, %v2710
        %2712 = vdwg.mxu0
        %v2713 = vxor.u32 %v2685, 2147483648
        %v2714 = vxor.u32 %v2704, 2147483648
        %v2715 = vxor.u32 %v2687, 2147483648
        %v2716 = vxor.u32 %v2706, 2147483648
        %v2717 = vxor.u32 %v2690, 2147483648
        %v2718 = vxor.u32 %v2709, 2147483648
        %v2719 = vxor.u32 %v2692, 2147483648
        %v2720 = vxor.u32 %v2711, 2147483648
        %v2721 = vmul.f32 %v2713, 1.442695
        %v2722 = vpow.pop %v2721
        %v2723 = vmul.f32 %v2714, 1.442695
        %v2724 = vpow.pop %v2723
        %v2725 = vmul.f32 %v2715, 1.442695
        %v2726 = vpow.pop %v2725
        %v2727 = vmul.f32 %v2716, 1.442695
        %v2728 = vpow.pop %v2727
        %v2729 = vmul.f32 %v2717, 1.442695
        %v2730 = vpow.pop %v2729
        %v2731 = vmul.f32 %v2718, 1.442695
        %v2732 = vpow.pop %v2731
        %v2733 = vmul.f32 %v2719, 1.442695
        %v2734 = vpow.pop %v2733
        %v2735 = vmul.f32 %v2720, 1.442695
        %v2736 = vpow.pop %v2735
        %v2737 = vadd.f32 %v2722, 1.0
        %v2738 = vadd.f32 %v2724, 1.0
        %v2739 = vadd.f32 %v2726, 1.0
        %v2740 = vadd.f32 %v2728, 1.0
        %v2741 = vadd.f32 %v2730, 1.0
        %v2742 = vadd.f32 %v2732, 1.0
        %v2743 = vadd.f32 %v2734, 1.0
        %v2744 = vadd.f32 %v2736, 1.0
        %v2745 = vrcp.pop %v2737
        %v2746 = vmul.f32 %v2737, %v2745
        %v2747 = vsub.f32 1.0, %v2746
        %v2748 = vmul.f32 %v2745, %v2747
        %v2749 = vadd.f32 %v2745, %v2748
        %vm2750 = vweird.f32 %v2737
        %vm2751 = vweird.f32 %v2745
        %vm2752 = vmor %vm2750, %vm2751
        %v2753 = vsel %vm2752, %v2745, %v2749
        %v2754 = vand.u32 2147483647, %v2737
        %vm2755 = vcmp.eq.f32.partialorder %v2754, 8.507059e+37
        %v2756 = vand.u32 %v2737, 2147483648
        %v2757 = vor.u32 1.1754944e-38, %v2756
        %v2758 = vsel %vm2755, %v2757, %v2753
        %v2759 = vmul.f32 1.0, %v2758
        %v2760 = vrcp.pop %v2738
        %v2761 = vmul.f32 %v2738, %v2760
        %v2762 = vsub.f32 1.0, %v2761
        %v2763 = vmul.f32 %v2760, %v2762
        %v2764 = vadd.f32 %v2760, %v2763
        %vm2765 = vweird.f32 %v2738
        %vm2766 = vweird.f32 %v2760
        %vm2767 = vmor %vm2765, %vm2766
        %v2768 = vsel %vm2767, %v2760, %v2764
        %v2769 = vand.u32 2147483647, %v2738
        %vm2770 = vcmp.eq.f32.partialorder %v2769, 8.507059e+37
        %v2771 = vand.u32 %v2738, 2147483648
        %v2772 = vor.u32 1.1754944e-38, %v2771
        %v2773 = vsel %vm2770, %v2772, %v2768
        %v2774 = vmul.f32 1.0, %v2773
        %v2775 = vrcp.pop %v2739
        %v2776 = vmul.f32 %v2739, %v2775
        %v2777 = vsub.f32 1.0, %v2776
        %v2778 = vmul.f32 %v2775, %v2777
        %v2779 = vadd.f32 %v2775, %v2778
        %vm2780 = vweird.f32 %v2739
        %vm2781 = vweird.f32 %v2775
        %vm2782 = vmor %vm2780, %vm2781
        %v2783 = vsel %vm2782, %v2775, %v2779
        %v2784 = vand.u32 2147483647, %v2739
        %vm2785 = vcmp.eq.f32.partialorder %v2784, 8.507059e+37
        %v2786 = vand.u32 %v2739, 2147483648
        %v2787 = vor.u32 1.1754944e-38, %v2786
        %v2788 = vsel %vm2785, %v2787, %v2783
        %v2789 = vmul.f32 1.0, %v2788
        %v2790 = vrcp.pop %v2740
        %v2791 = vmul.f32 %v2740, %v2790
        %v2792 = vsub.f32 1.0, %v2791
        %v2793 = vmul.f32 %v2790, %v2792
        %v2794 = vadd.f32 %v2790, %v2793
        %vm2795 = vweird.f32 %v2740
        %vm2796 = vweird.f32 %v2790
        %vm2797 = vmor %vm2795, %vm2796
        %v2798 = vsel %vm2797, %v2790, %v2794
        %v2799 = vand.u32 2147483647, %v2740
        %vm2800 = vcmp.eq.f32.partialorder %v2799, 8.507059e+37
        %v2801 = vand.u32 %v2740, 2147483648
        %v2802 = vor.u32 1.1754944e-38, %v2801
        %v2803 = vsel %vm2800, %v2802, %v2798
        %v2804 = vmul.f32 1.0, %v2803
        %v2805 = vrcp.pop %v2741
        %v2806 = vmul.f32 %v2741, %v2805
        %v2807 = vsub.f32 1.0, %v2806
        %v2808 = vmul.f32 %v2805, %v2807
        %v2809 = vadd.f32 %v2805, %v2808
        %vm2810 = vweird.f32 %v2741
        %vm2811 = vweird.f32 %v2805
        %vm2812 = vmor %vm2810, %vm2811
        %v2813 = vsel %vm2812, %v2805, %v2809
        %v2814 = vand.u32 2147483647, %v2741
        %vm2815 = vcmp.eq.f32.partialorder %v2814, 8.507059e+37
        %v2816 = vand.u32 %v2741, 2147483648
        %v2817 = vor.u32 1.1754944e-38, %v2816
        %v2818 = vsel %vm2815, %v2817, %v2813
        %v2819 = vmul.f32 1.0, %v2818
        %v2820 = vrcp.pop %v2742
        %v2821 = vmul.f32 %v2742, %v2820
        %v2822 = vsub.f32 1.0, %v2821
        %v2823 = vmul.f32 %v2820, %v2822
        %v2824 = vadd.f32 %v2820, %v2823
        %vm2825 = vweird.f32 %v2742
        %vm2826 = vweird.f32 %v2820
        %vm2827 = vmor %vm2825, %vm2826
        %v2828 = vsel %vm2827, %v2820, %v2824
        %v2829 = vand.u32 2147483647, %v2742
        %vm2830 = vcmp.eq.f32.partialorder %v2829, 8.507059e+37
        %v2831 = vand.u32 %v2742, 2147483648
        %v2832 = vor.u32 1.1754944e-38, %v2831
        %v2833 = vsel %vm2830, %v2832, %v2828
        %v2834 = vmul.f32 1.0, %v2833
        %v2835 = vrcp.pop %v2743
        %v2836 = vmul.f32 %v2743, %v2835
        %v2837 = vsub.f32 1.0, %v2836
        %v2838 = vmul.f32 %v2835, %v2837
        %v2839 = vadd.f32 %v2835, %v2838
        %vm2840 = vweird.f32 %v2743
        %vm2841 = vweird.f32 %v2835
        %vm2842 = vmor %vm2840, %vm2841
        %v2843 = vsel %vm2842, %v2835, %v2839
        %v2844 = vand.u32 2147483647, %v2743
        %vm2845 = vcmp.eq.f32.partialorder %v2844, 8.507059e+37
        %v2846 = vand.u32 %v2743, 2147483648
        %v2847 = vor.u32 1.1754944e-38, %v2846
        %v2848 = vsel %vm2845, %v2847, %v2843
        %v2849 = vmul.f32 1.0, %v2848
        %v2850 = vrcp.pop %v2744
        %v2851 = vmul.f32 %v2744, %v2850
        %v2852 = vsub.f32 1.0, %v2851
        %v2853 = vmul.f32 %v2850, %v2852
        %v2854 = vadd.f32 %v2850, %v2853
        %vm2855 = vweird.f32 %v2744
        %vm2856 = vweird.f32 %v2850
        %vm2857 = vmor %vm2855, %vm2856
        %v2858 = vsel %vm2857, %v2850, %v2854
        %v2859 = vand.u32 2147483647, %v2744
        %vm2860 = vcmp.eq.f32.partialorder %v2859, 8.507059e+37
        %v2861 = vand.u32 %v2744, 2147483648
        %v2862 = vor.u32 1.1754944e-38, %v2861
        %v2863 = vsel %vm2860, %v2862, %v2858
        %v2864 = vmul.f32 1.0, %v2863
        %v2865 = vmul.f32 %v507, %v2759
        %v2866 = vmul.f32 %v508, %v2774
        %v2867 = vmul.f32 %v509, %v2789
        %v2868 = vmul.f32 %v510, %v2804
        %v2869 = vmul.f32 %v511, %v2819
        %v2870 = vmul.f32 %v512, %v2834
        %v2871 = vmul.f32 %v513, %v2849
        %v2872 = vmul.f32 %v514, %v2864
        %2873 = vst [vmem:[%s505] sm:$0xff] %v2865
        %2874 = vst [vmem:[%s505 + $0x8] sm:$0xff] %v2866
        %2875 = vst [vmem:[%s505 + $0x10] sm:$0xff] %v2867
        %2876 = vst [vmem:[%s505 + $0x18] sm:$0xff] %v2868
        %2877 = vst [vmem:[%s505 + $0x20] sm:$0xff] %v2869
        %2878 = vst [vmem:[%s505 + $0x28] sm:$0xff] %v2870
        %2879 = vst [vmem:[%s505 + $0x30] sm:$0xff] %v2871
        %2880 = vst [vmem:[%s505 + $0x38] sm:$0xff] %v2872
        %s2881 = sand.u32 %s275, 1
        %s2882 = scalar_lea.sflag [#allocation4], %s2881
        %s2883 = sand.u32 %s275, 1
        %s2884 = smul.addr %s2883, 64
        %s2885 = scalar_lea.vmem [#allocation14], %s2884
        // Predicated region
        $region93: #{tpu_custom_call.1} parent=63 // pred_check
          %p2886 = pneg %p285
        $region94: #{tpu_custom_call.1} parent=63 // pred_check_branch
          %2888 = sbr.rel (%p2886) target = $region96
        $region95: #{tpu_custom_call.1} parent=63 // pred_region
          %2890 = vsyncadd %s2882, 0
          %s2891 = smul.addr %s31, 8
          %s2892 = smul.addr %s2891, 8
          %s2893 = scalar_lea.hbm %s11, %s2892
          %s2894 = sshll.u32 %s2885, 4
          %s2895 = int_to_ptr.vmem [resolvable:$true] %s2894
          %s2896 = sshll.u32 %s2893, 4
          %s2897 = int_to_ptr.hbm [resolvable:$true] %s2896
          %2902 = dma.vmem_to_hbm [thread:$0]  %s2895, 1024, %s2897, %s2882, 256, 256, 16
        $region96: #{tpu_custom_call.1} parent=63 // pred_fallthru
          _
      $region64: #{tpu_custom_call.1} parent=5 // pred_fallthru
        _
      %p2903 = scmp.le.s32.totalorder 2, %s26
      // Predicated region
      $region97: #{tpu_custom_call.1} parent=5 // pred_check
        %p2904 = pneg %p2903
      $region98: #{tpu_custom_call.1} parent=5 // pred_check_branch
        %2906 = sbr.rel (%p2904) target = $region100
      $region99: #{tpu_custom_call.1} parent=5 // pred_region
        %s2907 = ssub.s32 %s26, 2
        // Predicated region
        $region101: #{tpu_custom_call.1} parent=99 // pred_check
          %p2908 = pneg %p291
        $region102: #{tpu_custom_call.1} parent=99 // pred_check_branch
          %2910 = sbr.rel (%p2908) target = $region104
        $region103: #{tpu_custom_call.1} parent=99 // pred_region
          %s2911 = sand.u32 %s276, 1
          %s2912 = scalar_lea.sflag [#allocation4], %s2911
          %s2913 = sand.u32 %s276, 1
          %s2914 = smul.addr %s2913, 64
          %s2915 = scalar_lea.vmem [#allocation14], %s2914
          %2917 = dma.done %s2912, 1024
        $region104: #{tpu_custom_call.1} parent=99 // pred_fallthru
          _
      $region100: #{tpu_custom_call.1} parent=5 // pred_fallthru
        _
    $region6: #{tpu_custom_call.1} parent=1 // loop_footer
      %s30 = sadd.s32 1, %s26
    $region7: #{tpu_custom_call.1} parent=1 // loop_footer_branch
      %25 = sbr.rel target = $region3
    $region8: #{tpu_custom_call.1} parent=1 // loop_exit
      _
    %2918 = vsyncpa [#allocation3], 1
    %s2919 = scalar_lea.sflag [#allocation3], 1
    %2920 = vsyncpa %s2919, 1
    %2921 = vsyncpa [#allocation6], 1
    %2922 = vsyncpa [#allocation9], 1
    %2923 = vsyncpa [#allocation12], 1
    %2924 = vsyncpa [#allocation4], 1
    %s2925 = scalar_lea.sflag [#allocation4], 1
    %2926 = vsyncpa %s2925, 1

</llo_original>
